<compile_context>
chip_gen: v6e
topology: v6e:2x2x1
jax: 0.10.0
libtpu: 0.0.40
codegen_flags: <defaults>
</compile_context>

<pallas_src>
import math
from functools import partial

import jax
import jax.numpy as jnp
import numpy as np
from jax import lax
from jax.experimental import pallas as pl
from jax.experimental.pallas import tpu as pltpu

# ---- hyperparameters (mirror the PyTorch module) ----
N_EMBD = 32
BLOCK_SIZE = 8
N_HEAD = 4
N_LAYER = 4
VOCAB_SIZE = 65          # synthetic char vocab (the `text` corpus is not given)
V_PAD = 128              # lane-dense padded lm_head width (>= VOCAB_SIZE)
HEAD_DIM = N_EMBD // N_HEAD
LN_EPS = 1e-5            # torch.nn.LayerNorm default
NEG_INF = -1e30          # large finite negative bias (cheaper than -inf select)

assert V_PAD == 4 * N_EMBD  # bias128 slab packs b_fc1 rows and the padded b_lm row


# ----------------------------- Pallas kernel --------------------------------
def _layer_norm(x, g, b):
    mu = jnp.mean(x, axis=-1, keepdims=True)
    var = jnp.mean((x - mu) ** 2, axis=-1, keepdims=True)
    return (x - mu) * lax.rsqrt(var + LN_EPS) * g + b


def _gelu_exact(x):
    # nn.GELU() default: exact erf formulation (kept for PyTorch parity)
    return 0.5 * x * (1.0 + lax.erf(x * (1.0 / math.sqrt(2.0))))


def gpt2_kernel(x_ref, ln_ref, wqkv_ref, wproj_ref, wfc1_ref, wfc2_ref,
                b128_ref, wlm_ref, out_ref, *, seq_len):
    x = x_ref[...]                                   # (B*T, C) flattened activations
    bt = x_ref.shape[0]

    # Block-diagonal + causal additive mask (0 / -1e30), built in-kernel (no DMA,
    # does not grow a quadratic HBM input if the batch ever scales).
    rows = lax.broadcasted_iota(jnp.int32, (bt, bt), 0)
    cols = lax.broadcasted_iota(jnp.int32, (bt, bt), 1)
    if seq_len & (seq_len - 1) == 0:                 # power-of-two seq: cheap bit trick
        same_seq = (rows & (-seq_len)) == (cols & (-seq_len))
    else:
        same_seq = (rows // seq_len) == (cols // seq_len)
    bias = jnp.where(same_seq & (cols <= rows), 0.0, NEG_INF).astype(jnp.float32)

    for l in range(N_LAYER):
        lnp = ln_ref[l]                              # (5, C): ln1_g ln1_b ln2_g ln2_b b_fc2
        ln1_g, ln1_b = lnp[0:1], lnp[1:2]
        ln2_g, ln2_b = lnp[2:3], lnp[3:4]
        b_fc2 = lnp[4:5]

        # ---------- attention: x += sum_h softmax(q_h k_h^T + bias) v_h @ W_proj_h
        xn = _layer_norm(x, ln1_g, ln1_b)
        for h in range(N_HEAD):
            q = jnp.dot(xn, wqkv_ref[l, 0 * N_HEAD + h],     # 1/sqrt(d) folded in
                        preferred_element_type=jnp.float32)              # (BT, Hd)
            k = jnp.dot(xn, wqkv_ref[l, 1 * N_HEAD + h],
                        preferred_element_type=jnp.float32)
            v = jnp.dot(xn, wqkv_ref[l, 2 * N_HEAD + h],
                        preferred_element_type=jnp.float32)
            s = lax.dot_general(q, k, (((1,), (1,)), ((), ())),
                                preferred_element_type=jnp.float32) + bias  # (BT, BT)
            s = s - jnp.max(s, axis=-1, keepdims=True)        # keep for robustness
            p = jnp.exp(s)
            p = p * pl.reciprocal(jnp.sum(p, axis=-1, keepdims=True), approx=True)
            pv = jnp.dot(p, v, preferred_element_type=jnp.float32)          # (BT, Hd)
            # per-head output projection accumulated straight into the residual
            x = x + jnp.dot(pv, wproj_ref[l, h],
                            preferred_element_type=jnp.float32)             # (BT, C)

        # ---------- MLP: x += W2 gelu(W1 ln_2(x) + b1) + b2
        xn = _layer_norm(x, ln2_g, ln2_b)
        h1 = jnp.dot(xn, wfc1_ref[l],
                     preferred_element_type=jnp.float32) + b128_ref[l:l + 1, :]
        h1 = _gelu_exact(h1)
        x = x + jnp.dot(h1, wfc2_ref[l],
                        preferred_element_type=jnp.float32) + b_fc2

    # ---------- lm head: lane-dense (128-wide) output -> unmasked stores
    out_ref[...] = (jnp.dot(x, wlm_ref[...], preferred_element_type=jnp.float32)
                    + b128_ref[N_LAYER:N_LAYER + 1, :])


# ------------------------------- wrapper -------------------------------------
def pack_params(p):
    """Repack PyTorch-style params into the kernel's consolidated layout (host-side, once)."""
    scale = 1.0 / math.sqrt(HEAD_DIM)
    # per-head Q/K/V weights, head on a leading axis; fold score scale into Q
    w_qkv = p["w_attn"].reshape(N_LAYER, N_EMBD, 3, N_HEAD, HEAD_DIM)
    w_qkv = jnp.transpose(w_qkv, (0, 2, 3, 1, 4))               # (L, 3, H, C, Hd)
    w_qkv = w_qkv.at[:, 0].multiply(scale)
    w_qkv = w_qkv.reshape(N_LAYER, 3 * N_HEAD, N_EMBD, HEAD_DIM)
    # per-head output-projection blocks
    w_proj_h = p["w_proj"].reshape(N_LAYER, N_HEAD, HEAD_DIM, N_EMBD)
    # tiny per-layer vectors packed into one slab (leading-dim indexed in-kernel)
    ln_slab = jnp.stack([p["ln1_g"], p["ln1_b"], p["ln2_g"], p["ln2_b"], p["b_fc2"]],
                        axis=1)                                  # (L, 5, C)
    # 128-wide biases: rows 0..L-1 = b_fc1, row L = padded b_lm
    b_lm_pad = jnp.zeros((V_PAD,), jnp.float32).at[:VOCAB_SIZE].set(p["b_lm"])
    bias128 = jnp.concatenate([p["b_fc1"], b_lm_pad[None]], axis=0)   # (L+1, 128)
    # lane-padded lm head (padding columns exactly zero)
    w_lm_pad = jnp.zeros((N_EMBD, V_PAD), jnp.float32).at[:, :VOCAB_SIZE].set(p["w_lm"])
    return {
        "ln_slab": ln_slab, "w_qkv": w_qkv, "w_proj_h": w_proj_h,
        "w_fc1": p["w_fc1"], "w_fc2": p["w_fc2"],
        "bias128": bias128, "w_lm_pad": w_lm_pad,
        "tok_emb": p["tok_emb"], "pos_emb": p["pos_emb"],
    }


def gpt2_forward(idx, kp):
    """idx: int32 (B, T) token ids; kp: packed kernel params.  Returns (B, T, VOCAB_SIZE)."""
    B, T = idx.shape
    # embedding gathers (glue, outside the kernel)
    tok = kp["tok_emb"][idx]                         # (B, T, C)
    pos = kp["pos_emb"][:T]                          # (T, C)
    x = (tok + pos[None]).astype(jnp.float32).reshape(B * T, N_EMBD)

    vmem = pl.BlockSpec(memory_space=pltpu.MemorySpace.VMEM)
    args = (x, kp["ln_slab"], kp["w_qkv"], kp["w_proj_h"],
            kp["w_fc1"], kp["w_fc2"], kp["bias128"], kp["w_lm_pad"])

    logits_flat = pl.pallas_call(
        partial(gpt2_kernel, seq_len=T),
        out_shape=jax.ShapeDtypeStruct((B * T, V_PAD), jnp.float32),
        in_specs=[vmem] * len(args),
        out_specs=vmem,
    )(*args)

    # drop the lane padding and restore (B, T, V)
    return logits_flat[:, :VOCAB_SIZE].reshape(B, T, VOCAB_SIZE)
    # TODO(synk): cross-entropy loss path (targets != None) and generate() sampling
    # are host-side glue, not part of the kernel.


# --------------------------- parameter construction --------------------------
def make_params(key):
    ks = jax.random.split(key, 10)

    def w(k, shape):
        return 0.02 * jax.random.normal(k, shape, jnp.float32)

    return {
        # LayerNorm params (PyTorch default init: gamma=1, beta=0)
        "ln1_g": jnp.ones((N_LAYER, N_EMBD), jnp.float32),
        "ln1_b": jnp.zeros((N_LAYER, N_EMBD), jnp.float32),
        "ln2_g": jnp.ones((N_LAYER, N_EMBD), jnp.float32),
        "ln2_b": jnp.zeros((N_LAYER, N_EMBD), jnp.float32),
        # attention (weights stored pre-transposed: (in, out); Linear bias=False)
        "w_attn": w(ks[0], (N_LAYER, N_EMBD, 3 * N_EMBD)),
        "w_proj": w(ks[1], (N_LAYER, N_EMBD, N_EMBD)),
        # feed-forward (Linear bias=True)
        "w_fc1": w(ks[2], (N_LAYER, N_EMBD, 4 * N_EMBD)),
        "b_fc1": w(ks[3], (N_LAYER, 4 * N_EMBD)),
        "w_fc2": w(ks[4], (N_LAYER, 4 * N_EMBD, N_EMBD)),
        "b_fc2": w(ks[5], (N_LAYER, N_EMBD)),
        # lm head (bias=True)
        "w_lm": w(ks[6], (N_EMBD, VOCAB_SIZE)),
        "b_lm": w(ks[7], (VOCAB_SIZE,)),
        # embedding tables
        "tok_emb": w(ks[8], (VOCAB_SIZE, N_EMBD)),
        "pos_emb": w(ks[9], (BLOCK_SIZE, N_EMBD)),
    }


# --------------------------- pure-JAX reference -------------------------------
def ref_forward(idx, p):
    def ln(xx, g, b):
        mu = xx.mean(-1, keepdims=True)
        var = ((xx - mu) ** 2).mean(-1, keepdims=True)
        return (xx - mu) / jnp.sqrt(var + LN_EPS) * g + b

    def one(x):
        T = x.shape[0]
        causal = jnp.tril(jnp.ones((T, T), bool))
        for l in range(N_LAYER):
            xn = ln(x, p["ln1_g"][l], p["ln1_b"][l])
            qkv = xn @ p["w_attn"][l]
            q, k, v = jnp.split(qkv, 3, axis=-1)
            outs = []
            for h in range(N_HEAD):
                sl = slice(h * HEAD_DIM, (h + 1) * HEAD_DIM)
                s = (q[:, sl] @ k[:, sl].T) / math.sqrt(HEAD_DIM)
                s = jnp.where(causal, s, -jnp.inf)
                outs.append(jax.nn.softmax(s, axis=-1) @ v[:, sl])
            x = x + jnp.concatenate(outs, -1) @ p["w_proj"][l]
            xn = ln(x, p["ln2_g"][l], p["ln2_b"][l])
            h1 = jax.nn.gelu(xn @ p["w_fc1"][l] + p["b_fc1"][l], approximate=False)
            x = x + h1 @ p["w_fc2"][l] + p["b_fc2"][l]
        return x @ p["w_lm"] + p["b_lm"]

    tok = p["tok_emb"][idx]
    pos = p["pos_emb"][: idx.shape[1]]
    return jax.vmap(one)(tok + pos[None])


# ------------------------------------ main ------------------------------------
if __name__ == "__main__":
    key = jax.random.PRNGKey(0)
    pkey, ikey = jax.random.split(key)
    params = make_params(pkey)
    kparams = pack_params(params)                    # host-side repack, done once

    B, T = 2, BLOCK_SIZE
    idx = jax.random.randint(ikey, (B, T), 0, VOCAB_SIZE, dtype=jnp.int32)

    logits = gpt2_forward(idx, kparams)
    logits = jax.block_until_ready(logits)

    ref = jax.block_until_ready(ref_forward(idx, params))
    # tolerance 1e-3: softmax denominator uses the EUP approximate reciprocal.
    np.testing.assert_allclose(np.asarray(logits), np.asarray(ref),
                               rtol=1e-3, atol=1e-3)
    assert logits.shape == (B, T, VOCAB_SIZE)

    print("KERNEL_OK")
</pallas_src>

<mosaic_0001>
module attributes {stable_mosaic.version = 11 : i64} {
  func.func @gpt2_kernel(%arg0: memref<16x32xf32, #tpu.memory_space<vmem>>, %arg1: memref<4x5x32xf32, #tpu.memory_space<vmem>>, %arg2: memref<4x12x32x8xf32, #tpu.memory_space<vmem>>, %arg3: memref<4x4x8x32xf32, #tpu.memory_space<vmem>>, %arg4: memref<4x32x128xf32, #tpu.memory_space<vmem>>, %arg5: memref<4x128x32xf32, #tpu.memory_space<vmem>>, %arg6: memref<5x128xf32, #tpu.memory_space<vmem>>, %arg7: memref<32x128xf32, #tpu.memory_space<vmem>>, %arg8: memref<16x128xf32, #tpu.memory_space<vmem>>) attributes {dimension_semantics = [], scalar_prefetch = 0 : i64, scratch_operands = 0 : i64, tpu.core_type = #tpu.core_type<tc>} {
    %c0 = arith.constant 0 : index
    %c0_0 = arith.constant 0 : index
    %0 = vector.load %arg0[%c0, %c0_0] : memref<16x32xf32, #tpu.memory_space<vmem>>, vector<16x32xf32>
    %1 = tpu.iota {dimensions = array<i32: 0>} : vector<16x16xi32>
    %2 = tpu.iota {dimensions = array<i32: 1>} : vector<16x16xi32>
    %c-8_i32 = arith.constant -8 : i32
    %3 = vector.broadcast %c-8_i32 : i32 to vector<16x16xi32>
    %4 = arith.andi %1, %3 : vector<16x16xi32>
    %c-8_i32_1 = arith.constant -8 : i32
    %5 = vector.broadcast %c-8_i32_1 : i32 to vector<16x16xi32>
    %6 = arith.andi %2, %5 : vector<16x16xi32>
    %7 = arith.cmpi eq, %4, %6 : vector<16x16xi32>
    %8 = arith.cmpi sle, %2, %1 : vector<16x16xi32>
    %9 = arith.andi %7, %8 : vector<16x16xi1>
    %cst = arith.constant 0.000000e+00 : f32
    %cst_2 = arith.constant -1.000000e+30 : f32
    %10 = vector.broadcast %cst : f32 to vector<16x16xf32>
    %11 = vector.broadcast %cst_2 : f32 to vector<16x16xf32>
    %12 = arith.select %9, %10, %11 : vector<16x16xi1>, vector<16x16xf32>
    %c0_3 = arith.constant 0 : index
    %c0_4 = arith.constant 0 : index
    %c0_5 = arith.constant 0 : index
    %13 = vector.load %arg1[%c0_3, %c0_4, %c0_5] : memref<4x5x32xf32, #tpu.memory_space<vmem>>, vector<1x5x32xf32>
    %14 = vector.shape_cast %13 : vector<1x5x32xf32> to vector<5x32xf32>
    %15 = vector.extract_strided_slice %14 {offsets = [0, 0], sizes = [1, 32], strides = [1, 1]} : vector<5x32xf32> to vector<1x32xf32>
    %16 = vector.extract_strided_slice %14 {offsets = [1, 0], sizes = [1, 32], strides = [1, 1]} : vector<5x32xf32> to vector<1x32xf32>
    %17 = vector.extract_strided_slice %14 {offsets = [2, 0], sizes = [1, 32], strides = [1, 1]} : vector<5x32xf32> to vector<1x32xf32>
    %18 = vector.extract_strided_slice %14 {offsets = [3, 0], sizes = [1, 32], strides = [1, 1]} : vector<5x32xf32> to vector<1x32xf32>
    %19 = vector.extract_strided_slice %14 {offsets = [4, 0], sizes = [1, 32], strides = [1, 1]} : vector<5x32xf32> to vector<1x32xf32>
    %cst_6 = arith.constant dense<0.000000e+00> : vector<16xf32>
    %20 = vector.multi_reduction <add>, %0, %cst_6 [1] : vector<16x32xf32> to vector<16xf32>
    %21 = vector.shape_cast %20 : vector<16xf32> to vector<16x1xf32>
    %cst_7 = arith.constant 3.200000e+01 : f32
    %22 = vector.broadcast %cst_7 : f32 to vector<16x1xf32>
    %23 = arith.divf %21, %22 : vector<16x1xf32>
    %24 = vector.broadcast %23 : vector<16x1xf32> to vector<16x32xf32>
    %25 = arith.subf %0, %24 : vector<16x32xf32>
    %26 = arith.mulf %25, %25 : vector<16x32xf32>
    %cst_8 = arith.constant dense<0.000000e+00> : vector<16xf32>
    %27 = vector.multi_reduction <add>, %26, %cst_8 [1] : vector<16x32xf32> to vector<16xf32>
    %28 = vector.shape_cast %27 : vector<16xf32> to vector<16x1xf32>
    %cst_9 = arith.constant 3.200000e+01 : f32
    %29 = vector.broadcast %cst_9 : f32 to vector<16x1xf32>
    %30 = arith.divf %28, %29 : vector<16x1xf32>
    %31 = vector.broadcast %23 : vector<16x1xf32> to vector<16x32xf32>
    %32 = arith.subf %0, %31 : vector<16x32xf32>
    %cst_10 = arith.constant 9.99999974E-6 : f32
    %33 = vector.broadcast %cst_10 : f32 to vector<16x1xf32>
    %34 = arith.addf %30, %33 : vector<16x1xf32>
    %35 = math.rsqrt %34 : vector<16x1xf32>
    %36 = vector.broadcast %35 : vector<16x1xf32> to vector<16x32xf32>
    %37 = arith.mulf %32, %36 : vector<16x32xf32>
    %38 = vector.broadcast %15 : vector<1x32xf32> to vector<16x32xf32>
    %39 = arith.mulf %37, %38 : vector<16x32xf32>
    %40 = vector.broadcast %16 : vector<1x32xf32> to vector<16x32xf32>
    %41 = arith.addf %39, %40 : vector<16x32xf32>
    %c0_11 = arith.constant 0 : index
    %c0_12 = arith.constant 0 : index
    %c0_13 = arith.constant 0 : index
    %c0_14 = arith.constant 0 : index
    %42 = vector.load %arg2[%c0_11, %c0_12, %c0_13, %c0_14] : memref<4x12x32x8xf32, #tpu.memory_space<vmem>>, vector<1x1x32x8xf32>
    %43 = vector.shape_cast %42 : vector<1x1x32x8xf32> to vector<32x8xf32>
    %cst_15 = arith.constant dense<0.000000e+00> : vector<16x8xf32>
    %44 = tpu.matmul %41, %43, %cst_15 {dimension_numbers = #tpu.dot_dimension_numbers<[1], [0], [0], [1], [0, 0, 1, 1], [], []>} : vector<16x32xf32>, vector<32x8xf32>, vector<16x8xf32> -> vector<16x8xf32>
    %c0_16 = arith.constant 0 : index
    %c4 = arith.constant 4 : index
    %c0_17 = arith.constant 0 : index
    %c0_18 = arith.constant 0 : index
    %45 = vector.load %arg2[%c0_16, %c4, %c0_17, %c0_18] : memref<4x12x32x8xf32, #tpu.memory_space<vmem>>, vector<1x1x32x8xf32>
    %46 = vector.shape_cast %45 : vector<1x1x32x8xf32> to vector<32x8xf32>
    %cst_19 = arith.constant dense<0.000000e+00> : vector<16x8xf32>
    %47 = tpu.matmul %41, %46, %cst_19 {dimension_numbers = #tpu.dot_dimension_numbers<[1], [0], [0], [1], [0, 0, 1, 1], [], []>} : vector<16x32xf32>, vector<32x8xf32>, vector<16x8xf32> -> vector<16x8xf32>
    %c0_20 = arith.constant 0 : index
    %c8 = arith.constant 8 : index
    %c0_21 = arith.constant 0 : index
    %c0_22 = arith.constant 0 : index
    %48 = vector.load %arg2[%c0_20, %c8, %c0_21, %c0_22] : memref<4x12x32x8xf32, #tpu.memory_space<vmem>>, vector<1x1x32x8xf32>
    %49 = vector.shape_cast %48 : vector<1x1x32x8xf32> to vector<32x8xf32>
    %cst_23 = arith.constant dense<0.000000e+00> : vector<16x8xf32>
    %50 = tpu.matmul %41, %49, %cst_23 {dimension_numbers = #tpu.dot_dimension_numbers<[1], [0], [0], [1], [0, 0, 1, 1], [], []>} : vector<16x32xf32>, vector<32x8xf32>, vector<16x8xf32> -> vector<16x8xf32>
    %cst_24 = arith.constant dense<0.000000e+00> : vector<16x16xf32>
    %51 = tpu.matmul %44, %47, %cst_24 {dimension_numbers = #tpu.dot_dimension_numbers<[1], [1], [0], [0], [0, 0, 1, 0], [], []>} : vector<16x8xf32>, vector<16x8xf32>, vector<16x16xf32> -> vector<16x16xf32>
    %52 = arith.addf %51, %12 : vector<16x16xf32>
    %cst_25 = arith.constant dense<0xFF800000> : vector<16xf32>
    %53 = vector.multi_reduction <maximumf>, %52, %cst_25 [1] : vector<16x16xf32> to vector<16xf32>
    %54 = vector.shape_cast %53 : vector<16xf32> to vector<16x1xf32>
    %55 = vector.broadcast %54 : vector<16x1xf32> to vector<16x16xf32>
    %56 = arith.subf %52, %55 : vector<16x16xf32>
    %57 = math.exp %56 : vector<16x16xf32>
    %cst_26 = arith.constant dense<0.000000e+00> : vector<16xf32>
    %58 = vector.multi_reduction <add>, %57, %cst_26 [1] : vector<16x16xf32> to vector<16xf32>
    %59 = vector.shape_cast %58 : vector<16xf32> to vector<16x1xf32>
    %60 = tpu.reciprocal %59 {approx = true} : vector<16x1xf32> -> vector<16x1xf32>
    %61 = vector.broadcast %60 : vector<16x1xf32> to vector<16x16xf32>
    %62 = arith.mulf %57, %61 : vector<16x16xf32>
    %cst_27 = arith.constant dense<0.000000e+00> : vector<16x8xf32>
    %63 = tpu.matmul %62, %50, %cst_27 {dimension_numbers = #tpu.dot_dimension_numbers<[1], [0], [0], [1], [0, 0, 1, 1], [], []>} : vector<16x16xf32>, vector<16x8xf32>, vector<16x8xf32> -> vector<16x8xf32>
    %c0_28 = arith.constant 0 : index
    %c0_29 = arith.constant 0 : index
    %c0_30 = arith.constant 0 : index
    %c0_31 = arith.constant 0 : index
    %64 = vector.load %arg3[%c0_28, %c0_29, %c0_30, %c0_31] : memref<4x4x8x32xf32, #tpu.memory_space<vmem>>, vector<1x1x8x32xf32>
    %65 = vector.shape_cast %64 : vector<1x1x8x32xf32> to vector<8x32xf32>
    %cst_32 = arith.constant dense<0.000000e+00> : vector<16x32xf32>
    %66 = tpu.matmul %63, %65, %cst_32 {dimension_numbers = #tpu.dot_dimension_numbers<[1], [0], [0], [1], [0, 0, 1, 1], [], []>} : vector<16x8xf32>, vector<8x32xf32>, vector<16x32xf32> -> vector<16x32xf32>
    %67 = arith.addf %0, %66 : vector<16x32xf32>
    %c0_33 = arith.constant 0 : index
    %c1 = arith.constant 1 : index
    %c0_34 = arith.constant 0 : index
    %c0_35 = arith.constant 0 : index
    %68 = vector.load %arg2[%c0_33, %c1, %c0_34, %c0_35] : memref<4x12x32x8xf32, #tpu.memory_space<vmem>>, vector<1x1x32x8xf32>
    %69 = vector.shape_cast %68 : vector<1x1x32x8xf32> to vector<32x8xf32>
    %cst_36 = arith.constant dense<0.000000e+00> : vector<16x8xf32>
    %70 = tpu.matmul %41, %69, %cst_36 {dimension_numbers = #tpu.dot_dimension_numbers<[1], [0], [0], [1], [0, 0, 1, 1], [], []>} : vector<16x32xf32>, vector<32x8xf32>, vector<16x8xf32> -> vector<16x8xf32>
    %c0_37 = arith.constant 0 : index
    %c5 = arith.constant 5 : index
    %c0_38 = arith.constant 0 : index
    %c0_39 = arith.constant 0 : index
    %71 = vector.load %arg2[%c0_37, %c5, %c0_38, %c0_39] : memref<4x12x32x8xf32, #tpu.memory_space<vmem>>, vector<1x1x32x8xf32>
    %72 = vector.shape_cast %71 : vector<1x1x32x8xf32> to vector<32x8xf32>
    %cst_40 = arith.constant dense<0.000000e+00> : vector<16x8xf32>
    %73 = tpu.matmul %41, %72, %cst_40 {dimension_numbers = #tpu.dot_dimension_numbers<[1], [0], [0], [1], [0, 0, 1, 1], [], []>} : vector<16x32xf32>, vector<32x8xf32>, vector<16x8xf32> -> vector<16x8xf32>
    %c0_41 = arith.constant 0 : index
    %c9 = arith.constant 9 : index
    %c0_42 = arith.constant 0 : index
    %c0_43 = arith.constant 0 : index
    %74 = vector.load %arg2[%c0_41, %c9, %c0_42, %c0_43] : memref<4x12x32x8xf32, #tpu.memory_space<vmem>>, vector<1x1x32x8xf32>
    %75 = vector.shape_cast %74 : vector<1x1x32x8xf32> to vector<32x8xf32>
    %cst_44 = arith.constant dense<0.000000e+00> : vector<16x8xf32>
    %76 = tpu.matmul %41, %75, %cst_44 {dimension_numbers = #tpu.dot_dimension_numbers<[1], [0], [0], [1], [0, 0, 1, 1], [], []>} : vector<16x32xf32>, vector<32x8xf32>, vector<16x8xf32> -> vector<16x8xf32>
    %cst_45 = arith.constant dense<0.000000e+00> : vector<16x16xf32>
    %77 = tpu.matmul %70, %73, %cst_45 {dimension_numbers = #tpu.dot_dimension_numbers<[1], [1], [0], [0], [0, 0, 1, 0], [], []>} : vector<16x8xf32>, vector<16x8xf32>, vector<16x16xf32> -> vector<16x16xf32>
    %78 = arith.addf %77, %12 : vector<16x16xf32>
    %cst_46 = arith.constant dense<0xFF800000> : vector<16xf32>
    %79 = vector.multi_reduction <maximumf>, %78, %cst_46 [1] : vector<16x16xf32> to vector<16xf32>
    %80 = vector.shape_cast %79 : vector<16xf32> to vector<16x1xf32>
    %81 = vector.broadcast %80 : vector<16x1xf32> to vector<16x16xf32>
    %82 = arith.subf %78, %81 : vector<16x16xf32>
    %83 = math.exp %82 : vector<16x16xf32>
    %cst_47 = arith.constant dense<0.000000e+00> : vector<16xf32>
    %84 = vector.multi_reduction <add>, %83, %cst_47 [1] : vector<16x16xf32> to vector<16xf32>
    %85 = vector.shape_cast %84 : vector<16xf32> to vector<16x1xf32>
    %86 = tpu.reciprocal %85 {approx = true} : vector<16x1xf32> -> vector<16x1xf32>
    %87 = vector.broadcast %86 : vector<16x1xf32> to vector<16x16xf32>
    %88 = arith.mulf %83, %87 : vector<16x16xf32>
    %cst_48 = arith.constant dense<0.000000e+00> : vector<16x8xf32>
    %89 = tpu.matmul %88, %76, %cst_48 {dimension_numbers = #tpu.dot_dimension_numbers<[1], [0], [0], [1], [0, 0, 1, 1], [], []>} : vector<16x16xf32>, vector<16x8xf32>, vector<16x8xf32> -> vector<16x8xf32>
    %c0_49 = arith.constant 0 : index
    %c1_50 = arith.constant 1 : index
    %c0_51 = arith.constant 0 : index
    %c0_52 = arith.constant 0 : index
    %90 = vector.load %arg3[%c0_49, %c1_50, %c0_51, %c0_52] : memref<4x4x8x32xf32, #tpu.memory_space<vmem>>, vector<1x1x8x32xf32>
    %91 = vector.shape_cast %90 : vector<1x1x8x32xf32> to vector<8x32xf32>
    %cst_53 = arith.constant dense<0.000000e+00> : vector<16x32xf32>
    %92 = tpu.matmul %89, %91, %cst_53 {dimension_numbers = #tpu.dot_dimension_numbers<[1], [0], [0], [1], [0, 0, 1, 1], [], []>} : vector<16x8xf32>, vector<8x32xf32>, vector<16x32xf32> -> vector<16x32xf32>
    %93 = arith.addf %67, %92 : vector<16x32xf32>
    %c0_54 = arith.constant 0 : index
    %c2 = arith.constant 2 : index
    %c0_55 = arith.constant 0 : index
    %c0_56 = arith.constant 0 : index
    %94 = vector.load %arg2[%c0_54, %c2, %c0_55, %c0_56] : memref<4x12x32x8xf32, #tpu.memory_space<vmem>>, vector<1x1x32x8xf32>
    %95 = vector.shape_cast %94 : vector<1x1x32x8xf32> to vector<32x8xf32>
    %cst_57 = arith.constant dense<0.000000e+00> : vector<16x8xf32>
    %96 = tpu.matmul %41, %95, %cst_57 {dimension_numbers = #tpu.dot_dimension_numbers<[1], [0], [0], [1], [0, 0, 1, 1], [], []>} : vector<16x32xf32>, vector<32x8xf32>, vector<16x8xf32> -> vector<16x8xf32>
    %c0_58 = arith.constant 0 : index
    %c6 = arith.constant 6 : index
    %c0_59 = arith.constant 0 : index
    %c0_60 = arith.constant 0 : index
    %97 = vector.load %arg2[%c0_58, %c6, %c0_59, %c0_60] : memref<4x12x32x8xf32, #tpu.memory_space<vmem>>, vector<1x1x32x8xf32>
    %98 = vector.shape_cast %97 : vector<1x1x32x8xf32> to vector<32x8xf32>
    %cst_61 = arith.constant dense<0.000000e+00> : vector<16x8xf32>
    %99 = tpu.matmul %41, %98, %cst_61 {dimension_numbers = #tpu.dot_dimension_numbers<[1], [0], [0], [1], [0, 0, 1, 1], [], []>} : vector<16x32xf32>, vector<32x8xf32>, vector<16x8xf32> -> vector<16x8xf32>
    %c0_62 = arith.constant 0 : index
    %c10 = arith.constant 10 : index
    %c0_63 = arith.constant 0 : index
    %c0_64 = arith.constant 0 : index
    %100 = vector.load %arg2[%c0_62, %c10, %c0_63, %c0_64] : memref<4x12x32x8xf32, #tpu.memory_space<vmem>>, vector<1x1x32x8xf32>
    %101 = vector.shape_cast %100 : vector<1x1x32x8xf32> to vector<32x8xf32>
    %cst_65 = arith.constant dense<0.000000e+00> : vector<16x8xf32>
    %102 = tpu.matmul %41, %101, %cst_65 {dimension_numbers = #tpu.dot_dimension_numbers<[1], [0], [0], [1], [0, 0, 1, 1], [], []>} : vector<16x32xf32>, vector<32x8xf32>, vector<16x8xf32> -> vector<16x8xf32>
    %cst_66 = arith.constant dense<0.000000e+00> : vector<16x16xf32>
    %103 = tpu.matmul %96, %99, %cst_66 {dimension_numbers = #tpu.dot_dimension_numbers<[1], [1], [0], [0], [0, 0, 1, 0], [], []>} : vector<16x8xf32>, vector<16x8xf32>, vector<16x16xf32> -> vector<16x16xf32>
    %104 = arith.addf %103, %12 : vector<16x16xf32>
    %cst_67 = arith.constant dense<0xFF800000> : vector<16xf32>
    %105 = vector.multi_reduction <maximumf>, %104, %cst_67 [1] : vector<16x16xf32> to vector<16xf32>
    %106 = vector.shape_cast %105 : vector<16xf32> to vector<16x1xf32>
    %107 = vector.broadcast %106 : vector<16x1xf32> to vector<16x16xf32>
    %108 = arith.subf %104, %107 : vector<16x16xf32>
    %109 = math.exp %108 : vector<16x16xf32>
    %cst_68 = arith.constant dense<0.000000e+00> : vector<16xf32>
    %110 = vector.multi_reduction <add>, %109, %cst_68 [1] : vector<16x16xf32> to vector<16xf32>
    %111 = vector.shape_cast %110 : vector<16xf32> to vector<16x1xf32>
    %112 = tpu.reciprocal %111 {approx = true} : vector<16x1xf32> -> vector<16x1xf32>
    %113 = vector.broadcast %112 : vector<16x1xf32> to vector<16x16xf32>
    %114 = arith.mulf %109, %113 : vector<16x16xf32>
    %cst_69 = arith.constant dense<0.000000e+00> : vector<16x8xf32>
    %115 = tpu.matmul %114, %102, %cst_69 {dimension_numbers = #tpu.dot_dimension_numbers<[1], [0], [0], [1], [0, 0, 1, 1], [], []>} : vector<16x16xf32>, vector<16x8xf32>, vector<16x8xf32> -> vector<16x8xf32>
    %c0_70 = arith.constant 0 : index
    %c2_71 = arith.constant 2 : index
    %c0_72 = arith.constant 0 : index
    %c0_73 = arith.constant 0 : index
    %116 = vector.load %arg3[%c0_70, %c2_71, %c0_72, %c0_73] : memref<4x4x8x32xf32, #tpu.memory_space<vmem>>, vector<1x1x8x32xf32>
    %117 = vector.shape_cast %116 : vector<1x1x8x32xf32> to vector<8x32xf32>
    %cst_74 = arith.constant dense<0.000000e+00> : vector<16x32xf32>
    %118 = tpu.matmul %115, %117, %cst_74 {dimension_numbers = #tpu.dot_dimension_numbers<[1], [0], [0], [1], [0, 0, 1, 1], [], []>} : vector<16x8xf32>, vector<8x32xf32>, vector<16x32xf32> -> vector<16x32xf32>
    %119 = arith.addf %93, %118 : vector<16x32xf32>
    %c0_75 = arith.constant 0 : index
    %c3 = arith.constant 3 : index
    %c0_76 = arith.constant 0 : index
    %c0_77 = arith.constant 0 : index
    %120 = vector.load %arg2[%c0_75, %c3, %c0_76, %c0_77] : memref<4x12x32x8xf32, #tpu.memory_space<vmem>>, vector<1x1x32x8xf32>
    %121 = vector.shape_cast %120 : vector<1x1x32x8xf32> to vector<32x8xf32>
    %cst_78 = arith.constant dense<0.000000e+00> : vector<16x8xf32>
    %122 = tpu.matmul %41, %121, %cst_78 {dimension_numbers = #tpu.dot_dimension_numbers<[1], [0], [0], [1], [0, 0, 1, 1], [], []>} : vector<16x32xf32>, vector<32x8xf32>, vector<16x8xf32> -> vector<16x8xf32>
    %c0_79 = arith.constant 0 : index
    %c7 = arith.constant 7 : index
    %c0_80 = arith.constant 0 : index
    %c0_81 = arith.constant 0 : index
    %123 = vector.load %arg2[%c0_79, %c7, %c0_80, %c0_81] : memref<4x12x32x8xf32, #tpu.memory_space<vmem>>, vector<1x1x32x8xf32>
    %124 = vector.shape_cast %123 : vector<1x1x32x8xf32> to vector<32x8xf32>
    %cst_82 = arith.constant dense<0.000000e+00> : vector<16x8xf32>
    %125 = tpu.matmul %41, %124, %cst_82 {dimension_numbers = #tpu.dot_dimension_numbers<[1], [0], [0], [1], [0, 0, 1, 1], [], []>} : vector<16x32xf32>, vector<32x8xf32>, vector<16x8xf32> -> vector<16x8xf32>
    %c0_83 = arith.constant 0 : index
    %c11 = arith.constant 11 : index
    %c0_84 = arith.constant 0 : index
    %c0_85 = arith.constant 0 : index
    %126 = vector.load %arg2[%c0_83, %c11, %c0_84, %c0_85] : memref<4x12x32x8xf32, #tpu.memory_space<vmem>>, vector<1x1x32x8xf32>
    %127 = vector.shape_cast %126 : vector<1x1x32x8xf32> to vector<32x8xf32>
    %cst_86 = arith.constant dense<0.000000e+00> : vector<16x8xf32>
    %128 = tpu.matmul %41, %127, %cst_86 {dimension_numbers = #tpu.dot_dimension_numbers<[1], [0], [0], [1], [0, 0, 1, 1], [], []>} : vector<16x32xf32>, vector<32x8xf32>, vector<16x8xf32> -> vector<16x8xf32>
    %cst_87 = arith.constant dense<0.000000e+00> : vector<16x16xf32>
    %129 = tpu.matmul %122, %125, %cst_87 {dimension_numbers = #tpu.dot_dimension_numbers<[1], [1], [0], [0], [0, 0, 1, 0], [], []>} : vector<16x8xf32>, vector<16x8xf32>, vector<16x16xf32> -> vector<16x16xf32>
    %130 = arith.addf %129, %12 : vector<16x16xf32>
    %cst_88 = arith.constant dense<0xFF800000> : vector<16xf32>
    %131 = vector.multi_reduction <maximumf>, %130, %cst_88 [1] : vector<16x16xf32> to vector<16xf32>
    %132 = vector.shape_cast %131 : vector<16xf32> to vector<16x1xf32>
    %133 = vector.broadcast %132 : vector<16x1xf32> to vector<16x16xf32>
    %134 = arith.subf %130, %133 : vector<16x16xf32>
    %135 = math.exp %134 : vector<16x16xf32>
    %cst_89 = arith.constant dense<0.000000e+00> : vector<16xf32>
    %136 = vector.multi_reduction <add>, %135, %cst_89 [1] : vector<16x16xf32> to vector<16xf32>
    %137 = vector.shape_cast %136 : vector<16xf32> to vector<16x1xf32>
    %138 = tpu.reciprocal %137 {approx = true} : vector<16x1xf32> -> vector<16x1xf32>
    %139 = vector.broadcast %138 : vector<16x1xf32> to vector<16x16xf32>
    %140 = arith.mulf %135, %139 : vector<16x16xf32>
    %cst_90 = arith.constant dense<0.000000e+00> : vector<16x8xf32>
    %141 = tpu.matmul %140, %128, %cst_90 {dimension_numbers = #tpu.dot_dimension_numbers<[1], [0], [0], [1], [0, 0, 1, 1], [], []>} : vector<16x16xf32>, vector<16x8xf32>, vector<16x8xf32> -> vector<16x8xf32>
    %c0_91 = arith.constant 0 : index
    %c3_92 = arith.constant 3 : index
    %c0_93 = arith.constant 0 : index
    %c0_94 = arith.constant 0 : index
    %142 = vector.load %arg3[%c0_91, %c3_92, %c0_93, %c0_94] : memref<4x4x8x32xf32, #tpu.memory_space<vmem>>, vector<1x1x8x32xf32>
    %143 = vector.shape_cast %142 : vector<1x1x8x32xf32> to vector<8x32xf32>
    %cst_95 = arith.constant dense<0.000000e+00> : vector<16x32xf32>
    %144 = tpu.matmul %141, %143, %cst_95 {dimension_numbers = #tpu.dot_dimension_numbers<[1], [0], [0], [1], [0, 0, 1, 1], [], []>} : vector<16x8xf32>, vector<8x32xf32>, vector<16x32xf32> -> vector<16x32xf32>
    %145 = arith.addf %119, %144 : vector<16x32xf32>
    %cst_96 = arith.constant dense<0.000000e+00> : vector<16xf32>
    %146 = vector.multi_reduction <add>, %145, %cst_96 [1] : vector<16x32xf32> to vector<16xf32>
    %147 = vector.shape_cast %146 : vector<16xf32> to vector<16x1xf32>
    %cst_97 = arith.constant 3.200000e+01 : f32
    %148 = vector.broadcast %cst_97 : f32 to vector<16x1xf32>
    %149 = arith.divf %147, %148 : vector<16x1xf32>
    %150 = vector.broadcast %149 : vector<16x1xf32> to vector<16x32xf32>
    %151 = arith.subf %145, %150 : vector<16x32xf32>
    %152 = arith.mulf %151, %151 : vector<16x32xf32>
    %cst_98 = arith.constant dense<0.000000e+00> : vector<16xf32>
    %153 = vector.multi_reduction <add>, %152, %cst_98 [1] : vector<16x32xf32> to vector<16xf32>
    %154 = vector.shape_cast %153 : vector<16xf32> to vector<16x1xf32>
    %cst_99 = arith.constant 3.200000e+01 : f32
    %155 = vector.broadcast %cst_99 : f32 to vector<16x1xf32>
    %156 = arith.divf %154, %155 : vector<16x1xf32>
    %157 = vector.broadcast %149 : vector<16x1xf32> to vector<16x32xf32>
    %158 = arith.subf %145, %157 : vector<16x32xf32>
    %cst_100 = arith.constant 9.99999974E-6 : f32
    %159 = vector.broadcast %cst_100 : f32 to vector<16x1xf32>
    %160 = arith.addf %156, %159 : vector<16x1xf32>
    %161 = math.rsqrt %160 : vector<16x1xf32>
    %162 = vector.broadcast %161 : vector<16x1xf32> to vector<16x32xf32>
    %163 = arith.mulf %158, %162 : vector<16x32xf32>
    %164 = vector.broadcast %17 : vector<1x32xf32> to vector<16x32xf32>
    %165 = arith.mulf %163, %164 : vector<16x32xf32>
    %166 = vector.broadcast %18 : vector<1x32xf32> to vector<16x32xf32>
    %167 = arith.addf %165, %166 : vector<16x32xf32>
    %c0_101 = arith.constant 0 : index
    %c0_102 = arith.constant 0 : index
    %c0_103 = arith.constant 0 : index
    %168 = vector.load %arg4[%c0_101, %c0_102, %c0_103] : memref<4x32x128xf32, #tpu.memory_space<vmem>>, vector<1x32x128xf32>
    %169 = vector.shape_cast %168 : vector<1x32x128xf32> to vector<32x128xf32>
    %cst_104 = arith.constant dense<0.000000e+00> : vector<16x128xf32>
    %170 = tpu.matmul %167, %169, %cst_104 {dimension_numbers = #tpu.dot_dimension_numbers<[1], [0], [0], [1], [0, 0, 1, 1], [], []>} : vector<16x32xf32>, vector<32x128xf32>, vector<16x128xf32> -> vector<16x128xf32>
    %c0_105 = arith.constant 0 : index
    %c0_106 = arith.constant 0 : index
    %171 = vector.load %arg6[%c0_105, %c0_106] : memref<5x128xf32, #tpu.memory_space<vmem>>, vector<1x128xf32>
    %172 = vector.broadcast %171 : vector<1x128xf32> to vector<16x128xf32>
    %173 = arith.addf %170, %172 : vector<16x128xf32>
    %cst_107 = arith.constant 5.000000e-01 : f32
    %174 = vector.broadcast %cst_107 : f32 to vector<16x128xf32>
    %175 = arith.mulf %174, %173 : vector<16x128xf32>
    %cst_108 = arith.constant 0.707106769 : f32
    %176 = vector.broadcast %cst_108 : f32 to vector<16x128xf32>
    %177 = arith.mulf %173, %176 : vector<16x128xf32>
    %178 = math.erf %177 : vector<16x128xf32>
    %cst_109 = arith.constant 1.000000e+00 : f32
    %179 = vector.broadcast %cst_109 : f32 to vector<16x128xf32>
    %180 = arith.addf %179, %178 : vector<16x128xf32>
    %181 = arith.mulf %175, %180 : vector<16x128xf32>
    %c0_110 = arith.constant 0 : index
    %c0_111 = arith.constant 0 : index
    %c0_112 = arith.constant 0 : index
    %182 = vector.load %arg5[%c0_110, %c0_111, %c0_112] : memref<4x128x32xf32, #tpu.memory_space<vmem>>, vector<1x128x32xf32>
    %183 = vector.shape_cast %182 : vector<1x128x32xf32> to vector<128x32xf32>
    %cst_113 = arith.constant dense<0.000000e+00> : vector<16x32xf32>
    %184 = tpu.matmul %181, %183, %cst_113 {dimension_numbers = #tpu.dot_dimension_numbers<[1], [0], [0], [1], [0, 0, 1, 1], [], []>} : vector<16x128xf32>, vector<128x32xf32>, vector<16x32xf32> -> vector<16x32xf32>
    %185 = arith.addf %145, %184 : vector<16x32xf32>
    %186 = vector.broadcast %19 : vector<1x32xf32> to vector<16x32xf32>
    %187 = arith.addf %185, %186 : vector<16x32xf32>
    %c1_114 = arith.constant 1 : index
    %c0_115 = arith.constant 0 : index
    %c0_116 = arith.constant 0 : index
    %188 = vector.load %arg1[%c1_114, %c0_115, %c0_116] : memref<4x5x32xf32, #tpu.memory_space<vmem>>, vector<1x5x32xf32>
    %189 = vector.shape_cast %188 : vector<1x5x32xf32> to vector<5x32xf32>
    %190 = vector.extract_strided_slice %189 {offsets = [0, 0], sizes = [1, 32], strides = [1, 1]} : vector<5x32xf32> to vector<1x32xf32>
    %191 = vector.extract_strided_slice %189 {offsets = [1, 0], sizes = [1, 32], strides = [1, 1]} : vector<5x32xf32> to vector<1x32xf32>
    %192 = vector.extract_strided_slice %189 {offsets = [2, 0], sizes = [1, 32], strides = [1, 1]} : vector<5x32xf32> to vector<1x32xf32>
    %193 = vector.extract_strided_slice %189 {offsets = [3, 0], sizes = [1, 32], strides = [1, 1]} : vector<5x32xf32> to vector<1x32xf32>
    %194 = vector.extract_strided_slice %189 {offsets = [4, 0], sizes = [1, 32], strides = [1, 1]} : vector<5x32xf32> to vector<1x32xf32>
    %cst_117 = arith.constant dense<0.000000e+00> : vector<16xf32>
    %195 = vector.multi_reduction <add>, %187, %cst_117 [1] : vector<16x32xf32> to vector<16xf32>
    %196 = vector.shape_cast %195 : vector<16xf32> to vector<16x1xf32>
    %cst_118 = arith.constant 3.200000e+01 : f32
    %197 = vector.broadcast %cst_118 : f32 to vector<16x1xf32>
    %198 = arith.divf %196, %197 : vector<16x1xf32>
    %199 = vector.broadcast %198 : vector<16x1xf32> to vector<16x32xf32>
    %200 = arith.subf %187, %199 : vector<16x32xf32>
    %201 = arith.mulf %200, %200 : vector<16x32xf32>
    %cst_119 = arith.constant dense<0.000000e+00> : vector<16xf32>
    %202 = vector.multi_reduction <add>, %201, %cst_119 [1] : vector<16x32xf32> to vector<16xf32>
    %203 = vector.shape_cast %202 : vector<16xf32> to vector<16x1xf32>
    %cst_120 = arith.constant 3.200000e+01 : f32
    %204 = vector.broadcast %cst_120 : f32 to vector<16x1xf32>
    %205 = arith.divf %203, %204 : vector<16x1xf32>
    %206 = vector.broadcast %198 : vector<16x1xf32> to vector<16x32xf32>
    %207 = arith.subf %187, %206 : vector<16x32xf32>
    %cst_121 = arith.constant 9.99999974E-6 : f32
    %208 = vector.broadcast %cst_121 : f32 to vector<16x1xf32>
    %209 = arith.addf %205, %208 : vector<16x1xf32>
    %210 = math.rsqrt %209 : vector<16x1xf32>
    %211 = vector.broadcast %210 : vector<16x1xf32> to vector<16x32xf32>
    %212 = arith.mulf %207, %211 : vector<16x32xf32>
    %213 = vector.broadcast %190 : vector<1x32xf32> to vector<16x32xf32>
    %214 = arith.mulf %212, %213 : vector<16x32xf32>
    %215 = vector.broadcast %191 : vector<1x32xf32> to vector<16x32xf32>
    %216 = arith.addf %214, %215 : vector<16x32xf32>
    %c1_122 = arith.constant 1 : index
    %c0_123 = arith.constant 0 : index
    %c0_124 = arith.constant 0 : index
    %c0_125 = arith.constant 0 : index
    %217 = vector.load %arg2[%c1_122, %c0_123, %c0_124, %c0_125] : memref<4x12x32x8xf32, #tpu.memory_space<vmem>>, vector<1x1x32x8xf32>
    %218 = vector.shape_cast %217 : vector<1x1x32x8xf32> to vector<32x8xf32>
    %cst_126 = arith.constant dense<0.000000e+00> : vector<16x8xf32>
    %219 = tpu.matmul %216, %218, %cst_126 {dimension_numbers = #tpu.dot_dimension_numbers<[1], [0], [0], [1], [0, 0, 1, 1], [], []>} : vector<16x32xf32>, vector<32x8xf32>, vector<16x8xf32> -> vector<16x8xf32>
    %c1_127 = arith.constant 1 : index
    %c4_128 = arith.constant 4 : index
    %c0_129 = arith.constant 0 : index
    %c0_130 = arith.constant 0 : index
    %220 = vector.load %arg2[%c1_127, %c4_128, %c0_129, %c0_130] : memref<4x12x32x8xf32, #tpu.memory_space<vmem>>, vector<1x1x32x8xf32>
    %221 = vector.shape_cast %220 : vector<1x1x32x8xf32> to vector<32x8xf32>
    %cst_131 = arith.constant dense<0.000000e+00> : vector<16x8xf32>
    %222 = tpu.matmul %216, %221, %cst_131 {dimension_numbers = #tpu.dot_dimension_numbers<[1], [0], [0], [1], [0, 0, 1, 1], [], []>} : vector<16x32xf32>, vector<32x8xf32>, vector<16x8xf32> -> vector<16x8xf32>
    %c1_132 = arith.constant 1 : index
    %c8_133 = arith.constant 8 : index
    %c0_134 = arith.constant 0 : index
    %c0_135 = arith.constant 0 : index
    %223 = vector.load %arg2[%c1_132, %c8_133, %c0_134, %c0_135] : memref<4x12x32x8xf32, #tpu.memory_space<vmem>>, vector<1x1x32x8xf32>
    %224 = vector.shape_cast %223 : vector<1x1x32x8xf32> to vector<32x8xf32>
    %cst_136 = arith.constant dense<0.000000e+00> : vector<16x8xf32>
    %225 = tpu.matmul %216, %224, %cst_136 {dimension_numbers = #tpu.dot_dimension_numbers<[1], [0], [0], [1], [0, 0, 1, 1], [], []>} : vector<16x32xf32>, vector<32x8xf32>, vector<16x8xf32> -> vector<16x8xf32>
    %cst_137 = arith.constant dense<0.000000e+00> : vector<16x16xf32>
    %226 = tpu.matmul %219, %222, %cst_137 {dimension_numbers = #tpu.dot_dimension_numbers<[1], [1], [0], [0], [0, 0, 1, 0], [], []>} : vector<16x8xf32>, vector<16x8xf32>, vector<16x16xf32> -> vector<16x16xf32>
    %227 = arith.addf %226, %12 : vector<16x16xf32>
    %cst_138 = arith.constant dense<0xFF800000> : vector<16xf32>
    %228 = vector.multi_reduction <maximumf>, %227, %cst_138 [1] : vector<16x16xf32> to vector<16xf32>
    %229 = vector.shape_cast %228 : vector<16xf32> to vector<16x1xf32>
    %230 = vector.broadcast %229 : vector<16x1xf32> to vector<16x16xf32>
    %231 = arith.subf %227, %230 : vector<16x16xf32>
    %232 = math.exp %231 : vector<16x16xf32>
    %cst_139 = arith.constant dense<0.000000e+00> : vector<16xf32>
    %233 = vector.multi_reduction <add>, %232, %cst_139 [1] : vector<16x16xf32> to vector<16xf32>
    %234 = vector.shape_cast %233 : vector<16xf32> to vector<16x1xf32>
    %235 = tpu.reciprocal %234 {approx = true} : vector<16x1xf32> -> vector<16x1xf32>
    %236 = vector.broadcast %235 : vector<16x1xf32> to vector<16x16xf32>
    %237 = arith.mulf %232, %236 : vector<16x16xf32>
    %cst_140 = arith.constant dense<0.000000e+00> : vector<16x8xf32>
    %238 = tpu.matmul %237, %225, %cst_140 {dimension_numbers = #tpu.dot_dimension_numbers<[1], [0], [0], [1], [0, 0, 1, 1], [], []>} : vector<16x16xf32>, vector<16x8xf32>, vector<16x8xf32> -> vector<16x8xf32>
    %c1_141 = arith.constant 1 : index
    %c0_142 = arith.constant 0 : index
    %c0_143 = arith.constant 0 : index
    %c0_144 = arith.constant 0 : index
    %239 = vector.load %arg3[%c1_141, %c0_142, %c0_143, %c0_144] : memref<4x4x8x32xf32, #tpu.memory_space<vmem>>, vector<1x1x8x32xf32>
    %240 = vector.shape_cast %239 : vector<1x1x8x32xf32> to vector<8x32xf32>
    %cst_145 = arith.constant dense<0.000000e+00> : vector<16x32xf32>
    %241 = tpu.matmul %238, %240, %cst_145 {dimension_numbers = #tpu.dot_dimension_numbers<[1], [0], [0], [1], [0, 0, 1, 1], [], []>} : vector<16x8xf32>, vector<8x32xf32>, vector<16x32xf32> -> vector<16x32xf32>
    %242 = arith.addf %187, %241 : vector<16x32xf32>
    %c1_146 = arith.constant 1 : index
    %c1_147 = arith.constant 1 : index
    %c0_148 = arith.constant 0 : index
    %c0_149 = arith.constant 0 : index
    %243 = vector.load %arg2[%c1_146, %c1_147, %c0_148, %c0_149] : memref<4x12x32x8xf32, #tpu.memory_space<vmem>>, vector<1x1x32x8xf32>
    %244 = vector.shape_cast %243 : vector<1x1x32x8xf32> to vector<32x8xf32>
    %cst_150 = arith.constant dense<0.000000e+00> : vector<16x8xf32>
    %245 = tpu.matmul %216, %244, %cst_150 {dimension_numbers = #tpu.dot_dimension_numbers<[1], [0], [0], [1], [0, 0, 1, 1], [], []>} : vector<16x32xf32>, vector<32x8xf32>, vector<16x8xf32> -> vector<16x8xf32>
    %c1_151 = arith.constant 1 : index
    %c5_152 = arith.constant 5 : index
    %c0_153 = arith.constant 0 : index
    %c0_154 = arith.constant 0 : index
    %246 = vector.load %arg2[%c1_151, %c5_152, %c0_153, %c0_154] : memref<4x12x32x8xf32, #tpu.memory_space<vmem>>, vector<1x1x32x8xf32>
    %247 = vector.shape_cast %246 : vector<1x1x32x8xf32> to vector<32x8xf32>
    %cst_155 = arith.constant dense<0.000000e+00> : vector<16x8xf32>
    %248 = tpu.matmul %216, %247, %cst_155 {dimension_numbers = #tpu.dot_dimension_numbers<[1], [0], [0], [1], [0, 0, 1, 1], [], []>} : vector<16x32xf32>, vector<32x8xf32>, vector<16x8xf32> -> vector<16x8xf32>
    %c1_156 = arith.constant 1 : index
    %c9_157 = arith.constant 9 : index
    %c0_158 = arith.constant 0 : index
    %c0_159 = arith.constant 0 : index
    %249 = vector.load %arg2[%c1_156, %c9_157, %c0_158, %c0_159] : memref<4x12x32x8xf32, #tpu.memory_space<vmem>>, vector<1x1x32x8xf32>
    %250 = vector.shape_cast %249 : vector<1x1x32x8xf32> to vector<32x8xf32>
    %cst_160 = arith.constant dense<0.000000e+00> : vector<16x8xf32>
    %251 = tpu.matmul %216, %250, %cst_160 {dimension_numbers = #tpu.dot_dimension_numbers<[1], [0], [0], [1], [0, 0, 1, 1], [], []>} : vector<16x32xf32>, vector<32x8xf32>, vector<16x8xf32> -> vector<16x8xf32>
    %cst_161 = arith.constant dense<0.000000e+00> : vector<16x16xf32>
    %252 = tpu.matmul %245, %248, %cst_161 {dimension_numbers = #tpu.dot_dimension_numbers<[1], [1], [0], [0], [0, 0, 1, 0], [], []>} : vector<16x8xf32>, vector<16x8xf32>, vector<16x16xf32> -> vector<16x16xf32>
    %253 = arith.addf %252, %12 : vector<16x16xf32>
    %cst_162 = arith.constant dense<0xFF800000> : vector<16xf32>
    %254 = vector.multi_reduction <maximumf>, %253, %cst_162 [1] : vector<16x16xf32> to vector<16xf32>
    %255 = vector.shape_cast %254 : vector<16xf32> to vector<16x1xf32>
    %256 = vector.broadcast %255 : vector<16x1xf32> to vector<16x16xf32>
    %257 = arith.subf %253, %256 : vector<16x16xf32>
    %258 = math.exp %257 : vector<16x16xf32>
    %cst_163 = arith.constant dense<0.000000e+00> : vector<16xf32>
    %259 = vector.multi_reduction <add>, %258, %cst_163 [1] : vector<16x16xf32> to vector<16xf32>
    %260 = vector.shape_cast %259 : vector<16xf32> to vector<16x1xf32>
    %261 = tpu.reciprocal %260 {approx = true} : vector<16x1xf32> -> vector<16x1xf32>
    %262 = vector.broadcast %261 : vector<16x1xf32> to vector<16x16xf32>
    %263 = arith.mulf %258, %262 : vector<16x16xf32>
    %cst_164 = arith.constant dense<0.000000e+00> : vector<16x8xf32>
    %264 = tpu.matmul %263, %251, %cst_164 {dimension_numbers = #tpu.dot_dimension_numbers<[1], [0], [0], [1], [0, 0, 1, 1], [], []>} : vector<16x16xf32>, vector<16x8xf32>, vector<16x8xf32> -> vector<16x8xf32>
    %c1_165 = arith.constant 1 : index
    %c1_166 = arith.constant 1 : index
    %c0_167 = arith.constant 0 : index
    %c0_168 = arith.constant 0 : index
    %265 = vector.load %arg3[%c1_165, %c1_166, %c0_167, %c0_168] : memref<4x4x8x32xf32, #tpu.memory_space<vmem>>, vector<1x1x8x32xf32>
    %266 = vector.shape_cast %265 : vector<1x1x8x32xf32> to vector<8x32xf32>
    %cst_169 = arith.constant dense<0.000000e+00> : vector<16x32xf32>
    %267 = tpu.matmul %264, %266, %cst_169 {dimension_numbers = #tpu.dot_dimension_numbers<[1], [0], [0], [1], [0, 0, 1, 1], [], []>} : vector<16x8xf32>, vector<8x32xf32>, vector<16x32xf32> -> vector<16x32xf32>
    %268 = arith.addf %242, %267 : vector<16x32xf32>
    %c1_170 = arith.constant 1 : index
    %c2_171 = arith.constant 2 : index
    %c0_172 = arith.constant 0 : index
    %c0_173 = arith.constant 0 : index
    %269 = vector.load %arg2[%c1_170, %c2_171, %c0_172, %c0_173] : memref<4x12x32x8xf32, #tpu.memory_space<vmem>>, vector<1x1x32x8xf32>
    %270 = vector.shape_cast %269 : vector<1x1x32x8xf32> to vector<32x8xf32>
    %cst_174 = arith.constant dense<0.000000e+00> : vector<16x8xf32>
    %271 = tpu.matmul %216, %270, %cst_174 {dimension_numbers = #tpu.dot_dimension_numbers<[1], [0], [0], [1], [0, 0, 1, 1], [], []>} : vector<16x32xf32>, vector<32x8xf32>, vector<16x8xf32> -> vector<16x8xf32>
    %c1_175 = arith.constant 1 : index
    %c6_176 = arith.constant 6 : index
    %c0_177 = arith.constant 0 : index
    %c0_178 = arith.constant 0 : index
    %272 = vector.load %arg2[%c1_175, %c6_176, %c0_177, %c0_178] : memref<4x12x32x8xf32, #tpu.memory_space<vmem>>, vector<1x1x32x8xf32>
    %273 = vector.shape_cast %272 : vector<1x1x32x8xf32> to vector<32x8xf32>
    %cst_179 = arith.constant dense<0.000000e+00> : vector<16x8xf32>
    %274 = tpu.matmul %216, %273, %cst_179 {dimension_numbers = #tpu.dot_dimension_numbers<[1], [0], [0], [1], [0, 0, 1, 1], [], []>} : vector<16x32xf32>, vector<32x8xf32>, vector<16x8xf32> -> vector<16x8xf32>
    %c1_180 = arith.constant 1 : index
    %c10_181 = arith.constant 10 : index
    %c0_182 = arith.constant 0 : index
    %c0_183 = arith.constant 0 : index
    %275 = vector.load %arg2[%c1_180, %c10_181, %c0_182, %c0_183] : memref<4x12x32x8xf32, #tpu.memory_space<vmem>>, vector<1x1x32x8xf32>
    %276 = vector.shape_cast %275 : vector<1x1x32x8xf32> to vector<32x8xf32>
    %cst_184 = arith.constant dense<0.000000e+00> : vector<16x8xf32>
    %277 = tpu.matmul %216, %276, %cst_184 {dimension_numbers = #tpu.dot_dimension_numbers<[1], [0], [0], [1], [0, 0, 1, 1], [], []>} : vector<16x32xf32>, vector<32x8xf32>, vector<16x8xf32> -> vector<16x8xf32>
    %cst_185 = arith.constant dense<0.000000e+00> : vector<16x16xf32>
    %278 = tpu.matmul %271, %274, %cst_185 {dimension_numbers = #tpu.dot_dimension_numbers<[1], [1], [0], [0], [0, 0, 1, 0], [], []>} : vector<16x8xf32>, vector<16x8xf32>, vector<16x16xf32> -> vector<16x16xf32>
    %279 = arith.addf %278, %12 : vector<16x16xf32>
    %cst_186 = arith.constant dense<0xFF800000> : vector<16xf32>
    %280 = vector.multi_reduction <maximumf>, %279, %cst_186 [1] : vector<16x16xf32> to vector<16xf32>
    %281 = vector.shape_cast %280 : vector<16xf32> to vector<16x1xf32>
    %282 = vector.broadcast %281 : vector<16x1xf32> to vector<16x16xf32>
    %283 = arith.subf %279, %282 : vector<16x16xf32>
    %284 = math.exp %283 : vector<16x16xf32>
    %cst_187 = arith.constant dense<0.000000e+00> : vector<16xf32>
    %285 = vector.multi_reduction <add>, %284, %cst_187 [1] : vector<16x16xf32> to vector<16xf32>
    %286 = vector.shape_cast %285 : vector<16xf32> to vector<16x1xf32>
    %287 = tpu.reciprocal %286 {approx = true} : vector<16x1xf32> -> vector<16x1xf32>
    %288 = vector.broadcast %287 : vector<16x1xf32> to vector<16x16xf32>
    %289 = arith.mulf %284, %288 : vector<16x16xf32>
    %cst_188 = arith.constant dense<0.000000e+00> : vector<16x8xf32>
    %290 = tpu.matmul %289, %277, %cst_188 {dimension_numbers = #tpu.dot_dimension_numbers<[1], [0], [0], [1], [0, 0, 1, 1], [], []>} : vector<16x16xf32>, vector<16x8xf32>, vector<16x8xf32> -> vector<16x8xf32>
    %c1_189 = arith.constant 1 : index
    %c2_190 = arith.constant 2 : index
    %c0_191 = arith.constant 0 : index
    %c0_192 = arith.constant 0 : index
    %291 = vector.load %arg3[%c1_189, %c2_190, %c0_191, %c0_192] : memref<4x4x8x32xf32, #tpu.memory_space<vmem>>, vector<1x1x8x32xf32>
    %292 = vector.shape_cast %291 : vector<1x1x8x32xf32> to vector<8x32xf32>
    %cst_193 = arith.constant dense<0.000000e+00> : vector<16x32xf32>
    %293 = tpu.matmul %290, %292, %cst_193 {dimension_numbers = #tpu.dot_dimension_numbers<[1], [0], [0], [1], [0, 0, 1, 1], [], []>} : vector<16x8xf32>, vector<8x32xf32>, vector<16x32xf32> -> vector<16x32xf32>
    %294 = arith.addf %268, %293 : vector<16x32xf32>
    %c1_194 = arith.constant 1 : index
    %c3_195 = arith.constant 3 : index
    %c0_196 = arith.constant 0 : index
    %c0_197 = arith.constant 0 : index
    %295 = vector.load %arg2[%c1_194, %c3_195, %c0_196, %c0_197] : memref<4x12x32x8xf32, #tpu.memory_space<vmem>>, vector<1x1x32x8xf32>
    %296 = vector.shape_cast %295 : vector<1x1x32x8xf32> to vector<32x8xf32>
    %cst_198 = arith.constant dense<0.000000e+00> : vector<16x8xf32>
    %297 = tpu.matmul %216, %296, %cst_198 {dimension_numbers = #tpu.dot_dimension_numbers<[1], [0], [0], [1], [0, 0, 1, 1], [], []>} : vector<16x32xf32>, vector<32x8xf32>, vector<16x8xf32> -> vector<16x8xf32>
    %c1_199 = arith.constant 1 : index
    %c7_200 = arith.constant 7 : index
    %c0_201 = arith.constant 0 : index
    %c0_202 = arith.constant 0 : index
    %298 = vector.load %arg2[%c1_199, %c7_200, %c0_201, %c0_202] : memref<4x12x32x8xf32, #tpu.memory_space<vmem>>, vector<1x1x32x8xf32>
    %299 = vector.shape_cast %298 : vector<1x1x32x8xf32> to vector<32x8xf32>
    %cst_203 = arith.constant dense<0.000000e+00> : vector<16x8xf32>
    %300 = tpu.matmul %216, %299, %cst_203 {dimension_numbers = #tpu.dot_dimension_numbers<[1], [0], [0], [1], [0, 0, 1, 1], [], []>} : vector<16x32xf32>, vector<32x8xf32>, vector<16x8xf32> -> vector<16x8xf32>
    %c1_204 = arith.constant 1 : index
    %c11_205 = arith.constant 11 : index
    %c0_206 = arith.constant 0 : index
    %c0_207 = arith.constant 0 : index
    %301 = vector.load %arg2[%c1_204, %c11_205, %c0_206, %c0_207] : memref<4x12x32x8xf32, #tpu.memory_space<vmem>>, vector<1x1x32x8xf32>
    %302 = vector.shape_cast %301 : vector<1x1x32x8xf32> to vector<32x8xf32>
    %cst_208 = arith.constant dense<0.000000e+00> : vector<16x8xf32>
    %303 = tpu.matmul %216, %302, %cst_208 {dimension_numbers = #tpu.dot_dimension_numbers<[1], [0], [0], [1], [0, 0, 1, 1], [], []>} : vector<16x32xf32>, vector<32x8xf32>, vector<16x8xf32> -> vector<16x8xf32>
    %cst_209 = arith.constant dense<0.000000e+00> : vector<16x16xf32>
    %304 = tpu.matmul %297, %300, %cst_209 {dimension_numbers = #tpu.dot_dimension_numbers<[1], [1], [0], [0], [0, 0, 1, 0], [], []>} : vector<16x8xf32>, vector<16x8xf32>, vector<16x16xf32> -> vector<16x16xf32>
    %305 = arith.addf %304, %12 : vector<16x16xf32>
    %cst_210 = arith.constant dense<0xFF800000> : vector<16xf32>
    %306 = vector.multi_reduction <maximumf>, %305, %cst_210 [1] : vector<16x16xf32> to vector<16xf32>
    %307 = vector.shape_cast %306 : vector<16xf32> to vector<16x1xf32>
    %308 = vector.broadcast %307 : vector<16x1xf32> to vector<16x16xf32>
    %309 = arith.subf %305, %308 : vector<16x16xf32>
    %310 = math.exp %309 : vector<16x16xf32>
    %cst_211 = arith.constant dense<0.000000e+00> : vector<16xf32>
    %311 = vector.multi_reduction <add>, %310, %cst_211 [1] : vector<16x16xf32> to vector<16xf32>
    %312 = vector.shape_cast %311 : vector<16xf32> to vector<16x1xf32>
    %313 = tpu.reciprocal %312 {approx = true} : vector<16x1xf32> -> vector<16x1xf32>
    %314 = vector.broadcast %313 : vector<16x1xf32> to vector<16x16xf32>
    %315 = arith.mulf %310, %314 : vector<16x16xf32>
    %cst_212 = arith.constant dense<0.000000e+00> : vector<16x8xf32>
    %316 = tpu.matmul %315, %303, %cst_212 {dimension_numbers = #tpu.dot_dimension_numbers<[1], [0], [0], [1], [0, 0, 1, 1], [], []>} : vector<16x16xf32>, vector<16x8xf32>, vector<16x8xf32> -> vector<16x8xf32>
    %c1_213 = arith.constant 1 : index
    %c3_214 = arith.constant 3 : index
    %c0_215 = arith.constant 0 : index
    %c0_216 = arith.constant 0 : index
    %317 = vector.load %arg3[%c1_213, %c3_214, %c0_215, %c0_216] : memref<4x4x8x32xf32, #tpu.memory_space<vmem>>, vector<1x1x8x32xf32>
    %318 = vector.shape_cast %317 : vector<1x1x8x32xf32> to vector<8x32xf32>
    %cst_217 = arith.constant dense<0.000000e+00> : vector<16x32xf32>
    %319 = tpu.matmul %316, %318, %cst_217 {dimension_numbers = #tpu.dot_dimension_numbers<[1], [0], [0], [1], [0, 0, 1, 1], [], []>} : vector<16x8xf32>, vector<8x32xf32>, vector<16x32xf32> -> vector<16x32xf32>
    %320 = arith.addf %294, %319 : vector<16x32xf32>
    %cst_218 = arith.constant dense<0.000000e+00> : vector<16xf32>
    %321 = vector.multi_reduction <add>, %320, %cst_218 [1] : vector<16x32xf32> to vector<16xf32>
    %322 = vector.shape_cast %321 : vector<16xf32> to vector<16x1xf32>
    %cst_219 = arith.constant 3.200000e+01 : f32
    %323 = vector.broadcast %cst_219 : f32 to vector<16x1xf32>
    %324 = arith.divf %322, %323 : vector<16x1xf32>
    %325 = vector.broadcast %324 : vector<16x1xf32> to vector<16x32xf32>
    %326 = arith.subf %320, %325 : vector<16x32xf32>
    %327 = arith.mulf %326, %326 : vector<16x32xf32>
    %cst_220 = arith.constant dense<0.000000e+00> : vector<16xf32>
    %328 = vector.multi_reduction <add>, %327, %cst_220 [1] : vector<16x32xf32> to vector<16xf32>
    %329 = vector.shape_cast %328 : vector<16xf32> to vector<16x1xf32>
    %cst_221 = arith.constant 3.200000e+01 : f32
    %330 = vector.broadcast %cst_221 : f32 to vector<16x1xf32>
    %331 = arith.divf %329, %330 : vector<16x1xf32>
    %332 = vector.broadcast %324 : vector<16x1xf32> to vector<16x32xf32>
    %333 = arith.subf %320, %332 : vector<16x32xf32>
    %cst_222 = arith.constant 9.99999974E-6 : f32
    %334 = vector.broadcast %cst_222 : f32 to vector<16x1xf32>
    %335 = arith.addf %331, %334 : vector<16x1xf32>
    %336 = math.rsqrt %335 : vector<16x1xf32>
    %337 = vector.broadcast %336 : vector<16x1xf32> to vector<16x32xf32>
    %338 = arith.mulf %333, %337 : vector<16x32xf32>
    %339 = vector.broadcast %192 : vector<1x32xf32> to vector<16x32xf32>
    %340 = arith.mulf %338, %339 : vector<16x32xf32>
    %341 = vector.broadcast %193 : vector<1x32xf32> to vector<16x32xf32>
    %342 = arith.addf %340, %341 : vector<16x32xf32>
    %c1_223 = arith.constant 1 : index
    %c0_224 = arith.constant 0 : index
    %c0_225 = arith.constant 0 : index
    %343 = vector.load %arg4[%c1_223, %c0_224, %c0_225] : memref<4x32x128xf32, #tpu.memory_space<vmem>>, vector<1x32x128xf32>
    %344 = vector.shape_cast %343 : vector<1x32x128xf32> to vector<32x128xf32>
    %cst_226 = arith.constant dense<0.000000e+00> : vector<16x128xf32>
    %345 = tpu.matmul %342, %344, %cst_226 {dimension_numbers = #tpu.dot_dimension_numbers<[1], [0], [0], [1], [0, 0, 1, 1], [], []>} : vector<16x32xf32>, vector<32x128xf32>, vector<16x128xf32> -> vector<16x128xf32>
    %c1_227 = arith.constant 1 : index
    %c0_228 = arith.constant 0 : index
    %346 = vector.load %arg6[%c1_227, %c0_228] : memref<5x128xf32, #tpu.memory_space<vmem>>, vector<1x128xf32>
    %347 = vector.broadcast %346 : vector<1x128xf32> to vector<16x128xf32>
    %348 = arith.addf %345, %347 : vector<16x128xf32>
    %cst_229 = arith.constant 5.000000e-01 : f32
    %349 = vector.broadcast %cst_229 : f32 to vector<16x128xf32>
    %350 = arith.mulf %349, %348 : vector<16x128xf32>
    %cst_230 = arith.constant 0.707106769 : f32
    %351 = vector.broadcast %cst_230 : f32 to vector<16x128xf32>
    %352 = arith.mulf %348, %351 : vector<16x128xf32>
    %353 = math.erf %352 : vector<16x128xf32>
    %cst_231 = arith.constant 1.000000e+00 : f32
    %354 = vector.broadcast %cst_231 : f32 to vector<16x128xf32>
    %355 = arith.addf %354, %353 : vector<16x128xf32>
    %356 = arith.mulf %350, %355 : vector<16x128xf32>
    %c1_232 = arith.constant 1 : index
    %c0_233 = arith.constant 0 : index
    %c0_234 = arith.constant 0 : index
    %357 = vector.load %arg5[%c1_232, %c0_233, %c0_234] : memref<4x128x32xf32, #tpu.memory_space<vmem>>, vector<1x128x32xf32>
    %358 = vector.shape_cast %357 : vector<1x128x32xf32> to vector<128x32xf32>
    %cst_235 = arith.constant dense<0.000000e+00> : vector<16x32xf32>
    %359 = tpu.matmul %356, %358, %cst_235 {dimension_numbers = #tpu.dot_dimension_numbers<[1], [0], [0], [1], [0, 0, 1, 1], [], []>} : vector<16x128xf32>, vector<128x32xf32>, vector<16x32xf32> -> vector<16x32xf32>
    %360 = arith.addf %320, %359 : vector<16x32xf32>
    %361 = vector.broadcast %194 : vector<1x32xf32> to vector<16x32xf32>
    %362 = arith.addf %360, %361 : vector<16x32xf32>
    %c2_236 = arith.constant 2 : index
    %c0_237 = arith.constant 0 : index
    %c0_238 = arith.constant 0 : index
    %363 = vector.load %arg1[%c2_236, %c0_237, %c0_238] : memref<4x5x32xf32, #tpu.memory_space<vmem>>, vector<1x5x32xf32>
    %364 = vector.shape_cast %363 : vector<1x5x32xf32> to vector<5x32xf32>
    %365 = vector.extract_strided_slice %364 {offsets = [0, 0], sizes = [1, 32], strides = [1, 1]} : vector<5x32xf32> to vector<1x32xf32>
    %366 = vector.extract_strided_slice %364 {offsets = [1, 0], sizes = [1, 32], strides = [1, 1]} : vector<5x32xf32> to vector<1x32xf32>
    %367 = vector.extract_strided_slice %364 {offsets = [2, 0], sizes = [1, 32], strides = [1, 1]} : vector<5x32xf32> to vector<1x32xf32>
    %368 = vector.extract_strided_slice %364 {offsets = [3, 0], sizes = [1, 32], strides = [1, 1]} : vector<5x32xf32> to vector<1x32xf32>
    %369 = vector.extract_strided_slice %364 {offsets = [4, 0], sizes = [1, 32], strides = [1, 1]} : vector<5x32xf32> to vector<1x32xf32>
    %cst_239 = arith.constant dense<0.000000e+00> : vector<16xf32>
    %370 = vector.multi_reduction <add>, %362, %cst_239 [1] : vector<16x32xf32> to vector<16xf32>
    %371 = vector.shape_cast %370 : vector<16xf32> to vector<16x1xf32>
    %cst_240 = arith.constant 3.200000e+01 : f32
    %372 = vector.broadcast %cst_240 : f32 to vector<16x1xf32>
    %373 = arith.divf %371, %372 : vector<16x1xf32>
    %374 = vector.broadcast %373 : vector<16x1xf32> to vector<16x32xf32>
    %375 = arith.subf %362, %374 : vector<16x32xf32>
    %376 = arith.mulf %375, %375 : vector<16x32xf32>
    %cst_241 = arith.constant dense<0.000000e+00> : vector<16xf32>
    %377 = vector.multi_reduction <add>, %376, %cst_241 [1] : vector<16x32xf32> to vector<16xf32>
    %378 = vector.shape_cast %377 : vector<16xf32> to vector<16x1xf32>
    %cst_242 = arith.constant 3.200000e+01 : f32
    %379 = vector.broadcast %cst_242 : f32 to vector<16x1xf32>
    %380 = arith.divf %378, %379 : vector<16x1xf32>
    %381 = vector.broadcast %373 : vector<16x1xf32> to vector<16x32xf32>
    %382 = arith.subf %362, %381 : vector<16x32xf32>
    %cst_243 = arith.constant 9.99999974E-6 : f32
    %383 = vector.broadcast %cst_243 : f32 to vector<16x1xf32>
    %384 = arith.addf %380, %383 : vector<16x1xf32>
    %385 = math.rsqrt %384 : vector<16x1xf32>
    %386 = vector.broadcast %385 : vector<16x1xf32> to vector<16x32xf32>
    %387 = arith.mulf %382, %386 : vector<16x32xf32>
    %388 = vector.broadcast %365 : vector<1x32xf32> to vector<16x32xf32>
    %389 = arith.mulf %387, %388 : vector<16x32xf32>
    %390 = vector.broadcast %366 : vector<1x32xf32> to vector<16x32xf32>
    %391 = arith.addf %389, %390 : vector<16x32xf32>
    %c2_244 = arith.constant 2 : index
    %c0_245 = arith.constant 0 : index
    %c0_246 = arith.constant 0 : index
    %c0_247 = arith.constant 0 : index
    %392 = vector.load %arg2[%c2_244, %c0_245, %c0_246, %c0_247] : memref<4x12x32x8xf32, #tpu.memory_space<vmem>>, vector<1x1x32x8xf32>
    %393 = vector.shape_cast %392 : vector<1x1x32x8xf32> to vector<32x8xf32>
    %cst_248 = arith.constant dense<0.000000e+00> : vector<16x8xf32>
    %394 = tpu.matmul %391, %393, %cst_248 {dimension_numbers = #tpu.dot_dimension_numbers<[1], [0], [0], [1], [0, 0, 1, 1], [], []>} : vector<16x32xf32>, vector<32x8xf32>, vector<16x8xf32> -> vector<16x8xf32>
    %c2_249 = arith.constant 2 : index
    %c4_250 = arith.constant 4 : index
    %c0_251 = arith.constant 0 : index
    %c0_252 = arith.constant 0 : index
    %395 = vector.load %arg2[%c2_249, %c4_250, %c0_251, %c0_252] : memref<4x12x32x8xf32, #tpu.memory_space<vmem>>, vector<1x1x32x8xf32>
    %396 = vector.shape_cast %395 : vector<1x1x32x8xf32> to vector<32x8xf32>
    %cst_253 = arith.constant dense<0.000000e+00> : vector<16x8xf32>
    %397 = tpu.matmul %391, %396, %cst_253 {dimension_numbers = #tpu.dot_dimension_numbers<[1], [0], [0], [1], [0, 0, 1, 1], [], []>} : vector<16x32xf32>, vector<32x8xf32>, vector<16x8xf32> -> vector<16x8xf32>
    %c2_254 = arith.constant 2 : index
    %c8_255 = arith.constant 8 : index
    %c0_256 = arith.constant 0 : index
    %c0_257 = arith.constant 0 : index
    %398 = vector.load %arg2[%c2_254, %c8_255, %c0_256, %c0_257] : memref<4x12x32x8xf32, #tpu.memory_space<vmem>>, vector<1x1x32x8xf32>
    %399 = vector.shape_cast %398 : vector<1x1x32x8xf32> to vector<32x8xf32>
    %cst_258 = arith.constant dense<0.000000e+00> : vector<16x8xf32>
    %400 = tpu.matmul %391, %399, %cst_258 {dimension_numbers = #tpu.dot_dimension_numbers<[1], [0], [0], [1], [0, 0, 1, 1], [], []>} : vector<16x32xf32>, vector<32x8xf32>, vector<16x8xf32> -> vector<16x8xf32>
    %cst_259 = arith.constant dense<0.000000e+00> : vector<16x16xf32>
    %401 = tpu.matmul %394, %397, %cst_259 {dimension_numbers = #tpu.dot_dimension_numbers<[1], [1], [0], [0], [0, 0, 1, 0], [], []>} : vector<16x8xf32>, vector<16x8xf32>, vector<16x16xf32> -> vector<16x16xf32>
    %402 = arith.addf %401, %12 : vector<16x16xf32>
    %cst_260 = arith.constant dense<0xFF800000> : vector<16xf32>
    %403 = vector.multi_reduction <maximumf>, %402, %cst_260 [1] : vector<16x16xf32> to vector<16xf32>
    %404 = vector.shape_cast %403 : vector<16xf32> to vector<16x1xf32>
    %405 = vector.broadcast %404 : vector<16x1xf32> to vector<16x16xf32>
    %406 = arith.subf %402, %405 : vector<16x16xf32>
    %407 = math.exp %406 : vector<16x16xf32>
    %cst_261 = arith.constant dense<0.000000e+00> : vector<16xf32>
    %408 = vector.multi_reduction <add>, %407, %cst_261 [1] : vector<16x16xf32> to vector<16xf32>
    %409 = vector.shape_cast %408 : vector<16xf32> to vector<16x1xf32>
    %410 = tpu.reciprocal %409 {approx = true} : vector<16x1xf32> -> vector<16x1xf32>
    %411 = vector.broadcast %410 : vector<16x1xf32> to vector<16x16xf32>
    %412 = arith.mulf %407, %411 : vector<16x16xf32>
    %cst_262 = arith.constant dense<0.000000e+00> : vector<16x8xf32>
    %413 = tpu.matmul %412, %400, %cst_262 {dimension_numbers = #tpu.dot_dimension_numbers<[1], [0], [0], [1], [0, 0, 1, 1], [], []>} : vector<16x16xf32>, vector<16x8xf32>, vector<16x8xf32> -> vector<16x8xf32>
    %c2_263 = arith.constant 2 : index
    %c0_264 = arith.constant 0 : index
    %c0_265 = arith.constant 0 : index
    %c0_266 = arith.constant 0 : index
    %414 = vector.load %arg3[%c2_263, %c0_264, %c0_265, %c0_266] : memref<4x4x8x32xf32, #tpu.memory_space<vmem>>, vector<1x1x8x32xf32>
    %415 = vector.shape_cast %414 : vector<1x1x8x32xf32> to vector<8x32xf32>
    %cst_267 = arith.constant dense<0.000000e+00> : vector<16x32xf32>
    %416 = tpu.matmul %413, %415, %cst_267 {dimension_numbers = #tpu.dot_dimension_numbers<[1], [0], [0], [1], [0, 0, 1, 1], [], []>} : vector<16x8xf32>, vector<8x32xf32>, vector<16x32xf32> -> vector<16x32xf32>
    %417 = arith.addf %362, %416 : vector<16x32xf32>
    %c2_268 = arith.constant 2 : index
    %c1_269 = arith.constant 1 : index
    %c0_270 = arith.constant 0 : index
    %c0_271 = arith.constant 0 : index
    %418 = vector.load %arg2[%c2_268, %c1_269, %c0_270, %c0_271] : memref<4x12x32x8xf32, #tpu.memory_space<vmem>>, vector<1x1x32x8xf32>
    %419 = vector.shape_cast %418 : vector<1x1x32x8xf32> to vector<32x8xf32>
    %cst_272 = arith.constant dense<0.000000e+00> : vector<16x8xf32>
    %420 = tpu.matmul %391, %419, %cst_272 {dimension_numbers = #tpu.dot_dimension_numbers<[1], [0], [0], [1], [0, 0, 1, 1], [], []>} : vector<16x32xf32>, vector<32x8xf32>, vector<16x8xf32> -> vector<16x8xf32>
    %c2_273 = arith.constant 2 : index
    %c5_274 = arith.constant 5 : index
    %c0_275 = arith.constant 0 : index
    %c0_276 = arith.constant 0 : index
    %421 = vector.load %arg2[%c2_273, %c5_274, %c0_275, %c0_276] : memref<4x12x32x8xf32, #tpu.memory_space<vmem>>, vector<1x1x32x8xf32>
    %422 = vector.shape_cast %421 : vector<1x1x32x8xf32> to vector<32x8xf32>
    %cst_277 = arith.constant dense<0.000000e+00> : vector<16x8xf32>
    %423 = tpu.matmul %391, %422, %cst_277 {dimension_numbers = #tpu.dot_dimension_numbers<[1], [0], [0], [1], [0, 0, 1, 1], [], []>} : vector<16x32xf32>, vector<32x8xf32>, vector<16x8xf32> -> vector<16x8xf32>
    %c2_278 = arith.constant 2 : index
    %c9_279 = arith.constant 9 : index
    %c0_280 = arith.constant 0 : index
    %c0_281 = arith.constant 0 : index
    %424 = vector.load %arg2[%c2_278, %c9_279, %c0_280, %c0_281] : memref<4x12x32x8xf32, #tpu.memory_space<vmem>>, vector<1x1x32x8xf32>
    %425 = vector.shape_cast %424 : vector<1x1x32x8xf32> to vector<32x8xf32>
    %cst_282 = arith.constant dense<0.000000e+00> : vector<16x8xf32>
    %426 = tpu.matmul %391, %425, %cst_282 {dimension_numbers = #tpu.dot_dimension_numbers<[1], [0], [0], [1], [0, 0, 1, 1], [], []>} : vector<16x32xf32>, vector<32x8xf32>, vector<16x8xf32> -> vector<16x8xf32>
    %cst_283 = arith.constant dense<0.000000e+00> : vector<16x16xf32>
    %427 = tpu.matmul %420, %423, %cst_283 {dimension_numbers = #tpu.dot_dimension_numbers<[1], [1], [0], [0], [0, 0, 1, 0], [], []>} : vector<16x8xf32>, vector<16x8xf32>, vector<16x16xf32> -> vector<16x16xf32>
    %428 = arith.addf %427, %12 : vector<16x16xf32>
    %cst_284 = arith.constant dense<0xFF800000> : vector<16xf32>
    %429 = vector.multi_reduction <maximumf>, %428, %cst_284 [1] : vector<16x16xf32> to vector<16xf32>
    %430 = vector.shape_cast %429 : vector<16xf32> to vector<16x1xf32>
    %431 = vector.broadcast %430 : vector<16x1xf32> to vector<16x16xf32>
    %432 = arith.subf %428, %431 : vector<16x16xf32>
    %433 = math.exp %432 : vector<16x16xf32>
    %cst_285 = arith.constant dense<0.000000e+00> : vector<16xf32>
    %434 = vector.multi_reduction <add>, %433, %cst_285 [1] : vector<16x16xf32> to vector<16xf32>
    %435 = vector.shape_cast %434 : vector<16xf32> to vector<16x1xf32>
    %436 = tpu.reciprocal %435 {approx = true} : vector<16x1xf32> -> vector<16x1xf32>
    %437 = vector.broadcast %436 : vector<16x1xf32> to vector<16x16xf32>
    %438 = arith.mulf %433, %437 : vector<16x16xf32>
    %cst_286 = arith.constant dense<0.000000e+00> : vector<16x8xf32>
    %439 = tpu.matmul %438, %426, %cst_286 {dimension_numbers = #tpu.dot_dimension_numbers<[1], [0], [0], [1], [0, 0, 1, 1], [], []>} : vector<16x16xf32>, vector<16x8xf32>, vector<16x8xf32> -> vector<16x8xf32>
    %c2_287 = arith.constant 2 : index
    %c1_288 = arith.constant 1 : index
    %c0_289 = arith.constant 0 : index
    %c0_290 = arith.constant 0 : index
    %440 = vector.load %arg3[%c2_287, %c1_288, %c0_289, %c0_290] : memref<4x4x8x32xf32, #tpu.memory_space<vmem>>, vector<1x1x8x32xf32>
    %441 = vector.shape_cast %440 : vector<1x1x8x32xf32> to vector<8x32xf32>
    %cst_291 = arith.constant dense<0.000000e+00> : vector<16x32xf32>
    %442 = tpu.matmul %439, %441, %cst_291 {dimension_numbers = #tpu.dot_dimension_numbers<[1], [0], [0], [1], [0, 0, 1, 1], [], []>} : vector<16x8xf32>, vector<8x32xf32>, vector<16x32xf32> -> vector<16x32xf32>
    %443 = arith.addf %417, %442 : vector<16x32xf32>
    %c2_292 = arith.constant 2 : index
    %c2_293 = arith.constant 2 : index
    %c0_294 = arith.constant 0 : index
    %c0_295 = arith.constant 0 : index
    %444 = vector.load %arg2[%c2_292, %c2_293, %c0_294, %c0_295] : memref<4x12x32x8xf32, #tpu.memory_space<vmem>>, vector<1x1x32x8xf32>
    %445 = vector.shape_cast %444 : vector<1x1x32x8xf32> to vector<32x8xf32>
    %cst_296 = arith.constant dense<0.000000e+00> : vector<16x8xf32>
    %446 = tpu.matmul %391, %445, %cst_296 {dimension_numbers = #tpu.dot_dimension_numbers<[1], [0], [0], [1], [0, 0, 1, 1], [], []>} : vector<16x32xf32>, vector<32x8xf32>, vector<16x8xf32> -> vector<16x8xf32>
    %c2_297 = arith.constant 2 : index
    %c6_298 = arith.constant 6 : index
    %c0_299 = arith.constant 0 : index
    %c0_300 = arith.constant 0 : index
    %447 = vector.load %arg2[%c2_297, %c6_298, %c0_299, %c0_300] : memref<4x12x32x8xf32, #tpu.memory_space<vmem>>, vector<1x1x32x8xf32>
    %448 = vector.shape_cast %447 : vector<1x1x32x8xf32> to vector<32x8xf32>
    %cst_301 = arith.constant dense<0.000000e+00> : vector<16x8xf32>
    %449 = tpu.matmul %391, %448, %cst_301 {dimension_numbers = #tpu.dot_dimension_numbers<[1], [0], [0], [1], [0, 0, 1, 1], [], []>} : vector<16x32xf32>, vector<32x8xf32>, vector<16x8xf32> -> vector<16x8xf32>
    %c2_302 = arith.constant 2 : index
    %c10_303 = arith.constant 10 : index
    %c0_304 = arith.constant 0 : index
    %c0_305 = arith.constant 0 : index
    %450 = vector.load %arg2[%c2_302, %c10_303, %c0_304, %c0_305] : memref<4x12x32x8xf32, #tpu.memory_space<vmem>>, vector<1x1x32x8xf32>
    %451 = vector.shape_cast %450 : vector<1x1x32x8xf32> to vector<32x8xf32>
    %cst_306 = arith.constant dense<0.000000e+00> : vector<16x8xf32>
    %452 = tpu.matmul %391, %451, %cst_306 {dimension_numbers = #tpu.dot_dimension_numbers<[1], [0], [0], [1], [0, 0, 1, 1], [], []>} : vector<16x32xf32>, vector<32x8xf32>, vector<16x8xf32> -> vector<16x8xf32>
    %cst_307 = arith.constant dense<0.000000e+00> : vector<16x16xf32>
    %453 = tpu.matmul %446, %449, %cst_307 {dimension_numbers = #tpu.dot_dimension_numbers<[1], [1], [0], [0], [0, 0, 1, 0], [], []>} : vector<16x8xf32>, vector<16x8xf32>, vector<16x16xf32> -> vector<16x16xf32>
    %454 = arith.addf %453, %12 : vector<16x16xf32>
    %cst_308 = arith.constant dense<0xFF800000> : vector<16xf32>
    %455 = vector.multi_reduction <maximumf>, %454, %cst_308 [1] : vector<16x16xf32> to vector<16xf32>
    %456 = vector.shape_cast %455 : vector<16xf32> to vector<16x1xf32>
    %457 = vector.broadcast %456 : vector<16x1xf32> to vector<16x16xf32>
    %458 = arith.subf %454, %457 : vector<16x16xf32>
    %459 = math.exp %458 : vector<16x16xf32>
    %cst_309 = arith.constant dense<0.000000e+00> : vector<16xf32>
    %460 = vector.multi_reduction <add>, %459, %cst_309 [1] : vector<16x16xf32> to vector<16xf32>
    %461 = vector.shape_cast %460 : vector<16xf32> to vector<16x1xf32>
    %462 = tpu.reciprocal %461 {approx = true} : vector<16x1xf32> -> vector<16x1xf32>
    %463 = vector.broadcast %462 : vector<16x1xf32> to vector<16x16xf32>
    %464 = arith.mulf %459, %463 : vector<16x16xf32>
    %cst_310 = arith.constant dense<0.000000e+00> : vector<16x8xf32>
    %465 = tpu.matmul %464, %452, %cst_310 {dimension_numbers = #tpu.dot_dimension_numbers<[1], [0], [0], [1], [0, 0, 1, 1], [], []>} : vector<16x16xf32>, vector<16x8xf32>, vector<16x8xf32> -> vector<16x8xf32>
    %c2_311 = arith.constant 2 : index
    %c2_312 = arith.constant 2 : index
    %c0_313 = arith.constant 0 : index
    %c0_314 = arith.constant 0 : index
    %466 = vector.load %arg3[%c2_311, %c2_312, %c0_313, %c0_314] : memref<4x4x8x32xf32, #tpu.memory_space<vmem>>, vector<1x1x8x32xf32>
    %467 = vector.shape_cast %466 : vector<1x1x8x32xf32> to vector<8x32xf32>
    %cst_315 = arith.constant dense<0.000000e+00> : vector<16x32xf32>
    %468 = tpu.matmul %465, %467, %cst_315 {dimension_numbers = #tpu.dot_dimension_numbers<[1], [0], [0], [1], [0, 0, 1, 1], [], []>} : vector<16x8xf32>, vector<8x32xf32>, vector<16x32xf32> -> vector<16x32xf32>
    %469 = arith.addf %443, %468 : vector<16x32xf32>
    %c2_316 = arith.constant 2 : index
    %c3_317 = arith.constant 3 : index
    %c0_318 = arith.constant 0 : index
    %c0_319 = arith.constant 0 : index
    %470 = vector.load %arg2[%c2_316, %c3_317, %c0_318, %c0_319] : memref<4x12x32x8xf32, #tpu.memory_space<vmem>>, vector<1x1x32x8xf32>
    %471 = vector.shape_cast %470 : vector<1x1x32x8xf32> to vector<32x8xf32>
    %cst_320 = arith.constant dense<0.000000e+00> : vector<16x8xf32>
    %472 = tpu.matmul %391, %471, %cst_320 {dimension_numbers = #tpu.dot_dimension_numbers<[1], [0], [0], [1], [0, 0, 1, 1], [], []>} : vector<16x32xf32>, vector<32x8xf32>, vector<16x8xf32> -> vector<16x8xf32>
    %c2_321 = arith.constant 2 : index
    %c7_322 = arith.constant 7 : index
    %c0_323 = arith.constant 0 : index
    %c0_324 = arith.constant 0 : index
    %473 = vector.load %arg2[%c2_321, %c7_322, %c0_323, %c0_324] : memref<4x12x32x8xf32, #tpu.memory_space<vmem>>, vector<1x1x32x8xf32>
    %474 = vector.shape_cast %473 : vector<1x1x32x8xf32> to vector<32x8xf32>
    %cst_325 = arith.constant dense<0.000000e+00> : vector<16x8xf32>
    %475 = tpu.matmul %391, %474, %cst_325 {dimension_numbers = #tpu.dot_dimension_numbers<[1], [0], [0], [1], [0, 0, 1, 1], [], []>} : vector<16x32xf32>, vector<32x8xf32>, vector<16x8xf32> -> vector<16x8xf32>
    %c2_326 = arith.constant 2 : index
    %c11_327 = arith.constant 11 : index
    %c0_328 = arith.constant 0 : index
    %c0_329 = arith.constant 0 : index
    %476 = vector.load %arg2[%c2_326, %c11_327, %c0_328, %c0_329] : memref<4x12x32x8xf32, #tpu.memory_space<vmem>>, vector<1x1x32x8xf32>
    %477 = vector.shape_cast %476 : vector<1x1x32x8xf32> to vector<32x8xf32>
    %cst_330 = arith.constant dense<0.000000e+00> : vector<16x8xf32>
    %478 = tpu.matmul %391, %477, %cst_330 {dimension_numbers = #tpu.dot_dimension_numbers<[1], [0], [0], [1], [0, 0, 1, 1], [], []>} : vector<16x32xf32>, vector<32x8xf32>, vector<16x8xf32> -> vector<16x8xf32>
    %cst_331 = arith.constant dense<0.000000e+00> : vector<16x16xf32>
    %479 = tpu.matmul %472, %475, %cst_331 {dimension_numbers = #tpu.dot_dimension_numbers<[1], [1], [0], [0], [0, 0, 1, 0], [], []>} : vector<16x8xf32>, vector<16x8xf32>, vector<16x16xf32> -> vector<16x16xf32>
    %480 = arith.addf %479, %12 : vector<16x16xf32>
    %cst_332 = arith.constant dense<0xFF800000> : vector<16xf32>
    %481 = vector.multi_reduction <maximumf>, %480, %cst_332 [1] : vector<16x16xf32> to vector<16xf32>
    %482 = vector.shape_cast %481 : vector<16xf32> to vector<16x1xf32>
    %483 = vector.broadcast %482 : vector<16x1xf32> to vector<16x16xf32>
    %484 = arith.subf %480, %483 : vector<16x16xf32>
    %485 = math.exp %484 : vector<16x16xf32>
    %cst_333 = arith.constant dense<0.000000e+00> : vector<16xf32>
    %486 = vector.multi_reduction <add>, %485, %cst_333 [1] : vector<16x16xf32> to vector<16xf32>
    %487 = vector.shape_cast %486 : vector<16xf32> to vector<16x1xf32>
    %488 = tpu.reciprocal %487 {approx = true} : vector<16x1xf32> -> vector<16x1xf32>
    %489 = vector.broadcast %488 : vector<16x1xf32> to vector<16x16xf32>
    %490 = arith.mulf %485, %489 : vector<16x16xf32>
    %cst_334 = arith.constant dense<0.000000e+00> : vector<16x8xf32>
    %491 = tpu.matmul %490, %478, %cst_334 {dimension_numbers = #tpu.dot_dimension_numbers<[1], [0], [0], [1], [0, 0, 1, 1], [], []>} : vector<16x16xf32>, vector<16x8xf32>, vector<16x8xf32> -> vector<16x8xf32>
    %c2_335 = arith.constant 2 : index
    %c3_336 = arith.constant 3 : index
    %c0_337 = arith.constant 0 : index
    %c0_338 = arith.constant 0 : index
    %492 = vector.load %arg3[%c2_335, %c3_336, %c0_337, %c0_338] : memref<4x4x8x32xf32, #tpu.memory_space<vmem>>, vector<1x1x8x32xf32>
    %493 = vector.shape_cast %492 : vector<1x1x8x32xf32> to vector<8x32xf32>
    %cst_339 = arith.constant dense<0.000000e+00> : vector<16x32xf32>
    %494 = tpu.matmul %491, %493, %cst_339 {dimension_numbers = #tpu.dot_dimension_numbers<[1], [0], [0], [1], [0, 0, 1, 1], [], []>} : vector<16x8xf32>, vector<8x32xf32>, vector<16x32xf32> -> vector<16x32xf32>
    %495 = arith.addf %469, %494 : vector<16x32xf32>
    %cst_340 = arith.constant dense<0.000000e+00> : vector<16xf32>
    %496 = vector.multi_reduction <add>, %495, %cst_340 [1] : vector<16x32xf32> to vector<16xf32>
    %497 = vector.shape_cast %496 : vector<16xf32> to vector<16x1xf32>
    %cst_341 = arith.constant 3.200000e+01 : f32
    %498 = vector.broadcast %cst_341 : f32 to vector<16x1xf32>
    %499 = arith.divf %497, %498 : vector<16x1xf32>
    %500 = vector.broadcast %499 : vector<16x1xf32> to vector<16x32xf32>
    %501 = arith.subf %495, %500 : vector<16x32xf32>
    %502 = arith.mulf %501, %501 : vector<16x32xf32>
    %cst_342 = arith.constant dense<0.000000e+00> : vector<16xf32>
    %503 = vector.multi_reduction <add>, %502, %cst_342 [1] : vector<16x32xf32> to vector<16xf32>
    %504 = vector.shape_cast %503 : vector<16xf32> to vector<16x1xf32>
    %cst_343 = arith.constant 3.200000e+01 : f32
    %505 = vector.broadcast %cst_343 : f32 to vector<16x1xf32>
    %506 = arith.divf %504, %505 : vector<16x1xf32>
    %507 = vector.broadcast %499 : vector<16x1xf32> to vector<16x32xf32>
    %508 = arith.subf %495, %507 : vector<16x32xf32>
    %cst_344 = arith.constant 9.99999974E-6 : f32
    %509 = vector.broadcast %cst_344 : f32 to vector<16x1xf32>
    %510 = arith.addf %506, %509 : vector<16x1xf32>
    %511 = math.rsqrt %510 : vector<16x1xf32>
    %512 = vector.broadcast %511 : vector<16x1xf32> to vector<16x32xf32>
    %513 = arith.mulf %508, %512 : vector<16x32xf32>
    %514 = vector.broadcast %367 : vector<1x32xf32> to vector<16x32xf32>
    %515 = arith.mulf %513, %514 : vector<16x32xf32>
    %516 = vector.broadcast %368 : vector<1x32xf32> to vector<16x32xf32>
    %517 = arith.addf %515, %516 : vector<16x32xf32>
    %c2_345 = arith.constant 2 : index
    %c0_346 = arith.constant 0 : index
    %c0_347 = arith.constant 0 : index
    %518 = vector.load %arg4[%c2_345, %c0_346, %c0_347] : memref<4x32x128xf32, #tpu.memory_space<vmem>>, vector<1x32x128xf32>
    %519 = vector.shape_cast %518 : vector<1x32x128xf32> to vector<32x128xf32>
    %cst_348 = arith.constant dense<0.000000e+00> : vector<16x128xf32>
    %520 = tpu.matmul %517, %519, %cst_348 {dimension_numbers = #tpu.dot_dimension_numbers<[1], [0], [0], [1], [0, 0, 1, 1], [], []>} : vector<16x32xf32>, vector<32x128xf32>, vector<16x128xf32> -> vector<16x128xf32>
    %c2_349 = arith.constant 2 : index
    %c0_350 = arith.constant 0 : index
    %521 = vector.load %arg6[%c2_349, %c0_350] : memref<5x128xf32, #tpu.memory_space<vmem>>, vector<1x128xf32>
    %522 = vector.broadcast %521 : vector<1x128xf32> to vector<16x128xf32>
    %523 = arith.addf %520, %522 : vector<16x128xf32>
    %cst_351 = arith.constant 5.000000e-01 : f32
    %524 = vector.broadcast %cst_351 : f32 to vector<16x128xf32>
    %525 = arith.mulf %524, %523 : vector<16x128xf32>
    %cst_352 = arith.constant 0.707106769 : f32
    %526 = vector.broadcast %cst_352 : f32 to vector<16x128xf32>
    %527 = arith.mulf %523, %526 : vector<16x128xf32>
    %528 = math.erf %527 : vector<16x128xf32>
    %cst_353 = arith.constant 1.000000e+00 : f32
    %529 = vector.broadcast %cst_353 : f32 to vector<16x128xf32>
    %530 = arith.addf %529, %528 : vector<16x128xf32>
    %531 = arith.mulf %525, %530 : vector<16x128xf32>
    %c2_354 = arith.constant 2 : index
    %c0_355 = arith.constant 0 : index
    %c0_356 = arith.constant 0 : index
    %532 = vector.load %arg5[%c2_354, %c0_355, %c0_356] : memref<4x128x32xf32, #tpu.memory_space<vmem>>, vector<1x128x32xf32>
    %533 = vector.shape_cast %532 : vector<1x128x32xf32> to vector<128x32xf32>
    %cst_357 = arith.constant dense<0.000000e+00> : vector<16x32xf32>
    %534 = tpu.matmul %531, %533, %cst_357 {dimension_numbers = #tpu.dot_dimension_numbers<[1], [0], [0], [1], [0, 0, 1, 1], [], []>} : vector<16x128xf32>, vector<128x32xf32>, vector<16x32xf32> -> vector<16x32xf32>
    %535 = arith.addf %495, %534 : vector<16x32xf32>
    %536 = vector.broadcast %369 : vector<1x32xf32> to vector<16x32xf32>
    %537 = arith.addf %535, %536 : vector<16x32xf32>
    %c3_358 = arith.constant 3 : index
    %c0_359 = arith.constant 0 : index
    %c0_360 = arith.constant 0 : index
    %538 = vector.load %arg1[%c3_358, %c0_359, %c0_360] : memref<4x5x32xf32, #tpu.memory_space<vmem>>, vector<1x5x32xf32>
    %539 = vector.shape_cast %538 : vector<1x5x32xf32> to vector<5x32xf32>
    %540 = vector.extract_strided_slice %539 {offsets = [0, 0], sizes = [1, 32], strides = [1, 1]} : vector<5x32xf32> to vector<1x32xf32>
    %541 = vector.extract_strided_slice %539 {offsets = [1, 0], sizes = [1, 32], strides = [1, 1]} : vector<5x32xf32> to vector<1x32xf32>
    %542 = vector.extract_strided_slice %539 {offsets = [2, 0], sizes = [1, 32], strides = [1, 1]} : vector<5x32xf32> to vector<1x32xf32>
    %543 = vector.extract_strided_slice %539 {offsets = [3, 0], sizes = [1, 32], strides = [1, 1]} : vector<5x32xf32> to vector<1x32xf32>
    %544 = vector.extract_strided_slice %539 {offsets = [4, 0], sizes = [1, 32], strides = [1, 1]} : vector<5x32xf32> to vector<1x32xf32>
    %cst_361 = arith.constant dense<0.000000e+00> : vector<16xf32>
    %545 = vector.multi_reduction <add>, %537, %cst_361 [1] : vector<16x32xf32> to vector<16xf32>
    %546 = vector.shape_cast %545 : vector<16xf32> to vector<16x1xf32>
    %cst_362 = arith.constant 3.200000e+01 : f32
    %547 = vector.broadcast %cst_362 : f32 to vector<16x1xf32>
    %548 = arith.divf %546, %547 : vector<16x1xf32>
    %549 = vector.broadcast %548 : vector<16x1xf32> to vector<16x32xf32>
    %550 = arith.subf %537, %549 : vector<16x32xf32>
    %551 = arith.mulf %550, %550 : vector<16x32xf32>
    %cst_363 = arith.constant dense<0.000000e+00> : vector<16xf32>
    %552 = vector.multi_reduction <add>, %551, %cst_363 [1] : vector<16x32xf32> to vector<16xf32>
    %553 = vector.shape_cast %552 : vector<16xf32> to vector<16x1xf32>
    %cst_364 = arith.constant 3.200000e+01 : f32
    %554 = vector.broadcast %cst_364 : f32 to vector<16x1xf32>
    %555 = arith.divf %553, %554 : vector<16x1xf32>
    %556 = vector.broadcast %548 : vector<16x1xf32> to vector<16x32xf32>
    %557 = arith.subf %537, %556 : vector<16x32xf32>
    %cst_365 = arith.constant 9.99999974E-6 : f32
    %558 = vector.broadcast %cst_365 : f32 to vector<16x1xf32>
    %559 = arith.addf %555, %558 : vector<16x1xf32>
    %560 = math.rsqrt %559 : vector<16x1xf32>
    %561 = vector.broadcast %560 : vector<16x1xf32> to vector<16x32xf32>
    %562 = arith.mulf %557, %561 : vector<16x32xf32>
    %563 = vector.broadcast %540 : vector<1x32xf32> to vector<16x32xf32>
    %564 = arith.mulf %562, %563 : vector<16x32xf32>
    %565 = vector.broadcast %541 : vector<1x32xf32> to vector<16x32xf32>
    %566 = arith.addf %564, %565 : vector<16x32xf32>
    %c3_366 = arith.constant 3 : index
    %c0_367 = arith.constant 0 : index
    %c0_368 = arith.constant 0 : index
    %c0_369 = arith.constant 0 : index
    %567 = vector.load %arg2[%c3_366, %c0_367, %c0_368, %c0_369] : memref<4x12x32x8xf32, #tpu.memory_space<vmem>>, vector<1x1x32x8xf32>
    %568 = vector.shape_cast %567 : vector<1x1x32x8xf32> to vector<32x8xf32>
    %cst_370 = arith.constant dense<0.000000e+00> : vector<16x8xf32>
    %569 = tpu.matmul %566, %568, %cst_370 {dimension_numbers = #tpu.dot_dimension_numbers<[1], [0], [0], [1], [0, 0, 1, 1], [], []>} : vector<16x32xf32>, vector<32x8xf32>, vector<16x8xf32> -> vector<16x8xf32>
    %c3_371 = arith.constant 3 : index
    %c4_372 = arith.constant 4 : index
    %c0_373 = arith.constant 0 : index
    %c0_374 = arith.constant 0 : index
    %570 = vector.load %arg2[%c3_371, %c4_372, %c0_373, %c0_374] : memref<4x12x32x8xf32, #tpu.memory_space<vmem>>, vector<1x1x32x8xf32>
    %571 = vector.shape_cast %570 : vector<1x1x32x8xf32> to vector<32x8xf32>
    %cst_375 = arith.constant dense<0.000000e+00> : vector<16x8xf32>
    %572 = tpu.matmul %566, %571, %cst_375 {dimension_numbers = #tpu.dot_dimension_numbers<[1], [0], [0], [1], [0, 0, 1, 1], [], []>} : vector<16x32xf32>, vector<32x8xf32>, vector<16x8xf32> -> vector<16x8xf32>
    %c3_376 = arith.constant 3 : index
    %c8_377 = arith.constant 8 : index
    %c0_378 = arith.constant 0 : index
    %c0_379 = arith.constant 0 : index
    %573 = vector.load %arg2[%c3_376, %c8_377, %c0_378, %c0_379] : memref<4x12x32x8xf32, #tpu.memory_space<vmem>>, vector<1x1x32x8xf32>
    %574 = vector.shape_cast %573 : vector<1x1x32x8xf32> to vector<32x8xf32>
    %cst_380 = arith.constant dense<0.000000e+00> : vector<16x8xf32>
    %575 = tpu.matmul %566, %574, %cst_380 {dimension_numbers = #tpu.dot_dimension_numbers<[1], [0], [0], [1], [0, 0, 1, 1], [], []>} : vector<16x32xf32>, vector<32x8xf32>, vector<16x8xf32> -> vector<16x8xf32>
    %cst_381 = arith.constant dense<0.000000e+00> : vector<16x16xf32>
    %576 = tpu.matmul %569, %572, %cst_381 {dimension_numbers = #tpu.dot_dimension_numbers<[1], [1], [0], [0], [0, 0, 1, 0], [], []>} : vector<16x8xf32>, vector<16x8xf32>, vector<16x16xf32> -> vector<16x16xf32>
    %577 = arith.addf %576, %12 : vector<16x16xf32>
    %cst_382 = arith.constant dense<0xFF800000> : vector<16xf32>
    %578 = vector.multi_reduction <maximumf>, %577, %cst_382 [1] : vector<16x16xf32> to vector<16xf32>
    %579 = vector.shape_cast %578 : vector<16xf32> to vector<16x1xf32>
    %580 = vector.broadcast %579 : vector<16x1xf32> to vector<16x16xf32>
    %581 = arith.subf %577, %580 : vector<16x16xf32>
    %582 = math.exp %581 : vector<16x16xf32>
    %cst_383 = arith.constant dense<0.000000e+00> : vector<16xf32>
    %583 = vector.multi_reduction <add>, %582, %cst_383 [1] : vector<16x16xf32> to vector<16xf32>
    %584 = vector.shape_cast %583 : vector<16xf32> to vector<16x1xf32>
    %585 = tpu.reciprocal %584 {approx = true} : vector<16x1xf32> -> vector<16x1xf32>
    %586 = vector.broadcast %585 : vector<16x1xf32> to vector<16x16xf32>
    %587 = arith.mulf %582, %586 : vector<16x16xf32>
    %cst_384 = arith.constant dense<0.000000e+00> : vector<16x8xf32>
    %588 = tpu.matmul %587, %575, %cst_384 {dimension_numbers = #tpu.dot_dimension_numbers<[1], [0], [0], [1], [0, 0, 1, 1], [], []>} : vector<16x16xf32>, vector<16x8xf32>, vector<16x8xf32> -> vector<16x8xf32>
    %c3_385 = arith.constant 3 : index
    %c0_386 = arith.constant 0 : index
    %c0_387 = arith.constant 0 : index
    %c0_388 = arith.constant 0 : index
    %589 = vector.load %arg3[%c3_385, %c0_386, %c0_387, %c0_388] : memref<4x4x8x32xf32, #tpu.memory_space<vmem>>, vector<1x1x8x32xf32>
    %590 = vector.shape_cast %589 : vector<1x1x8x32xf32> to vector<8x32xf32>
    %cst_389 = arith.constant dense<0.000000e+00> : vector<16x32xf32>
    %591 = tpu.matmul %588, %590, %cst_389 {dimension_numbers = #tpu.dot_dimension_numbers<[1], [0], [0], [1], [0, 0, 1, 1], [], []>} : vector<16x8xf32>, vector<8x32xf32>, vector<16x32xf32> -> vector<16x32xf32>
    %592 = arith.addf %537, %591 : vector<16x32xf32>
    %c3_390 = arith.constant 3 : index
    %c1_391 = arith.constant 1 : index
    %c0_392 = arith.constant 0 : index
    %c0_393 = arith.constant 0 : index
    %593 = vector.load %arg2[%c3_390, %c1_391, %c0_392, %c0_393] : memref<4x12x32x8xf32, #tpu.memory_space<vmem>>, vector<1x1x32x8xf32>
    %594 = vector.shape_cast %593 : vector<1x1x32x8xf32> to vector<32x8xf32>
    %cst_394 = arith.constant dense<0.000000e+00> : vector<16x8xf32>
    %595 = tpu.matmul %566, %594, %cst_394 {dimension_numbers = #tpu.dot_dimension_numbers<[1], [0], [0], [1], [0, 0, 1, 1], [], []>} : vector<16x32xf32>, vector<32x8xf32>, vector<16x8xf32> -> vector<16x8xf32>
    %c3_395 = arith.constant 3 : index
    %c5_396 = arith.constant 5 : index
    %c0_397 = arith.constant 0 : index
    %c0_398 = arith.constant 0 : index
    %596 = vector.load %arg2[%c3_395, %c5_396, %c0_397, %c0_398] : memref<4x12x32x8xf32, #tpu.memory_space<vmem>>, vector<1x1x32x8xf32>
    %597 = vector.shape_cast %596 : vector<1x1x32x8xf32> to vector<32x8xf32>
    %cst_399 = arith.constant dense<0.000000e+00> : vector<16x8xf32>
    %598 = tpu.matmul %566, %597, %cst_399 {dimension_numbers = #tpu.dot_dimension_numbers<[1], [0], [0], [1], [0, 0, 1, 1], [], []>} : vector<16x32xf32>, vector<32x8xf32>, vector<16x8xf32> -> vector<16x8xf32>
    %c3_400 = arith.constant 3 : index
    %c9_401 = arith.constant 9 : index
    %c0_402 = arith.constant 0 : index
    %c0_403 = arith.constant 0 : index
    %599 = vector.load %arg2[%c3_400, %c9_401, %c0_402, %c0_403] : memref<4x12x32x8xf32, #tpu.memory_space<vmem>>, vector<1x1x32x8xf32>
    %600 = vector.shape_cast %599 : vector<1x1x32x8xf32> to vector<32x8xf32>
    %cst_404 = arith.constant dense<0.000000e+00> : vector<16x8xf32>
    %601 = tpu.matmul %566, %600, %cst_404 {dimension_numbers = #tpu.dot_dimension_numbers<[1], [0], [0], [1], [0, 0, 1, 1], [], []>} : vector<16x32xf32>, vector<32x8xf32>, vector<16x8xf32> -> vector<16x8xf32>
    %cst_405 = arith.constant dense<0.000000e+00> : vector<16x16xf32>
    %602 = tpu.matmul %595, %598, %cst_405 {dimension_numbers = #tpu.dot_dimension_numbers<[1], [1], [0], [0], [0, 0, 1, 0], [], []>} : vector<16x8xf32>, vector<16x8xf32>, vector<16x16xf32> -> vector<16x16xf32>
    %603 = arith.addf %602, %12 : vector<16x16xf32>
    %cst_406 = arith.constant dense<0xFF800000> : vector<16xf32>
    %604 = vector.multi_reduction <maximumf>, %603, %cst_406 [1] : vector<16x16xf32> to vector<16xf32>
    %605 = vector.shape_cast %604 : vector<16xf32> to vector<16x1xf32>
    %606 = vector.broadcast %605 : vector<16x1xf32> to vector<16x16xf32>
    %607 = arith.subf %603, %606 : vector<16x16xf32>
    %608 = math.exp %607 : vector<16x16xf32>
    %cst_407 = arith.constant dense<0.000000e+00> : vector<16xf32>
    %609 = vector.multi_reduction <add>, %608, %cst_407 [1] : vector<16x16xf32> to vector<16xf32>
    %610 = vector.shape_cast %609 : vector<16xf32> to vector<16x1xf32>
    %611 = tpu.reciprocal %610 {approx = true} : vector<16x1xf32> -> vector<16x1xf32>
    %612 = vector.broadcast %611 : vector<16x1xf32> to vector<16x16xf32>
    %613 = arith.mulf %608, %612 : vector<16x16xf32>
    %cst_408 = arith.constant dense<0.000000e+00> : vector<16x8xf32>
    %614 = tpu.matmul %613, %601, %cst_408 {dimension_numbers = #tpu.dot_dimension_numbers<[1], [0], [0], [1], [0, 0, 1, 1], [], []>} : vector<16x16xf32>, vector<16x8xf32>, vector<16x8xf32> -> vector<16x8xf32>
    %c3_409 = arith.constant 3 : index
    %c1_410 = arith.constant 1 : index
    %c0_411 = arith.constant 0 : index
    %c0_412 = arith.constant 0 : index
    %615 = vector.load %arg3[%c3_409, %c1_410, %c0_411, %c0_412] : memref<4x4x8x32xf32, #tpu.memory_space<vmem>>, vector<1x1x8x32xf32>
    %616 = vector.shape_cast %615 : vector<1x1x8x32xf32> to vector<8x32xf32>
    %cst_413 = arith.constant dense<0.000000e+00> : vector<16x32xf32>
    %617 = tpu.matmul %614, %616, %cst_413 {dimension_numbers = #tpu.dot_dimension_numbers<[1], [0], [0], [1], [0, 0, 1, 1], [], []>} : vector<16x8xf32>, vector<8x32xf32>, vector<16x32xf32> -> vector<16x32xf32>
    %618 = arith.addf %592, %617 : vector<16x32xf32>
    %c3_414 = arith.constant 3 : index
    %c2_415 = arith.constant 2 : index
    %c0_416 = arith.constant 0 : index
    %c0_417 = arith.constant 0 : index
    %619 = vector.load %arg2[%c3_414, %c2_415, %c0_416, %c0_417] : memref<4x12x32x8xf32, #tpu.memory_space<vmem>>, vector<1x1x32x8xf32>
    %620 = vector.shape_cast %619 : vector<1x1x32x8xf32> to vector<32x8xf32>
    %cst_418 = arith.constant dense<0.000000e+00> : vector<16x8xf32>
    %621 = tpu.matmul %566, %620, %cst_418 {dimension_numbers = #tpu.dot_dimension_numbers<[1], [0], [0], [1], [0, 0, 1, 1], [], []>} : vector<16x32xf32>, vector<32x8xf32>, vector<16x8xf32> -> vector<16x8xf32>
    %c3_419 = arith.constant 3 : index
    %c6_420 = arith.constant 6 : index
    %c0_421 = arith.constant 0 : index
    %c0_422 = arith.constant 0 : index
    %622 = vector.load %arg2[%c3_419, %c6_420, %c0_421, %c0_422] : memref<4x12x32x8xf32, #tpu.memory_space<vmem>>, vector<1x1x32x8xf32>
    %623 = vector.shape_cast %622 : vector<1x1x32x8xf32> to vector<32x8xf32>
    %cst_423 = arith.constant dense<0.000000e+00> : vector<16x8xf32>
    %624 = tpu.matmul %566, %623, %cst_423 {dimension_numbers = #tpu.dot_dimension_numbers<[1], [0], [0], [1], [0, 0, 1, 1], [], []>} : vector<16x32xf32>, vector<32x8xf32>, vector<16x8xf32> -> vector<16x8xf32>
    %c3_424 = arith.constant 3 : index
    %c10_425 = arith.constant 10 : index
    %c0_426 = arith.constant 0 : index
    %c0_427 = arith.constant 0 : index
    %625 = vector.load %arg2[%c3_424, %c10_425, %c0_426, %c0_427] : memref<4x12x32x8xf32, #tpu.memory_space<vmem>>, vector<1x1x32x8xf32>
    %626 = vector.shape_cast %625 : vector<1x1x32x8xf32> to vector<32x8xf32>
    %cst_428 = arith.constant dense<0.000000e+00> : vector<16x8xf32>
    %627 = tpu.matmul %566, %626, %cst_428 {dimension_numbers = #tpu.dot_dimension_numbers<[1], [0], [0], [1], [0, 0, 1, 1], [], []>} : vector<16x32xf32>, vector<32x8xf32>, vector<16x8xf32> -> vector<16x8xf32>
    %cst_429 = arith.constant dense<0.000000e+00> : vector<16x16xf32>
    %628 = tpu.matmul %621, %624, %cst_429 {dimension_numbers = #tpu.dot_dimension_numbers<[1], [1], [0], [0], [0, 0, 1, 0], [], []>} : vector<16x8xf32>, vector<16x8xf32>, vector<16x16xf32> -> vector<16x16xf32>
    %629 = arith.addf %628, %12 : vector<16x16xf32>
    %cst_430 = arith.constant dense<0xFF800000> : vector<16xf32>
    %630 = vector.multi_reduction <maximumf>, %629, %cst_430 [1] : vector<16x16xf32> to vector<16xf32>
    %631 = vector.shape_cast %630 : vector<16xf32> to vector<16x1xf32>
    %632 = vector.broadcast %631 : vector<16x1xf32> to vector<16x16xf32>
    %633 = arith.subf %629, %632 : vector<16x16xf32>
    %634 = math.exp %633 : vector<16x16xf32>
    %cst_431 = arith.constant dense<0.000000e+00> : vector<16xf32>
    %635 = vector.multi_reduction <add>, %634, %cst_431 [1] : vector<16x16xf32> to vector<16xf32>
    %636 = vector.shape_cast %635 : vector<16xf32> to vector<16x1xf32>
    %637 = tpu.reciprocal %636 {approx = true} : vector<16x1xf32> -> vector<16x1xf32>
    %638 = vector.broadcast %637 : vector<16x1xf32> to vector<16x16xf32>
    %639 = arith.mulf %634, %638 : vector<16x16xf32>
    %cst_432 = arith.constant dense<0.000000e+00> : vector<16x8xf32>
    %640 = tpu.matmul %639, %627, %cst_432 {dimension_numbers = #tpu.dot_dimension_numbers<[1], [0], [0], [1], [0, 0, 1, 1], [], []>} : vector<16x16xf32>, vector<16x8xf32>, vector<16x8xf32> -> vector<16x8xf32>
    %c3_433 = arith.constant 3 : index
    %c2_434 = arith.constant 2 : index
    %c0_435 = arith.constant 0 : index
    %c0_436 = arith.constant 0 : index
    %641 = vector.load %arg3[%c3_433, %c2_434, %c0_435, %c0_436] : memref<4x4x8x32xf32, #tpu.memory_space<vmem>>, vector<1x1x8x32xf32>
    %642 = vector.shape_cast %641 : vector<1x1x8x32xf32> to vector<8x32xf32>
    %cst_437 = arith.constant dense<0.000000e+00> : vector<16x32xf32>
    %643 = tpu.matmul %640, %642, %cst_437 {dimension_numbers = #tpu.dot_dimension_numbers<[1], [0], [0], [1], [0, 0, 1, 1], [], []>} : vector<16x8xf32>, vector<8x32xf32>, vector<16x32xf32> -> vector<16x32xf32>
    %644 = arith.addf %618, %643 : vector<16x32xf32>
    %c3_438 = arith.constant 3 : index
    %c3_439 = arith.constant 3 : index
    %c0_440 = arith.constant 0 : index
    %c0_441 = arith.constant 0 : index
    %645 = vector.load %arg2[%c3_438, %c3_439, %c0_440, %c0_441] : memref<4x12x32x8xf32, #tpu.memory_space<vmem>>, vector<1x1x32x8xf32>
    %646 = vector.shape_cast %645 : vector<1x1x32x8xf32> to vector<32x8xf32>
    %cst_442 = arith.constant dense<0.000000e+00> : vector<16x8xf32>
    %647 = tpu.matmul %566, %646, %cst_442 {dimension_numbers = #tpu.dot_dimension_numbers<[1], [0], [0], [1], [0, 0, 1, 1], [], []>} : vector<16x32xf32>, vector<32x8xf32>, vector<16x8xf32> -> vector<16x8xf32>
    %c3_443 = arith.constant 3 : index
    %c7_444 = arith.constant 7 : index
    %c0_445 = arith.constant 0 : index
    %c0_446 = arith.constant 0 : index
    %648 = vector.load %arg2[%c3_443, %c7_444, %c0_445, %c0_446] : memref<4x12x32x8xf32, #tpu.memory_space<vmem>>, vector<1x1x32x8xf32>
    %649 = vector.shape_cast %648 : vector<1x1x32x8xf32> to vector<32x8xf32>
    %cst_447 = arith.constant dense<0.000000e+00> : vector<16x8xf32>
    %650 = tpu.matmul %566, %649, %cst_447 {dimension_numbers = #tpu.dot_dimension_numbers<[1], [0], [0], [1], [0, 0, 1, 1], [], []>} : vector<16x32xf32>, vector<32x8xf32>, vector<16x8xf32> -> vector<16x8xf32>
    %c3_448 = arith.constant 3 : index
    %c11_449 = arith.constant 11 : index
    %c0_450 = arith.constant 0 : index
    %c0_451 = arith.constant 0 : index
    %651 = vector.load %arg2[%c3_448, %c11_449, %c0_450, %c0_451] : memref<4x12x32x8xf32, #tpu.memory_space<vmem>>, vector<1x1x32x8xf32>
    %652 = vector.shape_cast %651 : vector<1x1x32x8xf32> to vector<32x8xf32>
    %cst_452 = arith.constant dense<0.000000e+00> : vector<16x8xf32>
    %653 = tpu.matmul %566, %652, %cst_452 {dimension_numbers = #tpu.dot_dimension_numbers<[1], [0], [0], [1], [0, 0, 1, 1], [], []>} : vector<16x32xf32>, vector<32x8xf32>, vector<16x8xf32> -> vector<16x8xf32>
    %cst_453 = arith.constant dense<0.000000e+00> : vector<16x16xf32>
    %654 = tpu.matmul %647, %650, %cst_453 {dimension_numbers = #tpu.dot_dimension_numbers<[1], [1], [0], [0], [0, 0, 1, 0], [], []>} : vector<16x8xf32>, vector<16x8xf32>, vector<16x16xf32> -> vector<16x16xf32>
    %655 = arith.addf %654, %12 : vector<16x16xf32>
    %cst_454 = arith.constant dense<0xFF800000> : vector<16xf32>
    %656 = vector.multi_reduction <maximumf>, %655, %cst_454 [1] : vector<16x16xf32> to vector<16xf32>
    %657 = vector.shape_cast %656 : vector<16xf32> to vector<16x1xf32>
    %658 = vector.broadcast %657 : vector<16x1xf32> to vector<16x16xf32>
    %659 = arith.subf %655, %658 : vector<16x16xf32>
    %660 = math.exp %659 : vector<16x16xf32>
    %cst_455 = arith.constant dense<0.000000e+00> : vector<16xf32>
    %661 = vector.multi_reduction <add>, %660, %cst_455 [1] : vector<16x16xf32> to vector<16xf32>
    %662 = vector.shape_cast %661 : vector<16xf32> to vector<16x1xf32>
    %663 = tpu.reciprocal %662 {approx = true} : vector<16x1xf32> -> vector<16x1xf32>
    %664 = vector.broadcast %663 : vector<16x1xf32> to vector<16x16xf32>
    %665 = arith.mulf %660, %664 : vector<16x16xf32>
    %cst_456 = arith.constant dense<0.000000e+00> : vector<16x8xf32>
    %666 = tpu.matmul %665, %653, %cst_456 {dimension_numbers = #tpu.dot_dimension_numbers<[1], [0], [0], [1], [0, 0, 1, 1], [], []>} : vector<16x16xf32>, vector<16x8xf32>, vector<16x8xf32> -> vector<16x8xf32>
    %c3_457 = arith.constant 3 : index
    %c3_458 = arith.constant 3 : index
    %c0_459 = arith.constant 0 : index
    %c0_460 = arith.constant 0 : index
    %667 = vector.load %arg3[%c3_457, %c3_458, %c0_459, %c0_460] : memref<4x4x8x32xf32, #tpu.memory_space<vmem>>, vector<1x1x8x32xf32>
    %668 = vector.shape_cast %667 : vector<1x1x8x32xf32> to vector<8x32xf32>
    %cst_461 = arith.constant dense<0.000000e+00> : vector<16x32xf32>
    %669 = tpu.matmul %666, %668, %cst_461 {dimension_numbers = #tpu.dot_dimension_numbers<[1], [0], [0], [1], [0, 0, 1, 1], [], []>} : vector<16x8xf32>, vector<8x32xf32>, vector<16x32xf32> -> vector<16x32xf32>
    %670 = arith.addf %644, %669 : vector<16x32xf32>
    %cst_462 = arith.constant dense<0.000000e+00> : vector<16xf32>
    %671 = vector.multi_reduction <add>, %670, %cst_462 [1] : vector<16x32xf32> to vector<16xf32>
    %672 = vector.shape_cast %671 : vector<16xf32> to vector<16x1xf32>
    %cst_463 = arith.constant 3.200000e+01 : f32
    %673 = vector.broadcast %cst_463 : f32 to vector<16x1xf32>
    %674 = arith.divf %672, %673 : vector<16x1xf32>
    %675 = vector.broadcast %674 : vector<16x1xf32> to vector<16x32xf32>
    %676 = arith.subf %670, %675 : vector<16x32xf32>
    %677 = arith.mulf %676, %676 : vector<16x32xf32>
    %cst_464 = arith.constant dense<0.000000e+00> : vector<16xf32>
    %678 = vector.multi_reduction <add>, %677, %cst_464 [1] : vector<16x32xf32> to vector<16xf32>
    %679 = vector.shape_cast %678 : vector<16xf32> to vector<16x1xf32>
    %cst_465 = arith.constant 3.200000e+01 : f32
    %680 = vector.broadcast %cst_465 : f32 to vector<16x1xf32>
    %681 = arith.divf %679, %680 : vector<16x1xf32>
    %682 = vector.broadcast %674 : vector<16x1xf32> to vector<16x32xf32>
    %683 = arith.subf %670, %682 : vector<16x32xf32>
    %cst_466 = arith.constant 9.99999974E-6 : f32
    %684 = vector.broadcast %cst_466 : f32 to vector<16x1xf32>
    %685 = arith.addf %681, %684 : vector<16x1xf32>
    %686 = math.rsqrt %685 : vector<16x1xf32>
    %687 = vector.broadcast %686 : vector<16x1xf32> to vector<16x32xf32>
    %688 = arith.mulf %683, %687 : vector<16x32xf32>
    %689 = vector.broadcast %542 : vector<1x32xf32> to vector<16x32xf32>
    %690 = arith.mulf %688, %689 : vector<16x32xf32>
    %691 = vector.broadcast %543 : vector<1x32xf32> to vector<16x32xf32>
    %692 = arith.addf %690, %691 : vector<16x32xf32>
    %c3_467 = arith.constant 3 : index
    %c0_468 = arith.constant 0 : index
    %c0_469 = arith.constant 0 : index
    %693 = vector.load %arg4[%c3_467, %c0_468, %c0_469] : memref<4x32x128xf32, #tpu.memory_space<vmem>>, vector<1x32x128xf32>
    %694 = vector.shape_cast %693 : vector<1x32x128xf32> to vector<32x128xf32>
    %cst_470 = arith.constant dense<0.000000e+00> : vector<16x128xf32>
    %695 = tpu.matmul %692, %694, %cst_470 {dimension_numbers = #tpu.dot_dimension_numbers<[1], [0], [0], [1], [0, 0, 1, 1], [], []>} : vector<16x32xf32>, vector<32x128xf32>, vector<16x128xf32> -> vector<16x128xf32>
    %c3_471 = arith.constant 3 : index
    %c0_472 = arith.constant 0 : index
    %696 = vector.load %arg6[%c3_471, %c0_472] : memref<5x128xf32, #tpu.memory_space<vmem>>, vector<1x128xf32>
    %697 = vector.broadcast %696 : vector<1x128xf32> to vector<16x128xf32>
    %698 = arith.addf %695, %697 : vector<16x128xf32>
    %cst_473 = arith.constant 5.000000e-01 : f32
    %699 = vector.broadcast %cst_473 : f32 to vector<16x128xf32>
    %700 = arith.mulf %699, %698 : vector<16x128xf32>
    %cst_474 = arith.constant 0.707106769 : f32
    %701 = vector.broadcast %cst_474 : f32 to vector<16x128xf32>
    %702 = arith.mulf %698, %701 : vector<16x128xf32>
    %703 = math.erf %702 : vector<16x128xf32>
    %cst_475 = arith.constant 1.000000e+00 : f32
    %704 = vector.broadcast %cst_475 : f32 to vector<16x128xf32>
    %705 = arith.addf %704, %703 : vector<16x128xf32>
    %706 = arith.mulf %700, %705 : vector<16x128xf32>
    %c3_476 = arith.constant 3 : index
    %c0_477 = arith.constant 0 : index
    %c0_478 = arith.constant 0 : index
    %707 = vector.load %arg5[%c3_476, %c0_477, %c0_478] : memref<4x128x32xf32, #tpu.memory_space<vmem>>, vector<1x128x32xf32>
    %708 = vector.shape_cast %707 : vector<1x128x32xf32> to vector<128x32xf32>
    %cst_479 = arith.constant dense<0.000000e+00> : vector<16x32xf32>
    %709 = tpu.matmul %706, %708, %cst_479 {dimension_numbers = #tpu.dot_dimension_numbers<[1], [0], [0], [1], [0, 0, 1, 1], [], []>} : vector<16x128xf32>, vector<128x32xf32>, vector<16x32xf32> -> vector<16x32xf32>
    %710 = arith.addf %670, %709 : vector<16x32xf32>
    %711 = vector.broadcast %544 : vector<1x32xf32> to vector<16x32xf32>
    %712 = arith.addf %710, %711 : vector<16x32xf32>
    %c0_480 = arith.constant 0 : index
    %c0_481 = arith.constant 0 : index
    %713 = vector.load %arg7[%c0_480, %c0_481] : memref<32x128xf32, #tpu.memory_space<vmem>>, vector<32x128xf32>
    %cst_482 = arith.constant dense<0.000000e+00> : vector<16x128xf32>
    %714 = tpu.matmul %712, %713, %cst_482 {dimension_numbers = #tpu.dot_dimension_numbers<[1], [0], [0], [1], [0, 0, 1, 1], [], []>} : vector<16x32xf32>, vector<32x128xf32>, vector<16x128xf32> -> vector<16x128xf32>
    %c4_483 = arith.constant 4 : index
    %c0_484 = arith.constant 0 : index
    %715 = vector.load %arg6[%c4_483, %c0_484] : memref<5x128xf32, #tpu.memory_space<vmem>>, vector<1x128xf32>
    %716 = vector.broadcast %715 : vector<1x128xf32> to vector<16x128xf32>
    %717 = arith.addf %714, %716 : vector<16x128xf32>
    %c0_485 = arith.constant 0 : index
    %c0_486 = arith.constant 0 : index
    %718 = vector.load %arg8[%c0_485, %c0_486] : memref<16x128xf32, #tpu.memory_space<vmem>>, vector<16x128xf32>
    tpu.vector_store %arg8[%c0_485, %c0_486], %717 {strides = array<i32>} : memref<16x128xf32, #tpu.memory_space<vmem>>, vector<16x128xf32>,
    return
  }
}

</mosaic_0001>

<llo_original>
// kernel: tpu_custom_call.1
$region0: #{tpu_custom_call.1}
  #allocation0 [shape = 'u32[]', space=smem, size = 0x4, offset = 0x4, fixed_abs, tag = 'smem constant byte address 0x4 - core index']
  #allocation1 [shape = 'u32[144,128]{1,0:T(1,128)}', space=vmem, size = 0x12000, scoped, tag = 'internal scratch']
  %s0 = inlined_call_operand.vmem [shape: f32[16,32], index: 0, kind: input, shape index: {}]
  %s1 = inlined_call_operand.vmem [shape: f32[4,5,32], index: 1, kind: input, shape index: {}]
  %s2 = inlined_call_operand.vmem [shape: f32[4,12,32,8], index: 2, kind: input, shape index: {}]
  %s3 = inlined_call_operand.vmem [shape: f32[4,4,8,32], index: 3, kind: input, shape index: {}]
  %s4 = inlined_call_operand.vmem [shape: f32[4,32,128], index: 4, kind: input, shape index: {}]
  %s5 = inlined_call_operand.vmem [shape: f32[4,128,32], index: 5, kind: input, shape index: {}]
  %s6 = inlined_call_operand.vmem [shape: f32[5,128], index: 6, kind: input, shape index: {}]
  %s7 = inlined_call_operand.vmem [shape: f32[32,128], index: 7, kind: input, shape index: {}]
  %s8 = inlined_call_operand.hbm [shape: f32[16,128], index: 8, kind: output, shape index: {}]
  %s9 = sld [smem:[#allocation0]]
  $region42: #{tpu_custom_call.1} parent=0
    _
  %s11 = ssub.s32 1, %s9
  %s12 = scalar_select 0, %s11, %s9
  $region1: #{tpu_custom_call.1} parent=0
    #allocation2 [shape = 'u8[8192]{0}', space=vmem, size = 0x2000, scoped, tag = 'output window, operand 0, single buffered']
    #allocation3 [shape = 's32[1]{0}', space=sflag, size = 0x4, scoped, tag = 'scoped memory for tpu_custom_call.1']
    %13 = vsyncpa [#allocation3], 0
    // Predicated region
    $region2: #{tpu_custom_call.1} parent=1 // pred_check
      _
    $region3: #{tpu_custom_call.1} parent=1 // pred_check_branch
      %15 = sbr.rel (0) target = $region5
    $region4: #{tpu_custom_call.1} parent=1 // pred_region
      _
    $region5: #{tpu_custom_call.1} parent=1 // pred_fallthru
      _
    // Predicated region
    $region6: #{tpu_custom_call.1} parent=1 // pred_check
      _
    $region7: #{tpu_custom_call.1} parent=1 // pred_check_branch
      %17 = sbr.rel (0) target = $region9
    $region8: #{tpu_custom_call.1} parent=1 // pred_region
      _
    $region9: #{tpu_custom_call.1} parent=1 // pred_fallthru
      _
    // Predicated region
    $region10: #{tpu_custom_call.1} parent=1 // pred_check
      _
    $region11: #{tpu_custom_call.1} parent=1 // pred_check_branch
      %19 = sbr.rel (0) target = $region13
    $region12: #{tpu_custom_call.1} parent=1 // pred_region
      _
    $region13: #{tpu_custom_call.1} parent=1 // pred_fallthru
      _
    // Predicated region
    $region14: #{tpu_custom_call.1} parent=1 // pred_check
      _
    $region15: #{tpu_custom_call.1} parent=1 // pred_check_branch
      %21 = sbr.rel (0) target = $region17
    $region16: #{tpu_custom_call.1} parent=1 // pred_region
      _
    $region17: #{tpu_custom_call.1} parent=1 // pred_fallthru
      _
    // Predicated region
    $region18: #{tpu_custom_call.1} parent=1 // pred_check
      _
    $region19: #{tpu_custom_call.1} parent=1 // pred_check_branch
      %23 = sbr.rel (0) target = $region21
    $region20: #{tpu_custom_call.1} parent=1 // pred_region
      _
    $region21: #{tpu_custom_call.1} parent=1 // pred_fallthru
      _
    // Predicated region
    $region22: #{tpu_custom_call.1} parent=1 // pred_check
      _
    $region23: #{tpu_custom_call.1} parent=1 // pred_check_branch
      %25 = sbr.rel (0) target = $region25
    $region24: #{tpu_custom_call.1} parent=1 // pred_region
      _
    $region25: #{tpu_custom_call.1} parent=1 // pred_fallthru
      _
    // Predicated region
    $region26: #{tpu_custom_call.1} parent=1 // pred_check
      _
    $region27: #{tpu_custom_call.1} parent=1 // pred_check_branch
      %27 = sbr.rel (0) target = $region29
    $region28: #{tpu_custom_call.1} parent=1 // pred_region
      _
    $region29: #{tpu_custom_call.1} parent=1 // pred_fallthru
      _
    // Predicated region
    $region30: #{tpu_custom_call.1} parent=1 // pred_check
      _
    $region31: #{tpu_custom_call.1} parent=1 // pred_check_branch
      %29 = sbr.rel (0) target = $region33
    $region32: #{tpu_custom_call.1} parent=1 // pred_region
      _
    $region33: #{tpu_custom_call.1} parent=1 // pred_fallthru
      _
    %v30 = vld [vmem:[%s0] sm:$0xff]
    %v31 = vld [vmem:[%s0 + $0x8] sm:$0xff]
    %v32 = vlaneseq
    %v33 = vshrl.u32 %v32, 7
    %v34 = vadd.s32 %v33, 8
    %v35 = vlaneseq
    %v36 = vand.u32 %v35, 127
    %v37 = vand.u32 %v33, 4294967288
    %v38 = vand.u32 %v34, 4294967288
    %v39 = vand.u32 %v36, 4294967288
    %vm40 = vcmp.eq.s32.totalorder %v37, %v39
    %vm41 = vcmp.eq.s32.totalorder %v38, %v39
    %vm42 = vcmp.le.s32.totalorder %v36, %v33
    %vm43 = vcmp.le.s32.totalorder %v36, %v34
    %vm44 = vmand %vm40, %vm42
    %vm45 = vmand %vm41, %vm43
    %v46 = vsel %vm44, 0.0, -1e+30
    %v47 = vsel %vm45, 0.0, -1e+30
    %v48 = vld [vmem:[%s1] sm:$0x1f]
    %vm49 = vcmask 261120
    %v50 = vsel %vm49, %v30, 0.0
    %51 = vadd.xlane.f32.xlu0 %v50
    %v52 = vpop.xlane.xlu0 %51
    %v53 = vsel %vm49, %v31, 0.0
    %54 = vadd.xlane.f32.xlu0 %v53
    %v55 = vpop.xlane.xlu0 %54
    %v56 = vrcp.pop 32.0
    %v57 = vmul.f32 %v52, %v56
    %v58 = vmul.f32 %v55, %v56
    %v59 = vsub.f32 %v30, %v57
    %v60 = vsub.f32 %v31, %v58
    %v61 = vmul.f32 %v59, %v59
    %v62 = vmul.f32 %v60, %v60
    %v63 = vsel %vm49, %v61, 0.0
    %64 = vadd.xlane.f32.xlu0 %v63
    %v65 = vpop.xlane.xlu0 %64
    %v66 = vsel %vm49, %v62, 0.0
    %67 = vadd.xlane.f32.xlu0 %v66
    %v68 = vpop.xlane.xlu0 %67
    %v69 = vmul.f32 %v65, %v56
    %v70 = vmul.f32 %v68, %v56
    %v71 = vadd.f32 %v69, 1e-05
    %v72 = vadd.f32 %v70, 1e-05
    %v73 = vrsqrt.pop %v71
    %v74 = vrsqrt.pop %v72
    %v75 = vmul.f32 %v59, %v73
    %v76 = vmul.f32 %v60, %v74
    %v77 = vlaneseq
    %v78 = vshrl.u32 %v77, 7
    %v79 = vsub.s32 0, %v78
    %v80 = vrot.slane %v48, %v79
    %v81 = vmul.f32 %v75, %v80
    %v82 = vmul.f32 %v76, %v80
    %v83 = vlaneseq
    %v84 = vshrl.u32 %v83, 7
    %v85 = vsub.s32 1, %v84
    %v86 = vrot.slane %v48, %v85
    %v87 = vadd.f32 %v81, %v86
    %v88 = vadd.f32 %v82, %v86
    %v89 = vld [vmem:[%s2] sm:$0xff]
    %v90 = vld [vmem:[%s2 + $0x8] sm:$0xff]
    %v91 = vld [vmem:[%s2 + $0x10] sm:$0xff]
    %v92 = vld [vmem:[%s2 + $0x18] sm:$0xff]
    %v94 = vsel %vm49, %v87, 0
    %v97 = vsel %vm49, %v88, 0
    %99 = vmatprep.subr.mxu0 0.0
    %100 = vmatpush1.msra.mxu0 0.0
    %101 = vmatprep.subr.mxu0 0.0
    %102 = vmatpush1.msra.mxu0 0.0
    %103 = vmatprep.subr.mxu0 0.0
    %104 = vmatpush1.msra.mxu0 0.0
    %105 = vmatprep.subr.mxu0 0.0
    %106 = vmatpush1.msra.mxu0 0.0
    %107 = vmatprep.subr.mxu0 0.0
    %108 = vmatpush1.msra.mxu0 0.0
    %109 = vmatprep.subr.mxu0 0.0
    %110 = vmatpush1.msra.mxu0 0.0
    %111 = vmatprep.subr.mxu0 0.0
    %112 = vmatpush1.msra.mxu0 0.0
    %113 = vmatprep.subr.mxu0 0.0
    %114 = vmatpush1.msra.mxu0 0.0
    %115 = vmatprep.subr.mxu0 0.0
    %116 = vmatpush1.msra.mxu0 0.0
    %117 = vmatprep.subr.mxu0 0.0
    %118 = vmatpush1.msra.mxu0 0.0
    %119 = vmatprep.subr.mxu0 0.0
    %120 = vmatpush1.msra.mxu0 0.0
    %121 = vmatprep.subr.mxu0 0.0
    %122 = vmatpush1.msra.mxu0 0.0
    %123 = vmatprep.subr.mxu0 0.0
    %124 = vmatpush1.msra.mxu0 %v92
    %125 = vmatprep.subr.mxu0 0.0
    %126 = vmatpush1.msra.mxu0 %v91
    %127 = vmatprep.subr.mxu0 0.0
    %128 = vmatpush1.msra.mxu0 %v90
    %129 = vmatprep.subr.mxu0 0.0
    %130 = vmatpush1.msra.mxu0 %v89
    %131 = vmatprep.subr.mxu0 0.0
    %132 = vmatpush2.msra.mxu0 0.0
    %133 = vmatprep.subr.mxu0 0.0
    %134 = vmatpush2.msra.mxu0 0.0
    %135 = vmatprep.subr.mxu0 0.0
    %136 = vmatpush2.msra.mxu0 0.0
    %137 = vmatprep.subr.mxu0 0.0
    %138 = vmatpush2.msra.mxu0 0.0
    %139 = vmatprep.subr.mxu0 0.0
    %140 = vmatpush2.msra.mxu0 0.0
    %141 = vmatprep.subr.mxu0 0.0
    %142 = vmatpush2.msra.mxu0 0.0
    %143 = vmatprep.subr.mxu0 0.0
    %144 = vmatpush2.msra.mxu0 0.0
    %145 = vmatprep.subr.mxu0 0.0
    %146 = vmatpush2.msra.mxu0 0.0
    %147 = vmatprep.subr.mxu0 0.0
    %148 = vmatpush2.msra.mxu0 0.0
    %149 = vmatprep.subr.mxu0 0.0
    %150 = vmatpush2.msra.mxu0 0.0
    %151 = vmatprep.subr.mxu0 0.0
    %152 = vmatpush2.msra.mxu0 0.0
    %153 = vmatprep.subr.mxu0 0.0
    %154 = vmatpush2.msra.mxu0 0.0
    %155 = vmatprep.subr.mxu0 0.0
    %156 = vmatpush2.msra.mxu0 0.0
    %157 = vmatprep.subr.mxu0 0.0
    %158 = vmatpush2.msra.mxu0 0.0
    %159 = vmatprep.subr.mxu0 0.0
    %160 = vmatpush2.msra.mxu0 0.0
    %161 = vmatprep.subr.mxu0 0.0
    %162 = vmatpush2.msra.mxu0 0.0
    %163 = vmatprep.mubr.f32.mxu0 0.0
    %164 = vmatmul.mubr.f32.gmra.mxu0 %v94
    %v165 = vpop.f32.mrf.mxu0
    %v166 = vadd.f32 0.0, %v165
    %v167 = vpop.f32.mrf.mxu0
    %168 = vmatprep.mubr.f32.mxu0 0.0
    %169 = vmatmul.mubr.f32.gmra.mxu0 %v97
    %v170 = vpop.f32.mrf.mxu0
    %v171 = vadd.f32 0.0, %v170
    %v172 = vpop.f32.mrf.mxu0
    %173 = vdwg.mxu0
    %s174 = scalar_lea.vmem %s2, 128
    %v175 = vld [vmem:[%s174] sm:$0xff]
    %v176 = vld [vmem:[%s174 + $0x8] sm:$0xff]
    %v177 = vld [vmem:[%s174 + $0x10] sm:$0xff]
    %v178 = vld [vmem:[%s174 + $0x18] sm:$0xff]
    %179 = vmatprep.subr.mxu0 0.0
    %180 = vmatpush1.msra.mxu0 0.0
    %181 = vmatprep.subr.mxu0 0.0
    %182 = vmatpush1.msra.mxu0 0.0
    %183 = vmatprep.subr.mxu0 0.0
    %184 = vmatpush1.msra.mxu0 0.0
    %185 = vmatprep.subr.mxu0 0.0
    %186 = vmatpush1.msra.mxu0 0.0
    %187 = vmatprep.subr.mxu0 0.0
    %188 = vmatpush1.msra.mxu0 0.0
    %189 = vmatprep.subr.mxu0 0.0
    %190 = vmatpush1.msra.mxu0 0.0
    %191 = vmatprep.subr.mxu0 0.0
    %192 = vmatpush1.msra.mxu0 0.0
    %193 = vmatprep.subr.mxu0 0.0
    %194 = vmatpush1.msra.mxu0 0.0
    %195 = vmatprep.subr.mxu0 0.0
    %196 = vmatpush1.msra.mxu0 0.0
    %197 = vmatprep.subr.mxu0 0.0
    %198 = vmatpush1.msra.mxu0 0.0
    %199 = vmatprep.subr.mxu0 0.0
    %200 = vmatpush1.msra.mxu0 0.0
    %201 = vmatprep.subr.mxu0 0.0
    %202 = vmatpush1.msra.mxu0 0.0
    %203 = vmatprep.subr.mxu0 0.0
    %204 = vmatpush1.msra.mxu0 %v178
    %205 = vmatprep.subr.mxu0 0.0
    %206 = vmatpush1.msra.mxu0 %v177
    %207 = vmatprep.subr.mxu0 0.0
    %208 = vmatpush1.msra.mxu0 %v176
    %209 = vmatprep.subr.mxu0 0.0
    %210 = vmatpush1.msra.mxu0 %v175
    %211 = vmatprep.subr.mxu0 0.0
    %212 = vmatpush2.msra.mxu0 0.0
    %213 = vmatprep.subr.mxu0 0.0
    %214 = vmatpush2.msra.mxu0 0.0
    %215 = vmatprep.subr.mxu0 0.0
    %216 = vmatpush2.msra.mxu0 0.0
    %217 = vmatprep.subr.mxu0 0.0
    %218 = vmatpush2.msra.mxu0 0.0
    %219 = vmatprep.subr.mxu0 0.0
    %220 = vmatpush2.msra.mxu0 0.0
    %221 = vmatprep.subr.mxu0 0.0
    %222 = vmatpush2.msra.mxu0 0.0
    %223 = vmatprep.subr.mxu0 0.0
    %224 = vmatpush2.msra.mxu0 0.0
    %225 = vmatprep.subr.mxu0 0.0
    %226 = vmatpush2.msra.mxu0 0.0
    %227 = vmatprep.subr.mxu0 0.0
    %228 = vmatpush2.msra.mxu0 0.0
    %229 = vmatprep.subr.mxu0 0.0
    %230 = vmatpush2.msra.mxu0 0.0
    %231 = vmatprep.subr.mxu0 0.0
    %232 = vmatpush2.msra.mxu0 0.0
    %233 = vmatprep.subr.mxu0 0.0
    %234 = vmatpush2.msra.mxu0 0.0
    %235 = vmatprep.subr.mxu0 0.0
    %236 = vmatpush2.msra.mxu0 0.0
    %237 = vmatprep.subr.mxu0 0.0
    %238 = vmatpush2.msra.mxu0 0.0
    %239 = vmatprep.subr.mxu0 0.0
    %240 = vmatpush2.msra.mxu0 0.0
    %241 = vmatprep.subr.mxu0 0.0
    %242 = vmatpush2.msra.mxu0 0.0
    %243 = vmatprep.mubr.f32.mxu0 0.0
    %244 = vmatmul.mubr.f32.gmra.mxu0 %v94
    %v245 = vpop.f32.mrf.mxu0
    %v246 = vadd.f32 0.0, %v245
    %v247 = vpop.f32.mrf.mxu0
    %248 = vmatprep.mubr.f32.mxu0 0.0
    %249 = vmatmul.mubr.f32.gmra.mxu0 %v97
    %v250 = vpop.f32.mrf.mxu0
    %v251 = vadd.f32 0.0, %v250
    %v252 = vpop.f32.mrf.mxu0
    %253 = vdwg.mxu0
    %s254 = scalar_lea.vmem %s2, 256
    %v255 = vld [vmem:[%s254] sm:$0xff]
    %v256 = vld [vmem:[%s254 + $0x8] sm:$0xff]
    %v257 = vld [vmem:[%s254 + $0x10] sm:$0xff]
    %v258 = vld [vmem:[%s254 + $0x18] sm:$0xff]
    %259 = vmatprep.subr.mxu0 0.0
    %260 = vmatpush1.msra.mxu0 0.0
    %261 = vmatprep.subr.mxu0 0.0
    %262 = vmatpush1.msra.mxu0 0.0
    %263 = vmatprep.subr.mxu0 0.0
    %264 = vmatpush1.msra.mxu0 0.0
    %265 = vmatprep.subr.mxu0 0.0
    %266 = vmatpush1.msra.mxu0 0.0
    %267 = vmatprep.subr.mxu0 0.0
    %268 = vmatpush1.msra.mxu0 0.0
    %269 = vmatprep.subr.mxu0 0.0
    %270 = vmatpush1.msra.mxu0 0.0
    %271 = vmatprep.subr.mxu0 0.0
    %272 = vmatpush1.msra.mxu0 0.0
    %273 = vmatprep.subr.mxu0 0.0
    %274 = vmatpush1.msra.mxu0 0.0
    %275 = vmatprep.subr.mxu0 0.0
    %276 = vmatpush1.msra.mxu0 0.0
    %277 = vmatprep.subr.mxu0 0.0
    %278 = vmatpush1.msra.mxu0 0.0
    %279 = vmatprep.subr.mxu0 0.0
    %280 = vmatpush1.msra.mxu0 0.0
    %281 = vmatprep.subr.mxu0 0.0
    %282 = vmatpush1.msra.mxu0 0.0
    %283 = vmatprep.subr.mxu0 0.0
    %284 = vmatpush1.msra.mxu0 %v258
    %285 = vmatprep.subr.mxu0 0.0
    %286 = vmatpush1.msra.mxu0 %v257
    %287 = vmatprep.subr.mxu0 0.0
    %288 = vmatpush1.msra.mxu0 %v256
    %289 = vmatprep.subr.mxu0 0.0
    %290 = vmatpush1.msra.mxu0 %v255
    %291 = vmatprep.subr.mxu0 0.0
    %292 = vmatpush2.msra.mxu0 0.0
    %293 = vmatprep.subr.mxu0 0.0
    %294 = vmatpush2.msra.mxu0 0.0
    %295 = vmatprep.subr.mxu0 0.0
    %296 = vmatpush2.msra.mxu0 0.0
    %297 = vmatprep.subr.mxu0 0.0
    %298 = vmatpush2.msra.mxu0 0.0
    %299 = vmatprep.subr.mxu0 0.0
    %300 = vmatpush2.msra.mxu0 0.0
    %301 = vmatprep.subr.mxu0 0.0
    %302 = vmatpush2.msra.mxu0 0.0
    %303 = vmatprep.subr.mxu0 0.0
    %304 = vmatpush2.msra.mxu0 0.0
    %305 = vmatprep.subr.mxu0 0.0
    %306 = vmatpush2.msra.mxu0 0.0
    %307 = vmatprep.subr.mxu0 0.0
    %308 = vmatpush2.msra.mxu0 0.0
    %309 = vmatprep.subr.mxu0 0.0
    %310 = vmatpush2.msra.mxu0 0.0
    %311 = vmatprep.subr.mxu0 0.0
    %312 = vmatpush2.msra.mxu0 0.0
    %313 = vmatprep.subr.mxu0 0.0
    %314 = vmatpush2.msra.mxu0 0.0
    %315 = vmatprep.subr.mxu0 0.0
    %316 = vmatpush2.msra.mxu0 0.0
    %317 = vmatprep.subr.mxu0 0.0
    %318 = vmatpush2.msra.mxu0 0.0
    %319 = vmatprep.subr.mxu0 0.0
    %320 = vmatpush2.msra.mxu0 0.0
    %321 = vmatprep.subr.mxu0 0.0
    %322 = vmatpush2.msra.mxu0 0.0
    %323 = vmatprep.mubr.f32.mxu0 0.0
    %324 = vmatmul.mubr.f32.gmra.mxu0 %v94
    %v325 = vpop.f32.mrf.mxu0
    %v326 = vadd.f32 0.0, %v325
    %v327 = vpop.f32.mrf.mxu0
    %328 = vmatprep.mubr.f32.mxu0 0.0
    %329 = vmatmul.mubr.f32.gmra.mxu0 %v97
    %v330 = vpop.f32.mrf.mxu0
    %v331 = vadd.f32 0.0, %v330
    %v332 = vpop.f32.mrf.mxu0
    %333 = vdwg.mxu0
    %vm334 = vcmask 64512
    %v336 = vsel %vm334, %v166, 0
    %v339 = vsel %vm334, %v171, 0
    %v342 = vsel %vm334, %v246, 0
    %v345 = vsel %vm334, %v251, 0
    %347 = vmatprep.subr.mxu0 0.0
    %348 = vmatpush1.xpose.msra.mxu0 0.0
    %349 = vmatprep.subr.mxu0 0.0
    %350 = vmatpush1.xpose.msra.mxu0 0.0
    %351 = vmatprep.subr.mxu0 0.0
    %352 = vmatpush1.xpose.msra.mxu0 0.0
    %353 = vmatprep.subr.mxu0 0.0
    %354 = vmatpush1.xpose.msra.mxu0 0.0
    %355 = vmatprep.subr.mxu0 0.0
    %356 = vmatpush1.xpose.msra.mxu0 0.0
    %357 = vmatprep.subr.mxu0 0.0
    %358 = vmatpush1.xpose.msra.mxu0 0.0
    %359 = vmatprep.subr.mxu0 0.0
    %360 = vmatpush1.xpose.msra.mxu0 0.0
    %361 = vmatprep.subr.mxu0 0.0
    %362 = vmatpush1.xpose.msra.mxu0 0.0
    %363 = vmatprep.subr.mxu0 0.0
    %364 = vmatpush1.xpose.msra.mxu0 0.0
    %365 = vmatprep.subr.mxu0 0.0
    %366 = vmatpush1.xpose.msra.mxu0 0.0
    %367 = vmatprep.subr.mxu0 0.0
    %368 = vmatpush1.xpose.msra.mxu0 0.0
    %369 = vmatprep.subr.mxu0 0.0
    %370 = vmatpush1.xpose.msra.mxu0 0.0
    %371 = vmatprep.subr.mxu0 0.0
    %372 = vmatpush1.xpose.msra.mxu0 0.0
    %373 = vmatprep.subr.mxu0 0.0
    %374 = vmatpush1.xpose.msra.mxu0 0.0
    %375 = vmatprep.subr.mxu0 0.0
    %376 = vmatpush1.xpose.msra.mxu0 %v345
    %377 = vmatprep.subr.mxu0 0.0
    %378 = vmatpush1.xpose.msra.mxu0 %v342
    %379 = vmatprep.subr.mxu0 0.0
    %380 = vmatpush2.xpose.msra.mxu0 0.0
    %381 = vmatprep.subr.mxu0 0.0
    %382 = vmatpush2.xpose.msra.mxu0 0.0
    %383 = vmatprep.subr.mxu0 0.0
    %384 = vmatpush2.xpose.msra.mxu0 0.0
    %385 = vmatprep.subr.mxu0 0.0
    %386 = vmatpush2.xpose.msra.mxu0 0.0
    %387 = vmatprep.subr.mxu0 0.0
    %388 = vmatpush2.xpose.msra.mxu0 0.0
    %389 = vmatprep.subr.mxu0 0.0
    %390 = vmatpush2.xpose.msra.mxu0 0.0
    %391 = vmatprep.subr.mxu0 0.0
    %392 = vmatpush2.xpose.msra.mxu0 0.0
    %393 = vmatprep.subr.mxu0 0.0
    %394 = vmatpush2.xpose.msra.mxu0 0.0
    %395 = vmatprep.subr.mxu0 0.0
    %396 = vmatpush2.xpose.msra.mxu0 0.0
    %397 = vmatprep.subr.mxu0 0.0
    %398 = vmatpush2.xpose.msra.mxu0 0.0
    %399 = vmatprep.subr.mxu0 0.0
    %400 = vmatpush2.xpose.msra.mxu0 0.0
    %401 = vmatprep.subr.mxu0 0.0
    %402 = vmatpush2.xpose.msra.mxu0 0.0
    %403 = vmatprep.subr.mxu0 0.0
    %404 = vmatpush2.xpose.msra.mxu0 0.0
    %405 = vmatprep.subr.mxu0 0.0
    %406 = vmatpush2.xpose.msra.mxu0 0.0
    %407 = vmatprep.subr.mxu0 0.0
    %408 = vmatpush2.xpose.msra.mxu0 0.0
    %409 = vmatprep.subr.mxu0 0.0
    %410 = vmatpush2.xpose.msra.mxu0 0.0
    %411 = vmatprep.mubr.f32.mxu0 0.0
    %412 = vmatmul.mubr.f32.gmra.mxu0 %v336
    %v413 = vpop.f32.mrf.mxu0
    %v414 = vadd.f32 %v46, %v413
    %v415 = vpop.f32.mrf.mxu0
    %416 = vmatprep.mubr.f32.mxu0 0.0
    %417 = vmatmul.mubr.f32.gmra.mxu0 %v339
    %v418 = vpop.f32.mrf.mxu0
    %v419 = vadd.f32 %v47, %v418
    %v420 = vpop.f32.mrf.mxu0
    %421 = vdwg.mxu0
    %vm422 = vcmask 130048
    %v423 = vsel %vm422, %v414, -inf
    %424 = vmax.xlane.f32.xlu0 %v423
    %v425 = vpop.xlane.xlu0 %424
    %v426 = vsel %vm422, %v419, -inf
    %427 = vmax.xlane.f32.xlu0 %v426
    %v428 = vpop.xlane.xlu0 %427
    %v429 = vsub.f32 %v414, %v425
    %v430 = vsub.f32 %v419, %v428
    %v431 = vmul.f32 %v429, 1.442695
    %v432 = vpow.pop %v431
    %v433 = vmul.f32 %v430, 1.442695
    %v434 = vpow.pop %v433
    %v435 = vsel %vm422, %v432, 0.0
    %436 = vadd.xlane.f32.xlu0 %v435
    %v437 = vpop.xlane.xlu0 %436
    %v438 = vsel %vm422, %v434, 0.0
    %439 = vadd.xlane.f32.xlu0 %v438
    %v440 = vpop.xlane.xlu0 %439
    %v441 = vrcp.pop %v437
    %v442 = vrcp.pop %v440
    %v443 = vmul.f32 %v432, %v441
    %v444 = vmul.f32 %v434, %v442
    %v446 = vsel %vm422, %v443, 0
    %v449 = vsel %vm422, %v444, 0
    %451 = vmatprep.subr.mxu0 0.0
    %452 = vmatpush1.msra.mxu0 0.0
    %453 = vmatprep.subr.mxu0 0.0
    %454 = vmatpush1.msra.mxu0 0.0
    %455 = vmatprep.subr.mxu0 0.0
    %456 = vmatpush1.msra.mxu0 0.0
    %457 = vmatprep.subr.mxu0 0.0
    %458 = vmatpush1.msra.mxu0 0.0
    %459 = vmatprep.subr.mxu0 0.0
    %460 = vmatpush1.msra.mxu0 0.0
    %461 = vmatprep.subr.mxu0 0.0
    %462 = vmatpush1.msra.mxu0 0.0
    %463 = vmatprep.subr.mxu0 0.0
    %464 = vmatpush1.msra.mxu0 0.0
    %465 = vmatprep.subr.mxu0 0.0
    %466 = vmatpush1.msra.mxu0 0.0
    %467 = vmatprep.subr.mxu0 0.0
    %468 = vmatpush1.msra.mxu0 0.0
    %469 = vmatprep.subr.mxu0 0.0
    %470 = vmatpush1.msra.mxu0 0.0
    %471 = vmatprep.subr.mxu0 0.0
    %472 = vmatpush1.msra.mxu0 0.0
    %473 = vmatprep.subr.mxu0 0.0
    %474 = vmatpush1.msra.mxu0 0.0
    %475 = vmatprep.subr.mxu0 0.0
    %476 = vmatpush1.msra.mxu0 0.0
    %477 = vmatprep.subr.mxu0 0.0
    %478 = vmatpush1.msra.mxu0 0.0
    %479 = vmatprep.subr.mxu0 0.0
    %480 = vmatpush1.msra.mxu0 %v331
    %481 = vmatprep.subr.mxu0 0.0
    %482 = vmatpush1.msra.mxu0 %v326
    %483 = vmatprep.subr.mxu0 0.0
    %484 = vmatpush2.msra.mxu0 0.0
    %485 = vmatprep.subr.mxu0 0.0
    %486 = vmatpush2.msra.mxu0 0.0
    %487 = vmatprep.subr.mxu0 0.0
    %488 = vmatpush2.msra.mxu0 0.0
    %489 = vmatprep.subr.mxu0 0.0
    %490 = vmatpush2.msra.mxu0 0.0
    %491 = vmatprep.subr.mxu0 0.0
    %492 = vmatpush2.msra.mxu0 0.0
    %493 = vmatprep.subr.mxu0 0.0
    %494 = vmatpush2.msra.mxu0 0.0
    %495 = vmatprep.subr.mxu0 0.0
    %496 = vmatpush2.msra.mxu0 0.0
    %497 = vmatprep.subr.mxu0 0.0
    %498 = vmatpush2.msra.mxu0 0.0
    %499 = vmatprep.subr.mxu0 0.0
    %500 = vmatpush2.msra.mxu0 0.0
    %501 = vmatprep.subr.mxu0 0.0
    %502 = vmatpush2.msra.mxu0 0.0
    %503 = vmatprep.subr.mxu0 0.0
    %504 = vmatpush2.msra.mxu0 0.0
    %505 = vmatprep.subr.mxu0 0.0
    %506 = vmatpush2.msra.mxu0 0.0
    %507 = vmatprep.subr.mxu0 0.0
    %508 = vmatpush2.msra.mxu0 0.0
    %509 = vmatprep.subr.mxu0 0.0
    %510 = vmatpush2.msra.mxu0 0.0
    %511 = vmatprep.subr.mxu0 0.0
    %512 = vmatpush2.msra.mxu0 0.0
    %513 = vmatprep.subr.mxu0 0.0
    %514 = vmatpush2.msra.mxu0 0.0
    %515 = vmatprep.mubr.f32.mxu0 0.0
    %516 = vmatmul.mubr.f32.gmra.mxu0 %v446
    %v517 = vpop.f32.mrf.mxu0
    %v518 = vadd.f32 0.0, %v517
    %v519 = vpop.f32.mrf.mxu0
    %520 = vmatprep.mubr.f32.mxu0 0.0
    %521 = vmatmul.mubr.f32.gmra.mxu0 %v449
    %v522 = vpop.f32.mrf.mxu0
    %v523 = vadd.f32 0.0, %v522
    %v524 = vpop.f32.mrf.mxu0
    %525 = vdwg.mxu0
    %v526 = vld [vmem:[%s3] sm:$0xff]
    %v528 = vsel %vm334, %v518, 0
    %v531 = vsel %vm334, %v523, 0
    %533 = vmatprep.subr.mxu0 0.0
    %534 = vmatpush1.msra.mxu0 0.0
    %535 = vmatprep.subr.mxu0 0.0
    %536 = vmatpush1.msra.mxu0 0.0
    %537 = vmatprep.subr.mxu0 0.0
    %538 = vmatpush1.msra.mxu0 0.0
    %539 = vmatprep.subr.mxu0 0.0
    %540 = vmatpush1.msra.mxu0 0.0
    %541 = vmatprep.subr.mxu0 0.0
    %542 = vmatpush1.msra.mxu0 0.0
    %543 = vmatprep.subr.mxu0 0.0
    %544 = vmatpush1.msra.mxu0 0.0
    %545 = vmatprep.subr.mxu0 0.0
    %546 = vmatpush1.msra.mxu0 0.0
    %547 = vmatprep.subr.mxu0 0.0
    %548 = vmatpush1.msra.mxu0 0.0
    %549 = vmatprep.subr.mxu0 0.0
    %550 = vmatpush1.msra.mxu0 0.0
    %551 = vmatprep.subr.mxu0 0.0
    %552 = vmatpush1.msra.mxu0 0.0
    %553 = vmatprep.subr.mxu0 0.0
    %554 = vmatpush1.msra.mxu0 0.0
    %555 = vmatprep.subr.mxu0 0.0
    %556 = vmatpush1.msra.mxu0 0.0
    %557 = vmatprep.subr.mxu0 0.0
    %558 = vmatpush1.msra.mxu0 0.0
    %559 = vmatprep.subr.mxu0 0.0
    %560 = vmatpush1.msra.mxu0 0.0
    %561 = vmatprep.subr.mxu0 0.0
    %562 = vmatpush1.msra.mxu0 0.0
    %563 = vmatprep.subr.mxu0 0.0
    %564 = vmatpush1.msra.mxu0 %v526
    %565 = vmatprep.subr.mxu0 0.0
    %566 = vmatpush2.msra.mxu0 0.0
    %567 = vmatprep.subr.mxu0 0.0
    %568 = vmatpush2.msra.mxu0 0.0
    %569 = vmatprep.subr.mxu0 0.0
    %570 = vmatpush2.msra.mxu0 0.0
    %571 = vmatprep.subr.mxu0 0.0
    %572 = vmatpush2.msra.mxu0 0.0
    %573 = vmatprep.subr.mxu0 0.0
    %574 = vmatpush2.msra.mxu0 0.0
    %575 = vmatprep.subr.mxu0 0.0
    %576 = vmatpush2.msra.mxu0 0.0
    %577 = vmatprep.subr.mxu0 0.0
    %578 = vmatpush2.msra.mxu0 0.0
    %579 = vmatprep.subr.mxu0 0.0
    %580 = vmatpush2.msra.mxu0 0.0
    %581 = vmatprep.subr.mxu0 0.0
    %582 = vmatpush2.msra.mxu0 0.0
    %583 = vmatprep.subr.mxu0 0.0
    %584 = vmatpush2.msra.mxu0 0.0
    %585 = vmatprep.subr.mxu0 0.0
    %586 = vmatpush2.msra.mxu0 0.0
    %587 = vmatprep.subr.mxu0 0.0
    %588 = vmatpush2.msra.mxu0 0.0
    %589 = vmatprep.subr.mxu0 0.0
    %590 = vmatpush2.msra.mxu0 0.0
    %591 = vmatprep.subr.mxu0 0.0
    %592 = vmatpush2.msra.mxu0 0.0
    %593 = vmatprep.subr.mxu0 0.0
    %594 = vmatpush2.msra.mxu0 0.0
    %595 = vmatprep.subr.mxu0 0.0
    %596 = vmatpush2.msra.mxu0 0.0
    %597 = vmatprep.mubr.f32.mxu0 0.0
    %598 = vmatmul.mubr.f32.gmra.mxu0 %v528
    %v599 = vpop.f32.mrf.mxu0
    %v600 = vadd.f32 0.0, %v599
    %v601 = vpop.f32.mrf.mxu0
    %602 = vmatprep.mubr.f32.mxu0 0.0
    %603 = vmatmul.mubr.f32.gmra.mxu0 %v531
    %v604 = vpop.f32.mrf.mxu0
    %v605 = vadd.f32 0.0, %v604
    %v606 = vpop.f32.mrf.mxu0
    %607 = vdwg.mxu0
    %v608 = vadd.f32 %v30, %v600
    %v609 = vadd.f32 %v31, %v605
    %s610 = scalar_lea.vmem %s2, 32
    %v611 = vld [vmem:[%s610] sm:$0xff]
    %v612 = vld [vmem:[%s610 + $0x8] sm:$0xff]
    %v613 = vld [vmem:[%s610 + $0x10] sm:$0xff]
    %v614 = vld [vmem:[%s610 + $0x18] sm:$0xff]
    %615 = vmatprep.subr.mxu0 0.0
    %616 = vmatpush1.msra.mxu0 0.0
    %617 = vmatprep.subr.mxu0 0.0
    %618 = vmatpush1.msra.mxu0 0.0
    %619 = vmatprep.subr.mxu0 0.0
    %620 = vmatpush1.msra.mxu0 0.0
    %621 = vmatprep.subr.mxu0 0.0
    %622 = vmatpush1.msra.mxu0 0.0
    %623 = vmatprep.subr.mxu0 0.0
    %624 = vmatpush1.msra.mxu0 0.0
    %625 = vmatprep.subr.mxu0 0.0
    %626 = vmatpush1.msra.mxu0 0.0
    %627 = vmatprep.subr.mxu0 0.0
    %628 = vmatpush1.msra.mxu0 0.0
    %629 = vmatprep.subr.mxu0 0.0
    %630 = vmatpush1.msra.mxu0 0.0
    %631 = vmatprep.subr.mxu0 0.0
    %632 = vmatpush1.msra.mxu0 0.0
    %633 = vmatprep.subr.mxu0 0.0
    %634 = vmatpush1.msra.mxu0 0.0
    %635 = vmatprep.subr.mxu0 0.0
    %636 = vmatpush1.msra.mxu0 0.0
    %637 = vmatprep.subr.mxu0 0.0
    %638 = vmatpush1.msra.mxu0 0.0
    %639 = vmatprep.subr.mxu0 0.0
    %640 = vmatpush1.msra.mxu0 %v614
    %641 = vmatprep.subr.mxu0 0.0
    %642 = vmatpush1.msra.mxu0 %v613
    %643 = vmatprep.subr.mxu0 0.0
    %644 = vmatpush1.msra.mxu0 %v612
    %645 = vmatprep.subr.mxu0 0.0
    %646 = vmatpush1.msra.mxu0 %v611
    %647 = vmatprep.subr.mxu0 0.0
    %648 = vmatpush2.msra.mxu0 0.0
    %649 = vmatprep.subr.mxu0 0.0
    %650 = vmatpush2.msra.mxu0 0.0
    %651 = vmatprep.subr.mxu0 0.0
    %652 = vmatpush2.msra.mxu0 0.0
    %653 = vmatprep.subr.mxu0 0.0
    %654 = vmatpush2.msra.mxu0 0.0
    %655 = vmatprep.subr.mxu0 0.0
    %656 = vmatpush2.msra.mxu0 0.0
    %657 = vmatprep.subr.mxu0 0.0
    %658 = vmatpush2.msra.mxu0 0.0
    %659 = vmatprep.subr.mxu0 0.0
    %660 = vmatpush2.msra.mxu0 0.0
    %661 = vmatprep.subr.mxu0 0.0
    %662 = vmatpush2.msra.mxu0 0.0
    %663 = vmatprep.subr.mxu0 0.0
    %664 = vmatpush2.msra.mxu0 0.0
    %665 = vmatprep.subr.mxu0 0.0
    %666 = vmatpush2.msra.mxu0 0.0
    %667 = vmatprep.subr.mxu0 0.0
    %668 = vmatpush2.msra.mxu0 0.0
    %669 = vmatprep.subr.mxu0 0.0
    %670 = vmatpush2.msra.mxu0 0.0
    %671 = vmatprep.subr.mxu0 0.0
    %672 = vmatpush2.msra.mxu0 0.0
    %673 = vmatprep.subr.mxu0 0.0
    %674 = vmatpush2.msra.mxu0 0.0
    %675 = vmatprep.subr.mxu0 0.0
    %676 = vmatpush2.msra.mxu0 0.0
    %677 = vmatprep.subr.mxu0 0.0
    %678 = vmatpush2.msra.mxu0 0.0
    %679 = vmatprep.mubr.f32.mxu0 0.0
    %680 = vmatmul.mubr.f32.gmra.mxu0 %v94
    %v681 = vpop.f32.mrf.mxu0
    %v682 = vadd.f32 0.0, %v681
    %v683 = vpop.f32.mrf.mxu0
    %684 = vmatprep.mubr.f32.mxu0 0.0
    %685 = vmatmul.mubr.f32.gmra.mxu0 %v97
    %v686 = vpop.f32.mrf.mxu0
    %v687 = vadd.f32 0.0, %v686
    %v688 = vpop.f32.mrf.mxu0
    %689 = vdwg.mxu0
    %s690 = scalar_lea.vmem %s2, 160
    %v691 = vld [vmem:[%s690] sm:$0xff]
    %v692 = vld [vmem:[%s690 + $0x8] sm:$0xff]
    %v693 = vld [vmem:[%s690 + $0x10] sm:$0xff]
    %v694 = vld [vmem:[%s690 + $0x18] sm:$0xff]
    %695 = vmatprep.subr.mxu0 0.0
    %696 = vmatpush1.msra.mxu0 0.0
    %697 = vmatprep.subr.mxu0 0.0
    %698 = vmatpush1.msra.mxu0 0.0
    %699 = vmatprep.subr.mxu0 0.0
    %700 = vmatpush1.msra.mxu0 0.0
    %701 = vmatprep.subr.mxu0 0.0
    %702 = vmatpush1.msra.mxu0 0.0
    %703 = vmatprep.subr.mxu0 0.0
    %704 = vmatpush1.msra.mxu0 0.0
    %705 = vmatprep.subr.mxu0 0.0
    %706 = vmatpush1.msra.mxu0 0.0
    %707 = vmatprep.subr.mxu0 0.0
    %708 = vmatpush1.msra.mxu0 0.0
    %709 = vmatprep.subr.mxu0 0.0
    %710 = vmatpush1.msra.mxu0 0.0
    %711 = vmatprep.subr.mxu0 0.0
    %712 = vmatpush1.msra.mxu0 0.0
    %713 = vmatprep.subr.mxu0 0.0
    %714 = vmatpush1.msra.mxu0 0.0
    %715 = vmatprep.subr.mxu0 0.0
    %716 = vmatpush1.msra.mxu0 0.0
    %717 = vmatprep.subr.mxu0 0.0
    %718 = vmatpush1.msra.mxu0 0.0
    %719 = vmatprep.subr.mxu0 0.0
    %720 = vmatpush1.msra.mxu0 %v694
    %721 = vmatprep.subr.mxu0 0.0
    %722 = vmatpush1.msra.mxu0 %v693
    %723 = vmatprep.subr.mxu0 0.0
    %724 = vmatpush1.msra.mxu0 %v692
    %725 = vmatprep.subr.mxu0 0.0
    %726 = vmatpush1.msra.mxu0 %v691
    %727 = vmatprep.subr.mxu0 0.0
    %728 = vmatpush2.msra.mxu0 0.0
    %729 = vmatprep.subr.mxu0 0.0
    %730 = vmatpush2.msra.mxu0 0.0
    %731 = vmatprep.subr.mxu0 0.0
    %732 = vmatpush2.msra.mxu0 0.0
    %733 = vmatprep.subr.mxu0 0.0
    %734 = vmatpush2.msra.mxu0 0.0
    %735 = vmatprep.subr.mxu0 0.0
    %736 = vmatpush2.msra.mxu0 0.0
    %737 = vmatprep.subr.mxu0 0.0
    %738 = vmatpush2.msra.mxu0 0.0
    %739 = vmatprep.subr.mxu0 0.0
    %740 = vmatpush2.msra.mxu0 0.0
    %741 = vmatprep.subr.mxu0 0.0
    %742 = vmatpush2.msra.mxu0 0.0
    %743 = vmatprep.subr.mxu0 0.0
    %744 = vmatpush2.msra.mxu0 0.0
    %745 = vmatprep.subr.mxu0 0.0
    %746 = vmatpush2.msra.mxu0 0.0
    %747 = vmatprep.subr.mxu0 0.0
    %748 = vmatpush2.msra.mxu0 0.0
    %749 = vmatprep.subr.mxu0 0.0
    %750 = vmatpush2.msra.mxu0 0.0
    %751 = vmatprep.subr.mxu0 0.0
    %752 = vmatpush2.msra.mxu0 0.0
    %753 = vmatprep.subr.mxu0 0.0
    %754 = vmatpush2.msra.mxu0 0.0
    %755 = vmatprep.subr.mxu0 0.0
    %756 = vmatpush2.msra.mxu0 0.0
    %757 = vmatprep.subr.mxu0 0.0
    %758 = vmatpush2.msra.mxu0 0.0
    %759 = vmatprep.mubr.f32.mxu0 0.0
    %760 = vmatmul.mubr.f32.gmra.mxu0 %v94
    %v761 = vpop.f32.mrf.mxu0
    %v762 = vadd.f32 0.0, %v761
    %v763 = vpop.f32.mrf.mxu0
    %764 = vmatprep.mubr.f32.mxu0 0.0
    %765 = vmatmul.mubr.f32.gmra.mxu0 %v97
    %v766 = vpop.f32.mrf.mxu0
    %v767 = vadd.f32 0.0, %v766
    %v768 = vpop.f32.mrf.mxu0
    %769 = vdwg.mxu0
    %s770 = scalar_lea.vmem %s2, 288
    %v771 = vld [vmem:[%s770] sm:$0xff]
    %v772 = vld [vmem:[%s770 + $0x8] sm:$0xff]
    %v773 = vld [vmem:[%s770 + $0x10] sm:$0xff]
    %v774 = vld [vmem:[%s770 + $0x18] sm:$0xff]
    %775 = vmatprep.subr.mxu0 0.0
    %776 = vmatpush1.msra.mxu0 0.0
    %777 = vmatprep.subr.mxu0 0.0
    %778 = vmatpush1.msra.mxu0 0.0
    %779 = vmatprep.subr.mxu0 0.0
    %780 = vmatpush1.msra.mxu0 0.0
    %781 = vmatprep.subr.mxu0 0.0
    %782 = vmatpush1.msra.mxu0 0.0
    %783 = vmatprep.subr.mxu0 0.0
    %784 = vmatpush1.msra.mxu0 0.0
    %785 = vmatprep.subr.mxu0 0.0
    %786 = vmatpush1.msra.mxu0 0.0
    %787 = vmatprep.subr.mxu0 0.0
    %788 = vmatpush1.msra.mxu0 0.0
    %789 = vmatprep.subr.mxu0 0.0
    %790 = vmatpush1.msra.mxu0 0.0
    %791 = vmatprep.subr.mxu0 0.0
    %792 = vmatpush1.msra.mxu0 0.0
    %793 = vmatprep.subr.mxu0 0.0
    %794 = vmatpush1.msra.mxu0 0.0
    %795 = vmatprep.subr.mxu0 0.0
    %796 = vmatpush1.msra.mxu0 0.0
    %797 = vmatprep.subr.mxu0 0.0
    %798 = vmatpush1.msra.mxu0 0.0
    %799 = vmatprep.subr.mxu0 0.0
    %800 = vmatpush1.msra.mxu0 %v774
    %801 = vmatprep.subr.mxu0 0.0
    %802 = vmatpush1.msra.mxu0 %v773
    %803 = vmatprep.subr.mxu0 0.0
    %804 = vmatpush1.msra.mxu0 %v772
    %805 = vmatprep.subr.mxu0 0.0
    %806 = vmatpush1.msra.mxu0 %v771
    %807 = vmatprep.subr.mxu0 0.0
    %808 = vmatpush2.msra.mxu0 0.0
    %809 = vmatprep.subr.mxu0 0.0
    %810 = vmatpush2.msra.mxu0 0.0
    %811 = vmatprep.subr.mxu0 0.0
    %812 = vmatpush2.msra.mxu0 0.0
    %813 = vmatprep.subr.mxu0 0.0
    %814 = vmatpush2.msra.mxu0 0.0
    %815 = vmatprep.subr.mxu0 0.0
    %816 = vmatpush2.msra.mxu0 0.0
    %817 = vmatprep.subr.mxu0 0.0
    %818 = vmatpush2.msra.mxu0 0.0
    %819 = vmatprep.subr.mxu0 0.0
    %820 = vmatpush2.msra.mxu0 0.0
    %821 = vmatprep.subr.mxu0 0.0
    %822 = vmatpush2.msra.mxu0 0.0
    %823 = vmatprep.subr.mxu0 0.0
    %824 = vmatpush2.msra.mxu0 0.0
    %825 = vmatprep.subr.mxu0 0.0
    %826 = vmatpush2.msra.mxu0 0.0
    %827 = vmatprep.subr.mxu0 0.0
    %828 = vmatpush2.msra.mxu0 0.0
    %829 = vmatprep.subr.mxu0 0.0
    %830 = vmatpush2.msra.mxu0 0.0
    %831 = vmatprep.subr.mxu0 0.0
    %832 = vmatpush2.msra.mxu0 0.0
    %833 = vmatprep.subr.mxu0 0.0
    %834 = vmatpush2.msra.mxu0 0.0
    %835 = vmatprep.subr.mxu0 0.0
    %836 = vmatpush2.msra.mxu0 0.0
    %837 = vmatprep.subr.mxu0 0.0
    %838 = vmatpush2.msra.mxu0 0.0
    %839 = vmatprep.mubr.f32.mxu0 0.0
    %840 = vmatmul.mubr.f32.gmra.mxu0 %v94
    %v841 = vpop.f32.mrf.mxu0
    %v842 = vadd.f32 0.0, %v841
    %v843 = vpop.f32.mrf.mxu0
    %844 = vmatprep.mubr.f32.mxu0 0.0
    %845 = vmatmul.mubr.f32.gmra.mxu0 %v97
    %v846 = vpop.f32.mrf.mxu0
    %v847 = vadd.f32 0.0, %v846
    %v848 = vpop.f32.mrf.mxu0
    %849 = vdwg.mxu0
    %v851 = vsel %vm334, %v682, 0
    %v854 = vsel %vm334, %v687, 0
    %v857 = vsel %vm334, %v762, 0
    %v860 = vsel %vm334, %v767, 0
    %862 = vmatprep.subr.mxu0 0.0
    %863 = vmatpush1.xpose.msra.mxu0 0.0
    %864 = vmatprep.subr.mxu0 0.0
    %865 = vmatpush1.xpose.msra.mxu0 0.0
    %866 = vmatprep.subr.mxu0 0.0
    %867 = vmatpush1.xpose.msra.mxu0 0.0
    %868 = vmatprep.subr.mxu0 0.0
    %869 = vmatpush1.xpose.msra.mxu0 0.0
    %870 = vmatprep.subr.mxu0 0.0
    %871 = vmatpush1.xpose.msra.mxu0 0.0
    %872 = vmatprep.subr.mxu0 0.0
    %873 = vmatpush1.xpose.msra.mxu0 0.0
    %874 = vmatprep.subr.mxu0 0.0
    %875 = vmatpush1.xpose.msra.mxu0 0.0
    %876 = vmatprep.subr.mxu0 0.0
    %877 = vmatpush1.xpose.msra.mxu0 0.0
    %878 = vmatprep.subr.mxu0 0.0
    %879 = vmatpush1.xpose.msra.mxu0 0.0
    %880 = vmatprep.subr.mxu0 0.0
    %881 = vmatpush1.xpose.msra.mxu0 0.0
    %882 = vmatprep.subr.mxu0 0.0
    %883 = vmatpush1.xpose.msra.mxu0 0.0
    %884 = vmatprep.subr.mxu0 0.0
    %885 = vmatpush1.xpose.msra.mxu0 0.0
    %886 = vmatprep.subr.mxu0 0.0
    %887 = vmatpush1.xpose.msra.mxu0 0.0
    %888 = vmatprep.subr.mxu0 0.0
    %889 = vmatpush1.xpose.msra.mxu0 0.0
    %890 = vmatprep.subr.mxu0 0.0
    %891 = vmatpush1.xpose.msra.mxu0 %v860
    %892 = vmatprep.subr.mxu0 0.0
    %893 = vmatpush1.xpose.msra.mxu0 %v857
    %894 = vmatprep.subr.mxu0 0.0
    %895 = vmatpush2.xpose.msra.mxu0 0.0
    %896 = vmatprep.subr.mxu0 0.0
    %897 = vmatpush2.xpose.msra.mxu0 0.0
    %898 = vmatprep.subr.mxu0 0.0
    %899 = vmatpush2.xpose.msra.mxu0 0.0
    %900 = vmatprep.subr.mxu0 0.0
    %901 = vmatpush2.xpose.msra.mxu0 0.0
    %902 = vmatprep.subr.mxu0 0.0
    %903 = vmatpush2.xpose.msra.mxu0 0.0
    %904 = vmatprep.subr.mxu0 0.0
    %905 = vmatpush2.xpose.msra.mxu0 0.0
    %906 = vmatprep.subr.mxu0 0.0
    %907 = vmatpush2.xpose.msra.mxu0 0.0
    %908 = vmatprep.subr.mxu0 0.0
    %909 = vmatpush2.xpose.msra.mxu0 0.0
    %910 = vmatprep.subr.mxu0 0.0
    %911 = vmatpush2.xpose.msra.mxu0 0.0
    %912 = vmatprep.subr.mxu0 0.0
    %913 = vmatpush2.xpose.msra.mxu0 0.0
    %914 = vmatprep.subr.mxu0 0.0
    %915 = vmatpush2.xpose.msra.mxu0 0.0
    %916 = vmatprep.subr.mxu0 0.0
    %917 = vmatpush2.xpose.msra.mxu0 0.0
    %918 = vmatprep.subr.mxu0 0.0
    %919 = vmatpush2.xpose.msra.mxu0 0.0
    %920 = vmatprep.subr.mxu0 0.0
    %921 = vmatpush2.xpose.msra.mxu0 0.0
    %922 = vmatprep.subr.mxu0 0.0
    %923 = vmatpush2.xpose.msra.mxu0 0.0
    %924 = vmatprep.subr.mxu0 0.0
    %925 = vmatpush2.xpose.msra.mxu0 0.0
    %926 = vmatprep.mubr.f32.mxu0 0.0
    %927 = vmatmul.mubr.f32.gmra.mxu0 %v851
    %v928 = vpop.f32.mrf.mxu0
    %v929 = vadd.f32 %v46, %v928
    %v930 = vpop.f32.mrf.mxu0
    %931 = vmatprep.mubr.f32.mxu0 0.0
    %932 = vmatmul.mubr.f32.gmra.mxu0 %v854
    %v933 = vpop.f32.mrf.mxu0
    %v934 = vadd.f32 %v47, %v933
    %v935 = vpop.f32.mrf.mxu0
    %936 = vdwg.mxu0
    %v937 = vsel %vm422, %v929, -inf
    %938 = vmax.xlane.f32.xlu0 %v937
    %v939 = vpop.xlane.xlu0 %938
    %v940 = vsel %vm422, %v934, -inf
    %941 = vmax.xlane.f32.xlu0 %v940
    %v942 = vpop.xlane.xlu0 %941
    %v943 = vsub.f32 %v929, %v939
    %v944 = vsub.f32 %v934, %v942
    %v945 = vmul.f32 %v943, 1.442695
    %v946 = vpow.pop %v945
    %v947 = vmul.f32 %v944, 1.442695
    %v948 = vpow.pop %v947
    %v949 = vsel %vm422, %v946, 0.0
    %950 = vadd.xlane.f32.xlu0 %v949
    %v951 = vpop.xlane.xlu0 %950
    %v952 = vsel %vm422, %v948, 0.0
    %953 = vadd.xlane.f32.xlu0 %v952
    %v954 = vpop.xlane.xlu0 %953
    %v955 = vrcp.pop %v951
    %v956 = vrcp.pop %v954
    %v957 = vmul.f32 %v946, %v955
    %v958 = vmul.f32 %v948, %v956
    %v960 = vsel %vm422, %v957, 0
    %v963 = vsel %vm422, %v958, 0
    %965 = vmatprep.subr.mxu0 0.0
    %966 = vmatpush1.msra.mxu0 0.0
    %967 = vmatprep.subr.mxu0 0.0
    %968 = vmatpush1.msra.mxu0 0.0
    %969 = vmatprep.subr.mxu0 0.0
    %970 = vmatpush1.msra.mxu0 0.0
    %971 = vmatprep.subr.mxu0 0.0
    %972 = vmatpush1.msra.mxu0 0.0
    %973 = vmatprep.subr.mxu0 0.0
    %974 = vmatpush1.msra.mxu0 0.0
    %975 = vmatprep.subr.mxu0 0.0
    %976 = vmatpush1.msra.mxu0 0.0
    %977 = vmatprep.subr.mxu0 0.0
    %978 = vmatpush1.msra.mxu0 0.0
    %979 = vmatprep.subr.mxu0 0.0
    %980 = vmatpush1.msra.mxu0 0.0
    %981 = vmatprep.subr.mxu0 0.0
    %982 = vmatpush1.msra.mxu0 0.0
    %983 = vmatprep.subr.mxu0 0.0
    %984 = vmatpush1.msra.mxu0 0.0
    %985 = vmatprep.subr.mxu0 0.0
    %986 = vmatpush1.msra.mxu0 0.0
    %987 = vmatprep.subr.mxu0 0.0
    %988 = vmatpush1.msra.mxu0 0.0
    %989 = vmatprep.subr.mxu0 0.0
    %990 = vmatpush1.msra.mxu0 0.0
    %991 = vmatprep.subr.mxu0 0.0
    %992 = vmatpush1.msra.mxu0 0.0
    %993 = vmatprep.subr.mxu0 0.0
    %994 = vmatpush1.msra.mxu0 %v847
    %995 = vmatprep.subr.mxu0 0.0
    %996 = vmatpush1.msra.mxu0 %v842
    %997 = vmatprep.subr.mxu0 0.0
    %998 = vmatpush2.msra.mxu0 0.0
    %999 = vmatprep.subr.mxu0 0.0
    %1000 = vmatpush2.msra.mxu0 0.0
    %1001 = vmatprep.subr.mxu0 0.0
    %1002 = vmatpush2.msra.mxu0 0.0
    %1003 = vmatprep.subr.mxu0 0.0
    %1004 = vmatpush2.msra.mxu0 0.0
    %1005 = vmatprep.subr.mxu0 0.0
    %1006 = vmatpush2.msra.mxu0 0.0
    %1007 = vmatprep.subr.mxu0 0.0
    %1008 = vmatpush2.msra.mxu0 0.0
    %1009 = vmatprep.subr.mxu0 0.0
    %1010 = vmatpush2.msra.mxu0 0.0
    %1011 = vmatprep.subr.mxu0 0.0
    %1012 = vmatpush2.msra.mxu0 0.0
    %1013 = vmatprep.subr.mxu0 0.0
    %1014 = vmatpush2.msra.mxu0 0.0
    %1015 = vmatprep.subr.mxu0 0.0
    %1016 = vmatpush2.msra.mxu0 0.0
    %1017 = vmatprep.subr.mxu0 0.0
    %1018 = vmatpush2.msra.mxu0 0.0
    %1019 = vmatprep.subr.mxu0 0.0
    %1020 = vmatpush2.msra.mxu0 0.0
    %1021 = vmatprep.subr.mxu0 0.0
    %1022 = vmatpush2.msra.mxu0 0.0
    %1023 = vmatprep.subr.mxu0 0.0
    %1024 = vmatpush2.msra.mxu0 0.0
    %1025 = vmatprep.subr.mxu0 0.0
    %1026 = vmatpush2.msra.mxu0 0.0
    %1027 = vmatprep.subr.mxu0 0.0
    %1028 = vmatpush2.msra.mxu0 0.0
    %1029 = vmatprep.mubr.f32.mxu0 0.0
    %1030 = vmatmul.mubr.f32.gmra.mxu0 %v960
    %v1031 = vpop.f32.mrf.mxu0
    %v1032 = vadd.f32 0.0, %v1031
    %v1033 = vpop.f32.mrf.mxu0
    %1034 = vmatprep.mubr.f32.mxu0 0.0
    %1035 = vmatmul.mubr.f32.gmra.mxu0 %v963
    %v1036 = vpop.f32.mrf.mxu0
    %v1037 = vadd.f32 0.0, %v1036
    %v1038 = vpop.f32.mrf.mxu0
    %1039 = vdwg.mxu0
    %s1040 = scalar_lea.vmem %s3, 8
    %v1041 = vld [vmem:[%s1040] sm:$0xff]
    %v1043 = vsel %vm334, %v1032, 0
    %v1046 = vsel %vm334, %v1037, 0
    %1048 = vmatprep.subr.mxu0 0.0
    %1049 = vmatpush1.msra.mxu0 0.0
    %1050 = vmatprep.subr.mxu0 0.0
    %1051 = vmatpush1.msra.mxu0 0.0
    %1052 = vmatprep.subr.mxu0 0.0
    %1053 = vmatpush1.msra.mxu0 0.0
    %1054 = vmatprep.subr.mxu0 0.0
    %1055 = vmatpush1.msra.mxu0 0.0
    %1056 = vmatprep.subr.mxu0 0.0
    %1057 = vmatpush1.msra.mxu0 0.0
    %1058 = vmatprep.subr.mxu0 0.0
    %1059 = vmatpush1.msra.mxu0 0.0
    %1060 = vmatprep.subr.mxu0 0.0
    %1061 = vmatpush1.msra.mxu0 0.0
    %1062 = vmatprep.subr.mxu0 0.0
    %1063 = vmatpush1.msra.mxu0 0.0
    %1064 = vmatprep.subr.mxu0 0.0
    %1065 = vmatpush1.msra.mxu0 0.0
    %1066 = vmatprep.subr.mxu0 0.0
    %1067 = vmatpush1.msra.mxu0 0.0
    %1068 = vmatprep.subr.mxu0 0.0
    %1069 = vmatpush1.msra.mxu0 0.0
    %1070 = vmatprep.subr.mxu0 0.0
    %1071 = vmatpush1.msra.mxu0 0.0
    %1072 = vmatprep.subr.mxu0 0.0
    %1073 = vmatpush1.msra.mxu0 0.0
    %1074 = vmatprep.subr.mxu0 0.0
    %1075 = vmatpush1.msra.mxu0 0.0
    %1076 = vmatprep.subr.mxu0 0.0
    %1077 = vmatpush1.msra.mxu0 0.0
    %1078 = vmatprep.subr.mxu0 0.0
    %1079 = vmatpush1.msra.mxu0 %v1041
    %1080 = vmatprep.subr.mxu0 0.0
    %1081 = vmatpush2.msra.mxu0 0.0
    %1082 = vmatprep.subr.mxu0 0.0
    %1083 = vmatpush2.msra.mxu0 0.0
    %1084 = vmatprep.subr.mxu0 0.0
    %1085 = vmatpush2.msra.mxu0 0.0
    %1086 = vmatprep.subr.mxu0 0.0
    %1087 = vmatpush2.msra.mxu0 0.0
    %1088 = vmatprep.subr.mxu0 0.0
    %1089 = vmatpush2.msra.mxu0 0.0
    %1090 = vmatprep.subr.mxu0 0.0
    %1091 = vmatpush2.msra.mxu0 0.0
    %1092 = vmatprep.subr.mxu0 0.0
    %1093 = vmatpush2.msra.mxu0 0.0
    %1094 = vmatprep.subr.mxu0 0.0
    %1095 = vmatpush2.msra.mxu0 0.0
    %1096 = vmatprep.subr.mxu0 0.0
    %1097 = vmatpush2.msra.mxu0 0.0
    %1098 = vmatprep.subr.mxu0 0.0
    %1099 = vmatpush2.msra.mxu0 0.0
    %1100 = vmatprep.subr.mxu0 0.0
    %1101 = vmatpush2.msra.mxu0 0.0
    %1102 = vmatprep.subr.mxu0 0.0
    %1103 = vmatpush2.msra.mxu0 0.0
    %1104 = vmatprep.subr.mxu0 0.0
    %1105 = vmatpush2.msra.mxu0 0.0
    %1106 = vmatprep.subr.mxu0 0.0
    %1107 = vmatpush2.msra.mxu0 0.0
    %1108 = vmatprep.subr.mxu0 0.0
    %1109 = vmatpush2.msra.mxu0 0.0
    %1110 = vmatprep.subr.mxu0 0.0
    %1111 = vmatpush2.msra.mxu0 0.0
    %1112 = vmatprep.mubr.f32.mxu0 0.0
    %1113 = vmatmul.mubr.f32.gmra.mxu0 %v1043
    %v1114 = vpop.f32.mrf.mxu0
    %v1115 = vadd.f32 0.0, %v1114
    %v1116 = vpop.f32.mrf.mxu0
    %1117 = vmatprep.mubr.f32.mxu0 0.0
    %1118 = vmatmul.mubr.f32.gmra.mxu0 %v1046
    %v1119 = vpop.f32.mrf.mxu0
    %v1120 = vadd.f32 0.0, %v1119
    %v1121 = vpop.f32.mrf.mxu0
    %1122 = vdwg.mxu0
    %v1123 = vadd.f32 %v608, %v1115
    %v1124 = vadd.f32 %v609, %v1120
    %s1125 = scalar_lea.vmem %s2, 64
    %v1126 = vld [vmem:[%s1125] sm:$0xff]
    %v1127 = vld [vmem:[%s1125 + $0x8] sm:$0xff]
    %v1128 = vld [vmem:[%s1125 + $0x10] sm:$0xff]
    %v1129 = vld [vmem:[%s1125 + $0x18] sm:$0xff]
    %1130 = vmatprep.subr.mxu0 0.0
    %1131 = vmatpush1.msra.mxu0 0.0
    %1132 = vmatprep.subr.mxu0 0.0
    %1133 = vmatpush1.msra.mxu0 0.0
    %1134 = vmatprep.subr.mxu0 0.0
    %1135 = vmatpush1.msra.mxu0 0.0
    %1136 = vmatprep.subr.mxu0 0.0
    %1137 = vmatpush1.msra.mxu0 0.0
    %1138 = vmatprep.subr.mxu0 0.0
    %1139 = vmatpush1.msra.mxu0 0.0
    %1140 = vmatprep.subr.mxu0 0.0
    %1141 = vmatpush1.msra.mxu0 0.0
    %1142 = vmatprep.subr.mxu0 0.0
    %1143 = vmatpush1.msra.mxu0 0.0
    %1144 = vmatprep.subr.mxu0 0.0
    %1145 = vmatpush1.msra.mxu0 0.0
    %1146 = vmatprep.subr.mxu0 0.0
    %1147 = vmatpush1.msra.mxu0 0.0
    %1148 = vmatprep.subr.mxu0 0.0
    %1149 = vmatpush1.msra.mxu0 0.0
    %1150 = vmatprep.subr.mxu0 0.0
    %1151 = vmatpush1.msra.mxu0 0.0
    %1152 = vmatprep.subr.mxu0 0.0
    %1153 = vmatpush1.msra.mxu0 0.0
    %1154 = vmatprep.subr.mxu0 0.0
    %1155 = vmatpush1.msra.mxu0 %v1129
    %1156 = vmatprep.subr.mxu0 0.0
    %1157 = vmatpush1.msra.mxu0 %v1128
    %1158 = vmatprep.subr.mxu0 0.0
    %1159 = vmatpush1.msra.mxu0 %v1127
    %1160 = vmatprep.subr.mxu0 0.0
    %1161 = vmatpush1.msra.mxu0 %v1126
    %1162 = vmatprep.subr.mxu0 0.0
    %1163 = vmatpush2.msra.mxu0 0.0
    %1164 = vmatprep.subr.mxu0 0.0
    %1165 = vmatpush2.msra.mxu0 0.0
    %1166 = vmatprep.subr.mxu0 0.0
    %1167 = vmatpush2.msra.mxu0 0.0
    %1168 = vmatprep.subr.mxu0 0.0
    %1169 = vmatpush2.msra.mxu0 0.0
    %1170 = vmatprep.subr.mxu0 0.0
    %1171 = vmatpush2.msra.mxu0 0.0
    %1172 = vmatprep.subr.mxu0 0.0
    %1173 = vmatpush2.msra.mxu0 0.0
    %1174 = vmatprep.subr.mxu0 0.0
    %1175 = vmatpush2.msra.mxu0 0.0
    %1176 = vmatprep.subr.mxu0 0.0
    %1177 = vmatpush2.msra.mxu0 0.0
    %1178 = vmatprep.subr.mxu0 0.0
    %1179 = vmatpush2.msra.mxu0 0.0
    %1180 = vmatprep.subr.mxu0 0.0
    %1181 = vmatpush2.msra.mxu0 0.0
    %1182 = vmatprep.subr.mxu0 0.0
    %1183 = vmatpush2.msra.mxu0 0.0
    %1184 = vmatprep.subr.mxu0 0.0
    %1185 = vmatpush2.msra.mxu0 0.0
    %1186 = vmatprep.subr.mxu0 0.0
    %1187 = vmatpush2.msra.mxu0 0.0
    %1188 = vmatprep.subr.mxu0 0.0
    %1189 = vmatpush2.msra.mxu0 0.0
    %1190 = vmatprep.subr.mxu0 0.0
    %1191 = vmatpush2.msra.mxu0 0.0
    %1192 = vmatprep.subr.mxu0 0.0
    %1193 = vmatpush2.msra.mxu0 0.0
    %1194 = vmatprep.mubr.f32.mxu0 0.0
    %1195 = vmatmul.mubr.f32.gmra.mxu0 %v94
    %v1196 = vpop.f32.mrf.mxu0
    %v1197 = vadd.f32 0.0, %v1196
    %v1198 = vpop.f32.mrf.mxu0
    %1199 = vmatprep.mubr.f32.mxu0 0.0
    %1200 = vmatmul.mubr.f32.gmra.mxu0 %v97
    %v1201 = vpop.f32.mrf.mxu0
    %v1202 = vadd.f32 0.0, %v1201
    %v1203 = vpop.f32.mrf.mxu0
    %1204 = vdwg.mxu0
    %s1205 = scalar_lea.vmem %s2, 192
    %v1206 = vld [vmem:[%s1205] sm:$0xff]
    %v1207 = vld [vmem:[%s1205 + $0x8] sm:$0xff]
    %v1208 = vld [vmem:[%s1205 + $0x10] sm:$0xff]
    %v1209 = vld [vmem:[%s1205 + $0x18] sm:$0xff]
    %1210 = vmatprep.subr.mxu0 0.0
    %1211 = vmatpush1.msra.mxu0 0.0
    %1212 = vmatprep.subr.mxu0 0.0
    %1213 = vmatpush1.msra.mxu0 0.0
    %1214 = vmatprep.subr.mxu0 0.0
    %1215 = vmatpush1.msra.mxu0 0.0
    %1216 = vmatprep.subr.mxu0 0.0
    %1217 = vmatpush1.msra.mxu0 0.0
    %1218 = vmatprep.subr.mxu0 0.0
    %1219 = vmatpush1.msra.mxu0 0.0
    %1220 = vmatprep.subr.mxu0 0.0
    %1221 = vmatpush1.msra.mxu0 0.0
    %1222 = vmatprep.subr.mxu0 0.0
    %1223 = vmatpush1.msra.mxu0 0.0
    %1224 = vmatprep.subr.mxu0 0.0
    %1225 = vmatpush1.msra.mxu0 0.0
    %1226 = vmatprep.subr.mxu0 0.0
    %1227 = vmatpush1.msra.mxu0 0.0
    %1228 = vmatprep.subr.mxu0 0.0
    %1229 = vmatpush1.msra.mxu0 0.0
    %1230 = vmatprep.subr.mxu0 0.0
    %1231 = vmatpush1.msra.mxu0 0.0
    %1232 = vmatprep.subr.mxu0 0.0
    %1233 = vmatpush1.msra.mxu0 0.0
    %1234 = vmatprep.subr.mxu0 0.0
    %1235 = vmatpush1.msra.mxu0 %v1209
    %1236 = vmatprep.subr.mxu0 0.0
    %1237 = vmatpush1.msra.mxu0 %v1208
    %1238 = vmatprep.subr.mxu0 0.0
    %1239 = vmatpush1.msra.mxu0 %v1207
    %1240 = vmatprep.subr.mxu0 0.0
    %1241 = vmatpush1.msra.mxu0 %v1206
    %1242 = vmatprep.subr.mxu0 0.0
    %1243 = vmatpush2.msra.mxu0 0.0
    %1244 = vmatprep.subr.mxu0 0.0
    %1245 = vmatpush2.msra.mxu0 0.0
    %1246 = vmatprep.subr.mxu0 0.0
    %1247 = vmatpush2.msra.mxu0 0.0
    %1248 = vmatprep.subr.mxu0 0.0
    %1249 = vmatpush2.msra.mxu0 0.0
    %1250 = vmatprep.subr.mxu0 0.0
    %1251 = vmatpush2.msra.mxu0 0.0
    %1252 = vmatprep.subr.mxu0 0.0
    %1253 = vmatpush2.msra.mxu0 0.0
    %1254 = vmatprep.subr.mxu0 0.0
    %1255 = vmatpush2.msra.mxu0 0.0
    %1256 = vmatprep.subr.mxu0 0.0
    %1257 = vmatpush2.msra.mxu0 0.0
    %1258 = vmatprep.subr.mxu0 0.0
    %1259 = vmatpush2.msra.mxu0 0.0
    %1260 = vmatprep.subr.mxu0 0.0
    %1261 = vmatpush2.msra.mxu0 0.0
    %1262 = vmatprep.subr.mxu0 0.0
    %1263 = vmatpush2.msra.mxu0 0.0
    %1264 = vmatprep.subr.mxu0 0.0
    %1265 = vmatpush2.msra.mxu0 0.0
    %1266 = vmatprep.subr.mxu0 0.0
    %1267 = vmatpush2.msra.mxu0 0.0
    %1268 = vmatprep.subr.mxu0 0.0
    %1269 = vmatpush2.msra.mxu0 0.0
    %1270 = vmatprep.subr.mxu0 0.0
    %1271 = vmatpush2.msra.mxu0 0.0
    %1272 = vmatprep.subr.mxu0 0.0
    %1273 = vmatpush2.msra.mxu0 0.0
    %1274 = vmatprep.mubr.f32.mxu0 0.0
    %1275 = vmatmul.mubr.f32.gmra.mxu0 %v94
    %v1276 = vpop.f32.mrf.mxu0
    %v1277 = vadd.f32 0.0, %v1276
    %v1278 = vpop.f32.mrf.mxu0
    %1279 = vmatprep.mubr.f32.mxu0 0.0
    %1280 = vmatmul.mubr.f32.gmra.mxu0 %v97
    %v1281 = vpop.f32.mrf.mxu0
    %v1282 = vadd.f32 0.0, %v1281
    %v1283 = vpop.f32.mrf.mxu0
    %1284 = vdwg.mxu0
    %s1285 = scalar_lea.vmem %s2, 320
    %v1286 = vld [vmem:[%s1285] sm:$0xff]
    %v1287 = vld [vmem:[%s1285 + $0x8] sm:$0xff]
    %v1288 = vld [vmem:[%s1285 + $0x10] sm:$0xff]
    %v1289 = vld [vmem:[%s1285 + $0x18] sm:$0xff]
    %1290 = vmatprep.subr.mxu0 0.0
    %1291 = vmatpush1.msra.mxu0 0.0
    %1292 = vmatprep.subr.mxu0 0.0
    %1293 = vmatpush1.msra.mxu0 0.0
    %1294 = vmatprep.subr.mxu0 0.0
    %1295 = vmatpush1.msra.mxu0 0.0
    %1296 = vmatprep.subr.mxu0 0.0
    %1297 = vmatpush1.msra.mxu0 0.0
    %1298 = vmatprep.subr.mxu0 0.0
    %1299 = vmatpush1.msra.mxu0 0.0
    %1300 = vmatprep.subr.mxu0 0.0
    %1301 = vmatpush1.msra.mxu0 0.0
    %1302 = vmatprep.subr.mxu0 0.0
    %1303 = vmatpush1.msra.mxu0 0.0
    %1304 = vmatprep.subr.mxu0 0.0
    %1305 = vmatpush1.msra.mxu0 0.0
    %1306 = vmatprep.subr.mxu0 0.0
    %1307 = vmatpush1.msra.mxu0 0.0
    %1308 = vmatprep.subr.mxu0 0.0
    %1309 = vmatpush1.msra.mxu0 0.0
    %1310 = vmatprep.subr.mxu0 0.0
    %1311 = vmatpush1.msra.mxu0 0.0
    %1312 = vmatprep.subr.mxu0 0.0
    %1313 = vmatpush1.msra.mxu0 0.0
    %1314 = vmatprep.subr.mxu0 0.0
    %1315 = vmatpush1.msra.mxu0 %v1289
    %1316 = vmatprep.subr.mxu0 0.0
    %1317 = vmatpush1.msra.mxu0 %v1288
    %1318 = vmatprep.subr.mxu0 0.0
    %1319 = vmatpush1.msra.mxu0 %v1287
    %1320 = vmatprep.subr.mxu0 0.0
    %1321 = vmatpush1.msra.mxu0 %v1286
    %1322 = vmatprep.subr.mxu0 0.0
    %1323 = vmatpush2.msra.mxu0 0.0
    %1324 = vmatprep.subr.mxu0 0.0
    %1325 = vmatpush2.msra.mxu0 0.0
    %1326 = vmatprep.subr.mxu0 0.0
    %1327 = vmatpush2.msra.mxu0 0.0
    %1328 = vmatprep.subr.mxu0 0.0
    %1329 = vmatpush2.msra.mxu0 0.0
    %1330 = vmatprep.subr.mxu0 0.0
    %1331 = vmatpush2.msra.mxu0 0.0
    %1332 = vmatprep.subr.mxu0 0.0
    %1333 = vmatpush2.msra.mxu0 0.0
    %1334 = vmatprep.subr.mxu0 0.0
    %1335 = vmatpush2.msra.mxu0 0.0
    %1336 = vmatprep.subr.mxu0 0.0
    %1337 = vmatpush2.msra.mxu0 0.0
    %1338 = vmatprep.subr.mxu0 0.0
    %1339 = vmatpush2.msra.mxu0 0.0
    %1340 = vmatprep.subr.mxu0 0.0
    %1341 = vmatpush2.msra.mxu0 0.0
    %1342 = vmatprep.subr.mxu0 0.0
    %1343 = vmatpush2.msra.mxu0 0.0
    %1344 = vmatprep.subr.mxu0 0.0
    %1345 = vmatpush2.msra.mxu0 0.0
    %1346 = vmatprep.subr.mxu0 0.0
    %1347 = vmatpush2.msra.mxu0 0.0
    %1348 = vmatprep.subr.mxu0 0.0
    %1349 = vmatpush2.msra.mxu0 0.0
    %1350 = vmatprep.subr.mxu0 0.0
    %1351 = vmatpush2.msra.mxu0 0.0
    %1352 = vmatprep.subr.mxu0 0.0
    %1353 = vmatpush2.msra.mxu0 0.0
    %1354 = vmatprep.mubr.f32.mxu0 0.0
    %1355 = vmatmul.mubr.f32.gmra.mxu0 %v94
    %v1356 = vpop.f32.mrf.mxu0
    %v1357 = vadd.f32 0.0, %v1356
    %v1358 = vpop.f32.mrf.mxu0
    %1359 = vmatprep.mubr.f32.mxu0 0.0
    %1360 = vmatmul.mubr.f32.gmra.mxu0 %v97
    %v1361 = vpop.f32.mrf.mxu0
    %v1362 = vadd.f32 0.0, %v1361
    %v1363 = vpop.f32.mrf.mxu0
    %1364 = vdwg.mxu0
    %v1366 = vsel %vm334, %v1197, 0
    %v1369 = vsel %vm334, %v1202, 0
    %v1372 = vsel %vm334, %v1277, 0
    %v1375 = vsel %vm334, %v1282, 0
    %1377 = vmatprep.subr.mxu0 0.0
    %1378 = vmatpush1.xpose.msra.mxu0 0.0
    %1379 = vmatprep.subr.mxu0 0.0
    %1380 = vmatpush1.xpose.msra.mxu0 0.0
    %1381 = vmatprep.subr.mxu0 0.0
    %1382 = vmatpush1.xpose.msra.mxu0 0.0
    %1383 = vmatprep.subr.mxu0 0.0
    %1384 = vmatpush1.xpose.msra.mxu0 0.0
    %1385 = vmatprep.subr.mxu0 0.0
    %1386 = vmatpush1.xpose.msra.mxu0 0.0
    %1387 = vmatprep.subr.mxu0 0.0
    %1388 = vmatpush1.xpose.msra.mxu0 0.0
    %1389 = vmatprep.subr.mxu0 0.0
    %1390 = vmatpush1.xpose.msra.mxu0 0.0
    %1391 = vmatprep.subr.mxu0 0.0
    %1392 = vmatpush1.xpose.msra.mxu0 0.0
    %1393 = vmatprep.subr.mxu0 0.0
    %1394 = vmatpush1.xpose.msra.mxu0 0.0
    %1395 = vmatprep.subr.mxu0 0.0
    %1396 = vmatpush1.xpose.msra.mxu0 0.0
    %1397 = vmatprep.subr.mxu0 0.0
    %1398 = vmatpush1.xpose.msra.mxu0 0.0
    %1399 = vmatprep.subr.mxu0 0.0
    %1400 = vmatpush1.xpose.msra.mxu0 0.0
    %1401 = vmatprep.subr.mxu0 0.0
    %1402 = vmatpush1.xpose.msra.mxu0 0.0
    %1403 = vmatprep.subr.mxu0 0.0
    %1404 = vmatpush1.xpose.msra.mxu0 0.0
    %1405 = vmatprep.subr.mxu0 0.0
    %1406 = vmatpush1.xpose.msra.mxu0 %v1375
    %1407 = vmatprep.subr.mxu0 0.0
    %1408 = vmatpush1.xpose.msra.mxu0 %v1372
    %1409 = vmatprep.subr.mxu0 0.0
    %1410 = vmatpush2.xpose.msra.mxu0 0.0
    %1411 = vmatprep.subr.mxu0 0.0
    %1412 = vmatpush2.xpose.msra.mxu0 0.0
    %1413 = vmatprep.subr.mxu0 0.0
    %1414 = vmatpush2.xpose.msra.mxu0 0.0
    %1415 = vmatprep.subr.mxu0 0.0
    %1416 = vmatpush2.xpose.msra.mxu0 0.0
    %1417 = vmatprep.subr.mxu0 0.0
    %1418 = vmatpush2.xpose.msra.mxu0 0.0
    %1419 = vmatprep.subr.mxu0 0.0
    %1420 = vmatpush2.xpose.msra.mxu0 0.0
    %1421 = vmatprep.subr.mxu0 0.0
    %1422 = vmatpush2.xpose.msra.mxu0 0.0
    %1423 = vmatprep.subr.mxu0 0.0
    %1424 = vmatpush2.xpose.msra.mxu0 0.0
    %1425 = vmatprep.subr.mxu0 0.0
    %1426 = vmatpush2.xpose.msra.mxu0 0.0
    %1427 = vmatprep.subr.mxu0 0.0
    %1428 = vmatpush2.xpose.msra.mxu0 0.0
    %1429 = vmatprep.subr.mxu0 0.0
    %1430 = vmatpush2.xpose.msra.mxu0 0.0
    %1431 = vmatprep.subr.mxu0 0.0
    %1432 = vmatpush2.xpose.msra.mxu0 0.0
    %1433 = vmatprep.subr.mxu0 0.0
    %1434 = vmatpush2.xpose.msra.mxu0 0.0
    %1435 = vmatprep.subr.mxu0 0.0
    %1436 = vmatpush2.xpose.msra.mxu0 0.0
    %1437 = vmatprep.subr.mxu0 0.0
    %1438 = vmatpush2.xpose.msra.mxu0 0.0
    %1439 = vmatprep.subr.mxu0 0.0
    %1440 = vmatpush2.xpose.msra.mxu0 0.0
    %1441 = vmatprep.mubr.f32.mxu0 0.0
    %1442 = vmatmul.mubr.f32.gmra.mxu0 %v1366
    %v1443 = vpop.f32.mrf.mxu0
    %v1444 = vadd.f32 %v46, %v1443
    %v1445 = vpop.f32.mrf.mxu0
    %1446 = vmatprep.mubr.f32.mxu0 0.0
    %1447 = vmatmul.mubr.f32.gmra.mxu0 %v1369
    %v1448 = vpop.f32.mrf.mxu0
    %v1449 = vadd.f32 %v47, %v1448
    %v1450 = vpop.f32.mrf.mxu0
    %1451 = vdwg.mxu0
    %v1452 = vsel %vm422, %v1444, -inf
    %1453 = vmax.xlane.f32.xlu0 %v1452
    %v1454 = vpop.xlane.xlu0 %1453
    %v1455 = vsel %vm422, %v1449, -inf
    %1456 = vmax.xlane.f32.xlu0 %v1455
    %v1457 = vpop.xlane.xlu0 %1456
    %v1458 = vsub.f32 %v1444, %v1454
    %v1459 = vsub.f32 %v1449, %v1457
    %v1460 = vmul.f32 %v1458, 1.442695
    %v1461 = vpow.pop %v1460
    %v1462 = vmul.f32 %v1459, 1.442695
    %v1463 = vpow.pop %v1462
    %v1464 = vsel %vm422, %v1461, 0.0
    %1465 = vadd.xlane.f32.xlu0 %v1464
    %v1466 = vpop.xlane.xlu0 %1465
    %v1467 = vsel %vm422, %v1463, 0.0
    %1468 = vadd.xlane.f32.xlu0 %v1467
    %v1469 = vpop.xlane.xlu0 %1468
    %v1470 = vrcp.pop %v1466
    %v1471 = vrcp.pop %v1469
    %v1472 = vmul.f32 %v1461, %v1470
    %v1473 = vmul.f32 %v1463, %v1471
    %v1475 = vsel %vm422, %v1472, 0
    %v1478 = vsel %vm422, %v1473, 0
    %1480 = vmatprep.subr.mxu0 0.0
    %1481 = vmatpush1.msra.mxu0 0.0
    %1482 = vmatprep.subr.mxu0 0.0
    %1483 = vmatpush1.msra.mxu0 0.0
    %1484 = vmatprep.subr.mxu0 0.0
    %1485 = vmatpush1.msra.mxu0 0.0
    %1486 = vmatprep.subr.mxu0 0.0
    %1487 = vmatpush1.msra.mxu0 0.0
    %1488 = vmatprep.subr.mxu0 0.0
    %1489 = vmatpush1.msra.mxu0 0.0
    %1490 = vmatprep.subr.mxu0 0.0
    %1491 = vmatpush1.msra.mxu0 0.0
    %1492 = vmatprep.subr.mxu0 0.0
    %1493 = vmatpush1.msra.mxu0 0.0
    %1494 = vmatprep.subr.mxu0 0.0
    %1495 = vmatpush1.msra.mxu0 0.0
    %1496 = vmatprep.subr.mxu0 0.0
    %1497 = vmatpush1.msra.mxu0 0.0
    %1498 = vmatprep.subr.mxu0 0.0
    %1499 = vmatpush1.msra.mxu0 0.0
    %1500 = vmatprep.subr.mxu0 0.0
    %1501 = vmatpush1.msra.mxu0 0.0
    %1502 = vmatprep.subr.mxu0 0.0
    %1503 = vmatpush1.msra.mxu0 0.0
    %1504 = vmatprep.subr.mxu0 0.0
    %1505 = vmatpush1.msra.mxu0 0.0
    %1506 = vmatprep.subr.mxu0 0.0
    %1507 = vmatpush1.msra.mxu0 0.0
    %1508 = vmatprep.subr.mxu0 0.0
    %1509 = vmatpush1.msra.mxu0 %v1362
    %1510 = vmatprep.subr.mxu0 0.0
    %1511 = vmatpush1.msra.mxu0 %v1357
    %1512 = vmatprep.subr.mxu0 0.0
    %1513 = vmatpush2.msra.mxu0 0.0
    %1514 = vmatprep.subr.mxu0 0.0
    %1515 = vmatpush2.msra.mxu0 0.0
    %1516 = vmatprep.subr.mxu0 0.0
    %1517 = vmatpush2.msra.mxu0 0.0
    %1518 = vmatprep.subr.mxu0 0.0
    %1519 = vmatpush2.msra.mxu0 0.0
    %1520 = vmatprep.subr.mxu0 0.0
    %1521 = vmatpush2.msra.mxu0 0.0
    %1522 = vmatprep.subr.mxu0 0.0
    %1523 = vmatpush2.msra.mxu0 0.0
    %1524 = vmatprep.subr.mxu0 0.0
    %1525 = vmatpush2.msra.mxu0 0.0
    %1526 = vmatprep.subr.mxu0 0.0
    %1527 = vmatpush2.msra.mxu0 0.0
    %1528 = vmatprep.subr.mxu0 0.0
    %1529 = vmatpush2.msra.mxu0 0.0
    %1530 = vmatprep.subr.mxu0 0.0
    %1531 = vmatpush2.msra.mxu0 0.0
    %1532 = vmatprep.subr.mxu0 0.0
    %1533 = vmatpush2.msra.mxu0 0.0
    %1534 = vmatprep.subr.mxu0 0.0
    %1535 = vmatpush2.msra.mxu0 0.0
    %1536 = vmatprep.subr.mxu0 0.0
    %1537 = vmatpush2.msra.mxu0 0.0
    %1538 = vmatprep.subr.mxu0 0.0
    %1539 = vmatpush2.msra.mxu0 0.0
    %1540 = vmatprep.subr.mxu0 0.0
    %1541 = vmatpush2.msra.mxu0 0.0
    %1542 = vmatprep.subr.mxu0 0.0
    %1543 = vmatpush2.msra.mxu0 0.0
    %1544 = vmatprep.mubr.f32.mxu0 0.0
    %1545 = vmatmul.mubr.f32.gmra.mxu0 %v1475
    %v1546 = vpop.f32.mrf.mxu0
    %v1547 = vadd.f32 0.0, %v1546
    %v1548 = vpop.f32.mrf.mxu0
    %1549 = vmatprep.mubr.f32.mxu0 0.0
    %1550 = vmatmul.mubr.f32.gmra.mxu0 %v1478
    %v1551 = vpop.f32.mrf.mxu0
    %v1552 = vadd.f32 0.0, %v1551
    %v1553 = vpop.f32.mrf.mxu0
    %1554 = vdwg.mxu0
    %s1555 = scalar_lea.vmem %s3, 16
    %v1556 = vld [vmem:[%s1555] sm:$0xff]
    %v1558 = vsel %vm334, %v1547, 0
    %v1561 = vsel %vm334, %v1552, 0
    %1563 = vmatprep.subr.mxu0 0.0
    %1564 = vmatpush1.msra.mxu0 0.0
    %1565 = vmatprep.subr.mxu0 0.0
    %1566 = vmatpush1.msra.mxu0 0.0
    %1567 = vmatprep.subr.mxu0 0.0
    %1568 = vmatpush1.msra.mxu0 0.0
    %1569 = vmatprep.subr.mxu0 0.0
    %1570 = vmatpush1.msra.mxu0 0.0
    %1571 = vmatprep.subr.mxu0 0.0
    %1572 = vmatpush1.msra.mxu0 0.0
    %1573 = vmatprep.subr.mxu0 0.0
    %1574 = vmatpush1.msra.mxu0 0.0
    %1575 = vmatprep.subr.mxu0 0.0
    %1576 = vmatpush1.msra.mxu0 0.0
    %1577 = vmatprep.subr.mxu0 0.0
    %1578 = vmatpush1.msra.mxu0 0.0
    %1579 = vmatprep.subr.mxu0 0.0
    %1580 = vmatpush1.msra.mxu0 0.0
    %1581 = vmatprep.subr.mxu0 0.0
    %1582 = vmatpush1.msra.mxu0 0.0
    %1583 = vmatprep.subr.mxu0 0.0
    %1584 = vmatpush1.msra.mxu0 0.0
    %1585 = vmatprep.subr.mxu0 0.0
    %1586 = vmatpush1.msra.mxu0 0.0
    %1587 = vmatprep.subr.mxu0 0.0
    %1588 = vmatpush1.msra.mxu0 0.0
    %1589 = vmatprep.subr.mxu0 0.0
    %1590 = vmatpush1.msra.mxu0 0.0
    %1591 = vmatprep.subr.mxu0 0.0
    %1592 = vmatpush1.msra.mxu0 0.0
    %1593 = vmatprep.subr.mxu0 0.0
    %1594 = vmatpush1.msra.mxu0 %v1556
    %1595 = vmatprep.subr.mxu0 0.0
    %1596 = vmatpush2.msra.mxu0 0.0
    %1597 = vmatprep.subr.mxu0 0.0
    %1598 = vmatpush2.msra.mxu0 0.0
    %1599 = vmatprep.subr.mxu0 0.0
    %1600 = vmatpush2.msra.mxu0 0.0
    %1601 = vmatprep.subr.mxu0 0.0
    %1602 = vmatpush2.msra.mxu0 0.0
    %1603 = vmatprep.subr.mxu0 0.0
    %1604 = vmatpush2.msra.mxu0 0.0
    %1605 = vmatprep.subr.mxu0 0.0
    %1606 = vmatpush2.msra.mxu0 0.0
    %1607 = vmatprep.subr.mxu0 0.0
    %1608 = vmatpush2.msra.mxu0 0.0
    %1609 = vmatprep.subr.mxu0 0.0
    %1610 = vmatpush2.msra.mxu0 0.0
    %1611 = vmatprep.subr.mxu0 0.0
    %1612 = vmatpush2.msra.mxu0 0.0
    %1613 = vmatprep.subr.mxu0 0.0
    %1614 = vmatpush2.msra.mxu0 0.0
    %1615 = vmatprep.subr.mxu0 0.0
    %1616 = vmatpush2.msra.mxu0 0.0
    %1617 = vmatprep.subr.mxu0 0.0
    %1618 = vmatpush2.msra.mxu0 0.0
    %1619 = vmatprep.subr.mxu0 0.0
    %1620 = vmatpush2.msra.mxu0 0.0
    %1621 = vmatprep.subr.mxu0 0.0
    %1622 = vmatpush2.msra.mxu0 0.0
    %1623 = vmatprep.subr.mxu0 0.0
    %1624 = vmatpush2.msra.mxu0 0.0
    %1625 = vmatprep.subr.mxu0 0.0
    %1626 = vmatpush2.msra.mxu0 0.0
    %1627 = vmatprep.mubr.f32.mxu0 0.0
    %1628 = vmatmul.mubr.f32.gmra.mxu0 %v1558
    %v1629 = vpop.f32.mrf.mxu0
    %v1630 = vadd.f32 0.0, %v1629
    %v1631 = vpop.f32.mrf.mxu0
    %1632 = vmatprep.mubr.f32.mxu0 0.0
    %1633 = vmatmul.mubr.f32.gmra.mxu0 %v1561
    %v1634 = vpop.f32.mrf.mxu0
    %v1635 = vadd.f32 0.0, %v1634
    %v1636 = vpop.f32.mrf.mxu0
    %1637 = vdwg.mxu0
    %v1638 = vadd.f32 %v1123, %v1630
    %v1639 = vadd.f32 %v1124, %v1635
    %s1640 = scalar_lea.vmem %s2, 96
    %v1641 = vld [vmem:[%s1640] sm:$0xff]
    %v1642 = vld [vmem:[%s1640 + $0x8] sm:$0xff]
    %v1643 = vld [vmem:[%s1640 + $0x10] sm:$0xff]
    %v1644 = vld [vmem:[%s1640 + $0x18] sm:$0xff]
    %1645 = vmatprep.subr.mxu0 0.0
    %1646 = vmatpush1.msra.mxu0 0.0
    %1647 = vmatprep.subr.mxu0 0.0
    %1648 = vmatpush1.msra.mxu0 0.0
    %1649 = vmatprep.subr.mxu0 0.0
    %1650 = vmatpush1.msra.mxu0 0.0
    %1651 = vmatprep.subr.mxu0 0.0
    %1652 = vmatpush1.msra.mxu0 0.0
    %1653 = vmatprep.subr.mxu0 0.0
    %1654 = vmatpush1.msra.mxu0 0.0
    %1655 = vmatprep.subr.mxu0 0.0
    %1656 = vmatpush1.msra.mxu0 0.0
    %1657 = vmatprep.subr.mxu0 0.0
    %1658 = vmatpush1.msra.mxu0 0.0
    %1659 = vmatprep.subr.mxu0 0.0
    %1660 = vmatpush1.msra.mxu0 0.0
    %1661 = vmatprep.subr.mxu0 0.0
    %1662 = vmatpush1.msra.mxu0 0.0
    %1663 = vmatprep.subr.mxu0 0.0
    %1664 = vmatpush1.msra.mxu0 0.0
    %1665 = vmatprep.subr.mxu0 0.0
    %1666 = vmatpush1.msra.mxu0 0.0
    %1667 = vmatprep.subr.mxu0 0.0
    %1668 = vmatpush1.msra.mxu0 0.0
    %1669 = vmatprep.subr.mxu0 0.0
    %1670 = vmatpush1.msra.mxu0 %v1644
    %1671 = vmatprep.subr.mxu0 0.0
    %1672 = vmatpush1.msra.mxu0 %v1643
    %1673 = vmatprep.subr.mxu0 0.0
    %1674 = vmatpush1.msra.mxu0 %v1642
    %1675 = vmatprep.subr.mxu0 0.0
    %1676 = vmatpush1.msra.mxu0 %v1641
    %1677 = vmatprep.subr.mxu0 0.0
    %1678 = vmatpush2.msra.mxu0 0.0
    %1679 = vmatprep.subr.mxu0 0.0
    %1680 = vmatpush2.msra.mxu0 0.0
    %1681 = vmatprep.subr.mxu0 0.0
    %1682 = vmatpush2.msra.mxu0 0.0
    %1683 = vmatprep.subr.mxu0 0.0
    %1684 = vmatpush2.msra.mxu0 0.0
    %1685 = vmatprep.subr.mxu0 0.0
    %1686 = vmatpush2.msra.mxu0 0.0
    %1687 = vmatprep.subr.mxu0 0.0
    %1688 = vmatpush2.msra.mxu0 0.0
    %1689 = vmatprep.subr.mxu0 0.0
    %1690 = vmatpush2.msra.mxu0 0.0
    %1691 = vmatprep.subr.mxu0 0.0
    %1692 = vmatpush2.msra.mxu0 0.0
    %1693 = vmatprep.subr.mxu0 0.0
    %1694 = vmatpush2.msra.mxu0 0.0
    %1695 = vmatprep.subr.mxu0 0.0
    %1696 = vmatpush2.msra.mxu0 0.0
    %1697 = vmatprep.subr.mxu0 0.0
    %1698 = vmatpush2.msra.mxu0 0.0
    %1699 = vmatprep.subr.mxu0 0.0
    %1700 = vmatpush2.msra.mxu0 0.0
    %1701 = vmatprep.subr.mxu0 0.0
    %1702 = vmatpush2.msra.mxu0 0.0
    %1703 = vmatprep.subr.mxu0 0.0
    %1704 = vmatpush2.msra.mxu0 0.0
    %1705 = vmatprep.subr.mxu0 0.0
    %1706 = vmatpush2.msra.mxu0 0.0
    %1707 = vmatprep.subr.mxu0 0.0
    %1708 = vmatpush2.msra.mxu0 0.0
    %1709 = vmatprep.mubr.f32.mxu0 0.0
    %1710 = vmatmul.mubr.f32.gmra.mxu0 %v94
    %v1711 = vpop.f32.mrf.mxu0
    %v1712 = vadd.f32 0.0, %v1711
    %v1713 = vpop.f32.mrf.mxu0
    %1714 = vmatprep.mubr.f32.mxu0 0.0
    %1715 = vmatmul.mubr.f32.gmra.mxu0 %v97
    %v1716 = vpop.f32.mrf.mxu0
    %v1717 = vadd.f32 0.0, %v1716
    %v1718 = vpop.f32.mrf.mxu0
    %1719 = vdwg.mxu0
    %s1720 = scalar_lea.vmem %s2, 224
    %v1721 = vld [vmem:[%s1720] sm:$0xff]
    %v1722 = vld [vmem:[%s1720 + $0x8] sm:$0xff]
    %v1723 = vld [vmem:[%s1720 + $0x10] sm:$0xff]
    %v1724 = vld [vmem:[%s1720 + $0x18] sm:$0xff]
    %1725 = vmatprep.subr.mxu0 0.0
    %1726 = vmatpush1.msra.mxu0 0.0
    %1727 = vmatprep.subr.mxu0 0.0
    %1728 = vmatpush1.msra.mxu0 0.0
    %1729 = vmatprep.subr.mxu0 0.0
    %1730 = vmatpush1.msra.mxu0 0.0
    %1731 = vmatprep.subr.mxu0 0.0
    %1732 = vmatpush1.msra.mxu0 0.0
    %1733 = vmatprep.subr.mxu0 0.0
    %1734 = vmatpush1.msra.mxu0 0.0
    %1735 = vmatprep.subr.mxu0 0.0
    %1736 = vmatpush1.msra.mxu0 0.0
    %1737 = vmatprep.subr.mxu0 0.0
    %1738 = vmatpush1.msra.mxu0 0.0
    %1739 = vmatprep.subr.mxu0 0.0
    %1740 = vmatpush1.msra.mxu0 0.0
    %1741 = vmatprep.subr.mxu0 0.0
    %1742 = vmatpush1.msra.mxu0 0.0
    %1743 = vmatprep.subr.mxu0 0.0
    %1744 = vmatpush1.msra.mxu0 0.0
    %1745 = vmatprep.subr.mxu0 0.0
    %1746 = vmatpush1.msra.mxu0 0.0
    %1747 = vmatprep.subr.mxu0 0.0
    %1748 = vmatpush1.msra.mxu0 0.0
    %1749 = vmatprep.subr.mxu0 0.0
    %1750 = vmatpush1.msra.mxu0 %v1724
    %1751 = vmatprep.subr.mxu0 0.0
    %1752 = vmatpush1.msra.mxu0 %v1723
    %1753 = vmatprep.subr.mxu0 0.0
    %1754 = vmatpush1.msra.mxu0 %v1722
    %1755 = vmatprep.subr.mxu0 0.0
    %1756 = vmatpush1.msra.mxu0 %v1721
    %1757 = vmatprep.subr.mxu0 0.0
    %1758 = vmatpush2.msra.mxu0 0.0
    %1759 = vmatprep.subr.mxu0 0.0
    %1760 = vmatpush2.msra.mxu0 0.0
    %1761 = vmatprep.subr.mxu0 0.0
    %1762 = vmatpush2.msra.mxu0 0.0
    %1763 = vmatprep.subr.mxu0 0.0
    %1764 = vmatpush2.msra.mxu0 0.0
    %1765 = vmatprep.subr.mxu0 0.0
    %1766 = vmatpush2.msra.mxu0 0.0
    %1767 = vmatprep.subr.mxu0 0.0
    %1768 = vmatpush2.msra.mxu0 0.0
    %1769 = vmatprep.subr.mxu0 0.0
    %1770 = vmatpush2.msra.mxu0 0.0
    %1771 = vmatprep.subr.mxu0 0.0
    %1772 = vmatpush2.msra.mxu0 0.0
    %1773 = vmatprep.subr.mxu0 0.0
    %1774 = vmatpush2.msra.mxu0 0.0
    %1775 = vmatprep.subr.mxu0 0.0
    %1776 = vmatpush2.msra.mxu0 0.0
    %1777 = vmatprep.subr.mxu0 0.0
    %1778 = vmatpush2.msra.mxu0 0.0
    %1779 = vmatprep.subr.mxu0 0.0
    %1780 = vmatpush2.msra.mxu0 0.0
    %1781 = vmatprep.subr.mxu0 0.0
    %1782 = vmatpush2.msra.mxu0 0.0
    %1783 = vmatprep.subr.mxu0 0.0
    %1784 = vmatpush2.msra.mxu0 0.0
    %1785 = vmatprep.subr.mxu0 0.0
    %1786 = vmatpush2.msra.mxu0 0.0
    %1787 = vmatprep.subr.mxu0 0.0
    %1788 = vmatpush2.msra.mxu0 0.0
    %1789 = vmatprep.mubr.f32.mxu0 0.0
    %1790 = vmatmul.mubr.f32.gmra.mxu0 %v94
    %v1791 = vpop.f32.mrf.mxu0
    %v1792 = vadd.f32 0.0, %v1791
    %v1793 = vpop.f32.mrf.mxu0
    %1794 = vmatprep.mubr.f32.mxu0 0.0
    %1795 = vmatmul.mubr.f32.gmra.mxu0 %v97
    %v1796 = vpop.f32.mrf.mxu0
    %v1797 = vadd.f32 0.0, %v1796
    %v1798 = vpop.f32.mrf.mxu0
    %1799 = vdwg.mxu0
    %s1800 = scalar_lea.vmem %s2, 352
    %v1801 = vld [vmem:[%s1800] sm:$0xff]
    %v1802 = vld [vmem:[%s1800 + $0x8] sm:$0xff]
    %v1803 = vld [vmem:[%s1800 + $0x10] sm:$0xff]
    %v1804 = vld [vmem:[%s1800 + $0x18] sm:$0xff]
    %1805 = vmatprep.subr.mxu0 0.0
    %1806 = vmatpush1.msra.mxu0 0.0
    %1807 = vmatprep.subr.mxu0 0.0
    %1808 = vmatpush1.msra.mxu0 0.0
    %1809 = vmatprep.subr.mxu0 0.0
    %1810 = vmatpush1.msra.mxu0 0.0
    %1811 = vmatprep.subr.mxu0 0.0
    %1812 = vmatpush1.msra.mxu0 0.0
    %1813 = vmatprep.subr.mxu0 0.0
    %1814 = vmatpush1.msra.mxu0 0.0
    %1815 = vmatprep.subr.mxu0 0.0
    %1816 = vmatpush1.msra.mxu0 0.0
    %1817 = vmatprep.subr.mxu0 0.0
    %1818 = vmatpush1.msra.mxu0 0.0
    %1819 = vmatprep.subr.mxu0 0.0
    %1820 = vmatpush1.msra.mxu0 0.0
    %1821 = vmatprep.subr.mxu0 0.0
    %1822 = vmatpush1.msra.mxu0 0.0
    %1823 = vmatprep.subr.mxu0 0.0
    %1824 = vmatpush1.msra.mxu0 0.0
    %1825 = vmatprep.subr.mxu0 0.0
    %1826 = vmatpush1.msra.mxu0 0.0
    %1827 = vmatprep.subr.mxu0 0.0
    %1828 = vmatpush1.msra.mxu0 0.0
    %1829 = vmatprep.subr.mxu0 0.0
    %1830 = vmatpush1.msra.mxu0 %v1804
    %1831 = vmatprep.subr.mxu0 0.0
    %1832 = vmatpush1.msra.mxu0 %v1803
    %1833 = vmatprep.subr.mxu0 0.0
    %1834 = vmatpush1.msra.mxu0 %v1802
    %1835 = vmatprep.subr.mxu0 0.0
    %1836 = vmatpush1.msra.mxu0 %v1801
    %1837 = vmatprep.subr.mxu0 0.0
    %1838 = vmatpush2.msra.mxu0 0.0
    %1839 = vmatprep.subr.mxu0 0.0
    %1840 = vmatpush2.msra.mxu0 0.0
    %1841 = vmatprep.subr.mxu0 0.0
    %1842 = vmatpush2.msra.mxu0 0.0
    %1843 = vmatprep.subr.mxu0 0.0
    %1844 = vmatpush2.msra.mxu0 0.0
    %1845 = vmatprep.subr.mxu0 0.0
    %1846 = vmatpush2.msra.mxu0 0.0
    %1847 = vmatprep.subr.mxu0 0.0
    %1848 = vmatpush2.msra.mxu0 0.0
    %1849 = vmatprep.subr.mxu0 0.0
    %1850 = vmatpush2.msra.mxu0 0.0
    %1851 = vmatprep.subr.mxu0 0.0
    %1852 = vmatpush2.msra.mxu0 0.0
    %1853 = vmatprep.subr.mxu0 0.0
    %1854 = vmatpush2.msra.mxu0 0.0
    %1855 = vmatprep.subr.mxu0 0.0
    %1856 = vmatpush2.msra.mxu0 0.0
    %1857 = vmatprep.subr.mxu0 0.0
    %1858 = vmatpush2.msra.mxu0 0.0
    %1859 = vmatprep.subr.mxu0 0.0
    %1860 = vmatpush2.msra.mxu0 0.0
    %1861 = vmatprep.subr.mxu0 0.0
    %1862 = vmatpush2.msra.mxu0 0.0
    %1863 = vmatprep.subr.mxu0 0.0
    %1864 = vmatpush2.msra.mxu0 0.0
    %1865 = vmatprep.subr.mxu0 0.0
    %1866 = vmatpush2.msra.mxu0 0.0
    %1867 = vmatprep.subr.mxu0 0.0
    %1868 = vmatpush2.msra.mxu0 0.0
    %1869 = vmatprep.mubr.f32.mxu0 0.0
    %1870 = vmatmul.mubr.f32.gmra.mxu0 %v94
    %v1871 = vpop.f32.mrf.mxu0
    %v1872 = vadd.f32 0.0, %v1871
    %v1873 = vpop.f32.mrf.mxu0
    %1874 = vmatprep.mubr.f32.mxu0 0.0
    %1875 = vmatmul.mubr.f32.gmra.mxu0 %v97
    %v1876 = vpop.f32.mrf.mxu0
    %v1877 = vadd.f32 0.0, %v1876
    %v1878 = vpop.f32.mrf.mxu0
    %1879 = vdwg.mxu0
    %v1881 = vsel %vm334, %v1712, 0
    %v1884 = vsel %vm334, %v1717, 0
    %v1887 = vsel %vm334, %v1792, 0
    %v1890 = vsel %vm334, %v1797, 0
    %1892 = vmatprep.subr.mxu0 0.0
    %1893 = vmatpush1.xpose.msra.mxu0 0.0
    %1894 = vmatprep.subr.mxu0 0.0
    %1895 = vmatpush1.xpose.msra.mxu0 0.0
    %1896 = vmatprep.subr.mxu0 0.0
    %1897 = vmatpush1.xpose.msra.mxu0 0.0
    %1898 = vmatprep.subr.mxu0 0.0
    %1899 = vmatpush1.xpose.msra.mxu0 0.0
    %1900 = vmatprep.subr.mxu0 0.0
    %1901 = vmatpush1.xpose.msra.mxu0 0.0
    %1902 = vmatprep.subr.mxu0 0.0
    %1903 = vmatpush1.xpose.msra.mxu0 0.0
    %1904 = vmatprep.subr.mxu0 0.0
    %1905 = vmatpush1.xpose.msra.mxu0 0.0
    %1906 = vmatprep.subr.mxu0 0.0
    %1907 = vmatpush1.xpose.msra.mxu0 0.0
    %1908 = vmatprep.subr.mxu0 0.0
    %1909 = vmatpush1.xpose.msra.mxu0 0.0
    %1910 = vmatprep.subr.mxu0 0.0
    %1911 = vmatpush1.xpose.msra.mxu0 0.0
    %1912 = vmatprep.subr.mxu0 0.0
    %1913 = vmatpush1.xpose.msra.mxu0 0.0
    %1914 = vmatprep.subr.mxu0 0.0
    %1915 = vmatpush1.xpose.msra.mxu0 0.0
    %1916 = vmatprep.subr.mxu0 0.0
    %1917 = vmatpush1.xpose.msra.mxu0 0.0
    %1918 = vmatprep.subr.mxu0 0.0
    %1919 = vmatpush1.xpose.msra.mxu0 0.0
    %1920 = vmatprep.subr.mxu0 0.0
    %1921 = vmatpush1.xpose.msra.mxu0 %v1890
    %1922 = vmatprep.subr.mxu0 0.0
    %1923 = vmatpush1.xpose.msra.mxu0 %v1887
    %1924 = vmatprep.subr.mxu0 0.0
    %1925 = vmatpush2.xpose.msra.mxu0 0.0
    %1926 = vmatprep.subr.mxu0 0.0
    %1927 = vmatpush2.xpose.msra.mxu0 0.0
    %1928 = vmatprep.subr.mxu0 0.0
    %1929 = vmatpush2.xpose.msra.mxu0 0.0
    %1930 = vmatprep.subr.mxu0 0.0
    %1931 = vmatpush2.xpose.msra.mxu0 0.0
    %1932 = vmatprep.subr.mxu0 0.0
    %1933 = vmatpush2.xpose.msra.mxu0 0.0
    %1934 = vmatprep.subr.mxu0 0.0
    %1935 = vmatpush2.xpose.msra.mxu0 0.0
    %1936 = vmatprep.subr.mxu0 0.0
    %1937 = vmatpush2.xpose.msra.mxu0 0.0
    %1938 = vmatprep.subr.mxu0 0.0
    %1939 = vmatpush2.xpose.msra.mxu0 0.0
    %1940 = vmatprep.subr.mxu0 0.0
    %1941 = vmatpush2.xpose.msra.mxu0 0.0
    %1942 = vmatprep.subr.mxu0 0.0
    %1943 = vmatpush2.xpose.msra.mxu0 0.0
    %1944 = vmatprep.subr.mxu0 0.0
    %1945 = vmatpush2.xpose.msra.mxu0 0.0
    %1946 = vmatprep.subr.mxu0 0.0
    %1947 = vmatpush2.xpose.msra.mxu0 0.0
    %1948 = vmatprep.subr.mxu0 0.0
    %1949 = vmatpush2.xpose.msra.mxu0 0.0
    %1950 = vmatprep.subr.mxu0 0.0
    %1951 = vmatpush2.xpose.msra.mxu0 0.0
    %1952 = vmatprep.subr.mxu0 0.0
    %1953 = vmatpush2.xpose.msra.mxu0 0.0
    %1954 = vmatprep.subr.mxu0 0.0
    %1955 = vmatpush2.xpose.msra.mxu0 0.0
    %1956 = vmatprep.mubr.f32.mxu0 0.0
    %1957 = vmatmul.mubr.f32.gmra.mxu0 %v1881
    %v1958 = vpop.f32.mrf.mxu0
    %v1959 = vadd.f32 %v46, %v1958
    %v1960 = vpop.f32.mrf.mxu0
    %1961 = vmatprep.mubr.f32.mxu0 0.0
    %1962 = vmatmul.mubr.f32.gmra.mxu0 %v1884
    %v1963 = vpop.f32.mrf.mxu0
    %v1964 = vadd.f32 %v47, %v1963
    %v1965 = vpop.f32.mrf.mxu0
    %1966 = vdwg.mxu0
    %v1967 = vsel %vm422, %v1959, -inf
    %1968 = vmax.xlane.f32.xlu0 %v1967
    %v1969 = vpop.xlane.xlu0 %1968
    %v1970 = vsel %vm422, %v1964, -inf
    %1971 = vmax.xlane.f32.xlu0 %v1970
    %v1972 = vpop.xlane.xlu0 %1971
    %v1973 = vsub.f32 %v1959, %v1969
    %v1974 = vsub.f32 %v1964, %v1972
    %v1975 = vmul.f32 %v1973, 1.442695
    %v1976 = vpow.pop %v1975
    %v1977 = vmul.f32 %v1974, 1.442695
    %v1978 = vpow.pop %v1977
    %v1979 = vsel %vm422, %v1976, 0.0
    %1980 = vadd.xlane.f32.xlu0 %v1979
    %v1981 = vpop.xlane.xlu0 %1980
    %v1982 = vsel %vm422, %v1978, 0.0
    %1983 = vadd.xlane.f32.xlu0 %v1982
    %v1984 = vpop.xlane.xlu0 %1983
    %v1985 = vrcp.pop %v1981
    %v1986 = vrcp.pop %v1984
    %v1987 = vmul.f32 %v1976, %v1985
    %v1988 = vmul.f32 %v1978, %v1986
    %v1990 = vsel %vm422, %v1987, 0
    %v1993 = vsel %vm422, %v1988, 0
    %1995 = vmatprep.subr.mxu0 0.0
    %1996 = vmatpush1.msra.mxu0 0.0
    %1997 = vmatprep.subr.mxu0 0.0
    %1998 = vmatpush1.msra.mxu0 0.0
    %1999 = vmatprep.subr.mxu0 0.0
    %2000 = vmatpush1.msra.mxu0 0.0
    %2001 = vmatprep.subr.mxu0 0.0
    %2002 = vmatpush1.msra.mxu0 0.0
    %2003 = vmatprep.subr.mxu0 0.0
    %2004 = vmatpush1.msra.mxu0 0.0
    %2005 = vmatprep.subr.mxu0 0.0
    %2006 = vmatpush1.msra.mxu0 0.0
    %2007 = vmatprep.subr.mxu0 0.0
    %2008 = vmatpush1.msra.mxu0 0.0
    %2009 = vmatprep.subr.mxu0 0.0
    %2010 = vmatpush1.msra.mxu0 0.0
    %2011 = vmatprep.subr.mxu0 0.0
    %2012 = vmatpush1.msra.mxu0 0.0
    %2013 = vmatprep.subr.mxu0 0.0
    %2014 = vmatpush1.msra.mxu0 0.0
    %2015 = vmatprep.subr.mxu0 0.0
    %2016 = vmatpush1.msra.mxu0 0.0
    %2017 = vmatprep.subr.mxu0 0.0
    %2018 = vmatpush1.msra.mxu0 0.0
    %2019 = vmatprep.subr.mxu0 0.0
    %2020 = vmatpush1.msra.mxu0 0.0
    %2021 = vmatprep.subr.mxu0 0.0
    %2022 = vmatpush1.msra.mxu0 0.0
    %2023 = vmatprep.subr.mxu0 0.0
    %2024 = vmatpush1.msra.mxu0 %v1877
    %2025 = vmatprep.subr.mxu0 0.0
    %2026 = vmatpush1.msra.mxu0 %v1872
    %2027 = vmatprep.subr.mxu0 0.0
    %2028 = vmatpush2.msra.mxu0 0.0
    %2029 = vmatprep.subr.mxu0 0.0
    %2030 = vmatpush2.msra.mxu0 0.0
    %2031 = vmatprep.subr.mxu0 0.0
    %2032 = vmatpush2.msra.mxu0 0.0
    %2033 = vmatprep.subr.mxu0 0.0
    %2034 = vmatpush2.msra.mxu0 0.0
    %2035 = vmatprep.subr.mxu0 0.0
    %2036 = vmatpush2.msra.mxu0 0.0
    %2037 = vmatprep.subr.mxu0 0.0
    %2038 = vmatpush2.msra.mxu0 0.0
    %2039 = vmatprep.subr.mxu0 0.0
    %2040 = vmatpush2.msra.mxu0 0.0
    %2041 = vmatprep.subr.mxu0 0.0
    %2042 = vmatpush2.msra.mxu0 0.0
    %2043 = vmatprep.subr.mxu0 0.0
    %2044 = vmatpush2.msra.mxu0 0.0
    %2045 = vmatprep.subr.mxu0 0.0
    %2046 = vmatpush2.msra.mxu0 0.0
    %2047 = vmatprep.subr.mxu0 0.0
    %2048 = vmatpush2.msra.mxu0 0.0
    %2049 = vmatprep.subr.mxu0 0.0
    %2050 = vmatpush2.msra.mxu0 0.0
    %2051 = vmatprep.subr.mxu0 0.0
    %2052 = vmatpush2.msra.mxu0 0.0
    %2053 = vmatprep.subr.mxu0 0.0
    %2054 = vmatpush2.msra.mxu0 0.0
    %2055 = vmatprep.subr.mxu0 0.0
    %2056 = vmatpush2.msra.mxu0 0.0
    %2057 = vmatprep.subr.mxu0 0.0
    %2058 = vmatpush2.msra.mxu0 0.0
    %2059 = vmatprep.mubr.f32.mxu0 0.0
    %2060 = vmatmul.mubr.f32.gmra.mxu0 %v1990
    %v2061 = vpop.f32.mrf.mxu0
    %v2062 = vadd.f32 0.0, %v2061
    %v2063 = vpop.f32.mrf.mxu0
    %2064 = vmatprep.mubr.f32.mxu0 0.0
    %2065 = vmatmul.mubr.f32.gmra.mxu0 %v1993
    %v2066 = vpop.f32.mrf.mxu0
    %v2067 = vadd.f32 0.0, %v2066
    %v2068 = vpop.f32.mrf.mxu0
    %2069 = vdwg.mxu0
    %s2070 = scalar_lea.vmem %s3, 24
    %v2071 = vld [vmem:[%s2070] sm:$0xff]
    %v2073 = vsel %vm334, %v2062, 0
    %v2076 = vsel %vm334, %v2067, 0
    %2078 = vmatprep.subr.mxu0 0.0
    %2079 = vmatpush1.msra.mxu0 0.0
    %2080 = vmatprep.subr.mxu0 0.0
    %2081 = vmatpush1.msra.mxu0 0.0
    %2082 = vmatprep.subr.mxu0 0.0
    %2083 = vmatpush1.msra.mxu0 0.0
    %2084 = vmatprep.subr.mxu0 0.0
    %2085 = vmatpush1.msra.mxu0 0.0
    %2086 = vmatprep.subr.mxu0 0.0
    %2087 = vmatpush1.msra.mxu0 0.0
    %2088 = vmatprep.subr.mxu0 0.0
    %2089 = vmatpush1.msra.mxu0 0.0
    %2090 = vmatprep.subr.mxu0 0.0
    %2091 = vmatpush1.msra.mxu0 0.0
    %2092 = vmatprep.subr.mxu0 0.0
    %2093 = vmatpush1.msra.mxu0 0.0
    %2094 = vmatprep.subr.mxu0 0.0
    %2095 = vmatpush1.msra.mxu0 0.0
    %2096 = vmatprep.subr.mxu0 0.0
    %2097 = vmatpush1.msra.mxu0 0.0
    %2098 = vmatprep.subr.mxu0 0.0
    %2099 = vmatpush1.msra.mxu0 0.0
    %2100 = vmatprep.subr.mxu0 0.0
    %2101 = vmatpush1.msra.mxu0 0.0
    %2102 = vmatprep.subr.mxu0 0.0
    %2103 = vmatpush1.msra.mxu0 0.0
    %2104 = vmatprep.subr.mxu0 0.0
    %2105 = vmatpush1.msra.mxu0 0.0
    %2106 = vmatprep.subr.mxu0 0.0
    %2107 = vmatpush1.msra.mxu0 0.0
    %2108 = vmatprep.subr.mxu0 0.0
    %2109 = vmatpush1.msra.mxu0 %v2071
    %2110 = vmatprep.subr.mxu0 0.0
    %2111 = vmatpush2.msra.mxu0 0.0
    %2112 = vmatprep.subr.mxu0 0.0
    %2113 = vmatpush2.msra.mxu0 0.0
    %2114 = vmatprep.subr.mxu0 0.0
    %2115 = vmatpush2.msra.mxu0 0.0
    %2116 = vmatprep.subr.mxu0 0.0
    %2117 = vmatpush2.msra.mxu0 0.0
    %2118 = vmatprep.subr.mxu0 0.0
    %2119 = vmatpush2.msra.mxu0 0.0
    %2120 = vmatprep.subr.mxu0 0.0
    %2121 = vmatpush2.msra.mxu0 0.0
    %2122 = vmatprep.subr.mxu0 0.0
    %2123 = vmatpush2.msra.mxu0 0.0
    %2124 = vmatprep.subr.mxu0 0.0
    %2125 = vmatpush2.msra.mxu0 0.0
    %2126 = vmatprep.subr.mxu0 0.0
    %2127 = vmatpush2.msra.mxu0 0.0
    %2128 = vmatprep.subr.mxu0 0.0
    %2129 = vmatpush2.msra.mxu0 0.0
    %2130 = vmatprep.subr.mxu0 0.0
    %2131 = vmatpush2.msra.mxu0 0.0
    %2132 = vmatprep.subr.mxu0 0.0
    %2133 = vmatpush2.msra.mxu0 0.0
    %2134 = vmatprep.subr.mxu0 0.0
    %2135 = vmatpush2.msra.mxu0 0.0
    %2136 = vmatprep.subr.mxu0 0.0
    %2137 = vmatpush2.msra.mxu0 0.0
    %2138 = vmatprep.subr.mxu0 0.0
    %2139 = vmatpush2.msra.mxu0 0.0
    %2140 = vmatprep.subr.mxu0 0.0
    %2141 = vmatpush2.msra.mxu0 0.0
    %2142 = vmatprep.mubr.f32.mxu0 0.0
    %2143 = vmatmul.mubr.f32.gmra.mxu0 %v2073
    %v2144 = vpop.f32.mrf.mxu0
    %v2145 = vadd.f32 0.0, %v2144
    %v2146 = vpop.f32.mrf.mxu0
    %2147 = vmatprep.mubr.f32.mxu0 0.0
    %2148 = vmatmul.mubr.f32.gmra.mxu0 %v2076
    %v2149 = vpop.f32.mrf.mxu0
    %v2150 = vadd.f32 0.0, %v2149
    %v2151 = vpop.f32.mrf.mxu0
    %2152 = vdwg.mxu0
    %v2153 = vadd.f32 %v1638, %v2145
    %v2154 = vadd.f32 %v1639, %v2150
    %v2155 = vsel %vm49, %v2153, 0.0
    %2156 = vadd.xlane.f32.xlu0 %v2155
    %v2157 = vpop.xlane.xlu0 %2156
    %v2158 = vsel %vm49, %v2154, 0.0
    %2159 = vadd.xlane.f32.xlu0 %v2158
    %v2160 = vpop.xlane.xlu0 %2159
    %v2161 = vmul.f32 %v2157, %v56
    %v2162 = vmul.f32 %v2160, %v56
    %v2163 = vsub.f32 %v2153, %v2161
    %v2164 = vsub.f32 %v2154, %v2162
    %v2165 = vmul.f32 %v2163, %v2163
    %v2166 = vmul.f32 %v2164, %v2164
    %v2167 = vsel %vm49, %v2165, 0.0
    %2168 = vadd.xlane.f32.xlu0 %v2167
    %v2169 = vpop.xlane.xlu0 %2168
    %v2170 = vsel %vm49, %v2166, 0.0
    %2171 = vadd.xlane.f32.xlu0 %v2170
    %v2172 = vpop.xlane.xlu0 %2171
    %v2173 = vmul.f32 %v2169, %v56
    %v2174 = vmul.f32 %v2172, %v56
    %v2175 = vadd.f32 %v2173, 1e-05
    %v2176 = vadd.f32 %v2174, 1e-05
    %v2177 = vrsqrt.pop %v2175
    %v2178 = vrsqrt.pop %v2176
    %v2179 = vmul.f32 %v2163, %v2177
    %v2180 = vmul.f32 %v2164, %v2178
    %v2181 = vlaneseq
    %v2182 = vshrl.u32 %v2181, 7
    %v2183 = vsub.s32 2, %v2182
    %v2184 = vrot.slane %v48, %v2183
    %v2185 = vmul.f32 %v2179, %v2184
    %v2186 = vmul.f32 %v2180, %v2184
    %v2187 = vlaneseq
    %v2188 = vshrl.u32 %v2187, 7
    %v2189 = vsub.s32 3, %v2188
    %v2190 = vrot.slane %v48, %v2189
    %v2191 = vadd.f32 %v2185, %v2190
    %v2192 = vadd.f32 %v2186, %v2190
    %v2193 = vld [vmem:[%s4] sm:$0xff]
    %v2194 = vld [vmem:[%s4 + $0x8] sm:$0xff]
    %v2195 = vld [vmem:[%s4 + $0x10] sm:$0xff]
    %v2196 = vld [vmem:[%s4 + $0x18] sm:$0xff]
    %v2197 = vld [vmem:[%s6] sm:$0x1]
    %v2198 = vlaneseq
    %v2199 = vshrl.u32 %v2198, 7
    %v2200 = vsub.s32 0, %v2199
    %v2201 = vrot.slane %v2197, %v2200
    %v2203 = vsel %vm49, %v2191, 0
    %v2206 = vsel %vm49, %v2192, 0
    %2208 = vmatprep.subr.mxu0 0.0
    %2209 = vmatpush1.msra.mxu0 0.0
    %2210 = vmatprep.subr.mxu0 0.0
    %2211 = vmatpush1.msra.mxu0 0.0
    %2212 = vmatprep.subr.mxu0 0.0
    %2213 = vmatpush1.msra.mxu0 0.0
    %2214 = vmatprep.subr.mxu0 0.0
    %2215 = vmatpush1.msra.mxu0 0.0
    %2216 = vmatprep.subr.mxu0 0.0
    %2217 = vmatpush1.msra.mxu0 0.0
    %2218 = vmatprep.subr.mxu0 0.0
    %2219 = vmatpush1.msra.mxu0 0.0
    %2220 = vmatprep.subr.mxu0 0.0
    %2221 = vmatpush1.msra.mxu0 0.0
    %2222 = vmatprep.subr.mxu0 0.0
    %2223 = vmatpush1.msra.mxu0 0.0
    %2224 = vmatprep.subr.mxu0 0.0
    %2225 = vmatpush1.msra.mxu0 0.0
    %2226 = vmatprep.subr.mxu0 0.0
    %2227 = vmatpush1.msra.mxu0 0.0
    %2228 = vmatprep.subr.mxu0 0.0
    %2229 = vmatpush1.msra.mxu0 0.0
    %2230 = vmatprep.subr.mxu0 0.0
    %2231 = vmatpush1.msra.mxu0 0.0
    %2232 = vmatprep.subr.mxu0 0.0
    %2233 = vmatpush1.msra.mxu0 %v2196
    %2234 = vmatprep.subr.mxu0 0.0
    %2235 = vmatpush1.msra.mxu0 %v2195
    %2236 = vmatprep.subr.mxu0 0.0
    %2237 = vmatpush1.msra.mxu0 %v2194
    %2238 = vmatprep.subr.mxu0 0.0
    %2239 = vmatpush1.msra.mxu0 %v2193
    %2240 = vmatprep.subr.mxu0 0.0
    %2241 = vmatpush2.msra.mxu0 0.0
    %2242 = vmatprep.subr.mxu0 0.0
    %2243 = vmatpush2.msra.mxu0 0.0
    %2244 = vmatprep.subr.mxu0 0.0
    %2245 = vmatpush2.msra.mxu0 0.0
    %2246 = vmatprep.subr.mxu0 0.0
    %2247 = vmatpush2.msra.mxu0 0.0
    %2248 = vmatprep.subr.mxu0 0.0
    %2249 = vmatpush2.msra.mxu0 0.0
    %2250 = vmatprep.subr.mxu0 0.0
    %2251 = vmatpush2.msra.mxu0 0.0
    %2252 = vmatprep.subr.mxu0 0.0
    %2253 = vmatpush2.msra.mxu0 0.0
    %2254 = vmatprep.subr.mxu0 0.0
    %2255 = vmatpush2.msra.mxu0 0.0
    %2256 = vmatprep.subr.mxu0 0.0
    %2257 = vmatpush2.msra.mxu0 0.0
    %2258 = vmatprep.subr.mxu0 0.0
    %2259 = vmatpush2.msra.mxu0 0.0
    %2260 = vmatprep.subr.mxu0 0.0
    %2261 = vmatpush2.msra.mxu0 0.0
    %2262 = vmatprep.subr.mxu0 0.0
    %2263 = vmatpush2.msra.mxu0 0.0
    %2264 = vmatprep.subr.mxu0 0.0
    %2265 = vmatpush2.msra.mxu0 0.0
    %2266 = vmatprep.subr.mxu0 0.0
    %2267 = vmatpush2.msra.mxu0 0.0
    %2268 = vmatprep.subr.mxu0 0.0
    %2269 = vmatpush2.msra.mxu0 0.0
    %2270 = vmatprep.subr.mxu0 0.0
    %2271 = vmatpush2.msra.mxu0 0.0
    %2272 = vmatprep.mubr.f32.mxu0 0.0
    %2273 = vmatmul.mubr.f32.gmra.mxu0 %v2203
    %v2274 = vpop.f32.mrf.mxu0
    %v2275 = vadd.f32 %v2201, %v2274
    %v2276 = vpop.f32.mrf.mxu0
    %2277 = vmatprep.mubr.f32.mxu0 0.0
    %2278 = vmatmul.mubr.f32.gmra.mxu0 %v2206
    %v2279 = vpop.f32.mrf.mxu0
    %v2280 = vadd.f32 %v2201, %v2279
    %v2281 = vpop.f32.mrf.mxu0
    %2282 = vdwg.mxu0
    %v2283 = vmul.f32 %v2275, 0.5
    %v2284 = vmul.f32 %v2280, 0.5
    %v2285 = vmul.f32 %v2275, 0.70710677
    %v2286 = vmul.f32 %v2280, 0.70710677
    %v2287 = verf.f32.pop %v2285
    %v2288 = verf.f32.pop %v2286
    %v2289 = vadd.f32 %v2287, 1.0
    %v2290 = vadd.f32 %v2288, 1.0
    %v2291 = vmul.f32 %v2283, %v2289
    %v2292 = vmul.f32 %v2284, %v2290
    %v2293 = vld [vmem:[%s5] sm:$0xff]
    %v2294 = vld [vmem:[%s5 + $0x8] sm:$0xff]
    %v2295 = vld [vmem:[%s5 + $0x10] sm:$0xff]
    %v2296 = vld [vmem:[%s5 + $0x18] sm:$0xff]
    %v2297 = vld [vmem:[%s5 + $0x20] sm:$0xff]
    %v2298 = vld [vmem:[%s5 + $0x28] sm:$0xff]
    %v2299 = vld [vmem:[%s5 + $0x30] sm:$0xff]
    %v2300 = vld [vmem:[%s5 + $0x38] sm:$0xff]
    %v2301 = vld [vmem:[%s5 + $0x40] sm:$0xff]
    %v2302 = vld [vmem:[%s5 + $0x48] sm:$0xff]
    %v2303 = vld [vmem:[%s5 + $0x50] sm:$0xff]
    %v2304 = vld [vmem:[%s5 + $0x58] sm:$0xff]
    %v2305 = vld [vmem:[%s5 + $0x60] sm:$0xff]
    %v2306 = vld [vmem:[%s5 + $0x68] sm:$0xff]
    %v2307 = vld [vmem:[%s5 + $0x70] sm:$0xff]
    %v2308 = vld [vmem:[%s5 + $0x78] sm:$0xff]
    %2309 = vmatprep.subr.mxu0 0.0
    %2310 = vmatpush1.msra.mxu0 %v2308
    %2311 = vmatprep.subr.mxu0 0.0
    %2312 = vmatpush1.msra.mxu0 %v2307
    %2313 = vmatprep.subr.mxu0 0.0
    %2314 = vmatpush1.msra.mxu0 %v2306
    %2315 = vmatprep.subr.mxu0 0.0
    %2316 = vmatpush1.msra.mxu0 %v2305
    %2317 = vmatprep.subr.mxu0 0.0
    %2318 = vmatpush1.msra.mxu0 %v2304
    %2319 = vmatprep.subr.mxu0 0.0
    %2320 = vmatpush1.msra.mxu0 %v2303
    %2321 = vmatprep.subr.mxu0 0.0
    %2322 = vmatpush1.msra.mxu0 %v2302
    %2323 = vmatprep.subr.mxu0 0.0
    %2324 = vmatpush1.msra.mxu0 %v2301
    %2325 = vmatprep.subr.mxu0 0.0
    %2326 = vmatpush1.msra.mxu0 %v2300
    %2327 = vmatprep.subr.mxu0 0.0
    %2328 = vmatpush1.msra.mxu0 %v2299
    %2329 = vmatprep.subr.mxu0 0.0
    %2330 = vmatpush1.msra.mxu0 %v2298
    %2331 = vmatprep.subr.mxu0 0.0
    %2332 = vmatpush1.msra.mxu0 %v2297
    %2333 = vmatprep.subr.mxu0 0.0
    %2334 = vmatpush1.msra.mxu0 %v2296
    %2335 = vmatprep.subr.mxu0 0.0
    %2336 = vmatpush1.msra.mxu0 %v2295
    %2337 = vmatprep.subr.mxu0 0.0
    %2338 = vmatpush1.msra.mxu0 %v2294
    %2339 = vmatprep.subr.mxu0 0.0
    %2340 = vmatpush1.msra.mxu0 %v2293
    %2341 = vmatprep.subr.mxu0 0.0
    %2342 = vmatpush2.msra.mxu0 0.0
    %2343 = vmatprep.subr.mxu0 0.0
    %2344 = vmatpush2.msra.mxu0 0.0
    %2345 = vmatprep.subr.mxu0 0.0
    %2346 = vmatpush2.msra.mxu0 0.0
    %2347 = vmatprep.subr.mxu0 0.0
    %2348 = vmatpush2.msra.mxu0 0.0
    %2349 = vmatprep.subr.mxu0 0.0
    %2350 = vmatpush2.msra.mxu0 0.0
    %2351 = vmatprep.subr.mxu0 0.0
    %2352 = vmatpush2.msra.mxu0 0.0
    %2353 = vmatprep.subr.mxu0 0.0
    %2354 = vmatpush2.msra.mxu0 0.0
    %2355 = vmatprep.subr.mxu0 0.0
    %2356 = vmatpush2.msra.mxu0 0.0
    %2357 = vmatprep.subr.mxu0 0.0
    %2358 = vmatpush2.msra.mxu0 0.0
    %2359 = vmatprep.subr.mxu0 0.0
    %2360 = vmatpush2.msra.mxu0 0.0
    %2361 = vmatprep.subr.mxu0 0.0
    %2362 = vmatpush2.msra.mxu0 0.0
    %2363 = vmatprep.subr.mxu0 0.0
    %2364 = vmatpush2.msra.mxu0 0.0
    %2365 = vmatprep.subr.mxu0 0.0
    %2366 = vmatpush2.msra.mxu0 0.0
    %2367 = vmatprep.subr.mxu0 0.0
    %2368 = vmatpush2.msra.mxu0 0.0
    %2369 = vmatprep.subr.mxu0 0.0
    %2370 = vmatpush2.msra.mxu0 0.0
    %2371 = vmatprep.subr.mxu0 0.0
    %2372 = vmatpush2.msra.mxu0 0.0
    %2373 = vmatprep.mubr.f32.mxu0 0.0
    %2374 = vmatmul.mubr.f32.gmra.mxu0 %v2291
    %v2375 = vpop.f32.mrf.mxu0
    %v2376 = vadd.f32 0.0, %v2375
    %v2377 = vpop.f32.mrf.mxu0
    %2378 = vmatprep.mubr.f32.mxu0 0.0
    %2379 = vmatmul.mubr.f32.gmra.mxu0 %v2292
    %v2380 = vpop.f32.mrf.mxu0
    %v2381 = vadd.f32 0.0, %v2380
    %v2382 = vpop.f32.mrf.mxu0
    %2383 = vdwg.mxu0
    %v2384 = vadd.f32 %v2153, %v2376
    %v2385 = vadd.f32 %v2154, %v2381
    %v2386 = vlaneseq
    %v2387 = vshrl.u32 %v2386, 7
    %v2388 = vsub.s32 4, %v2387
    %v2389 = vrot.slane %v48, %v2388
    %v2390 = vadd.f32 %v2384, %v2389
    %v2391 = vadd.f32 %v2385, %v2389
    %s2392 = scalar_lea.vmem %s1, 8
    %v2393 = vld [vmem:[%s2392] sm:$0x1f]
    %v2394 = vsel %vm49, %v2390, 0.0
    %2395 = vadd.xlane.f32.xlu0 %v2394
    %v2396 = vpop.xlane.xlu0 %2395
    %v2397 = vsel %vm49, %v2391, 0.0
    %2398 = vadd.xlane.f32.xlu0 %v2397
    %v2399 = vpop.xlane.xlu0 %2398
    %v2400 = vmul.f32 %v2396, %v56
    %v2401 = vmul.f32 %v2399, %v56
    %v2402 = vsub.f32 %v2390, %v2400
    %v2403 = vsub.f32 %v2391, %v2401
    %v2404 = vmul.f32 %v2402, %v2402
    %v2405 = vmul.f32 %v2403, %v2403
    %v2406 = vsel %vm49, %v2404, 0.0
    %2407 = vadd.xlane.f32.xlu0 %v2406
    %v2408 = vpop.xlane.xlu0 %2407
    %v2409 = vsel %vm49, %v2405, 0.0
    %2410 = vadd.xlane.f32.xlu0 %v2409
    %v2411 = vpop.xlane.xlu0 %2410
    %v2412 = vmul.f32 %v2408, %v56
    %v2413 = vmul.f32 %v2411, %v56
    %v2414 = vadd.f32 %v2412, 1e-05
    %v2415 = vadd.f32 %v2413, 1e-05
    %v2416 = vrsqrt.pop %v2414
    %v2417 = vrsqrt.pop %v2415
    %v2418 = vmul.f32 %v2402, %v2416
    %v2419 = vmul.f32 %v2403, %v2417
    %v2420 = vlaneseq
    %v2421 = vshrl.u32 %v2420, 7
    %v2422 = vsub.s32 0, %v2421
    %v2423 = vrot.slane %v2393, %v2422
    %v2424 = vmul.f32 %v2418, %v2423
    %v2425 = vmul.f32 %v2419, %v2423
    %v2426 = vlaneseq
    %v2427 = vshrl.u32 %v2426, 7
    %v2428 = vsub.s32 1, %v2427
    %v2429 = vrot.slane %v2393, %v2428
    %v2430 = vadd.f32 %v2424, %v2429
    %v2431 = vadd.f32 %v2425, %v2429
    %s2432 = scalar_lea.vmem %s2, 384
    %v2433 = vld [vmem:[%s2432] sm:$0xff]
    %v2434 = vld [vmem:[%s2432 + $0x8] sm:$0xff]
    %v2435 = vld [vmem:[%s2432 + $0x10] sm:$0xff]
    %v2436 = vld [vmem:[%s2432 + $0x18] sm:$0xff]
    %v2438 = vsel %vm49, %v2430, 0
    %v2441 = vsel %vm49, %v2431, 0
    %2443 = vmatprep.subr.mxu0 0.0
    %2444 = vmatpush1.msra.mxu0 0.0
    %2445 = vmatprep.subr.mxu0 0.0
    %2446 = vmatpush1.msra.mxu0 0.0
    %2447 = vmatprep.subr.mxu0 0.0
    %2448 = vmatpush1.msra.mxu0 0.0
    %2449 = vmatprep.subr.mxu0 0.0
    %2450 = vmatpush1.msra.mxu0 0.0
    %2451 = vmatprep.subr.mxu0 0.0
    %2452 = vmatpush1.msra.mxu0 0.0
    %2453 = vmatprep.subr.mxu0 0.0
    %2454 = vmatpush1.msra.mxu0 0.0
    %2455 = vmatprep.subr.mxu0 0.0
    %2456 = vmatpush1.msra.mxu0 0.0
    %2457 = vmatprep.subr.mxu0 0.0
    %2458 = vmatpush1.msra.mxu0 0.0
    %2459 = vmatprep.subr.mxu0 0.0
    %2460 = vmatpush1.msra.mxu0 0.0
    %2461 = vmatprep.subr.mxu0 0.0
    %2462 = vmatpush1.msra.mxu0 0.0
    %2463 = vmatprep.subr.mxu0 0.0
    %2464 = vmatpush1.msra.mxu0 0.0
    %2465 = vmatprep.subr.mxu0 0.0
    %2466 = vmatpush1.msra.mxu0 0.0
    %2467 = vmatprep.subr.mxu0 0.0
    %2468 = vmatpush1.msra.mxu0 %v2436
    %2469 = vmatprep.subr.mxu0 0.0
    %2470 = vmatpush1.msra.mxu0 %v2435
    %2471 = vmatprep.subr.mxu0 0.0
    %2472 = vmatpush1.msra.mxu0 %v2434
    %2473 = vmatprep.subr.mxu0 0.0
    %2474 = vmatpush1.msra.mxu0 %v2433
    %2475 = vmatprep.subr.mxu0 0.0
    %2476 = vmatpush2.msra.mxu0 0.0
    %2477 = vmatprep.subr.mxu0 0.0
    %2478 = vmatpush2.msra.mxu0 0.0
    %2479 = vmatprep.subr.mxu0 0.0
    %2480 = vmatpush2.msra.mxu0 0.0
    %2481 = vmatprep.subr.mxu0 0.0
    %2482 = vmatpush2.msra.mxu0 0.0
    %2483 = vmatprep.subr.mxu0 0.0
    %2484 = vmatpush2.msra.mxu0 0.0
    %2485 = vmatprep.subr.mxu0 0.0
    %2486 = vmatpush2.msra.mxu0 0.0
    %2487 = vmatprep.subr.mxu0 0.0
    %2488 = vmatpush2.msra.mxu0 0.0
    %2489 = vmatprep.subr.mxu0 0.0
    %2490 = vmatpush2.msra.mxu0 0.0
    %2491 = vmatprep.subr.mxu0 0.0
    %2492 = vmatpush2.msra.mxu0 0.0
    %2493 = vmatprep.subr.mxu0 0.0
    %2494 = vmatpush2.msra.mxu0 0.0
    %2495 = vmatprep.subr.mxu0 0.0
    %2496 = vmatpush2.msra.mxu0 0.0
    %2497 = vmatprep.subr.mxu0 0.0
    %2498 = vmatpush2.msra.mxu0 0.0
    %2499 = vmatprep.subr.mxu0 0.0
    %2500 = vmatpush2.msra.mxu0 0.0
    %2501 = vmatprep.subr.mxu0 0.0
    %2502 = vmatpush2.msra.mxu0 0.0
    %2503 = vmatprep.subr.mxu0 0.0
    %2504 = vmatpush2.msra.mxu0 0.0
    %2505 = vmatprep.subr.mxu0 0.0
    %2506 = vmatpush2.msra.mxu0 0.0
    %2507 = vmatprep.mubr.f32.mxu0 0.0
    %2508 = vmatmul.mubr.f32.gmra.mxu0 %v2438
    %v2509 = vpop.f32.mrf.mxu0
    %v2510 = vadd.f32 0.0, %v2509
    %v2511 = vpop.f32.mrf.mxu0
    %2512 = vmatprep.mubr.f32.mxu0 0.0
    %2513 = vmatmul.mubr.f32.gmra.mxu0 %v2441
    %v2514 = vpop.f32.mrf.mxu0
    %v2515 = vadd.f32 0.0, %v2514
    %v2516 = vpop.f32.mrf.mxu0
    %2517 = vdwg.mxu0
    %s2518 = scalar_lea.vmem %s2, 512
    %v2519 = vld [vmem:[%s2518] sm:$0xff]
    %v2520 = vld [vmem:[%s2518 + $0x8] sm:$0xff]
    %v2521 = vld [vmem:[%s2518 + $0x10] sm:$0xff]
    %v2522 = vld [vmem:[%s2518 + $0x18] sm:$0xff]
    %2523 = vmatprep.subr.mxu0 0.0
    %2524 = vmatpush1.msra.mxu0 0.0
    %2525 = vmatprep.subr.mxu0 0.0
    %2526 = vmatpush1.msra.mxu0 0.0
    %2527 = vmatprep.subr.mxu0 0.0
    %2528 = vmatpush1.msra.mxu0 0.0
    %2529 = vmatprep.subr.mxu0 0.0
    %2530 = vmatpush1.msra.mxu0 0.0
    %2531 = vmatprep.subr.mxu0 0.0
    %2532 = vmatpush1.msra.mxu0 0.0
    %2533 = vmatprep.subr.mxu0 0.0
    %2534 = vmatpush1.msra.mxu0 0.0
    %2535 = vmatprep.subr.mxu0 0.0
    %2536 = vmatpush1.msra.mxu0 0.0
    %2537 = vmatprep.subr.mxu0 0.0
    %2538 = vmatpush1.msra.mxu0 0.0
    %2539 = vmatprep.subr.mxu0 0.0
    %2540 = vmatpush1.msra.mxu0 0.0
    %2541 = vmatprep.subr.mxu0 0.0
    %2542 = vmatpush1.msra.mxu0 0.0
    %2543 = vmatprep.subr.mxu0 0.0
    %2544 = vmatpush1.msra.mxu0 0.0
    %2545 = vmatprep.subr.mxu0 0.0
    %2546 = vmatpush1.msra.mxu0 0.0
    %2547 = vmatprep.subr.mxu0 0.0
    %2548 = vmatpush1.msra.mxu0 %v2522
    %2549 = vmatprep.subr.mxu0 0.0
    %2550 = vmatpush1.msra.mxu0 %v2521
    %2551 = vmatprep.subr.mxu0 0.0
    %2552 = vmatpush1.msra.mxu0 %v2520
    %2553 = vmatprep.subr.mxu0 0.0
    %2554 = vmatpush1.msra.mxu0 %v2519
    %2555 = vmatprep.subr.mxu0 0.0
    %2556 = vmatpush2.msra.mxu0 0.0
    %2557 = vmatprep.subr.mxu0 0.0
    %2558 = vmatpush2.msra.mxu0 0.0
    %2559 = vmatprep.subr.mxu0 0.0
    %2560 = vmatpush2.msra.mxu0 0.0
    %2561 = vmatprep.subr.mxu0 0.0
    %2562 = vmatpush2.msra.mxu0 0.0
    %2563 = vmatprep.subr.mxu0 0.0
    %2564 = vmatpush2.msra.mxu0 0.0
    %2565 = vmatprep.subr.mxu0 0.0
    %2566 = vmatpush2.msra.mxu0 0.0
    %2567 = vmatprep.subr.mxu0 0.0
    %2568 = vmatpush2.msra.mxu0 0.0
    %2569 = vmatprep.subr.mxu0 0.0
    %2570 = vmatpush2.msra.mxu0 0.0
    %2571 = vmatprep.subr.mxu0 0.0
    %2572 = vmatpush2.msra.mxu0 0.0
    %2573 = vmatprep.subr.mxu0 0.0
    %2574 = vmatpush2.msra.mxu0 0.0
    %2575 = vmatprep.subr.mxu0 0.0
    %2576 = vmatpush2.msra.mxu0 0.0
    %2577 = vmatprep.subr.mxu0 0.0
    %2578 = vmatpush2.msra.mxu0 0.0
    %2579 = vmatprep.subr.mxu0 0.0
    %2580 = vmatpush2.msra.mxu0 0.0
    %2581 = vmatprep.subr.mxu0 0.0
    %2582 = vmatpush2.msra.mxu0 0.0
    %2583 = vmatprep.subr.mxu0 0.0
    %2584 = vmatpush2.msra.mxu0 0.0
    %2585 = vmatprep.subr.mxu0 0.0
    %2586 = vmatpush2.msra.mxu0 0.0
    %2587 = vmatprep.mubr.f32.mxu0 0.0
    %2588 = vmatmul.mubr.f32.gmra.mxu0 %v2438
    %v2589 = vpop.f32.mrf.mxu0
    %v2590 = vadd.f32 0.0, %v2589
    %v2591 = vpop.f32.mrf.mxu0
    %2592 = vmatprep.mubr.f32.mxu0 0.0
    %2593 = vmatmul.mubr.f32.gmra.mxu0 %v2441
    %v2594 = vpop.f32.mrf.mxu0
    %v2595 = vadd.f32 0.0, %v2594
    %v2596 = vpop.f32.mrf.mxu0
    %2597 = vdwg.mxu0
    %s2598 = scalar_lea.vmem %s2, 640
    %v2599 = vld [vmem:[%s2598] sm:$0xff]
    %v2600 = vld [vmem:[%s2598 + $0x8] sm:$0xff]
    %v2601 = vld [vmem:[%s2598 + $0x10] sm:$0xff]
    %v2602 = vld [vmem:[%s2598 + $0x18] sm:$0xff]
    %2603 = vmatprep.subr.mxu0 0.0
    %2604 = vmatpush1.msra.mxu0 0.0
    %2605 = vmatprep.subr.mxu0 0.0
    %2606 = vmatpush1.msra.mxu0 0.0
    %2607 = vmatprep.subr.mxu0 0.0
    %2608 = vmatpush1.msra.mxu0 0.0
    %2609 = vmatprep.subr.mxu0 0.0
    %2610 = vmatpush1.msra.mxu0 0.0
    %2611 = vmatprep.subr.mxu0 0.0
    %2612 = vmatpush1.msra.mxu0 0.0
    %2613 = vmatprep.subr.mxu0 0.0
    %2614 = vmatpush1.msra.mxu0 0.0
    %2615 = vmatprep.subr.mxu0 0.0
    %2616 = vmatpush1.msra.mxu0 0.0
    %2617 = vmatprep.subr.mxu0 0.0
    %2618 = vmatpush1.msra.mxu0 0.0
    %2619 = vmatprep.subr.mxu0 0.0
    %2620 = vmatpush1.msra.mxu0 0.0
    %2621 = vmatprep.subr.mxu0 0.0
    %2622 = vmatpush1.msra.mxu0 0.0
    %2623 = vmatprep.subr.mxu0 0.0
    %2624 = vmatpush1.msra.mxu0 0.0
    %2625 = vmatprep.subr.mxu0 0.0
    %2626 = vmatpush1.msra.mxu0 0.0
    %2627 = vmatprep.subr.mxu0 0.0
    %2628 = vmatpush1.msra.mxu0 %v2602
    %2629 = vmatprep.subr.mxu0 0.0
    %2630 = vmatpush1.msra.mxu0 %v2601
    %2631 = vmatprep.subr.mxu0 0.0
    %2632 = vmatpush1.msra.mxu0 %v2600
    %2633 = vmatprep.subr.mxu0 0.0
    %2634 = vmatpush1.msra.mxu0 %v2599
    %2635 = vmatprep.subr.mxu0 0.0
    %2636 = vmatpush2.msra.mxu0 0.0
    %2637 = vmatprep.subr.mxu0 0.0
    %2638 = vmatpush2.msra.mxu0 0.0
    %2639 = vmatprep.subr.mxu0 0.0
    %2640 = vmatpush2.msra.mxu0 0.0
    %2641 = vmatprep.subr.mxu0 0.0
    %2642 = vmatpush2.msra.mxu0 0.0
    %2643 = vmatprep.subr.mxu0 0.0
    %2644 = vmatpush2.msra.mxu0 0.0
    %2645 = vmatprep.subr.mxu0 0.0
    %2646 = vmatpush2.msra.mxu0 0.0
    %2647 = vmatprep.subr.mxu0 0.0
    %2648 = vmatpush2.msra.mxu0 0.0
    %2649 = vmatprep.subr.mxu0 0.0
    %2650 = vmatpush2.msra.mxu0 0.0
    %2651 = vmatprep.subr.mxu0 0.0
    %2652 = vmatpush2.msra.mxu0 0.0
    %2653 = vmatprep.subr.mxu0 0.0
    %2654 = vmatpush2.msra.mxu0 0.0
    %2655 = vmatprep.subr.mxu0 0.0
    %2656 = vmatpush2.msra.mxu0 0.0
    %2657 = vmatprep.subr.mxu0 0.0
    %2658 = vmatpush2.msra.mxu0 0.0
    %2659 = vmatprep.subr.mxu0 0.0
    %2660 = vmatpush2.msra.mxu0 0.0
    %2661 = vmatprep.subr.mxu0 0.0
    %2662 = vmatpush2.msra.mxu0 0.0
    %2663 = vmatprep.subr.mxu0 0.0
    %2664 = vmatpush2.msra.mxu0 0.0
    %2665 = vmatprep.subr.mxu0 0.0
    %2666 = vmatpush2.msra.mxu0 0.0
    %2667 = vmatprep.mubr.f32.mxu0 0.0
    %2668 = vmatmul.mubr.f32.gmra.mxu0 %v2438
    %v2669 = vpop.f32.mrf.mxu0
    %v2670 = vadd.f32 0.0, %v2669
    %v2671 = vpop.f32.mrf.mxu0
    %2672 = vmatprep.mubr.f32.mxu0 0.0
    %2673 = vmatmul.mubr.f32.gmra.mxu0 %v2441
    %v2674 = vpop.f32.mrf.mxu0
    %v2675 = vadd.f32 0.0, %v2674
    %v2676 = vpop.f32.mrf.mxu0
    %2677 = vdwg.mxu0
    %v2679 = vsel %vm334, %v2510, 0
    %v2682 = vsel %vm334, %v2515, 0
    %v2685 = vsel %vm334, %v2590, 0
    %v2688 = vsel %vm334, %v2595, 0
    %2690 = vmatprep.subr.mxu0 0.0
    %2691 = vmatpush1.xpose.msra.mxu0 0.0
    %2692 = vmatprep.subr.mxu0 0.0
    %2693 = vmatpush1.xpose.msra.mxu0 0.0
    %2694 = vmatprep.subr.mxu0 0.0
    %2695 = vmatpush1.xpose.msra.mxu0 0.0
    %2696 = vmatprep.subr.mxu0 0.0
    %2697 = vmatpush1.xpose.msra.mxu0 0.0
    %2698 = vmatprep.subr.mxu0 0.0
    %2699 = vmatpush1.xpose.msra.mxu0 0.0
    %2700 = vmatprep.subr.mxu0 0.0
    %2701 = vmatpush1.xpose.msra.mxu0 0.0
    %2702 = vmatprep.subr.mxu0 0.0
    %2703 = vmatpush1.xpose.msra.mxu0 0.0
    %2704 = vmatprep.subr.mxu0 0.0
    %2705 = vmatpush1.xpose.msra.mxu0 0.0
    %2706 = vmatprep.subr.mxu0 0.0
    %2707 = vmatpush1.xpose.msra.mxu0 0.0
    %2708 = vmatprep.subr.mxu0 0.0
    %2709 = vmatpush1.xpose.msra.mxu0 0.0
    %2710 = vmatprep.subr.mxu0 0.0
    %2711 = vmatpush1.xpose.msra.mxu0 0.0
    %2712 = vmatprep.subr.mxu0 0.0
    %2713 = vmatpush1.xpose.msra.mxu0 0.0
    %2714 = vmatprep.subr.mxu0 0.0
    %2715 = vmatpush1.xpose.msra.mxu0 0.0
    %2716 = vmatprep.subr.mxu0 0.0
    %2717 = vmatpush1.xpose.msra.mxu0 0.0
    %2718 = vmatprep.subr.mxu0 0.0
    %2719 = vmatpush1.xpose.msra.mxu0 %v2688
    %2720 = vmatprep.subr.mxu0 0.0
    %2721 = vmatpush1.xpose.msra.mxu0 %v2685
    %2722 = vmatprep.subr.mxu0 0.0
    %2723 = vmatpush2.xpose.msra.mxu0 0.0
    %2724 = vmatprep.subr.mxu0 0.0
    %2725 = vmatpush2.xpose.msra.mxu0 0.0
    %2726 = vmatprep.subr.mxu0 0.0
    %2727 = vmatpush2.xpose.msra.mxu0 0.0
    %2728 = vmatprep.subr.mxu0 0.0
    %2729 = vmatpush2.xpose.msra.mxu0 0.0
    %2730 = vmatprep.subr.mxu0 0.0
    %2731 = vmatpush2.xpose.msra.mxu0 0.0
    %2732 = vmatprep.subr.mxu0 0.0
    %2733 = vmatpush2.xpose.msra.mxu0 0.0
    %2734 = vmatprep.subr.mxu0 0.0
    %2735 = vmatpush2.xpose.msra.mxu0 0.0
    %2736 = vmatprep.subr.mxu0 0.0
    %2737 = vmatpush2.xpose.msra.mxu0 0.0
    %2738 = vmatprep.subr.mxu0 0.0
    %2739 = vmatpush2.xpose.msra.mxu0 0.0
    %2740 = vmatprep.subr.mxu0 0.0
    %2741 = vmatpush2.xpose.msra.mxu0 0.0
    %2742 = vmatprep.subr.mxu0 0.0
    %2743 = vmatpush2.xpose.msra.mxu0 0.0
    %2744 = vmatprep.subr.mxu0 0.0
    %2745 = vmatpush2.xpose.msra.mxu0 0.0
    %2746 = vmatprep.subr.mxu0 0.0
    %2747 = vmatpush2.xpose.msra.mxu0 0.0
    %2748 = vmatprep.subr.mxu0 0.0
    %2749 = vmatpush2.xpose.msra.mxu0 0.0
    %2750 = vmatprep.subr.mxu0 0.0
    %2751 = vmatpush2.xpose.msra.mxu0 0.0
    %2752 = vmatprep.subr.mxu0 0.0
    %2753 = vmatpush2.xpose.msra.mxu0 0.0
    %2754 = vmatprep.mubr.f32.mxu0 0.0
    %2755 = vmatmul.mubr.f32.gmra.mxu0 %v2679
    %v2756 = vpop.f32.mrf.mxu0
    %v2757 = vadd.f32 %v46, %v2756
    %v2758 = vpop.f32.mrf.mxu0
    %2759 = vmatprep.mubr.f32.mxu0 0.0
    %2760 = vmatmul.mubr.f32.gmra.mxu0 %v2682
    %v2761 = vpop.f32.mrf.mxu0
    %v2762 = vadd.f32 %v47, %v2761
    %v2763 = vpop.f32.mrf.mxu0
    %2764 = vdwg.mxu0
    %v2765 = vsel %vm422, %v2757, -inf
    %2766 = vmax.xlane.f32.xlu0 %v2765
    %v2767 = vpop.xlane.xlu0 %2766
    %v2768 = vsel %vm422, %v2762, -inf
    %2769 = vmax.xlane.f32.xlu0 %v2768
    %v2770 = vpop.xlane.xlu0 %2769
    %v2771 = vsub.f32 %v2757, %v2767
    %v2772 = vsub.f32 %v2762, %v2770
    %v2773 = vmul.f32 %v2771, 1.442695
    %v2774 = vpow.pop %v2773
    %v2775 = vmul.f32 %v2772, 1.442695
    %v2776 = vpow.pop %v2775
    %v2777 = vsel %vm422, %v2774, 0.0
    %2778 = vadd.xlane.f32.xlu0 %v2777
    %v2779 = vpop.xlane.xlu0 %2778
    %v2780 = vsel %vm422, %v2776, 0.0
    %2781 = vadd.xlane.f32.xlu0 %v2780
    %v2782 = vpop.xlane.xlu0 %2781
    %v2783 = vrcp.pop %v2779
    %v2784 = vrcp.pop %v2782
    %v2785 = vmul.f32 %v2774, %v2783
    %v2786 = vmul.f32 %v2776, %v2784
    %v2788 = vsel %vm422, %v2785, 0
    %v2791 = vsel %vm422, %v2786, 0
    %2793 = vmatprep.subr.mxu0 0.0
    %2794 = vmatpush1.msra.mxu0 0.0
    %2795 = vmatprep.subr.mxu0 0.0
    %2796 = vmatpush1.msra.mxu0 0.0
    %2797 = vmatprep.subr.mxu0 0.0
    %2798 = vmatpush1.msra.mxu0 0.0
    %2799 = vmatprep.subr.mxu0 0.0
    %2800 = vmatpush1.msra.mxu0 0.0
    %2801 = vmatprep.subr.mxu0 0.0
    %2802 = vmatpush1.msra.mxu0 0.0
    %2803 = vmatprep.subr.mxu0 0.0
    %2804 = vmatpush1.msra.mxu0 0.0
    %2805 = vmatprep.subr.mxu0 0.0
    %2806 = vmatpush1.msra.mxu0 0.0
    %2807 = vmatprep.subr.mxu0 0.0
    %2808 = vmatpush1.msra.mxu0 0.0
    %2809 = vmatprep.subr.mxu0 0.0
    %2810 = vmatpush1.msra.mxu0 0.0
    %2811 = vmatprep.subr.mxu0 0.0
    %2812 = vmatpush1.msra.mxu0 0.0
    %2813 = vmatprep.subr.mxu0 0.0
    %2814 = vmatpush1.msra.mxu0 0.0
    %2815 = vmatprep.subr.mxu0 0.0
    %2816 = vmatpush1.msra.mxu0 0.0
    %2817 = vmatprep.subr.mxu0 0.0
    %2818 = vmatpush1.msra.mxu0 0.0
    %2819 = vmatprep.subr.mxu0 0.0
    %2820 = vmatpush1.msra.mxu0 0.0
    %2821 = vmatprep.subr.mxu0 0.0
    %2822 = vmatpush1.msra.mxu0 %v2675
    %2823 = vmatprep.subr.mxu0 0.0
    %2824 = vmatpush1.msra.mxu0 %v2670
    %2825 = vmatprep.subr.mxu0 0.0
    %2826 = vmatpush2.msra.mxu0 0.0
    %2827 = vmatprep.subr.mxu0 0.0
    %2828 = vmatpush2.msra.mxu0 0.0
    %2829 = vmatprep.subr.mxu0 0.0
    %2830 = vmatpush2.msra.mxu0 0.0
    %2831 = vmatprep.subr.mxu0 0.0
    %2832 = vmatpush2.msra.mxu0 0.0
    %2833 = vmatprep.subr.mxu0 0.0
    %2834 = vmatpush2.msra.mxu0 0.0
    %2835 = vmatprep.subr.mxu0 0.0
    %2836 = vmatpush2.msra.mxu0 0.0
    %2837 = vmatprep.subr.mxu0 0.0
    %2838 = vmatpush2.msra.mxu0 0.0
    %2839 = vmatprep.subr.mxu0 0.0
    %2840 = vmatpush2.msra.mxu0 0.0
    %2841 = vmatprep.subr.mxu0 0.0
    %2842 = vmatpush2.msra.mxu0 0.0
    %2843 = vmatprep.subr.mxu0 0.0
    %2844 = vmatpush2.msra.mxu0 0.0
    %2845 = vmatprep.subr.mxu0 0.0
    %2846 = vmatpush2.msra.mxu0 0.0
    %2847 = vmatprep.subr.mxu0 0.0
    %2848 = vmatpush2.msra.mxu0 0.0
    %2849 = vmatprep.subr.mxu0 0.0
    %2850 = vmatpush2.msra.mxu0 0.0
    %2851 = vmatprep.subr.mxu0 0.0
    %2852 = vmatpush2.msra.mxu0 0.0
    %2853 = vmatprep.subr.mxu0 0.0
    %2854 = vmatpush2.msra.mxu0 0.0
    %2855 = vmatprep.subr.mxu0 0.0
    %2856 = vmatpush2.msra.mxu0 0.0
    %2857 = vmatprep.mubr.f32.mxu0 0.0
    %2858 = vmatmul.mubr.f32.gmra.mxu0 %v2788
    %v2859 = vpop.f32.mrf.mxu0
    %v2860 = vadd.f32 0.0, %v2859
    %v2861 = vpop.f32.mrf.mxu0
    %2862 = vmatprep.mubr.f32.mxu0 0.0
    %2863 = vmatmul.mubr.f32.gmra.mxu0 %v2791
    %v2864 = vpop.f32.mrf.mxu0
    %v2865 = vadd.f32 0.0, %v2864
    %v2866 = vpop.f32.mrf.mxu0
    %2867 = vdwg.mxu0
    %s2868 = scalar_lea.vmem %s3, 32
    %v2869 = vld [vmem:[%s2868] sm:$0xff]
    %v2871 = vsel %vm334, %v2860, 0
    %v2874 = vsel %vm334, %v2865, 0
    %2876 = vmatprep.subr.mxu0 0.0
    %2877 = vmatpush1.msra.mxu0 0.0
    %2878 = vmatprep.subr.mxu0 0.0
    %2879 = vmatpush1.msra.mxu0 0.0
    %2880 = vmatprep.subr.mxu0 0.0
    %2881 = vmatpush1.msra.mxu0 0.0
    %2882 = vmatprep.subr.mxu0 0.0
    %2883 = vmatpush1.msra.mxu0 0.0
    %2884 = vmatprep.subr.mxu0 0.0
    %2885 = vmatpush1.msra.mxu0 0.0
    %2886 = vmatprep.subr.mxu0 0.0
    %2887 = vmatpush1.msra.mxu0 0.0
    %2888 = vmatprep.subr.mxu0 0.0
    %2889 = vmatpush1.msra.mxu0 0.0
    %2890 = vmatprep.subr.mxu0 0.0
    %2891 = vmatpush1.msra.mxu0 0.0
    %2892 = vmatprep.subr.mxu0 0.0
    %2893 = vmatpush1.msra.mxu0 0.0
    %2894 = vmatprep.subr.mxu0 0.0
    %2895 = vmatpush1.msra.mxu0 0.0
    %2896 = vmatprep.subr.mxu0 0.0
    %2897 = vmatpush1.msra.mxu0 0.0
    %2898 = vmatprep.subr.mxu0 0.0
    %2899 = vmatpush1.msra.mxu0 0.0
    %2900 = vmatprep.subr.mxu0 0.0
    %2901 = vmatpush1.msra.mxu0 0.0
    %2902 = vmatprep.subr.mxu0 0.0
    %2903 = vmatpush1.msra.mxu0 0.0
    %2904 = vmatprep.subr.mxu0 0.0
    %2905 = vmatpush1.msra.mxu0 0.0
    %2906 = vmatprep.subr.mxu0 0.0
    %2907 = vmatpush1.msra.mxu0 %v2869
    %2908 = vmatprep.subr.mxu0 0.0
    %2909 = vmatpush2.msra.mxu0 0.0
    %2910 = vmatprep.subr.mxu0 0.0
    %2911 = vmatpush2.msra.mxu0 0.0
    %2912 = vmatprep.subr.mxu0 0.0
    %2913 = vmatpush2.msra.mxu0 0.0
    %2914 = vmatprep.subr.mxu0 0.0
    %2915 = vmatpush2.msra.mxu0 0.0
    %2916 = vmatprep.subr.mxu0 0.0
    %2917 = vmatpush2.msra.mxu0 0.0
    %2918 = vmatprep.subr.mxu0 0.0
    %2919 = vmatpush2.msra.mxu0 0.0
    %2920 = vmatprep.subr.mxu0 0.0
    %2921 = vmatpush2.msra.mxu0 0.0
    %2922 = vmatprep.subr.mxu0 0.0
    %2923 = vmatpush2.msra.mxu0 0.0
    %2924 = vmatprep.subr.mxu0 0.0
    %2925 = vmatpush2.msra.mxu0 0.0
    %2926 = vmatprep.subr.mxu0 0.0
    %2927 = vmatpush2.msra.mxu0 0.0
    %2928 = vmatprep.subr.mxu0 0.0
    %2929 = vmatpush2.msra.mxu0 0.0
    %2930 = vmatprep.subr.mxu0 0.0
    %2931 = vmatpush2.msra.mxu0 0.0
    %2932 = vmatprep.subr.mxu0 0.0
    %2933 = vmatpush2.msra.mxu0 0.0
    %2934 = vmatprep.subr.mxu0 0.0
    %2935 = vmatpush2.msra.mxu0 0.0
    %2936 = vmatprep.subr.mxu0 0.0
    %2937 = vmatpush2.msra.mxu0 0.0
    %2938 = vmatprep.subr.mxu0 0.0
    %2939 = vmatpush2.msra.mxu0 0.0
    %2940 = vmatprep.mubr.f32.mxu0 0.0
    %2941 = vmatmul.mubr.f32.gmra.mxu0 %v2871
    %v2942 = vpop.f32.mrf.mxu0
    %v2943 = vadd.f32 0.0, %v2942
    %v2944 = vpop.f32.mrf.mxu0
    %2945 = vmatprep.mubr.f32.mxu0 0.0
    %2946 = vmatmul.mubr.f32.gmra.mxu0 %v2874
    %v2947 = vpop.f32.mrf.mxu0
    %v2948 = vadd.f32 0.0, %v2947
    %v2949 = vpop.f32.mrf.mxu0
    %2950 = vdwg.mxu0
    %v2951 = vadd.f32 %v2390, %v2943
    %v2952 = vadd.f32 %v2391, %v2948
    %s2953 = scalar_lea.vmem %s2, 416
    %v2954 = vld [vmem:[%s2953] sm:$0xff]
    %v2955 = vld [vmem:[%s2953 + $0x8] sm:$0xff]
    %v2956 = vld [vmem:[%s2953 + $0x10] sm:$0xff]
    %v2957 = vld [vmem:[%s2953 + $0x18] sm:$0xff]
    %2958 = vmatprep.subr.mxu0 0.0
    %2959 = vmatpush1.msra.mxu0 0.0
    %2960 = vmatprep.subr.mxu0 0.0
    %2961 = vmatpush1.msra.mxu0 0.0
    %2962 = vmatprep.subr.mxu0 0.0
    %2963 = vmatpush1.msra.mxu0 0.0
    %2964 = vmatprep.subr.mxu0 0.0
    %2965 = vmatpush1.msra.mxu0 0.0
    %2966 = vmatprep.subr.mxu0 0.0
    %2967 = vmatpush1.msra.mxu0 0.0
    %2968 = vmatprep.subr.mxu0 0.0
    %2969 = vmatpush1.msra.mxu0 0.0
    %2970 = vmatprep.subr.mxu0 0.0
    %2971 = vmatpush1.msra.mxu0 0.0
    %2972 = vmatprep.subr.mxu0 0.0
    %2973 = vmatpush1.msra.mxu0 0.0
    %2974 = vmatprep.subr.mxu0 0.0
    %2975 = vmatpush1.msra.mxu0 0.0
    %2976 = vmatprep.subr.mxu0 0.0
    %2977 = vmatpush1.msra.mxu0 0.0
    %2978 = vmatprep.subr.mxu0 0.0
    %2979 = vmatpush1.msra.mxu0 0.0
    %2980 = vmatprep.subr.mxu0 0.0
    %2981 = vmatpush1.msra.mxu0 0.0
    %2982 = vmatprep.subr.mxu0 0.0
    %2983 = vmatpush1.msra.mxu0 %v2957
    %2984 = vmatprep.subr.mxu0 0.0
    %2985 = vmatpush1.msra.mxu0 %v2956
    %2986 = vmatprep.subr.mxu0 0.0
    %2987 = vmatpush1.msra.mxu0 %v2955
    %2988 = vmatprep.subr.mxu0 0.0
    %2989 = vmatpush1.msra.mxu0 %v2954
    %2990 = vmatprep.subr.mxu0 0.0
    %2991 = vmatpush2.msra.mxu0 0.0
    %2992 = vmatprep.subr.mxu0 0.0
    %2993 = vmatpush2.msra.mxu0 0.0
    %2994 = vmatprep.subr.mxu0 0.0
    %2995 = vmatpush2.msra.mxu0 0.0
    %2996 = vmatprep.subr.mxu0 0.0
    %2997 = vmatpush2.msra.mxu0 0.0
    %2998 = vmatprep.subr.mxu0 0.0
    %2999 = vmatpush2.msra.mxu0 0.0
    %3000 = vmatprep.subr.mxu0 0.0
    %3001 = vmatpush2.msra.mxu0 0.0
    %3002 = vmatprep.subr.mxu0 0.0
    %3003 = vmatpush2.msra.mxu0 0.0
    %3004 = vmatprep.subr.mxu0 0.0
    %3005 = vmatpush2.msra.mxu0 0.0
    %3006 = vmatprep.subr.mxu0 0.0
    %3007 = vmatpush2.msra.mxu0 0.0
    %3008 = vmatprep.subr.mxu0 0.0
    %3009 = vmatpush2.msra.mxu0 0.0
    %3010 = vmatprep.subr.mxu0 0.0
    %3011 = vmatpush2.msra.mxu0 0.0
    %3012 = vmatprep.subr.mxu0 0.0
    %3013 = vmatpush2.msra.mxu0 0.0
    %3014 = vmatprep.subr.mxu0 0.0
    %3015 = vmatpush2.msra.mxu0 0.0
    %3016 = vmatprep.subr.mxu0 0.0
    %3017 = vmatpush2.msra.mxu0 0.0
    %3018 = vmatprep.subr.mxu0 0.0
    %3019 = vmatpush2.msra.mxu0 0.0
    %3020 = vmatprep.subr.mxu0 0.0
    %3021 = vmatpush2.msra.mxu0 0.0
    %3022 = vmatprep.mubr.f32.mxu0 0.0
    %3023 = vmatmul.mubr.f32.gmra.mxu0 %v2438
    %v3024 = vpop.f32.mrf.mxu0
    %v3025 = vadd.f32 0.0, %v3024
    %v3026 = vpop.f32.mrf.mxu0
    %3027 = vmatprep.mubr.f32.mxu0 0.0
    %3028 = vmatmul.mubr.f32.gmra.mxu0 %v2441
    %v3029 = vpop.f32.mrf.mxu0
    %v3030 = vadd.f32 0.0, %v3029
    %v3031 = vpop.f32.mrf.mxu0
    %3032 = vdwg.mxu0
    %s3033 = scalar_lea.vmem %s2, 544
    %v3034 = vld [vmem:[%s3033] sm:$0xff]
    %v3035 = vld [vmem:[%s3033 + $0x8] sm:$0xff]
    %v3036 = vld [vmem:[%s3033 + $0x10] sm:$0xff]
    %v3037 = vld [vmem:[%s3033 + $0x18] sm:$0xff]
    %3038 = vmatprep.subr.mxu0 0.0
    %3039 = vmatpush1.msra.mxu0 0.0
    %3040 = vmatprep.subr.mxu0 0.0
    %3041 = vmatpush1.msra.mxu0 0.0
    %3042 = vmatprep.subr.mxu0 0.0
    %3043 = vmatpush1.msra.mxu0 0.0
    %3044 = vmatprep.subr.mxu0 0.0
    %3045 = vmatpush1.msra.mxu0 0.0
    %3046 = vmatprep.subr.mxu0 0.0
    %3047 = vmatpush1.msra.mxu0 0.0
    %3048 = vmatprep.subr.mxu0 0.0
    %3049 = vmatpush1.msra.mxu0 0.0
    %3050 = vmatprep.subr.mxu0 0.0
    %3051 = vmatpush1.msra.mxu0 0.0
    %3052 = vmatprep.subr.mxu0 0.0
    %3053 = vmatpush1.msra.mxu0 0.0
    %3054 = vmatprep.subr.mxu0 0.0
    %3055 = vmatpush1.msra.mxu0 0.0
    %3056 = vmatprep.subr.mxu0 0.0
    %3057 = vmatpush1.msra.mxu0 0.0
    %3058 = vmatprep.subr.mxu0 0.0
    %3059 = vmatpush1.msra.mxu0 0.0
    %3060 = vmatprep.subr.mxu0 0.0
    %3061 = vmatpush1.msra.mxu0 0.0
    %3062 = vmatprep.subr.mxu0 0.0
    %3063 = vmatpush1.msra.mxu0 %v3037
    %3064 = vmatprep.subr.mxu0 0.0
    %3065 = vmatpush1.msra.mxu0 %v3036
    %3066 = vmatprep.subr.mxu0 0.0
    %3067 = vmatpush1.msra.mxu0 %v3035
    %3068 = vmatprep.subr.mxu0 0.0
    %3069 = vmatpush1.msra.mxu0 %v3034
    %3070 = vmatprep.subr.mxu0 0.0
    %3071 = vmatpush2.msra.mxu0 0.0
    %3072 = vmatprep.subr.mxu0 0.0
    %3073 = vmatpush2.msra.mxu0 0.0
    %3074 = vmatprep.subr.mxu0 0.0
    %3075 = vmatpush2.msra.mxu0 0.0
    %3076 = vmatprep.subr.mxu0 0.0
    %3077 = vmatpush2.msra.mxu0 0.0
    %3078 = vmatprep.subr.mxu0 0.0
    %3079 = vmatpush2.msra.mxu0 0.0
    %3080 = vmatprep.subr.mxu0 0.0
    %3081 = vmatpush2.msra.mxu0 0.0
    %3082 = vmatprep.subr.mxu0 0.0
    %3083 = vmatpush2.msra.mxu0 0.0
    %3084 = vmatprep.subr.mxu0 0.0
    %3085 = vmatpush2.msra.mxu0 0.0
    %3086 = vmatprep.subr.mxu0 0.0
    %3087 = vmatpush2.msra.mxu0 0.0
    %3088 = vmatprep.subr.mxu0 0.0
    %3089 = vmatpush2.msra.mxu0 0.0
    %3090 = vmatprep.subr.mxu0 0.0
    %3091 = vmatpush2.msra.mxu0 0.0
    %3092 = vmatprep.subr.mxu0 0.0
    %3093 = vmatpush2.msra.mxu0 0.0
    %3094 = vmatprep.subr.mxu0 0.0
    %3095 = vmatpush2.msra.mxu0 0.0
    %3096 = vmatprep.subr.mxu0 0.0
    %3097 = vmatpush2.msra.mxu0 0.0
    %3098 = vmatprep.subr.mxu0 0.0
    %3099 = vmatpush2.msra.mxu0 0.0
    %3100 = vmatprep.subr.mxu0 0.0
    %3101 = vmatpush2.msra.mxu0 0.0
    %3102 = vmatprep.mubr.f32.mxu0 0.0
    %3103 = vmatmul.mubr.f32.gmra.mxu0 %v2438
    %v3104 = vpop.f32.mrf.mxu0
    %v3105 = vadd.f32 0.0, %v3104
    %v3106 = vpop.f32.mrf.mxu0
    %3107 = vmatprep.mubr.f32.mxu0 0.0
    %3108 = vmatmul.mubr.f32.gmra.mxu0 %v2441
    %v3109 = vpop.f32.mrf.mxu0
    %v3110 = vadd.f32 0.0, %v3109
    %v3111 = vpop.f32.mrf.mxu0
    %3112 = vdwg.mxu0
    %s3113 = scalar_lea.vmem %s2, 672
    %v3114 = vld [vmem:[%s3113] sm:$0xff]
    %v3115 = vld [vmem:[%s3113 + $0x8] sm:$0xff]
    %v3116 = vld [vmem:[%s3113 + $0x10] sm:$0xff]
    %v3117 = vld [vmem:[%s3113 + $0x18] sm:$0xff]
    %3118 = vmatprep.subr.mxu0 0.0
    %3119 = vmatpush1.msra.mxu0 0.0
    %3120 = vmatprep.subr.mxu0 0.0
    %3121 = vmatpush1.msra.mxu0 0.0
    %3122 = vmatprep.subr.mxu0 0.0
    %3123 = vmatpush1.msra.mxu0 0.0
    %3124 = vmatprep.subr.mxu0 0.0
    %3125 = vmatpush1.msra.mxu0 0.0
    %3126 = vmatprep.subr.mxu0 0.0
    %3127 = vmatpush1.msra.mxu0 0.0
    %3128 = vmatprep.subr.mxu0 0.0
    %3129 = vmatpush1.msra.mxu0 0.0
    %3130 = vmatprep.subr.mxu0 0.0
    %3131 = vmatpush1.msra.mxu0 0.0
    %3132 = vmatprep.subr.mxu0 0.0
    %3133 = vmatpush1.msra.mxu0 0.0
    %3134 = vmatprep.subr.mxu0 0.0
    %3135 = vmatpush1.msra.mxu0 0.0
    %3136 = vmatprep.subr.mxu0 0.0
    %3137 = vmatpush1.msra.mxu0 0.0
    %3138 = vmatprep.subr.mxu0 0.0
    %3139 = vmatpush1.msra.mxu0 0.0
    %3140 = vmatprep.subr.mxu0 0.0
    %3141 = vmatpush1.msra.mxu0 0.0
    %3142 = vmatprep.subr.mxu0 0.0
    %3143 = vmatpush1.msra.mxu0 %v3117
    %3144 = vmatprep.subr.mxu0 0.0
    %3145 = vmatpush1.msra.mxu0 %v3116
    %3146 = vmatprep.subr.mxu0 0.0
    %3147 = vmatpush1.msra.mxu0 %v3115
    %3148 = vmatprep.subr.mxu0 0.0
    %3149 = vmatpush1.msra.mxu0 %v3114
    %3150 = vmatprep.subr.mxu0 0.0
    %3151 = vmatpush2.msra.mxu0 0.0
    %3152 = vmatprep.subr.mxu0 0.0
    %3153 = vmatpush2.msra.mxu0 0.0
    %3154 = vmatprep.subr.mxu0 0.0
    %3155 = vmatpush2.msra.mxu0 0.0
    %3156 = vmatprep.subr.mxu0 0.0
    %3157 = vmatpush2.msra.mxu0 0.0
    %3158 = vmatprep.subr.mxu0 0.0
    %3159 = vmatpush2.msra.mxu0 0.0
    %3160 = vmatprep.subr.mxu0 0.0
    %3161 = vmatpush2.msra.mxu0 0.0
    %3162 = vmatprep.subr.mxu0 0.0
    %3163 = vmatpush2.msra.mxu0 0.0
    %3164 = vmatprep.subr.mxu0 0.0
    %3165 = vmatpush2.msra.mxu0 0.0
    %3166 = vmatprep.subr.mxu0 0.0
    %3167 = vmatpush2.msra.mxu0 0.0
    %3168 = vmatprep.subr.mxu0 0.0
    %3169 = vmatpush2.msra.mxu0 0.0
    %3170 = vmatprep.subr.mxu0 0.0
    %3171 = vmatpush2.msra.mxu0 0.0
    %3172 = vmatprep.subr.mxu0 0.0
    %3173 = vmatpush2.msra.mxu0 0.0
    %3174 = vmatprep.subr.mxu0 0.0
    %3175 = vmatpush2.msra.mxu0 0.0
    %3176 = vmatprep.subr.mxu0 0.0
    %3177 = vmatpush2.msra.mxu0 0.0
    %3178 = vmatprep.subr.mxu0 0.0
    %3179 = vmatpush2.msra.mxu0 0.0
    %3180 = vmatprep.subr.mxu0 0.0
    %3181 = vmatpush2.msra.mxu0 0.0
    %3182 = vmatprep.mubr.f32.mxu0 0.0
    %3183 = vmatmul.mubr.f32.gmra.mxu0 %v2438
    %v3184 = vpop.f32.mrf.mxu0
    %v3185 = vadd.f32 0.0, %v3184
    %v3186 = vpop.f32.mrf.mxu0
    %3187 = vmatprep.mubr.f32.mxu0 0.0
    %3188 = vmatmul.mubr.f32.gmra.mxu0 %v2441
    %v3189 = vpop.f32.mrf.mxu0
    %v3190 = vadd.f32 0.0, %v3189
    %v3191 = vpop.f32.mrf.mxu0
    %3192 = vdwg.mxu0
    %v3194 = vsel %vm334, %v3025, 0
    %v3197 = vsel %vm334, %v3030, 0
    %v3200 = vsel %vm334, %v3105, 0
    %v3203 = vsel %vm334, %v3110, 0
    %3205 = vmatprep.subr.mxu0 0.0
    %3206 = vmatpush1.xpose.msra.mxu0 0.0
    %3207 = vmatprep.subr.mxu0 0.0
    %3208 = vmatpush1.xpose.msra.mxu0 0.0
    %3209 = vmatprep.subr.mxu0 0.0
    %3210 = vmatpush1.xpose.msra.mxu0 0.0
    %3211 = vmatprep.subr.mxu0 0.0
    %3212 = vmatpush1.xpose.msra.mxu0 0.0
    %3213 = vmatprep.subr.mxu0 0.0
    %3214 = vmatpush1.xpose.msra.mxu0 0.0
    %3215 = vmatprep.subr.mxu0 0.0
    %3216 = vmatpush1.xpose.msra.mxu0 0.0
    %3217 = vmatprep.subr.mxu0 0.0
    %3218 = vmatpush1.xpose.msra.mxu0 0.0
    %3219 = vmatprep.subr.mxu0 0.0
    %3220 = vmatpush1.xpose.msra.mxu0 0.0
    %3221 = vmatprep.subr.mxu0 0.0
    %3222 = vmatpush1.xpose.msra.mxu0 0.0
    %3223 = vmatprep.subr.mxu0 0.0
    %3224 = vmatpush1.xpose.msra.mxu0 0.0
    %3225 = vmatprep.subr.mxu0 0.0
    %3226 = vmatpush1.xpose.msra.mxu0 0.0
    %3227 = vmatprep.subr.mxu0 0.0
    %3228 = vmatpush1.xpose.msra.mxu0 0.0
    %3229 = vmatprep.subr.mxu0 0.0
    %3230 = vmatpush1.xpose.msra.mxu0 0.0
    %3231 = vmatprep.subr.mxu0 0.0
    %3232 = vmatpush1.xpose.msra.mxu0 0.0
    %3233 = vmatprep.subr.mxu0 0.0
    %3234 = vmatpush1.xpose.msra.mxu0 %v3203
    %3235 = vmatprep.subr.mxu0 0.0
    %3236 = vmatpush1.xpose.msra.mxu0 %v3200
    %3237 = vmatprep.subr.mxu0 0.0
    %3238 = vmatpush2.xpose.msra.mxu0 0.0
    %3239 = vmatprep.subr.mxu0 0.0
    %3240 = vmatpush2.xpose.msra.mxu0 0.0
    %3241 = vmatprep.subr.mxu0 0.0
    %3242 = vmatpush2.xpose.msra.mxu0 0.0
    %3243 = vmatprep.subr.mxu0 0.0
    %3244 = vmatpush2.xpose.msra.mxu0 0.0
    %3245 = vmatprep.subr.mxu0 0.0
    %3246 = vmatpush2.xpose.msra.mxu0 0.0
    %3247 = vmatprep.subr.mxu0 0.0
    %3248 = vmatpush2.xpose.msra.mxu0 0.0
    %3249 = vmatprep.subr.mxu0 0.0
    %3250 = vmatpush2.xpose.msra.mxu0 0.0
    %3251 = vmatprep.subr.mxu0 0.0
    %3252 = vmatpush2.xpose.msra.mxu0 0.0
    %3253 = vmatprep.subr.mxu0 0.0
    %3254 = vmatpush2.xpose.msra.mxu0 0.0
    %3255 = vmatprep.subr.mxu0 0.0
    %3256 = vmatpush2.xpose.msra.mxu0 0.0
    %3257 = vmatprep.subr.mxu0 0.0
    %3258 = vmatpush2.xpose.msra.mxu0 0.0
    %3259 = vmatprep.subr.mxu0 0.0
    %3260 = vmatpush2.xpose.msra.mxu0 0.0
    %3261 = vmatprep.subr.mxu0 0.0
    %3262 = vmatpush2.xpose.msra.mxu0 0.0
    %3263 = vmatprep.subr.mxu0 0.0
    %3264 = vmatpush2.xpose.msra.mxu0 0.0
    %3265 = vmatprep.subr.mxu0 0.0
    %3266 = vmatpush2.xpose.msra.mxu0 0.0
    %3267 = vmatprep.subr.mxu0 0.0
    %3268 = vmatpush2.xpose.msra.mxu0 0.0
    %3269 = vmatprep.mubr.f32.mxu0 0.0
    %3270 = vmatmul.mubr.f32.gmra.mxu0 %v3194
    %v3271 = vpop.f32.mrf.mxu0
    %v3272 = vadd.f32 %v46, %v3271
    %v3273 = vpop.f32.mrf.mxu0
    %3274 = vmatprep.mubr.f32.mxu0 0.0
    %3275 = vmatmul.mubr.f32.gmra.mxu0 %v3197
    %v3276 = vpop.f32.mrf.mxu0
    %v3277 = vadd.f32 %v47, %v3276
    %v3278 = vpop.f32.mrf.mxu0
    %3279 = vdwg.mxu0
    %v3280 = vsel %vm422, %v3272, -inf
    %3281 = vmax.xlane.f32.xlu0 %v3280
    %v3282 = vpop.xlane.xlu0 %3281
    %v3283 = vsel %vm422, %v3277, -inf
    %3284 = vmax.xlane.f32.xlu0 %v3283
    %v3285 = vpop.xlane.xlu0 %3284
    %v3286 = vsub.f32 %v3272, %v3282
    %v3287 = vsub.f32 %v3277, %v3285
    %v3288 = vmul.f32 %v3286, 1.442695
    %v3289 = vpow.pop %v3288
    %v3290 = vmul.f32 %v3287, 1.442695
    %v3291 = vpow.pop %v3290
    %v3292 = vsel %vm422, %v3289, 0.0
    %3293 = vadd.xlane.f32.xlu0 %v3292
    %v3294 = vpop.xlane.xlu0 %3293
    %v3295 = vsel %vm422, %v3291, 0.0
    %3296 = vadd.xlane.f32.xlu0 %v3295
    %v3297 = vpop.xlane.xlu0 %3296
    %v3298 = vrcp.pop %v3294
    %v3299 = vrcp.pop %v3297
    %v3300 = vmul.f32 %v3289, %v3298
    %v3301 = vmul.f32 %v3291, %v3299
    %v3303 = vsel %vm422, %v3300, 0
    %v3306 = vsel %vm422, %v3301, 0
    %3308 = vmatprep.subr.mxu0 0.0
    %3309 = vmatpush1.msra.mxu0 0.0
    %3310 = vmatprep.subr.mxu0 0.0
    %3311 = vmatpush1.msra.mxu0 0.0
    %3312 = vmatprep.subr.mxu0 0.0
    %3313 = vmatpush1.msra.mxu0 0.0
    %3314 = vmatprep.subr.mxu0 0.0
    %3315 = vmatpush1.msra.mxu0 0.0
    %3316 = vmatprep.subr.mxu0 0.0
    %3317 = vmatpush1.msra.mxu0 0.0
    %3318 = vmatprep.subr.mxu0 0.0
    %3319 = vmatpush1.msra.mxu0 0.0
    %3320 = vmatprep.subr.mxu0 0.0
    %3321 = vmatpush1.msra.mxu0 0.0
    %3322 = vmatprep.subr.mxu0 0.0
    %3323 = vmatpush1.msra.mxu0 0.0
    %3324 = vmatprep.subr.mxu0 0.0
    %3325 = vmatpush1.msra.mxu0 0.0
    %3326 = vmatprep.subr.mxu0 0.0
    %3327 = vmatpush1.msra.mxu0 0.0
    %3328 = vmatprep.subr.mxu0 0.0
    %3329 = vmatpush1.msra.mxu0 0.0
    %3330 = vmatprep.subr.mxu0 0.0
    %3331 = vmatpush1.msra.mxu0 0.0
    %3332 = vmatprep.subr.mxu0 0.0
    %3333 = vmatpush1.msra.mxu0 0.0
    %3334 = vmatprep.subr.mxu0 0.0
    %3335 = vmatpush1.msra.mxu0 0.0
    %3336 = vmatprep.subr.mxu0 0.0
    %3337 = vmatpush1.msra.mxu0 %v3190
    %3338 = vmatprep.subr.mxu0 0.0
    %3339 = vmatpush1.msra.mxu0 %v3185
    %3340 = vmatprep.subr.mxu0 0.0
    %3341 = vmatpush2.msra.mxu0 0.0
    %3342 = vmatprep.subr.mxu0 0.0
    %3343 = vmatpush2.msra.mxu0 0.0
    %3344 = vmatprep.subr.mxu0 0.0
    %3345 = vmatpush2.msra.mxu0 0.0
    %3346 = vmatprep.subr.mxu0 0.0
    %3347 = vmatpush2.msra.mxu0 0.0
    %3348 = vmatprep.subr.mxu0 0.0
    %3349 = vmatpush2.msra.mxu0 0.0
    %3350 = vmatprep.subr.mxu0 0.0
    %3351 = vmatpush2.msra.mxu0 0.0
    %3352 = vmatprep.subr.mxu0 0.0
    %3353 = vmatpush2.msra.mxu0 0.0
    %3354 = vmatprep.subr.mxu0 0.0
    %3355 = vmatpush2.msra.mxu0 0.0
    %3356 = vmatprep.subr.mxu0 0.0
    %3357 = vmatpush2.msra.mxu0 0.0
    %3358 = vmatprep.subr.mxu0 0.0
    %3359 = vmatpush2.msra.mxu0 0.0
    %3360 = vmatprep.subr.mxu0 0.0
    %3361 = vmatpush2.msra.mxu0 0.0
    %3362 = vmatprep.subr.mxu0 0.0
    %3363 = vmatpush2.msra.mxu0 0.0
    %3364 = vmatprep.subr.mxu0 0.0
    %3365 = vmatpush2.msra.mxu0 0.0
    %3366 = vmatprep.subr.mxu0 0.0
    %3367 = vmatpush2.msra.mxu0 0.0
    %3368 = vmatprep.subr.mxu0 0.0
    %3369 = vmatpush2.msra.mxu0 0.0
    %3370 = vmatprep.subr.mxu0 0.0
    %3371 = vmatpush2.msra.mxu0 0.0
    %3372 = vmatprep.mubr.f32.mxu0 0.0
    %3373 = vmatmul.mubr.f32.gmra.mxu0 %v3303
    %v3374 = vpop.f32.mrf.mxu0
    %v3375 = vadd.f32 0.0, %v3374
    %v3376 = vpop.f32.mrf.mxu0
    %3377 = vmatprep.mubr.f32.mxu0 0.0
    %3378 = vmatmul.mubr.f32.gmra.mxu0 %v3306
    %v3379 = vpop.f32.mrf.mxu0
    %v3380 = vadd.f32 0.0, %v3379
    %v3381 = vpop.f32.mrf.mxu0
    %3382 = vdwg.mxu0
    %s3383 = scalar_lea.vmem %s3, 40
    %v3384 = vld [vmem:[%s3383] sm:$0xff]
    %v3386 = vsel %vm334, %v3375, 0
    %v3389 = vsel %vm334, %v3380, 0
    %3391 = vmatprep.subr.mxu0 0.0
    %3392 = vmatpush1.msra.mxu0 0.0
    %3393 = vmatprep.subr.mxu0 0.0
    %3394 = vmatpush1.msra.mxu0 0.0
    %3395 = vmatprep.subr.mxu0 0.0
    %3396 = vmatpush1.msra.mxu0 0.0
    %3397 = vmatprep.subr.mxu0 0.0
    %3398 = vmatpush1.msra.mxu0 0.0
    %3399 = vmatprep.subr.mxu0 0.0
    %3400 = vmatpush1.msra.mxu0 0.0
    %3401 = vmatprep.subr.mxu0 0.0
    %3402 = vmatpush1.msra.mxu0 0.0
    %3403 = vmatprep.subr.mxu0 0.0
    %3404 = vmatpush1.msra.mxu0 0.0
    %3405 = vmatprep.subr.mxu0 0.0
    %3406 = vmatpush1.msra.mxu0 0.0
    %3407 = vmatprep.subr.mxu0 0.0
    %3408 = vmatpush1.msra.mxu0 0.0
    %3409 = vmatprep.subr.mxu0 0.0
    %3410 = vmatpush1.msra.mxu0 0.0
    %3411 = vmatprep.subr.mxu0 0.0
    %3412 = vmatpush1.msra.mxu0 0.0
    %3413 = vmatprep.subr.mxu0 0.0
    %3414 = vmatpush1.msra.mxu0 0.0
    %3415 = vmatprep.subr.mxu0 0.0
    %3416 = vmatpush1.msra.mxu0 0.0
    %3417 = vmatprep.subr.mxu0 0.0
    %3418 = vmatpush1.msra.mxu0 0.0
    %3419 = vmatprep.subr.mxu0 0.0
    %3420 = vmatpush1.msra.mxu0 0.0
    %3421 = vmatprep.subr.mxu0 0.0
    %3422 = vmatpush1.msra.mxu0 %v3384
    %3423 = vmatprep.subr.mxu0 0.0
    %3424 = vmatpush2.msra.mxu0 0.0
    %3425 = vmatprep.subr.mxu0 0.0
    %3426 = vmatpush2.msra.mxu0 0.0
    %3427 = vmatprep.subr.mxu0 0.0
    %3428 = vmatpush2.msra.mxu0 0.0
    %3429 = vmatprep.subr.mxu0 0.0
    %3430 = vmatpush2.msra.mxu0 0.0
    %3431 = vmatprep.subr.mxu0 0.0
    %3432 = vmatpush2.msra.mxu0 0.0
    %3433 = vmatprep.subr.mxu0 0.0
    %3434 = vmatpush2.msra.mxu0 0.0
    %3435 = vmatprep.subr.mxu0 0.0
    %3436 = vmatpush2.msra.mxu0 0.0
    %3437 = vmatprep.subr.mxu0 0.0
    %3438 = vmatpush2.msra.mxu0 0.0
    %3439 = vmatprep.subr.mxu0 0.0
    %3440 = vmatpush2.msra.mxu0 0.0
    %3441 = vmatprep.subr.mxu0 0.0
    %3442 = vmatpush2.msra.mxu0 0.0
    %3443 = vmatprep.subr.mxu0 0.0
    %3444 = vmatpush2.msra.mxu0 0.0
    %3445 = vmatprep.subr.mxu0 0.0
    %3446 = vmatpush2.msra.mxu0 0.0
    %3447 = vmatprep.subr.mxu0 0.0
    %3448 = vmatpush2.msra.mxu0 0.0
    %3449 = vmatprep.subr.mxu0 0.0
    %3450 = vmatpush2.msra.mxu0 0.0
    %3451 = vmatprep.subr.mxu0 0.0
    %3452 = vmatpush2.msra.mxu0 0.0
    %3453 = vmatprep.subr.mxu0 0.0
    %3454 = vmatpush2.msra.mxu0 0.0
    %3455 = vmatprep.mubr.f32.mxu0 0.0
    %3456 = vmatmul.mubr.f32.gmra.mxu0 %v3386
    %v3457 = vpop.f32.mrf.mxu0
    %v3458 = vadd.f32 0.0, %v3457
    %v3459 = vpop.f32.mrf.mxu0
    %3460 = vmatprep.mubr.f32.mxu0 0.0
    %3461 = vmatmul.mubr.f32.gmra.mxu0 %v3389
    %v3462 = vpop.f32.mrf.mxu0
    %v3463 = vadd.f32 0.0, %v3462
    %v3464 = vpop.f32.mrf.mxu0
    %3465 = vdwg.mxu0
    %v3466 = vadd.f32 %v2951, %v3458
    %v3467 = vadd.f32 %v2952, %v3463
    %s3468 = scalar_lea.vmem %s2, 448
    %v3469 = vld [vmem:[%s3468] sm:$0xff]
    %v3470 = vld [vmem:[%s3468 + $0x8] sm:$0xff]
    %v3471 = vld [vmem:[%s3468 + $0x10] sm:$0xff]
    %v3472 = vld [vmem:[%s3468 + $0x18] sm:$0xff]
    %3473 = vmatprep.subr.mxu0 0.0
    %3474 = vmatpush1.msra.mxu0 0.0
    %3475 = vmatprep.subr.mxu0 0.0
    %3476 = vmatpush1.msra.mxu0 0.0
    %3477 = vmatprep.subr.mxu0 0.0
    %3478 = vmatpush1.msra.mxu0 0.0
    %3479 = vmatprep.subr.mxu0 0.0
    %3480 = vmatpush1.msra.mxu0 0.0
    %3481 = vmatprep.subr.mxu0 0.0
    %3482 = vmatpush1.msra.mxu0 0.0
    %3483 = vmatprep.subr.mxu0 0.0
    %3484 = vmatpush1.msra.mxu0 0.0
    %3485 = vmatprep.subr.mxu0 0.0
    %3486 = vmatpush1.msra.mxu0 0.0
    %3487 = vmatprep.subr.mxu0 0.0
    %3488 = vmatpush1.msra.mxu0 0.0
    %3489 = vmatprep.subr.mxu0 0.0
    %3490 = vmatpush1.msra.mxu0 0.0
    %3491 = vmatprep.subr.mxu0 0.0
    %3492 = vmatpush1.msra.mxu0 0.0
    %3493 = vmatprep.subr.mxu0 0.0
    %3494 = vmatpush1.msra.mxu0 0.0
    %3495 = vmatprep.subr.mxu0 0.0
    %3496 = vmatpush1.msra.mxu0 0.0
    %3497 = vmatprep.subr.mxu0 0.0
    %3498 = vmatpush1.msra.mxu0 %v3472
    %3499 = vmatprep.subr.mxu0 0.0
    %3500 = vmatpush1.msra.mxu0 %v3471
    %3501 = vmatprep.subr.mxu0 0.0
    %3502 = vmatpush1.msra.mxu0 %v3470
    %3503 = vmatprep.subr.mxu0 0.0
    %3504 = vmatpush1.msra.mxu0 %v3469
    %3505 = vmatprep.subr.mxu0 0.0
    %3506 = vmatpush2.msra.mxu0 0.0
    %3507 = vmatprep.subr.mxu0 0.0
    %3508 = vmatpush2.msra.mxu0 0.0
    %3509 = vmatprep.subr.mxu0 0.0
    %3510 = vmatpush2.msra.mxu0 0.0
    %3511 = vmatprep.subr.mxu0 0.0
    %3512 = vmatpush2.msra.mxu0 0.0
    %3513 = vmatprep.subr.mxu0 0.0
    %3514 = vmatpush2.msra.mxu0 0.0
    %3515 = vmatprep.subr.mxu0 0.0
    %3516 = vmatpush2.msra.mxu0 0.0
    %3517 = vmatprep.subr.mxu0 0.0
    %3518 = vmatpush2.msra.mxu0 0.0
    %3519 = vmatprep.subr.mxu0 0.0
    %3520 = vmatpush2.msra.mxu0 0.0
    %3521 = vmatprep.subr.mxu0 0.0
    %3522 = vmatpush2.msra.mxu0 0.0
    %3523 = vmatprep.subr.mxu0 0.0
    %3524 = vmatpush2.msra.mxu0 0.0
    %3525 = vmatprep.subr.mxu0 0.0
    %3526 = vmatpush2.msra.mxu0 0.0
    %3527 = vmatprep.subr.mxu0 0.0
    %3528 = vmatpush2.msra.mxu0 0.0
    %3529 = vmatprep.subr.mxu0 0.0
    %3530 = vmatpush2.msra.mxu0 0.0
    %3531 = vmatprep.subr.mxu0 0.0
    %3532 = vmatpush2.msra.mxu0 0.0
    %3533 = vmatprep.subr.mxu0 0.0
    %3534 = vmatpush2.msra.mxu0 0.0
    %3535 = vmatprep.subr.mxu0 0.0
    %3536 = vmatpush2.msra.mxu0 0.0
    %3537 = vmatprep.mubr.f32.mxu0 0.0
    %3538 = vmatmul.mubr.f32.gmra.mxu0 %v2438
    %v3539 = vpop.f32.mrf.mxu0
    %v3540 = vadd.f32 0.0, %v3539
    %v3541 = vpop.f32.mrf.mxu0
    %3542 = vmatprep.mubr.f32.mxu0 0.0
    %3543 = vmatmul.mubr.f32.gmra.mxu0 %v2441
    %v3544 = vpop.f32.mrf.mxu0
    %v3545 = vadd.f32 0.0, %v3544
    %v3546 = vpop.f32.mrf.mxu0
    %3547 = vdwg.mxu0
    %s3548 = scalar_lea.vmem %s2, 576
    %v3549 = vld [vmem:[%s3548] sm:$0xff]
    %v3550 = vld [vmem:[%s3548 + $0x8] sm:$0xff]
    %v3551 = vld [vmem:[%s3548 + $0x10] sm:$0xff]
    %v3552 = vld [vmem:[%s3548 + $0x18] sm:$0xff]
    %3553 = vmatprep.subr.mxu0 0.0
    %3554 = vmatpush1.msra.mxu0 0.0
    %3555 = vmatprep.subr.mxu0 0.0
    %3556 = vmatpush1.msra.mxu0 0.0
    %3557 = vmatprep.subr.mxu0 0.0
    %3558 = vmatpush1.msra.mxu0 0.0
    %3559 = vmatprep.subr.mxu0 0.0
    %3560 = vmatpush1.msra.mxu0 0.0
    %3561 = vmatprep.subr.mxu0 0.0
    %3562 = vmatpush1.msra.mxu0 0.0
    %3563 = vmatprep.subr.mxu0 0.0
    %3564 = vmatpush1.msra.mxu0 0.0
    %3565 = vmatprep.subr.mxu0 0.0
    %3566 = vmatpush1.msra.mxu0 0.0
    %3567 = vmatprep.subr.mxu0 0.0
    %3568 = vmatpush1.msra.mxu0 0.0
    %3569 = vmatprep.subr.mxu0 0.0
    %3570 = vmatpush1.msra.mxu0 0.0
    %3571 = vmatprep.subr.mxu0 0.0
    %3572 = vmatpush1.msra.mxu0 0.0
    %3573 = vmatprep.subr.mxu0 0.0
    %3574 = vmatpush1.msra.mxu0 0.0
    %3575 = vmatprep.subr.mxu0 0.0
    %3576 = vmatpush1.msra.mxu0 0.0
    %3577 = vmatprep.subr.mxu0 0.0
    %3578 = vmatpush1.msra.mxu0 %v3552
    %3579 = vmatprep.subr.mxu0 0.0
    %3580 = vmatpush1.msra.mxu0 %v3551
    %3581 = vmatprep.subr.mxu0 0.0
    %3582 = vmatpush1.msra.mxu0 %v3550
    %3583 = vmatprep.subr.mxu0 0.0
    %3584 = vmatpush1.msra.mxu0 %v3549
    %3585 = vmatprep.subr.mxu0 0.0
    %3586 = vmatpush2.msra.mxu0 0.0
    %3587 = vmatprep.subr.mxu0 0.0
    %3588 = vmatpush2.msra.mxu0 0.0
    %3589 = vmatprep.subr.mxu0 0.0
    %3590 = vmatpush2.msra.mxu0 0.0
    %3591 = vmatprep.subr.mxu0 0.0
    %3592 = vmatpush2.msra.mxu0 0.0
    %3593 = vmatprep.subr.mxu0 0.0
    %3594 = vmatpush2.msra.mxu0 0.0
    %3595 = vmatprep.subr.mxu0 0.0
    %3596 = vmatpush2.msra.mxu0 0.0
    %3597 = vmatprep.subr.mxu0 0.0
    %3598 = vmatpush2.msra.mxu0 0.0
    %3599 = vmatprep.subr.mxu0 0.0
    %3600 = vmatpush2.msra.mxu0 0.0
    %3601 = vmatprep.subr.mxu0 0.0
    %3602 = vmatpush2.msra.mxu0 0.0
    %3603 = vmatprep.subr.mxu0 0.0
    %3604 = vmatpush2.msra.mxu0 0.0
    %3605 = vmatprep.subr.mxu0 0.0
    %3606 = vmatpush2.msra.mxu0 0.0
    %3607 = vmatprep.subr.mxu0 0.0
    %3608 = vmatpush2.msra.mxu0 0.0
    %3609 = vmatprep.subr.mxu0 0.0
    %3610 = vmatpush2.msra.mxu0 0.0
    %3611 = vmatprep.subr.mxu0 0.0
    %3612 = vmatpush2.msra.mxu0 0.0
    %3613 = vmatprep.subr.mxu0 0.0
    %3614 = vmatpush2.msra.mxu0 0.0
    %3615 = vmatprep.subr.mxu0 0.0
    %3616 = vmatpush2.msra.mxu0 0.0
    %3617 = vmatprep.mubr.f32.mxu0 0.0
    %3618 = vmatmul.mubr.f32.gmra.mxu0 %v2438
    %v3619 = vpop.f32.mrf.mxu0
    %v3620 = vadd.f32 0.0, %v3619
    %v3621 = vpop.f32.mrf.mxu0
    %3622 = vmatprep.mubr.f32.mxu0 0.0
    %3623 = vmatmul.mubr.f32.gmra.mxu0 %v2441
    %v3624 = vpop.f32.mrf.mxu0
    %v3625 = vadd.f32 0.0, %v3624
    %v3626 = vpop.f32.mrf.mxu0
    %3627 = vdwg.mxu0
    %s3628 = scalar_lea.vmem %s2, 704
    %v3629 = vld [vmem:[%s3628] sm:$0xff]
    %v3630 = vld [vmem:[%s3628 + $0x8] sm:$0xff]
    %v3631 = vld [vmem:[%s3628 + $0x10] sm:$0xff]
    %v3632 = vld [vmem:[%s3628 + $0x18] sm:$0xff]
    %3633 = vmatprep.subr.mxu0 0.0
    %3634 = vmatpush1.msra.mxu0 0.0
    %3635 = vmatprep.subr.mxu0 0.0
    %3636 = vmatpush1.msra.mxu0 0.0
    %3637 = vmatprep.subr.mxu0 0.0
    %3638 = vmatpush1.msra.mxu0 0.0
    %3639 = vmatprep.subr.mxu0 0.0
    %3640 = vmatpush1.msra.mxu0 0.0
    %3641 = vmatprep.subr.mxu0 0.0
    %3642 = vmatpush1.msra.mxu0 0.0
    %3643 = vmatprep.subr.mxu0 0.0
    %3644 = vmatpush1.msra.mxu0 0.0
    %3645 = vmatprep.subr.mxu0 0.0
    %3646 = vmatpush1.msra.mxu0 0.0
    %3647 = vmatprep.subr.mxu0 0.0
    %3648 = vmatpush1.msra.mxu0 0.0
    %3649 = vmatprep.subr.mxu0 0.0
    %3650 = vmatpush1.msra.mxu0 0.0
    %3651 = vmatprep.subr.mxu0 0.0
    %3652 = vmatpush1.msra.mxu0 0.0
    %3653 = vmatprep.subr.mxu0 0.0
    %3654 = vmatpush1.msra.mxu0 0.0
    %3655 = vmatprep.subr.mxu0 0.0
    %3656 = vmatpush1.msra.mxu0 0.0
    %3657 = vmatprep.subr.mxu0 0.0
    %3658 = vmatpush1.msra.mxu0 %v3632
    %3659 = vmatprep.subr.mxu0 0.0
    %3660 = vmatpush1.msra.mxu0 %v3631
    %3661 = vmatprep.subr.mxu0 0.0
    %3662 = vmatpush1.msra.mxu0 %v3630
    %3663 = vmatprep.subr.mxu0 0.0
    %3664 = vmatpush1.msra.mxu0 %v3629
    %3665 = vmatprep.subr.mxu0 0.0
    %3666 = vmatpush2.msra.mxu0 0.0
    %3667 = vmatprep.subr.mxu0 0.0
    %3668 = vmatpush2.msra.mxu0 0.0
    %3669 = vmatprep.subr.mxu0 0.0
    %3670 = vmatpush2.msra.mxu0 0.0
    %3671 = vmatprep.subr.mxu0 0.0
    %3672 = vmatpush2.msra.mxu0 0.0
    %3673 = vmatprep.subr.mxu0 0.0
    %3674 = vmatpush2.msra.mxu0 0.0
    %3675 = vmatprep.subr.mxu0 0.0
    %3676 = vmatpush2.msra.mxu0 0.0
    %3677 = vmatprep.subr.mxu0 0.0
    %3678 = vmatpush2.msra.mxu0 0.0
    %3679 = vmatprep.subr.mxu0 0.0
    %3680 = vmatpush2.msra.mxu0 0.0
    %3681 = vmatprep.subr.mxu0 0.0
    %3682 = vmatpush2.msra.mxu0 0.0
    %3683 = vmatprep.subr.mxu0 0.0
    %3684 = vmatpush2.msra.mxu0 0.0
    %3685 = vmatprep.subr.mxu0 0.0
    %3686 = vmatpush2.msra.mxu0 0.0
    %3687 = vmatprep.subr.mxu0 0.0
    %3688 = vmatpush2.msra.mxu0 0.0
    %3689 = vmatprep.subr.mxu0 0.0
    %3690 = vmatpush2.msra.mxu0 0.0
    %3691 = vmatprep.subr.mxu0 0.0
    %3692 = vmatpush2.msra.mxu0 0.0
    %3693 = vmatprep.subr.mxu0 0.0
    %3694 = vmatpush2.msra.mxu0 0.0
    %3695 = vmatprep.subr.mxu0 0.0
    %3696 = vmatpush2.msra.mxu0 0.0
    %3697 = vmatprep.mubr.f32.mxu0 0.0
    %3698 = vmatmul.mubr.f32.gmra.mxu0 %v2438
    %v3699 = vpop.f32.mrf.mxu0
    %v3700 = vadd.f32 0.0, %v3699
    %v3701 = vpop.f32.mrf.mxu0
    %3702 = vmatprep.mubr.f32.mxu0 0.0
    %3703 = vmatmul.mubr.f32.gmra.mxu0 %v2441
    %v3704 = vpop.f32.mrf.mxu0
    %v3705 = vadd.f32 0.0, %v3704
    %v3706 = vpop.f32.mrf.mxu0
    %3707 = vdwg.mxu0
    %v3709 = vsel %vm334, %v3540, 0
    %v3712 = vsel %vm334, %v3545, 0
    %v3715 = vsel %vm334, %v3620, 0
    %v3718 = vsel %vm334, %v3625, 0
    %3720 = vmatprep.subr.mxu0 0.0
    %3721 = vmatpush1.xpose.msra.mxu0 0.0
    %3722 = vmatprep.subr.mxu0 0.0
    %3723 = vmatpush1.xpose.msra.mxu0 0.0
    %3724 = vmatprep.subr.mxu0 0.0
    %3725 = vmatpush1.xpose.msra.mxu0 0.0
    %3726 = vmatprep.subr.mxu0 0.0
    %3727 = vmatpush1.xpose.msra.mxu0 0.0
    %3728 = vmatprep.subr.mxu0 0.0
    %3729 = vmatpush1.xpose.msra.mxu0 0.0
    %3730 = vmatprep.subr.mxu0 0.0
    %3731 = vmatpush1.xpose.msra.mxu0 0.0
    %3732 = vmatprep.subr.mxu0 0.0
    %3733 = vmatpush1.xpose.msra.mxu0 0.0
    %3734 = vmatprep.subr.mxu0 0.0
    %3735 = vmatpush1.xpose.msra.mxu0 0.0
    %3736 = vmatprep.subr.mxu0 0.0
    %3737 = vmatpush1.xpose.msra.mxu0 0.0
    %3738 = vmatprep.subr.mxu0 0.0
    %3739 = vmatpush1.xpose.msra.mxu0 0.0
    %3740 = vmatprep.subr.mxu0 0.0
    %3741 = vmatpush1.xpose.msra.mxu0 0.0
    %3742 = vmatprep.subr.mxu0 0.0
    %3743 = vmatpush1.xpose.msra.mxu0 0.0
    %3744 = vmatprep.subr.mxu0 0.0
    %3745 = vmatpush1.xpose.msra.mxu0 0.0
    %3746 = vmatprep.subr.mxu0 0.0
    %3747 = vmatpush1.xpose.msra.mxu0 0.0
    %3748 = vmatprep.subr.mxu0 0.0
    %3749 = vmatpush1.xpose.msra.mxu0 %v3718
    %3750 = vmatprep.subr.mxu0 0.0
    %3751 = vmatpush1.xpose.msra.mxu0 %v3715
    %3752 = vmatprep.subr.mxu0 0.0
    %3753 = vmatpush2.xpose.msra.mxu0 0.0
    %3754 = vmatprep.subr.mxu0 0.0
    %3755 = vmatpush2.xpose.msra.mxu0 0.0
    %3756 = vmatprep.subr.mxu0 0.0
    %3757 = vmatpush2.xpose.msra.mxu0 0.0
    %3758 = vmatprep.subr.mxu0 0.0
    %3759 = vmatpush2.xpose.msra.mxu0 0.0
    %3760 = vmatprep.subr.mxu0 0.0
    %3761 = vmatpush2.xpose.msra.mxu0 0.0
    %3762 = vmatprep.subr.mxu0 0.0
    %3763 = vmatpush2.xpose.msra.mxu0 0.0
    %3764 = vmatprep.subr.mxu0 0.0
    %3765 = vmatpush2.xpose.msra.mxu0 0.0
    %3766 = vmatprep.subr.mxu0 0.0
    %3767 = vmatpush2.xpose.msra.mxu0 0.0
    %3768 = vmatprep.subr.mxu0 0.0
    %3769 = vmatpush2.xpose.msra.mxu0 0.0
    %3770 = vmatprep.subr.mxu0 0.0
    %3771 = vmatpush2.xpose.msra.mxu0 0.0
    %3772 = vmatprep.subr.mxu0 0.0
    %3773 = vmatpush2.xpose.msra.mxu0 0.0
    %3774 = vmatprep.subr.mxu0 0.0
    %3775 = vmatpush2.xpose.msra.mxu0 0.0
    %3776 = vmatprep.subr.mxu0 0.0
    %3777 = vmatpush2.xpose.msra.mxu0 0.0
    %3778 = vmatprep.subr.mxu0 0.0
    %3779 = vmatpush2.xpose.msra.mxu0 0.0
    %3780 = vmatprep.subr.mxu0 0.0
    %3781 = vmatpush2.xpose.msra.mxu0 0.0
    %3782 = vmatprep.subr.mxu0 0.0
    %3783 = vmatpush2.xpose.msra.mxu0 0.0
    %3784 = vmatprep.mubr.f32.mxu0 0.0
    %3785 = vmatmul.mubr.f32.gmra.mxu0 %v3709
    %v3786 = vpop.f32.mrf.mxu0
    %v3787 = vadd.f32 %v46, %v3786
    %v3788 = vpop.f32.mrf.mxu0
    %3789 = vmatprep.mubr.f32.mxu0 0.0
    %3790 = vmatmul.mubr.f32.gmra.mxu0 %v3712
    %v3791 = vpop.f32.mrf.mxu0
    %v3792 = vadd.f32 %v47, %v3791
    %v3793 = vpop.f32.mrf.mxu0
    %3794 = vdwg.mxu0
    %v3795 = vsel %vm422, %v3787, -inf
    %3796 = vmax.xlane.f32.xlu0 %v3795
    %v3797 = vpop.xlane.xlu0 %3796
    %v3798 = vsel %vm422, %v3792, -inf
    %3799 = vmax.xlane.f32.xlu0 %v3798
    %v3800 = vpop.xlane.xlu0 %3799
    %v3801 = vsub.f32 %v3787, %v3797
    %v3802 = vsub.f32 %v3792, %v3800
    %v3803 = vmul.f32 %v3801, 1.442695
    %v3804 = vpow.pop %v3803
    %v3805 = vmul.f32 %v3802, 1.442695
    %v3806 = vpow.pop %v3805
    %v3807 = vsel %vm422, %v3804, 0.0
    %3808 = vadd.xlane.f32.xlu0 %v3807
    %v3809 = vpop.xlane.xlu0 %3808
    %v3810 = vsel %vm422, %v3806, 0.0
    %3811 = vadd.xlane.f32.xlu0 %v3810
    %v3812 = vpop.xlane.xlu0 %3811
    %v3813 = vrcp.pop %v3809
    %v3814 = vrcp.pop %v3812
    %v3815 = vmul.f32 %v3804, %v3813
    %v3816 = vmul.f32 %v3806, %v3814
    %v3818 = vsel %vm422, %v3815, 0
    %v3821 = vsel %vm422, %v3816, 0
    %3823 = vmatprep.subr.mxu0 0.0
    %3824 = vmatpush1.msra.mxu0 0.0
    %3825 = vmatprep.subr.mxu0 0.0
    %3826 = vmatpush1.msra.mxu0 0.0
    %3827 = vmatprep.subr.mxu0 0.0
    %3828 = vmatpush1.msra.mxu0 0.0
    %3829 = vmatprep.subr.mxu0 0.0
    %3830 = vmatpush1.msra.mxu0 0.0
    %3831 = vmatprep.subr.mxu0 0.0
    %3832 = vmatpush1.msra.mxu0 0.0
    %3833 = vmatprep.subr.mxu0 0.0
    %3834 = vmatpush1.msra.mxu0 0.0
    %3835 = vmatprep.subr.mxu0 0.0
    %3836 = vmatpush1.msra.mxu0 0.0
    %3837 = vmatprep.subr.mxu0 0.0
    %3838 = vmatpush1.msra.mxu0 0.0
    %3839 = vmatprep.subr.mxu0 0.0
    %3840 = vmatpush1.msra.mxu0 0.0
    %3841 = vmatprep.subr.mxu0 0.0
    %3842 = vmatpush1.msra.mxu0 0.0
    %3843 = vmatprep.subr.mxu0 0.0
    %3844 = vmatpush1.msra.mxu0 0.0
    %3845 = vmatprep.subr.mxu0 0.0
    %3846 = vmatpush1.msra.mxu0 0.0
    %3847 = vmatprep.subr.mxu0 0.0
    %3848 = vmatpush1.msra.mxu0 0.0
    %3849 = vmatprep.subr.mxu0 0.0
    %3850 = vmatpush1.msra.mxu0 0.0
    %3851 = vmatprep.subr.mxu0 0.0
    %3852 = vmatpush1.msra.mxu0 %v3705
    %3853 = vmatprep.subr.mxu0 0.0
    %3854 = vmatpush1.msra.mxu0 %v3700
    %3855 = vmatprep.subr.mxu0 0.0
    %3856 = vmatpush2.msra.mxu0 0.0
    %3857 = vmatprep.subr.mxu0 0.0
    %3858 = vmatpush2.msra.mxu0 0.0
    %3859 = vmatprep.subr.mxu0 0.0
    %3860 = vmatpush2.msra.mxu0 0.0
    %3861 = vmatprep.subr.mxu0 0.0
    %3862 = vmatpush2.msra.mxu0 0.0
    %3863 = vmatprep.subr.mxu0 0.0
    %3864 = vmatpush2.msra.mxu0 0.0
    %3865 = vmatprep.subr.mxu0 0.0
    %3866 = vmatpush2.msra.mxu0 0.0
    %3867 = vmatprep.subr.mxu0 0.0
    %3868 = vmatpush2.msra.mxu0 0.0
    %3869 = vmatprep.subr.mxu0 0.0
    %3870 = vmatpush2.msra.mxu0 0.0
    %3871 = vmatprep.subr.mxu0 0.0
    %3872 = vmatpush2.msra.mxu0 0.0
    %3873 = vmatprep.subr.mxu0 0.0
    %3874 = vmatpush2.msra.mxu0 0.0
    %3875 = vmatprep.subr.mxu0 0.0
    %3876 = vmatpush2.msra.mxu0 0.0
    %3877 = vmatprep.subr.mxu0 0.0
    %3878 = vmatpush2.msra.mxu0 0.0
    %3879 = vmatprep.subr.mxu0 0.0
    %3880 = vmatpush2.msra.mxu0 0.0
    %3881 = vmatprep.subr.mxu0 0.0
    %3882 = vmatpush2.msra.mxu0 0.0
    %3883 = vmatprep.subr.mxu0 0.0
    %3884 = vmatpush2.msra.mxu0 0.0
    %3885 = vmatprep.subr.mxu0 0.0
    %3886 = vmatpush2.msra.mxu0 0.0
    %3887 = vmatprep.mubr.f32.mxu0 0.0
    %3888 = vmatmul.mubr.f32.gmra.mxu0 %v3818
    %v3889 = vpop.f32.mrf.mxu0
    %v3890 = vadd.f32 0.0, %v3889
    %v3891 = vpop.f32.mrf.mxu0
    %3892 = vmatprep.mubr.f32.mxu0 0.0
    %3893 = vmatmul.mubr.f32.gmra.mxu0 %v3821
    %v3894 = vpop.f32.mrf.mxu0
    %v3895 = vadd.f32 0.0, %v3894
    %v3896 = vpop.f32.mrf.mxu0
    %3897 = vdwg.mxu0
    %s3898 = scalar_lea.vmem %s3, 48
    %v3899 = vld [vmem:[%s3898] sm:$0xff]
    %v3901 = vsel %vm334, %v3890, 0
    %v3904 = vsel %vm334, %v3895, 0
    %3906 = vmatprep.subr.mxu0 0.0
    %3907 = vmatpush1.msra.mxu0 0.0
    %3908 = vmatprep.subr.mxu0 0.0
    %3909 = vmatpush1.msra.mxu0 0.0
    %3910 = vmatprep.subr.mxu0 0.0
    %3911 = vmatpush1.msra.mxu0 0.0
    %3912 = vmatprep.subr.mxu0 0.0
    %3913 = vmatpush1.msra.mxu0 0.0
    %3914 = vmatprep.subr.mxu0 0.0
    %3915 = vmatpush1.msra.mxu0 0.0
    %3916 = vmatprep.subr.mxu0 0.0
    %3917 = vmatpush1.msra.mxu0 0.0
    %3918 = vmatprep.subr.mxu0 0.0
    %3919 = vmatpush1.msra.mxu0 0.0
    %3920 = vmatprep.subr.mxu0 0.0
    %3921 = vmatpush1.msra.mxu0 0.0
    %3922 = vmatprep.subr.mxu0 0.0
    %3923 = vmatpush1.msra.mxu0 0.0
    %3924 = vmatprep.subr.mxu0 0.0
    %3925 = vmatpush1.msra.mxu0 0.0
    %3926 = vmatprep.subr.mxu0 0.0
    %3927 = vmatpush1.msra.mxu0 0.0
    %3928 = vmatprep.subr.mxu0 0.0
    %3929 = vmatpush1.msra.mxu0 0.0
    %3930 = vmatprep.subr.mxu0 0.0
    %3931 = vmatpush1.msra.mxu0 0.0
    %3932 = vmatprep.subr.mxu0 0.0
    %3933 = vmatpush1.msra.mxu0 0.0
    %3934 = vmatprep.subr.mxu0 0.0
    %3935 = vmatpush1.msra.mxu0 0.0
    %3936 = vmatprep.subr.mxu0 0.0
    %3937 = vmatpush1.msra.mxu0 %v3899
    %3938 = vmatprep.subr.mxu0 0.0
    %3939 = vmatpush2.msra.mxu0 0.0
    %3940 = vmatprep.subr.mxu0 0.0
    %3941 = vmatpush2.msra.mxu0 0.0
    %3942 = vmatprep.subr.mxu0 0.0
    %3943 = vmatpush2.msra.mxu0 0.0
    %3944 = vmatprep.subr.mxu0 0.0
    %3945 = vmatpush2.msra.mxu0 0.0
    %3946 = vmatprep.subr.mxu0 0.0
    %3947 = vmatpush2.msra.mxu0 0.0
    %3948 = vmatprep.subr.mxu0 0.0
    %3949 = vmatpush2.msra.mxu0 0.0
    %3950 = vmatprep.subr.mxu0 0.0
    %3951 = vmatpush2.msra.mxu0 0.0
    %3952 = vmatprep.subr.mxu0 0.0
    %3953 = vmatpush2.msra.mxu0 0.0
    %3954 = vmatprep.subr.mxu0 0.0
    %3955 = vmatpush2.msra.mxu0 0.0
    %3956 = vmatprep.subr.mxu0 0.0
    %3957 = vmatpush2.msra.mxu0 0.0
    %3958 = vmatprep.subr.mxu0 0.0
    %3959 = vmatpush2.msra.mxu0 0.0
    %3960 = vmatprep.subr.mxu0 0.0
    %3961 = vmatpush2.msra.mxu0 0.0
    %3962 = vmatprep.subr.mxu0 0.0
    %3963 = vmatpush2.msra.mxu0 0.0
    %3964 = vmatprep.subr.mxu0 0.0
    %3965 = vmatpush2.msra.mxu0 0.0
    %3966 = vmatprep.subr.mxu0 0.0
    %3967 = vmatpush2.msra.mxu0 0.0
    %3968 = vmatprep.subr.mxu0 0.0
    %3969 = vmatpush2.msra.mxu0 0.0
    %3970 = vmatprep.mubr.f32.mxu0 0.0
    %3971 = vmatmul.mubr.f32.gmra.mxu0 %v3901
    %v3972 = vpop.f32.mrf.mxu0
    %v3973 = vadd.f32 0.0, %v3972
    %v3974 = vpop.f32.mrf.mxu0
    %3975 = vmatprep.mubr.f32.mxu0 0.0
    %3976 = vmatmul.mubr.f32.gmra.mxu0 %v3904
    %v3977 = vpop.f32.mrf.mxu0
    %v3978 = vadd.f32 0.0, %v3977
    %v3979 = vpop.f32.mrf.mxu0
    %3980 = vdwg.mxu0
    %v3981 = vadd.f32 %v3466, %v3973
    %v3982 = vadd.f32 %v3467, %v3978
    %s3983 = scalar_lea.vmem %s2, 480
    %v3984 = vld [vmem:[%s3983] sm:$0xff]
    %v3985 = vld [vmem:[%s3983 + $0x8] sm:$0xff]
    %v3986 = vld [vmem:[%s3983 + $0x10] sm:$0xff]
    %v3987 = vld [vmem:[%s3983 + $0x18] sm:$0xff]
    %3988 = vmatprep.subr.mxu0 0.0
    %3989 = vmatpush1.msra.mxu0 0.0
    %3990 = vmatprep.subr.mxu0 0.0
    %3991 = vmatpush1.msra.mxu0 0.0
    %3992 = vmatprep.subr.mxu0 0.0
    %3993 = vmatpush1.msra.mxu0 0.0
    %3994 = vmatprep.subr.mxu0 0.0
    %3995 = vmatpush1.msra.mxu0 0.0
    %3996 = vmatprep.subr.mxu0 0.0
    %3997 = vmatpush1.msra.mxu0 0.0
    %3998 = vmatprep.subr.mxu0 0.0
    %3999 = vmatpush1.msra.mxu0 0.0
    %4000 = vmatprep.subr.mxu0 0.0
    %4001 = vmatpush1.msra.mxu0 0.0
    %4002 = vmatprep.subr.mxu0 0.0
    %4003 = vmatpush1.msra.mxu0 0.0
    %4004 = vmatprep.subr.mxu0 0.0
    %4005 = vmatpush1.msra.mxu0 0.0
    %4006 = vmatprep.subr.mxu0 0.0
    %4007 = vmatpush1.msra.mxu0 0.0
    %4008 = vmatprep.subr.mxu0 0.0
    %4009 = vmatpush1.msra.mxu0 0.0
    %4010 = vmatprep.subr.mxu0 0.0
    %4011 = vmatpush1.msra.mxu0 0.0
    %4012 = vmatprep.subr.mxu0 0.0
    %4013 = vmatpush1.msra.mxu0 %v3987
    %4014 = vmatprep.subr.mxu0 0.0
    %4015 = vmatpush1.msra.mxu0 %v3986
    %4016 = vmatprep.subr.mxu0 0.0
    %4017 = vmatpush1.msra.mxu0 %v3985
    %4018 = vmatprep.subr.mxu0 0.0
    %4019 = vmatpush1.msra.mxu0 %v3984
    %4020 = vmatprep.subr.mxu0 0.0
    %4021 = vmatpush2.msra.mxu0 0.0
    %4022 = vmatprep.subr.mxu0 0.0
    %4023 = vmatpush2.msra.mxu0 0.0
    %4024 = vmatprep.subr.mxu0 0.0
    %4025 = vmatpush2.msra.mxu0 0.0
    %4026 = vmatprep.subr.mxu0 0.0
    %4027 = vmatpush2.msra.mxu0 0.0
    %4028 = vmatprep.subr.mxu0 0.0
    %4029 = vmatpush2.msra.mxu0 0.0
    %4030 = vmatprep.subr.mxu0 0.0
    %4031 = vmatpush2.msra.mxu0 0.0
    %4032 = vmatprep.subr.mxu0 0.0
    %4033 = vmatpush2.msra.mxu0 0.0
    %4034 = vmatprep.subr.mxu0 0.0
    %4035 = vmatpush2.msra.mxu0 0.0
    %4036 = vmatprep.subr.mxu0 0.0
    %4037 = vmatpush2.msra.mxu0 0.0
    %4038 = vmatprep.subr.mxu0 0.0
    %4039 = vmatpush2.msra.mxu0 0.0
    %4040 = vmatprep.subr.mxu0 0.0
    %4041 = vmatpush2.msra.mxu0 0.0
    %4042 = vmatprep.subr.mxu0 0.0
    %4043 = vmatpush2.msra.mxu0 0.0
    %4044 = vmatprep.subr.mxu0 0.0
    %4045 = vmatpush2.msra.mxu0 0.0
    %4046 = vmatprep.subr.mxu0 0.0
    %4047 = vmatpush2.msra.mxu0 0.0
    %4048 = vmatprep.subr.mxu0 0.0
    %4049 = vmatpush2.msra.mxu0 0.0
    %4050 = vmatprep.subr.mxu0 0.0
    %4051 = vmatpush2.msra.mxu0 0.0
    %4052 = vmatprep.mubr.f32.mxu0 0.0
    %4053 = vmatmul.mubr.f32.gmra.mxu0 %v2438
    %v4054 = vpop.f32.mrf.mxu0
    %v4055 = vadd.f32 0.0, %v4054
    %v4056 = vpop.f32.mrf.mxu0
    %4057 = vmatprep.mubr.f32.mxu0 0.0
    %4058 = vmatmul.mubr.f32.gmra.mxu0 %v2441
    %v4059 = vpop.f32.mrf.mxu0
    %v4060 = vadd.f32 0.0, %v4059
    %v4061 = vpop.f32.mrf.mxu0
    %4062 = vdwg.mxu0
    %s4063 = scalar_lea.vmem %s2, 608
    %v4064 = vld [vmem:[%s4063] sm:$0xff]
    %v4065 = vld [vmem:[%s4063 + $0x8] sm:$0xff]
    %v4066 = vld [vmem:[%s4063 + $0x10] sm:$0xff]
    %v4067 = vld [vmem:[%s4063 + $0x18] sm:$0xff]
    %4068 = vmatprep.subr.mxu0 0.0
    %4069 = vmatpush1.msra.mxu0 0.0
    %4070 = vmatprep.subr.mxu0 0.0
    %4071 = vmatpush1.msra.mxu0 0.0
    %4072 = vmatprep.subr.mxu0 0.0
    %4073 = vmatpush1.msra.mxu0 0.0
    %4074 = vmatprep.subr.mxu0 0.0
    %4075 = vmatpush1.msra.mxu0 0.0
    %4076 = vmatprep.subr.mxu0 0.0
    %4077 = vmatpush1.msra.mxu0 0.0
    %4078 = vmatprep.subr.mxu0 0.0
    %4079 = vmatpush1.msra.mxu0 0.0
    %4080 = vmatprep.subr.mxu0 0.0
    %4081 = vmatpush1.msra.mxu0 0.0
    %4082 = vmatprep.subr.mxu0 0.0
    %4083 = vmatpush1.msra.mxu0 0.0
    %4084 = vmatprep.subr.mxu0 0.0
    %4085 = vmatpush1.msra.mxu0 0.0
    %4086 = vmatprep.subr.mxu0 0.0
    %4087 = vmatpush1.msra.mxu0 0.0
    %4088 = vmatprep.subr.mxu0 0.0
    %4089 = vmatpush1.msra.mxu0 0.0
    %4090 = vmatprep.subr.mxu0 0.0
    %4091 = vmatpush1.msra.mxu0 0.0
    %4092 = vmatprep.subr.mxu0 0.0
    %4093 = vmatpush1.msra.mxu0 %v4067
    %4094 = vmatprep.subr.mxu0 0.0
    %4095 = vmatpush1.msra.mxu0 %v4066
    %4096 = vmatprep.subr.mxu0 0.0
    %4097 = vmatpush1.msra.mxu0 %v4065
    %4098 = vmatprep.subr.mxu0 0.0
    %4099 = vmatpush1.msra.mxu0 %v4064
    %4100 = vmatprep.subr.mxu0 0.0
    %4101 = vmatpush2.msra.mxu0 0.0
    %4102 = vmatprep.subr.mxu0 0.0
    %4103 = vmatpush2.msra.mxu0 0.0
    %4104 = vmatprep.subr.mxu0 0.0
    %4105 = vmatpush2.msra.mxu0 0.0
    %4106 = vmatprep.subr.mxu0 0.0
    %4107 = vmatpush2.msra.mxu0 0.0
    %4108 = vmatprep.subr.mxu0 0.0
    %4109 = vmatpush2.msra.mxu0 0.0
    %4110 = vmatprep.subr.mxu0 0.0
    %4111 = vmatpush2.msra.mxu0 0.0
    %4112 = vmatprep.subr.mxu0 0.0
    %4113 = vmatpush2.msra.mxu0 0.0
    %4114 = vmatprep.subr.mxu0 0.0
    %4115 = vmatpush2.msra.mxu0 0.0
    %4116 = vmatprep.subr.mxu0 0.0
    %4117 = vmatpush2.msra.mxu0 0.0
    %4118 = vmatprep.subr.mxu0 0.0
    %4119 = vmatpush2.msra.mxu0 0.0
    %4120 = vmatprep.subr.mxu0 0.0
    %4121 = vmatpush2.msra.mxu0 0.0
    %4122 = vmatprep.subr.mxu0 0.0
    %4123 = vmatpush2.msra.mxu0 0.0
    %4124 = vmatprep.subr.mxu0 0.0
    %4125 = vmatpush2.msra.mxu0 0.0
    %4126 = vmatprep.subr.mxu0 0.0
    %4127 = vmatpush2.msra.mxu0 0.0
    %4128 = vmatprep.subr.mxu0 0.0
    %4129 = vmatpush2.msra.mxu0 0.0
    %4130 = vmatprep.subr.mxu0 0.0
    %4131 = vmatpush2.msra.mxu0 0.0
    %4132 = vmatprep.mubr.f32.mxu0 0.0
    %4133 = vmatmul.mubr.f32.gmra.mxu0 %v2438
    %v4134 = vpop.f32.mrf.mxu0
    %v4135 = vadd.f32 0.0, %v4134
    %v4136 = vpop.f32.mrf.mxu0
    %4137 = vmatprep.mubr.f32.mxu0 0.0
    %4138 = vmatmul.mubr.f32.gmra.mxu0 %v2441
    %v4139 = vpop.f32.mrf.mxu0
    %v4140 = vadd.f32 0.0, %v4139
    %v4141 = vpop.f32.mrf.mxu0
    %4142 = vdwg.mxu0
    %s4143 = scalar_lea.vmem %s2, 736
    %v4144 = vld [vmem:[%s4143] sm:$0xff]
    %v4145 = vld [vmem:[%s4143 + $0x8] sm:$0xff]
    %v4146 = vld [vmem:[%s4143 + $0x10] sm:$0xff]
    %v4147 = vld [vmem:[%s4143 + $0x18] sm:$0xff]
    %4148 = vmatprep.subr.mxu0 0.0
    %4149 = vmatpush1.msra.mxu0 0.0
    %4150 = vmatprep.subr.mxu0 0.0
    %4151 = vmatpush1.msra.mxu0 0.0
    %4152 = vmatprep.subr.mxu0 0.0
    %4153 = vmatpush1.msra.mxu0 0.0
    %4154 = vmatprep.subr.mxu0 0.0
    %4155 = vmatpush1.msra.mxu0 0.0
    %4156 = vmatprep.subr.mxu0 0.0
    %4157 = vmatpush1.msra.mxu0 0.0
    %4158 = vmatprep.subr.mxu0 0.0
    %4159 = vmatpush1.msra.mxu0 0.0
    %4160 = vmatprep.subr.mxu0 0.0
    %4161 = vmatpush1.msra.mxu0 0.0
    %4162 = vmatprep.subr.mxu0 0.0
    %4163 = vmatpush1.msra.mxu0 0.0
    %4164 = vmatprep.subr.mxu0 0.0
    %4165 = vmatpush1.msra.mxu0 0.0
    %4166 = vmatprep.subr.mxu0 0.0
    %4167 = vmatpush1.msra.mxu0 0.0
    %4168 = vmatprep.subr.mxu0 0.0
    %4169 = vmatpush1.msra.mxu0 0.0
    %4170 = vmatprep.subr.mxu0 0.0
    %4171 = vmatpush1.msra.mxu0 0.0
    %4172 = vmatprep.subr.mxu0 0.0
    %4173 = vmatpush1.msra.mxu0 %v4147
    %4174 = vmatprep.subr.mxu0 0.0
    %4175 = vmatpush1.msra.mxu0 %v4146
    %4176 = vmatprep.subr.mxu0 0.0
    %4177 = vmatpush1.msra.mxu0 %v4145
    %4178 = vmatprep.subr.mxu0 0.0
    %4179 = vmatpush1.msra.mxu0 %v4144
    %4180 = vmatprep.subr.mxu0 0.0
    %4181 = vmatpush2.msra.mxu0 0.0
    %4182 = vmatprep.subr.mxu0 0.0
    %4183 = vmatpush2.msra.mxu0 0.0
    %4184 = vmatprep.subr.mxu0 0.0
    %4185 = vmatpush2.msra.mxu0 0.0
    %4186 = vmatprep.subr.mxu0 0.0
    %4187 = vmatpush2.msra.mxu0 0.0
    %4188 = vmatprep.subr.mxu0 0.0
    %4189 = vmatpush2.msra.mxu0 0.0
    %4190 = vmatprep.subr.mxu0 0.0
    %4191 = vmatpush2.msra.mxu0 0.0
    %4192 = vmatprep.subr.mxu0 0.0
    %4193 = vmatpush2.msra.mxu0 0.0
    %4194 = vmatprep.subr.mxu0 0.0
    %4195 = vmatpush2.msra.mxu0 0.0
    %4196 = vmatprep.subr.mxu0 0.0
    %4197 = vmatpush2.msra.mxu0 0.0
    %4198 = vmatprep.subr.mxu0 0.0
    %4199 = vmatpush2.msra.mxu0 0.0
    %4200 = vmatprep.subr.mxu0 0.0
    %4201 = vmatpush2.msra.mxu0 0.0
    %4202 = vmatprep.subr.mxu0 0.0
    %4203 = vmatpush2.msra.mxu0 0.0
    %4204 = vmatprep.subr.mxu0 0.0
    %4205 = vmatpush2.msra.mxu0 0.0
    %4206 = vmatprep.subr.mxu0 0.0
    %4207 = vmatpush2.msra.mxu0 0.0
    %4208 = vmatprep.subr.mxu0 0.0
    %4209 = vmatpush2.msra.mxu0 0.0
    %4210 = vmatprep.subr.mxu0 0.0
    %4211 = vmatpush2.msra.mxu0 0.0
    %4212 = vmatprep.mubr.f32.mxu0 0.0
    %4213 = vmatmul.mubr.f32.gmra.mxu0 %v2438
    %v4214 = vpop.f32.mrf.mxu0
    %v4215 = vadd.f32 0.0, %v4214
    %v4216 = vpop.f32.mrf.mxu0
    %4217 = vmatprep.mubr.f32.mxu0 0.0
    %4218 = vmatmul.mubr.f32.gmra.mxu0 %v2441
    %v4219 = vpop.f32.mrf.mxu0
    %v4220 = vadd.f32 0.0, %v4219
    %v4221 = vpop.f32.mrf.mxu0
    %4222 = vdwg.mxu0
    %v4224 = vsel %vm334, %v4055, 0
    %v4227 = vsel %vm334, %v4060, 0
    %v4230 = vsel %vm334, %v4135, 0
    %v4233 = vsel %vm334, %v4140, 0
    %4235 = vmatprep.subr.mxu0 0.0
    %4236 = vmatpush1.xpose.msra.mxu0 0.0
    %4237 = vmatprep.subr.mxu0 0.0
    %4238 = vmatpush1.xpose.msra.mxu0 0.0
    %4239 = vmatprep.subr.mxu0 0.0
    %4240 = vmatpush1.xpose.msra.mxu0 0.0
    %4241 = vmatprep.subr.mxu0 0.0
    %4242 = vmatpush1.xpose.msra.mxu0 0.0
    %4243 = vmatprep.subr.mxu0 0.0
    %4244 = vmatpush1.xpose.msra.mxu0 0.0
    %4245 = vmatprep.subr.mxu0 0.0
    %4246 = vmatpush1.xpose.msra.mxu0 0.0
    %4247 = vmatprep.subr.mxu0 0.0
    %4248 = vmatpush1.xpose.msra.mxu0 0.0
    %4249 = vmatprep.subr.mxu0 0.0
    %4250 = vmatpush1.xpose.msra.mxu0 0.0
    %4251 = vmatprep.subr.mxu0 0.0
    %4252 = vmatpush1.xpose.msra.mxu0 0.0
    %4253 = vmatprep.subr.mxu0 0.0
    %4254 = vmatpush1.xpose.msra.mxu0 0.0
    %4255 = vmatprep.subr.mxu0 0.0
    %4256 = vmatpush1.xpose.msra.mxu0 0.0
    %4257 = vmatprep.subr.mxu0 0.0
    %4258 = vmatpush1.xpose.msra.mxu0 0.0
    %4259 = vmatprep.subr.mxu0 0.0
    %4260 = vmatpush1.xpose.msra.mxu0 0.0
    %4261 = vmatprep.subr.mxu0 0.0
    %4262 = vmatpush1.xpose.msra.mxu0 0.0
    %4263 = vmatprep.subr.mxu0 0.0
    %4264 = vmatpush1.xpose.msra.mxu0 %v4233
    %4265 = vmatprep.subr.mxu0 0.0
    %4266 = vmatpush1.xpose.msra.mxu0 %v4230
    %4267 = vmatprep.subr.mxu0 0.0
    %4268 = vmatpush2.xpose.msra.mxu0 0.0
    %4269 = vmatprep.subr.mxu0 0.0
    %4270 = vmatpush2.xpose.msra.mxu0 0.0
    %4271 = vmatprep.subr.mxu0 0.0
    %4272 = vmatpush2.xpose.msra.mxu0 0.0
    %4273 = vmatprep.subr.mxu0 0.0
    %4274 = vmatpush2.xpose.msra.mxu0 0.0
    %4275 = vmatprep.subr.mxu0 0.0
    %4276 = vmatpush2.xpose.msra.mxu0 0.0
    %4277 = vmatprep.subr.mxu0 0.0
    %4278 = vmatpush2.xpose.msra.mxu0 0.0
    %4279 = vmatprep.subr.mxu0 0.0
    %4280 = vmatpush2.xpose.msra.mxu0 0.0
    %4281 = vmatprep.subr.mxu0 0.0
    %4282 = vmatpush2.xpose.msra.mxu0 0.0
    %4283 = vmatprep.subr.mxu0 0.0
    %4284 = vmatpush2.xpose.msra.mxu0 0.0
    %4285 = vmatprep.subr.mxu0 0.0
    %4286 = vmatpush2.xpose.msra.mxu0 0.0
    %4287 = vmatprep.subr.mxu0 0.0
    %4288 = vmatpush2.xpose.msra.mxu0 0.0
    %4289 = vmatprep.subr.mxu0 0.0
    %4290 = vmatpush2.xpose.msra.mxu0 0.0
    %4291 = vmatprep.subr.mxu0 0.0
    %4292 = vmatpush2.xpose.msra.mxu0 0.0
    %4293 = vmatprep.subr.mxu0 0.0
    %4294 = vmatpush2.xpose.msra.mxu0 0.0
    %4295 = vmatprep.subr.mxu0 0.0
    %4296 = vmatpush2.xpose.msra.mxu0 0.0
    %4297 = vmatprep.subr.mxu0 0.0
    %4298 = vmatpush2.xpose.msra.mxu0 0.0
    %4299 = vmatprep.mubr.f32.mxu0 0.0
    %4300 = vmatmul.mubr.f32.gmra.mxu0 %v4224
    %v4301 = vpop.f32.mrf.mxu0
    %v4302 = vadd.f32 %v46, %v4301
    %v4303 = vpop.f32.mrf.mxu0
    %4304 = vmatprep.mubr.f32.mxu0 0.0
    %4305 = vmatmul.mubr.f32.gmra.mxu0 %v4227
    %v4306 = vpop.f32.mrf.mxu0
    %v4307 = vadd.f32 %v47, %v4306
    %v4308 = vpop.f32.mrf.mxu0
    %4309 = vdwg.mxu0
    %v4310 = vsel %vm422, %v4302, -inf
    %4311 = vmax.xlane.f32.xlu0 %v4310
    %v4312 = vpop.xlane.xlu0 %4311
    %v4313 = vsel %vm422, %v4307, -inf
    %4314 = vmax.xlane.f32.xlu0 %v4313
    %v4315 = vpop.xlane.xlu0 %4314
    %v4316 = vsub.f32 %v4302, %v4312
    %v4317 = vsub.f32 %v4307, %v4315
    %v4318 = vmul.f32 %v4316, 1.442695
    %v4319 = vpow.pop %v4318
    %v4320 = vmul.f32 %v4317, 1.442695
    %v4321 = vpow.pop %v4320
    %v4322 = vsel %vm422, %v4319, 0.0
    %4323 = vadd.xlane.f32.xlu0 %v4322
    %v4324 = vpop.xlane.xlu0 %4323
    %v4325 = vsel %vm422, %v4321, 0.0
    %4326 = vadd.xlane.f32.xlu0 %v4325
    %v4327 = vpop.xlane.xlu0 %4326
    %v4328 = vrcp.pop %v4324
    %v4329 = vrcp.pop %v4327
    %v4330 = vmul.f32 %v4319, %v4328
    %v4331 = vmul.f32 %v4321, %v4329
    %v4333 = vsel %vm422, %v4330, 0
    %v4336 = vsel %vm422, %v4331, 0
    %4338 = vmatprep.subr.mxu0 0.0
    %4339 = vmatpush1.msra.mxu0 0.0
    %4340 = vmatprep.subr.mxu0 0.0
    %4341 = vmatpush1.msra.mxu0 0.0
    %4342 = vmatprep.subr.mxu0 0.0
    %4343 = vmatpush1.msra.mxu0 0.0
    %4344 = vmatprep.subr.mxu0 0.0
    %4345 = vmatpush1.msra.mxu0 0.0
    %4346 = vmatprep.subr.mxu0 0.0
    %4347 = vmatpush1.msra.mxu0 0.0
    %4348 = vmatprep.subr.mxu0 0.0
    %4349 = vmatpush1.msra.mxu0 0.0
    %4350 = vmatprep.subr.mxu0 0.0
    %4351 = vmatpush1.msra.mxu0 0.0
    %4352 = vmatprep.subr.mxu0 0.0
    %4353 = vmatpush1.msra.mxu0 0.0
    %4354 = vmatprep.subr.mxu0 0.0
    %4355 = vmatpush1.msra.mxu0 0.0
    %4356 = vmatprep.subr.mxu0 0.0
    %4357 = vmatpush1.msra.mxu0 0.0
    %4358 = vmatprep.subr.mxu0 0.0
    %4359 = vmatpush1.msra.mxu0 0.0
    %4360 = vmatprep.subr.mxu0 0.0
    %4361 = vmatpush1.msra.mxu0 0.0
    %4362 = vmatprep.subr.mxu0 0.0
    %4363 = vmatpush1.msra.mxu0 0.0
    %4364 = vmatprep.subr.mxu0 0.0
    %4365 = vmatpush1.msra.mxu0 0.0
    %4366 = vmatprep.subr.mxu0 0.0
    %4367 = vmatpush1.msra.mxu0 %v4220
    %4368 = vmatprep.subr.mxu0 0.0
    %4369 = vmatpush1.msra.mxu0 %v4215
    %4370 = vmatprep.subr.mxu0 0.0
    %4371 = vmatpush2.msra.mxu0 0.0
    %4372 = vmatprep.subr.mxu0 0.0
    %4373 = vmatpush2.msra.mxu0 0.0
    %4374 = vmatprep.subr.mxu0 0.0
    %4375 = vmatpush2.msra.mxu0 0.0
    %4376 = vmatprep.subr.mxu0 0.0
    %4377 = vmatpush2.msra.mxu0 0.0
    %4378 = vmatprep.subr.mxu0 0.0
    %4379 = vmatpush2.msra.mxu0 0.0
    %4380 = vmatprep.subr.mxu0 0.0
    %4381 = vmatpush2.msra.mxu0 0.0
    %4382 = vmatprep.subr.mxu0 0.0
    %4383 = vmatpush2.msra.mxu0 0.0
    %4384 = vmatprep.subr.mxu0 0.0
    %4385 = vmatpush2.msra.mxu0 0.0
    %4386 = vmatprep.subr.mxu0 0.0
    %4387 = vmatpush2.msra.mxu0 0.0
    %4388 = vmatprep.subr.mxu0 0.0
    %4389 = vmatpush2.msra.mxu0 0.0
    %4390 = vmatprep.subr.mxu0 0.0
    %4391 = vmatpush2.msra.mxu0 0.0
    %4392 = vmatprep.subr.mxu0 0.0
    %4393 = vmatpush2.msra.mxu0 0.0
    %4394 = vmatprep.subr.mxu0 0.0
    %4395 = vmatpush2.msra.mxu0 0.0
    %4396 = vmatprep.subr.mxu0 0.0
    %4397 = vmatpush2.msra.mxu0 0.0
    %4398 = vmatprep.subr.mxu0 0.0
    %4399 = vmatpush2.msra.mxu0 0.0
    %4400 = vmatprep.subr.mxu0 0.0
    %4401 = vmatpush2.msra.mxu0 0.0
    %4402 = vmatprep.mubr.f32.mxu0 0.0
    %4403 = vmatmul.mubr.f32.gmra.mxu0 %v4333
    %v4404 = vpop.f32.mrf.mxu0
    %v4405 = vadd.f32 0.0, %v4404
    %v4406 = vpop.f32.mrf.mxu0
    %4407 = vmatprep.mubr.f32.mxu0 0.0
    %4408 = vmatmul.mubr.f32.gmra.mxu0 %v4336
    %v4409 = vpop.f32.mrf.mxu0
    %v4410 = vadd.f32 0.0, %v4409
    %v4411 = vpop.f32.mrf.mxu0
    %4412 = vdwg.mxu0
    %s4413 = scalar_lea.vmem %s3, 56
    %v4414 = vld [vmem:[%s4413] sm:$0xff]
    %v4416 = vsel %vm334, %v4405, 0
    %v4419 = vsel %vm334, %v4410, 0
    %4421 = vmatprep.subr.mxu0 0.0
    %4422 = vmatpush1.msra.mxu0 0.0
    %4423 = vmatprep.subr.mxu0 0.0
    %4424 = vmatpush1.msra.mxu0 0.0
    %4425 = vmatprep.subr.mxu0 0.0
    %4426 = vmatpush1.msra.mxu0 0.0
    %4427 = vmatprep.subr.mxu0 0.0
    %4428 = vmatpush1.msra.mxu0 0.0
    %4429 = vmatprep.subr.mxu0 0.0
    %4430 = vmatpush1.msra.mxu0 0.0
    %4431 = vmatprep.subr.mxu0 0.0
    %4432 = vmatpush1.msra.mxu0 0.0
    %4433 = vmatprep.subr.mxu0 0.0
    %4434 = vmatpush1.msra.mxu0 0.0
    %4435 = vmatprep.subr.mxu0 0.0
    %4436 = vmatpush1.msra.mxu0 0.0
    %4437 = vmatprep.subr.mxu0 0.0
    %4438 = vmatpush1.msra.mxu0 0.0
    %4439 = vmatprep.subr.mxu0 0.0
    %4440 = vmatpush1.msra.mxu0 0.0
    %4441 = vmatprep.subr.mxu0 0.0
    %4442 = vmatpush1.msra.mxu0 0.0
    %4443 = vmatprep.subr.mxu0 0.0
    %4444 = vmatpush1.msra.mxu0 0.0
    %4445 = vmatprep.subr.mxu0 0.0
    %4446 = vmatpush1.msra.mxu0 0.0
    %4447 = vmatprep.subr.mxu0 0.0
    %4448 = vmatpush1.msra.mxu0 0.0
    %4449 = vmatprep.subr.mxu0 0.0
    %4450 = vmatpush1.msra.mxu0 0.0
    %4451 = vmatprep.subr.mxu0 0.0
    %4452 = vmatpush1.msra.mxu0 %v4414
    %4453 = vmatprep.subr.mxu0 0.0
    %4454 = vmatpush2.msra.mxu0 0.0
    %4455 = vmatprep.subr.mxu0 0.0
    %4456 = vmatpush2.msra.mxu0 0.0
    %4457 = vmatprep.subr.mxu0 0.0
    %4458 = vmatpush2.msra.mxu0 0.0
    %4459 = vmatprep.subr.mxu0 0.0
    %4460 = vmatpush2.msra.mxu0 0.0
    %4461 = vmatprep.subr.mxu0 0.0
    %4462 = vmatpush2.msra.mxu0 0.0
    %4463 = vmatprep.subr.mxu0 0.0
    %4464 = vmatpush2.msra.mxu0 0.0
    %4465 = vmatprep.subr.mxu0 0.0
    %4466 = vmatpush2.msra.mxu0 0.0
    %4467 = vmatprep.subr.mxu0 0.0
    %4468 = vmatpush2.msra.mxu0 0.0
    %4469 = vmatprep.subr.mxu0 0.0
    %4470 = vmatpush2.msra.mxu0 0.0
    %4471 = vmatprep.subr.mxu0 0.0
    %4472 = vmatpush2.msra.mxu0 0.0
    %4473 = vmatprep.subr.mxu0 0.0
    %4474 = vmatpush2.msra.mxu0 0.0
    %4475 = vmatprep.subr.mxu0 0.0
    %4476 = vmatpush2.msra.mxu0 0.0
    %4477 = vmatprep.subr.mxu0 0.0
    %4478 = vmatpush2.msra.mxu0 0.0
    %4479 = vmatprep.subr.mxu0 0.0
    %4480 = vmatpush2.msra.mxu0 0.0
    %4481 = vmatprep.subr.mxu0 0.0
    %4482 = vmatpush2.msra.mxu0 0.0
    %4483 = vmatprep.subr.mxu0 0.0
    %4484 = vmatpush2.msra.mxu0 0.0
    %4485 = vmatprep.mubr.f32.mxu0 0.0
    %4486 = vmatmul.mubr.f32.gmra.mxu0 %v4416
    %v4487 = vpop.f32.mrf.mxu0
    %v4488 = vadd.f32 0.0, %v4487
    %v4489 = vpop.f32.mrf.mxu0
    %4490 = vmatprep.mubr.f32.mxu0 0.0
    %4491 = vmatmul.mubr.f32.gmra.mxu0 %v4419
    %v4492 = vpop.f32.mrf.mxu0
    %v4493 = vadd.f32 0.0, %v4492
    %v4494 = vpop.f32.mrf.mxu0
    %4495 = vdwg.mxu0
    %v4496 = vadd.f32 %v3981, %v4488
    %v4497 = vadd.f32 %v3982, %v4493
    %v4498 = vsel %vm49, %v4496, 0.0
    %4499 = vadd.xlane.f32.xlu0 %v4498
    %v4500 = vpop.xlane.xlu0 %4499
    %v4501 = vsel %vm49, %v4497, 0.0
    %4502 = vadd.xlane.f32.xlu0 %v4501
    %v4503 = vpop.xlane.xlu0 %4502
    %v4504 = vmul.f32 %v4500, %v56
    %v4505 = vmul.f32 %v4503, %v56
    %v4506 = vsub.f32 %v4496, %v4504
    %v4507 = vsub.f32 %v4497, %v4505
    %v4508 = vmul.f32 %v4506, %v4506
    %v4509 = vmul.f32 %v4507, %v4507
    %v4510 = vsel %vm49, %v4508, 0.0
    %4511 = vadd.xlane.f32.xlu0 %v4510
    %v4512 = vpop.xlane.xlu0 %4511
    %v4513 = vsel %vm49, %v4509, 0.0
    %4514 = vadd.xlane.f32.xlu0 %v4513
    %v4515 = vpop.xlane.xlu0 %4514
    %v4516 = vmul.f32 %v4512, %v56
    %v4517 = vmul.f32 %v4515, %v56
    %v4518 = vadd.f32 %v4516, 1e-05
    %v4519 = vadd.f32 %v4517, 1e-05
    %v4520 = vrsqrt.pop %v4518
    %v4521 = vrsqrt.pop %v4519
    %v4522 = vmul.f32 %v4506, %v4520
    %v4523 = vmul.f32 %v4507, %v4521
    %v4524 = vlaneseq
    %v4525 = vshrl.u32 %v4524, 7
    %v4526 = vsub.s32 2, %v4525
    %v4527 = vrot.slane %v2393, %v4526
    %v4528 = vmul.f32 %v4522, %v4527
    %v4529 = vmul.f32 %v4523, %v4527
    %v4530 = vlaneseq
    %v4531 = vshrl.u32 %v4530, 7
    %v4532 = vsub.s32 3, %v4531
    %v4533 = vrot.slane %v2393, %v4532
    %v4534 = vadd.f32 %v4528, %v4533
    %v4535 = vadd.f32 %v4529, %v4533
    %s4536 = scalar_lea.vmem %s4, 32
    %v4537 = vld [vmem:[%s4536] sm:$0xff]
    %v4538 = vld [vmem:[%s4536 + $0x8] sm:$0xff]
    %v4539 = vld [vmem:[%s4536 + $0x10] sm:$0xff]
    %v4540 = vld [vmem:[%s4536 + $0x18] sm:$0xff]
    %v4541 = vld [vmem:[%s6 + $0x1] sm:$0x1]
    %v4542 = vlaneseq
    %v4543 = vshrl.u32 %v4542, 7
    %v4544 = vsub.s32 0, %v4543
    %v4545 = vrot.slane %v4541, %v4544
    %v4547 = vsel %vm49, %v4534, 0
    %v4550 = vsel %vm49, %v4535, 0
    %4552 = vmatprep.subr.mxu0 0.0
    %4553 = vmatpush1.msra.mxu0 0.0
    %4554 = vmatprep.subr.mxu0 0.0
    %4555 = vmatpush1.msra.mxu0 0.0
    %4556 = vmatprep.subr.mxu0 0.0
    %4557 = vmatpush1.msra.mxu0 0.0
    %4558 = vmatprep.subr.mxu0 0.0
    %4559 = vmatpush1.msra.mxu0 0.0
    %4560 = vmatprep.subr.mxu0 0.0
    %4561 = vmatpush1.msra.mxu0 0.0
    %4562 = vmatprep.subr.mxu0 0.0
    %4563 = vmatpush1.msra.mxu0 0.0
    %4564 = vmatprep.subr.mxu0 0.0
    %4565 = vmatpush1.msra.mxu0 0.0
    %4566 = vmatprep.subr.mxu0 0.0
    %4567 = vmatpush1.msra.mxu0 0.0
    %4568 = vmatprep.subr.mxu0 0.0
    %4569 = vmatpush1.msra.mxu0 0.0
    %4570 = vmatprep.subr.mxu0 0.0
    %4571 = vmatpush1.msra.mxu0 0.0
    %4572 = vmatprep.subr.mxu0 0.0
    %4573 = vmatpush1.msra.mxu0 0.0
    %4574 = vmatprep.subr.mxu0 0.0
    %4575 = vmatpush1.msra.mxu0 0.0
    %4576 = vmatprep.subr.mxu0 0.0
    %4577 = vmatpush1.msra.mxu0 %v4540
    %4578 = vmatprep.subr.mxu0 0.0
    %4579 = vmatpush1.msra.mxu0 %v4539
    %4580 = vmatprep.subr.mxu0 0.0
    %4581 = vmatpush1.msra.mxu0 %v4538
    %4582 = vmatprep.subr.mxu0 0.0
    %4583 = vmatpush1.msra.mxu0 %v4537
    %4584 = vmatprep.subr.mxu0 0.0
    %4585 = vmatpush2.msra.mxu0 0.0
    %4586 = vmatprep.subr.mxu0 0.0
    %4587 = vmatpush2.msra.mxu0 0.0
    %4588 = vmatprep.subr.mxu0 0.0
    %4589 = vmatpush2.msra.mxu0 0.0
    %4590 = vmatprep.subr.mxu0 0.0
    %4591 = vmatpush2.msra.mxu0 0.0
    %4592 = vmatprep.subr.mxu0 0.0
    %4593 = vmatpush2.msra.mxu0 0.0
    %4594 = vmatprep.subr.mxu0 0.0
    %4595 = vmatpush2.msra.mxu0 0.0
    %4596 = vmatprep.subr.mxu0 0.0
    %4597 = vmatpush2.msra.mxu0 0.0
    %4598 = vmatprep.subr.mxu0 0.0
    %4599 = vmatpush2.msra.mxu0 0.0
    %4600 = vmatprep.subr.mxu0 0.0
    %4601 = vmatpush2.msra.mxu0 0.0
    %4602 = vmatprep.subr.mxu0 0.0
    %4603 = vmatpush2.msra.mxu0 0.0
    %4604 = vmatprep.subr.mxu0 0.0
    %4605 = vmatpush2.msra.mxu0 0.0
    %4606 = vmatprep.subr.mxu0 0.0
    %4607 = vmatpush2.msra.mxu0 0.0
    %4608 = vmatprep.subr.mxu0 0.0
    %4609 = vmatpush2.msra.mxu0 0.0
    %4610 = vmatprep.subr.mxu0 0.0
    %4611 = vmatpush2.msra.mxu0 0.0
    %4612 = vmatprep.subr.mxu0 0.0
    %4613 = vmatpush2.msra.mxu0 0.0
    %4614 = vmatprep.subr.mxu0 0.0
    %4615 = vmatpush2.msra.mxu0 0.0
    %4616 = vmatprep.mubr.f32.mxu0 0.0
    %4617 = vmatmul.mubr.f32.gmra.mxu0 %v4547
    %v4618 = vpop.f32.mrf.mxu0
    %v4619 = vadd.f32 %v4545, %v4618
    %v4620 = vpop.f32.mrf.mxu0
    %4621 = vmatprep.mubr.f32.mxu0 0.0
    %4622 = vmatmul.mubr.f32.gmra.mxu0 %v4550
    %v4623 = vpop.f32.mrf.mxu0
    %v4624 = vadd.f32 %v4545, %v4623
    %v4625 = vpop.f32.mrf.mxu0
    %4626 = vdwg.mxu0
    %v4627 = vmul.f32 %v4619, 0.5
    %v4628 = vmul.f32 %v4624, 0.5
    %v4629 = vmul.f32 %v4619, 0.70710677
    %v4630 = vmul.f32 %v4624, 0.70710677
    %v4631 = verf.f32.pop %v4629
    %v4632 = verf.f32.pop %v4630
    %v4633 = vadd.f32 %v4631, 1.0
    %v4634 = vadd.f32 %v4632, 1.0
    %v4635 = vmul.f32 %v4627, %v4633
    %v4636 = vmul.f32 %v4628, %v4634
    %s4637 = scalar_lea.vmem %s5, 128
    %v4638 = vld [vmem:[%s4637] sm:$0xff]
    %v4639 = vld [vmem:[%s4637 + $0x8] sm:$0xff]
    %v4640 = vld [vmem:[%s4637 + $0x10] sm:$0xff]
    %v4641 = vld [vmem:[%s4637 + $0x18] sm:$0xff]
    %v4642 = vld [vmem:[%s4637 + $0x20] sm:$0xff]
    %v4643 = vld [vmem:[%s4637 + $0x28] sm:$0xff]
    %v4644 = vld [vmem:[%s4637 + $0x30] sm:$0xff]
    %v4645 = vld [vmem:[%s4637 + $0x38] sm:$0xff]
    %v4646 = vld [vmem:[%s4637 + $0x40] sm:$0xff]
    %v4647 = vld [vmem:[%s4637 + $0x48] sm:$0xff]
    %v4648 = vld [vmem:[%s4637 + $0x50] sm:$0xff]
    %v4649 = vld [vmem:[%s4637 + $0x58] sm:$0xff]
    %v4650 = vld [vmem:[%s4637 + $0x60] sm:$0xff]
    %v4651 = vld [vmem:[%s4637 + $0x68] sm:$0xff]
    %v4652 = vld [vmem:[%s4637 + $0x70] sm:$0xff]
    %v4653 = vld [vmem:[%s4637 + $0x78] sm:$0xff]
    %4654 = vmatprep.subr.mxu0 0.0
    %4655 = vmatpush1.msra.mxu0 %v4653
    %4656 = vmatprep.subr.mxu0 0.0
    %4657 = vmatpush1.msra.mxu0 %v4652
    %4658 = vmatprep.subr.mxu0 0.0
    %4659 = vmatpush1.msra.mxu0 %v4651
    %4660 = vmatprep.subr.mxu0 0.0
    %4661 = vmatpush1.msra.mxu0 %v4650
    %4662 = vmatprep.subr.mxu0 0.0
    %4663 = vmatpush1.msra.mxu0 %v4649
    %4664 = vmatprep.subr.mxu0 0.0
    %4665 = vmatpush1.msra.mxu0 %v4648
    %4666 = vmatprep.subr.mxu0 0.0
    %4667 = vmatpush1.msra.mxu0 %v4647
    %4668 = vmatprep.subr.mxu0 0.0
    %4669 = vmatpush1.msra.mxu0 %v4646
    %4670 = vmatprep.subr.mxu0 0.0
    %4671 = vmatpush1.msra.mxu0 %v4645
    %4672 = vmatprep.subr.mxu0 0.0
    %4673 = vmatpush1.msra.mxu0 %v4644
    %4674 = vmatprep.subr.mxu0 0.0
    %4675 = vmatpush1.msra.mxu0 %v4643
    %4676 = vmatprep.subr.mxu0 0.0
    %4677 = vmatpush1.msra.mxu0 %v4642
    %4678 = vmatprep.subr.mxu0 0.0
    %4679 = vmatpush1.msra.mxu0 %v4641
    %4680 = vmatprep.subr.mxu0 0.0
    %4681 = vmatpush1.msra.mxu0 %v4640
    %4682 = vmatprep.subr.mxu0 0.0
    %4683 = vmatpush1.msra.mxu0 %v4639
    %4684 = vmatprep.subr.mxu0 0.0
    %4685 = vmatpush1.msra.mxu0 %v4638
    %4686 = vmatprep.subr.mxu0 0.0
    %4687 = vmatpush2.msra.mxu0 0.0
    %4688 = vmatprep.subr.mxu0 0.0
    %4689 = vmatpush2.msra.mxu0 0.0
    %4690 = vmatprep.subr.mxu0 0.0
    %4691 = vmatpush2.msra.mxu0 0.0
    %4692 = vmatprep.subr.mxu0 0.0
    %4693 = vmatpush2.msra.mxu0 0.0
    %4694 = vmatprep.subr.mxu0 0.0
    %4695 = vmatpush2.msra.mxu0 0.0
    %4696 = vmatprep.subr.mxu0 0.0
    %4697 = vmatpush2.msra.mxu0 0.0
    %4698 = vmatprep.subr.mxu0 0.0
    %4699 = vmatpush2.msra.mxu0 0.0
    %4700 = vmatprep.subr.mxu0 0.0
    %4701 = vmatpush2.msra.mxu0 0.0
    %4702 = vmatprep.subr.mxu0 0.0
    %4703 = vmatpush2.msra.mxu0 0.0
    %4704 = vmatprep.subr.mxu0 0.0
    %4705 = vmatpush2.msra.mxu0 0.0
    %4706 = vmatprep.subr.mxu0 0.0
    %4707 = vmatpush2.msra.mxu0 0.0
    %4708 = vmatprep.subr.mxu0 0.0
    %4709 = vmatpush2.msra.mxu0 0.0
    %4710 = vmatprep.subr.mxu0 0.0
    %4711 = vmatpush2.msra.mxu0 0.0
    %4712 = vmatprep.subr.mxu0 0.0
    %4713 = vmatpush2.msra.mxu0 0.0
    %4714 = vmatprep.subr.mxu0 0.0
    %4715 = vmatpush2.msra.mxu0 0.0
    %4716 = vmatprep.subr.mxu0 0.0
    %4717 = vmatpush2.msra.mxu0 0.0
    %4718 = vmatprep.mubr.f32.mxu0 0.0
    %4719 = vmatmul.mubr.f32.gmra.mxu0 %v4635
    %v4720 = vpop.f32.mrf.mxu0
    %v4721 = vadd.f32 0.0, %v4720
    %v4722 = vpop.f32.mrf.mxu0
    %4723 = vmatprep.mubr.f32.mxu0 0.0
    %4724 = vmatmul.mubr.f32.gmra.mxu0 %v4636
    %v4725 = vpop.f32.mrf.mxu0
    %v4726 = vadd.f32 0.0, %v4725
    %v4727 = vpop.f32.mrf.mxu0
    %4728 = vdwg.mxu0
    %v4729 = vadd.f32 %v4496, %v4721
    %v4730 = vadd.f32 %v4497, %v4726
    %v4731 = vlaneseq
    %v4732 = vshrl.u32 %v4731, 7
    %v4733 = vsub.s32 4, %v4732
    %v4734 = vrot.slane %v2393, %v4733
    %v4735 = vadd.f32 %v4729, %v4734
    %v4736 = vadd.f32 %v4730, %v4734
    %s4737 = scalar_lea.vmem %s1, 16
    %v4738 = vld [vmem:[%s4737] sm:$0x1f]
    %v4739 = vsel %vm49, %v4735, 0.0
    %4740 = vadd.xlane.f32.xlu0 %v4739
    %v4741 = vpop.xlane.xlu0 %4740
    %v4742 = vsel %vm49, %v4736, 0.0
    %4743 = vadd.xlane.f32.xlu0 %v4742
    %v4744 = vpop.xlane.xlu0 %4743
    %v4745 = vmul.f32 %v4741, %v56
    %v4746 = vmul.f32 %v4744, %v56
    %v4747 = vsub.f32 %v4735, %v4745
    %v4748 = vsub.f32 %v4736, %v4746
    %v4749 = vmul.f32 %v4747, %v4747
    %v4750 = vmul.f32 %v4748, %v4748
    %v4751 = vsel %vm49, %v4749, 0.0
    %4752 = vadd.xlane.f32.xlu0 %v4751
    %v4753 = vpop.xlane.xlu0 %4752
    %v4754 = vsel %vm49, %v4750, 0.0
    %4755 = vadd.xlane.f32.xlu0 %v4754
    %v4756 = vpop.xlane.xlu0 %4755
    %v4757 = vmul.f32 %v4753, %v56
    %v4758 = vmul.f32 %v4756, %v56
    %v4759 = vadd.f32 %v4757, 1e-05
    %v4760 = vadd.f32 %v4758, 1e-05
    %v4761 = vrsqrt.pop %v4759
    %v4762 = vrsqrt.pop %v4760
    %v4763 = vmul.f32 %v4747, %v4761
    %v4764 = vmul.f32 %v4748, %v4762
    %v4765 = vlaneseq
    %v4766 = vshrl.u32 %v4765, 7
    %v4767 = vsub.s32 0, %v4766
    %v4768 = vrot.slane %v4738, %v4767
    %v4769 = vmul.f32 %v4763, %v4768
    %v4770 = vmul.f32 %v4764, %v4768
    %v4771 = vlaneseq
    %v4772 = vshrl.u32 %v4771, 7
    %v4773 = vsub.s32 1, %v4772
    %v4774 = vrot.slane %v4738, %v4773
    %v4775 = vadd.f32 %v4769, %v4774
    %v4776 = vadd.f32 %v4770, %v4774
    %s4777 = scalar_lea.vmem %s2, 768
    %v4778 = vld [vmem:[%s4777] sm:$0xff]
    %v4779 = vld [vmem:[%s4777 + $0x8] sm:$0xff]
    %v4780 = vld [vmem:[%s4777 + $0x10] sm:$0xff]
    %v4781 = vld [vmem:[%s4777 + $0x18] sm:$0xff]
    %v4783 = vsel %vm49, %v4775, 0
    %v4786 = vsel %vm49, %v4776, 0
    %4788 = vmatprep.subr.mxu0 0.0
    %4789 = vmatpush1.msra.mxu0 0.0
    %4790 = vmatprep.subr.mxu0 0.0
    %4791 = vmatpush1.msra.mxu0 0.0
    %4792 = vmatprep.subr.mxu0 0.0
    %4793 = vmatpush1.msra.mxu0 0.0
    %4794 = vmatprep.subr.mxu0 0.0
    %4795 = vmatpush1.msra.mxu0 0.0
    %4796 = vmatprep.subr.mxu0 0.0
    %4797 = vmatpush1.msra.mxu0 0.0
    %4798 = vmatprep.subr.mxu0 0.0
    %4799 = vmatpush1.msra.mxu0 0.0
    %4800 = vmatprep.subr.mxu0 0.0
    %4801 = vmatpush1.msra.mxu0 0.0
    %4802 = vmatprep.subr.mxu0 0.0
    %4803 = vmatpush1.msra.mxu0 0.0
    %4804 = vmatprep.subr.mxu0 0.0
    %4805 = vmatpush1.msra.mxu0 0.0
    %4806 = vmatprep.subr.mxu0 0.0
    %4807 = vmatpush1.msra.mxu0 0.0
    %4808 = vmatprep.subr.mxu0 0.0
    %4809 = vmatpush1.msra.mxu0 0.0
    %4810 = vmatprep.subr.mxu0 0.0
    %4811 = vmatpush1.msra.mxu0 0.0
    %4812 = vmatprep.subr.mxu0 0.0
    %4813 = vmatpush1.msra.mxu0 %v4781
    %4814 = vmatprep.subr.mxu0 0.0
    %4815 = vmatpush1.msra.mxu0 %v4780
    %4816 = vmatprep.subr.mxu0 0.0
    %4817 = vmatpush1.msra.mxu0 %v4779
    %4818 = vmatprep.subr.mxu0 0.0
    %4819 = vmatpush1.msra.mxu0 %v4778
    %4820 = vmatprep.subr.mxu0 0.0
    %4821 = vmatpush2.msra.mxu0 0.0
    %4822 = vmatprep.subr.mxu0 0.0
    %4823 = vmatpush2.msra.mxu0 0.0
    %4824 = vmatprep.subr.mxu0 0.0
    %4825 = vmatpush2.msra.mxu0 0.0
    %4826 = vmatprep.subr.mxu0 0.0
    %4827 = vmatpush2.msra.mxu0 0.0
    %4828 = vmatprep.subr.mxu0 0.0
    %4829 = vmatpush2.msra.mxu0 0.0
    %4830 = vmatprep.subr.mxu0 0.0
    %4831 = vmatpush2.msra.mxu0 0.0
    %4832 = vmatprep.subr.mxu0 0.0
    %4833 = vmatpush2.msra.mxu0 0.0
    %4834 = vmatprep.subr.mxu0 0.0
    %4835 = vmatpush2.msra.mxu0 0.0
    %4836 = vmatprep.subr.mxu0 0.0
    %4837 = vmatpush2.msra.mxu0 0.0
    %4838 = vmatprep.subr.mxu0 0.0
    %4839 = vmatpush2.msra.mxu0 0.0
    %4840 = vmatprep.subr.mxu0 0.0
    %4841 = vmatpush2.msra.mxu0 0.0
    %4842 = vmatprep.subr.mxu0 0.0
    %4843 = vmatpush2.msra.mxu0 0.0
    %4844 = vmatprep.subr.mxu0 0.0
    %4845 = vmatpush2.msra.mxu0 0.0
    %4846 = vmatprep.subr.mxu0 0.0
    %4847 = vmatpush2.msra.mxu0 0.0
    %4848 = vmatprep.subr.mxu0 0.0
    %4849 = vmatpush2.msra.mxu0 0.0
    %4850 = vmatprep.subr.mxu0 0.0
    %4851 = vmatpush2.msra.mxu0 0.0
    %4852 = vmatprep.mubr.f32.mxu0 0.0
    %4853 = vmatmul.mubr.f32.gmra.mxu0 %v4783
    %v4854 = vpop.f32.mrf.mxu0
    %v4855 = vadd.f32 0.0, %v4854
    %v4856 = vpop.f32.mrf.mxu0
    %4857 = vmatprep.mubr.f32.mxu0 0.0
    %4858 = vmatmul.mubr.f32.gmra.mxu0 %v4786
    %v4859 = vpop.f32.mrf.mxu0
    %v4860 = vadd.f32 0.0, %v4859
    %v4861 = vpop.f32.mrf.mxu0
    %4862 = vdwg.mxu0
    %s4863 = scalar_lea.vmem %s2, 896
    %v4864 = vld [vmem:[%s4863] sm:$0xff]
    %v4865 = vld [vmem:[%s4863 + $0x8] sm:$0xff]
    %v4866 = vld [vmem:[%s4863 + $0x10] sm:$0xff]
    %v4867 = vld [vmem:[%s4863 + $0x18] sm:$0xff]
    %4868 = vmatprep.subr.mxu0 0.0
    %4869 = vmatpush1.msra.mxu0 0.0
    %4870 = vmatprep.subr.mxu0 0.0
    %4871 = vmatpush1.msra.mxu0 0.0
    %4872 = vmatprep.subr.mxu0 0.0
    %4873 = vmatpush1.msra.mxu0 0.0
    %4874 = vmatprep.subr.mxu0 0.0
    %4875 = vmatpush1.msra.mxu0 0.0
    %4876 = vmatprep.subr.mxu0 0.0
    %4877 = vmatpush1.msra.mxu0 0.0
    %4878 = vmatprep.subr.mxu0 0.0
    %4879 = vmatpush1.msra.mxu0 0.0
    %4880 = vmatprep.subr.mxu0 0.0
    %4881 = vmatpush1.msra.mxu0 0.0
    %4882 = vmatprep.subr.mxu0 0.0
    %4883 = vmatpush1.msra.mxu0 0.0
    %4884 = vmatprep.subr.mxu0 0.0
    %4885 = vmatpush1.msra.mxu0 0.0
    %4886 = vmatprep.subr.mxu0 0.0
    %4887 = vmatpush1.msra.mxu0 0.0
    %4888 = vmatprep.subr.mxu0 0.0
    %4889 = vmatpush1.msra.mxu0 0.0
    %4890 = vmatprep.subr.mxu0 0.0
    %4891 = vmatpush1.msra.mxu0 0.0
    %4892 = vmatprep.subr.mxu0 0.0
    %4893 = vmatpush1.msra.mxu0 %v4867
    %4894 = vmatprep.subr.mxu0 0.0
    %4895 = vmatpush1.msra.mxu0 %v4866
    %4896 = vmatprep.subr.mxu0 0.0
    %4897 = vmatpush1.msra.mxu0 %v4865
    %4898 = vmatprep.subr.mxu0 0.0
    %4899 = vmatpush1.msra.mxu0 %v4864
    %4900 = vmatprep.subr.mxu0 0.0
    %4901 = vmatpush2.msra.mxu0 0.0
    %4902 = vmatprep.subr.mxu0 0.0
    %4903 = vmatpush2.msra.mxu0 0.0
    %4904 = vmatprep.subr.mxu0 0.0
    %4905 = vmatpush2.msra.mxu0 0.0
    %4906 = vmatprep.subr.mxu0 0.0
    %4907 = vmatpush2.msra.mxu0 0.0
    %4908 = vmatprep.subr.mxu0 0.0
    %4909 = vmatpush2.msra.mxu0 0.0
    %4910 = vmatprep.subr.mxu0 0.0
    %4911 = vmatpush2.msra.mxu0 0.0
    %4912 = vmatprep.subr.mxu0 0.0
    %4913 = vmatpush2.msra.mxu0 0.0
    %4914 = vmatprep.subr.mxu0 0.0
    %4915 = vmatpush2.msra.mxu0 0.0
    %4916 = vmatprep.subr.mxu0 0.0
    %4917 = vmatpush2.msra.mxu0 0.0
    %4918 = vmatprep.subr.mxu0 0.0
    %4919 = vmatpush2.msra.mxu0 0.0
    %4920 = vmatprep.subr.mxu0 0.0
    %4921 = vmatpush2.msra.mxu0 0.0
    %4922 = vmatprep.subr.mxu0 0.0
    %4923 = vmatpush2.msra.mxu0 0.0
    %4924 = vmatprep.subr.mxu0 0.0
    %4925 = vmatpush2.msra.mxu0 0.0
    %4926 = vmatprep.subr.mxu0 0.0
    %4927 = vmatpush2.msra.mxu0 0.0
    %4928 = vmatprep.subr.mxu0 0.0
    %4929 = vmatpush2.msra.mxu0 0.0
    %4930 = vmatprep.subr.mxu0 0.0
    %4931 = vmatpush2.msra.mxu0 0.0
    %4932 = vmatprep.mubr.f32.mxu0 0.0
    %4933 = vmatmul.mubr.f32.gmra.mxu0 %v4783
    %v4934 = vpop.f32.mrf.mxu0
    %v4935 = vadd.f32 0.0, %v4934
    %v4936 = vpop.f32.mrf.mxu0
    %4937 = vmatprep.mubr.f32.mxu0 0.0
    %4938 = vmatmul.mubr.f32.gmra.mxu0 %v4786
    %v4939 = vpop.f32.mrf.mxu0
    %v4940 = vadd.f32 0.0, %v4939
    %v4941 = vpop.f32.mrf.mxu0
    %4942 = vdwg.mxu0
    %s4943 = scalar_lea.vmem %s2, 1024
    %v4944 = vld [vmem:[%s4943] sm:$0xff]
    %v4945 = vld [vmem:[%s4943 + $0x8] sm:$0xff]
    %v4946 = vld [vmem:[%s4943 + $0x10] sm:$0xff]
    %v4947 = vld [vmem:[%s4943 + $0x18] sm:$0xff]
    %4948 = vmatprep.subr.mxu0 0.0
    %4949 = vmatpush1.msra.mxu0 0.0
    %4950 = vmatprep.subr.mxu0 0.0
    %4951 = vmatpush1.msra.mxu0 0.0
    %4952 = vmatprep.subr.mxu0 0.0
    %4953 = vmatpush1.msra.mxu0 0.0
    %4954 = vmatprep.subr.mxu0 0.0
    %4955 = vmatpush1.msra.mxu0 0.0
    %4956 = vmatprep.subr.mxu0 0.0
    %4957 = vmatpush1.msra.mxu0 0.0
    %4958 = vmatprep.subr.mxu0 0.0
    %4959 = vmatpush1.msra.mxu0 0.0
    %4960 = vmatprep.subr.mxu0 0.0
    %4961 = vmatpush1.msra.mxu0 0.0
    %4962 = vmatprep.subr.mxu0 0.0
    %4963 = vmatpush1.msra.mxu0 0.0
    %4964 = vmatprep.subr.mxu0 0.0
    %4965 = vmatpush1.msra.mxu0 0.0
    %4966 = vmatprep.subr.mxu0 0.0
    %4967 = vmatpush1.msra.mxu0 0.0
    %4968 = vmatprep.subr.mxu0 0.0
    %4969 = vmatpush1.msra.mxu0 0.0
    %4970 = vmatprep.subr.mxu0 0.0
    %4971 = vmatpush1.msra.mxu0 0.0
    %4972 = vmatprep.subr.mxu0 0.0
    %4973 = vmatpush1.msra.mxu0 %v4947
    %4974 = vmatprep.subr.mxu0 0.0
    %4975 = vmatpush1.msra.mxu0 %v4946
    %4976 = vmatprep.subr.mxu0 0.0
    %4977 = vmatpush1.msra.mxu0 %v4945
    %4978 = vmatprep.subr.mxu0 0.0
    %4979 = vmatpush1.msra.mxu0 %v4944
    %4980 = vmatprep.subr.mxu0 0.0
    %4981 = vmatpush2.msra.mxu0 0.0
    %4982 = vmatprep.subr.mxu0 0.0
    %4983 = vmatpush2.msra.mxu0 0.0
    %4984 = vmatprep.subr.mxu0 0.0
    %4985 = vmatpush2.msra.mxu0 0.0
    %4986 = vmatprep.subr.mxu0 0.0
    %4987 = vmatpush2.msra.mxu0 0.0
    %4988 = vmatprep.subr.mxu0 0.0
    %4989 = vmatpush2.msra.mxu0 0.0
    %4990 = vmatprep.subr.mxu0 0.0
    %4991 = vmatpush2.msra.mxu0 0.0
    %4992 = vmatprep.subr.mxu0 0.0
    %4993 = vmatpush2.msra.mxu0 0.0
    %4994 = vmatprep.subr.mxu0 0.0
    %4995 = vmatpush2.msra.mxu0 0.0
    %4996 = vmatprep.subr.mxu0 0.0
    %4997 = vmatpush2.msra.mxu0 0.0
    %4998 = vmatprep.subr.mxu0 0.0
    %4999 = vmatpush2.msra.mxu0 0.0
    %5000 = vmatprep.subr.mxu0 0.0
    %5001 = vmatpush2.msra.mxu0 0.0
    %5002 = vmatprep.subr.mxu0 0.0
    %5003 = vmatpush2.msra.mxu0 0.0
    %5004 = vmatprep.subr.mxu0 0.0
    %5005 = vmatpush2.msra.mxu0 0.0
    %5006 = vmatprep.subr.mxu0 0.0
    %5007 = vmatpush2.msra.mxu0 0.0
    %5008 = vmatprep.subr.mxu0 0.0
    %5009 = vmatpush2.msra.mxu0 0.0
    %5010 = vmatprep.subr.mxu0 0.0
    %5011 = vmatpush2.msra.mxu0 0.0
    %5012 = vmatprep.mubr.f32.mxu0 0.0
    %5013 = vmatmul.mubr.f32.gmra.mxu0 %v4783
    %v5014 = vpop.f32.mrf.mxu0
    %v5015 = vadd.f32 0.0, %v5014
    %v5016 = vpop.f32.mrf.mxu0
    %5017 = vmatprep.mubr.f32.mxu0 0.0
    %5018 = vmatmul.mubr.f32.gmra.mxu0 %v4786
    %v5019 = vpop.f32.mrf.mxu0
    %v5020 = vadd.f32 0.0, %v5019
    %v5021 = vpop.f32.mrf.mxu0
    %5022 = vdwg.mxu0
    %v5024 = vsel %vm334, %v4855, 0
    %v5027 = vsel %vm334, %v4860, 0
    %v5030 = vsel %vm334, %v4935, 0
    %v5033 = vsel %vm334, %v4940, 0
    %5035 = vmatprep.subr.mxu0 0.0
    %5036 = vmatpush1.xpose.msra.mxu0 0.0
    %5037 = vmatprep.subr.mxu0 0.0
    %5038 = vmatpush1.xpose.msra.mxu0 0.0
    %5039 = vmatprep.subr.mxu0 0.0
    %5040 = vmatpush1.xpose.msra.mxu0 0.0
    %5041 = vmatprep.subr.mxu0 0.0
    %5042 = vmatpush1.xpose.msra.mxu0 0.0
    %5043 = vmatprep.subr.mxu0 0.0
    %5044 = vmatpush1.xpose.msra.mxu0 0.0
    %5045 = vmatprep.subr.mxu0 0.0
    %5046 = vmatpush1.xpose.msra.mxu0 0.0
    %5047 = vmatprep.subr.mxu0 0.0
    %5048 = vmatpush1.xpose.msra.mxu0 0.0
    %5049 = vmatprep.subr.mxu0 0.0
    %5050 = vmatpush1.xpose.msra.mxu0 0.0
    %5051 = vmatprep.subr.mxu0 0.0
    %5052 = vmatpush1.xpose.msra.mxu0 0.0
    %5053 = vmatprep.subr.mxu0 0.0
    %5054 = vmatpush1.xpose.msra.mxu0 0.0
    %5055 = vmatprep.subr.mxu0 0.0
    %5056 = vmatpush1.xpose.msra.mxu0 0.0
    %5057 = vmatprep.subr.mxu0 0.0
    %5058 = vmatpush1.xpose.msra.mxu0 0.0
    %5059 = vmatprep.subr.mxu0 0.0
    %5060 = vmatpush1.xpose.msra.mxu0 0.0
    %5061 = vmatprep.subr.mxu0 0.0
    %5062 = vmatpush1.xpose.msra.mxu0 0.0
    %5063 = vmatprep.subr.mxu0 0.0
    %5064 = vmatpush1.xpose.msra.mxu0 %v5033
    %5065 = vmatprep.subr.mxu0 0.0
    %5066 = vmatpush1.xpose.msra.mxu0 %v5030
    %5067 = vmatprep.subr.mxu0 0.0
    %5068 = vmatpush2.xpose.msra.mxu0 0.0
    %5069 = vmatprep.subr.mxu0 0.0
    %5070 = vmatpush2.xpose.msra.mxu0 0.0
    %5071 = vmatprep.subr.mxu0 0.0
    %5072 = vmatpush2.xpose.msra.mxu0 0.0
    %5073 = vmatprep.subr.mxu0 0.0
    %5074 = vmatpush2.xpose.msra.mxu0 0.0
    %5075 = vmatprep.subr.mxu0 0.0
    %5076 = vmatpush2.xpose.msra.mxu0 0.0
    %5077 = vmatprep.subr.mxu0 0.0
    %5078 = vmatpush2.xpose.msra.mxu0 0.0
    %5079 = vmatprep.subr.mxu0 0.0
    %5080 = vmatpush2.xpose.msra.mxu0 0.0
    %5081 = vmatprep.subr.mxu0 0.0
    %5082 = vmatpush2.xpose.msra.mxu0 0.0
    %5083 = vmatprep.subr.mxu0 0.0
    %5084 = vmatpush2.xpose.msra.mxu0 0.0
    %5085 = vmatprep.subr.mxu0 0.0
    %5086 = vmatpush2.xpose.msra.mxu0 0.0
    %5087 = vmatprep.subr.mxu0 0.0
    %5088 = vmatpush2.xpose.msra.mxu0 0.0
    %5089 = vmatprep.subr.mxu0 0.0
    %5090 = vmatpush2.xpose.msra.mxu0 0.0
    %5091 = vmatprep.subr.mxu0 0.0
    %5092 = vmatpush2.xpose.msra.mxu0 0.0
    %5093 = vmatprep.subr.mxu0 0.0
    %5094 = vmatpush2.xpose.msra.mxu0 0.0
    %5095 = vmatprep.subr.mxu0 0.0
    %5096 = vmatpush2.xpose.msra.mxu0 0.0
    %5097 = vmatprep.subr.mxu0 0.0
    %5098 = vmatpush2.xpose.msra.mxu0 0.0
    %5099 = vmatprep.mubr.f32.mxu0 0.0
    %5100 = vmatmul.mubr.f32.gmra.mxu0 %v5024
    %v5101 = vpop.f32.mrf.mxu0
    %v5102 = vadd.f32 %v46, %v5101
    %v5103 = vpop.f32.mrf.mxu0
    %5104 = vmatprep.mubr.f32.mxu0 0.0
    %5105 = vmatmul.mubr.f32.gmra.mxu0 %v5027
    %v5106 = vpop.f32.mrf.mxu0
    %v5107 = vadd.f32 %v47, %v5106
    %v5108 = vpop.f32.mrf.mxu0
    %5109 = vdwg.mxu0
    %v5110 = vsel %vm422, %v5102, -inf
    %5111 = vmax.xlane.f32.xlu0 %v5110
    %v5112 = vpop.xlane.xlu0 %5111
    %v5113 = vsel %vm422, %v5107, -inf
    %5114 = vmax.xlane.f32.xlu0 %v5113
    %v5115 = vpop.xlane.xlu0 %5114
    %v5116 = vsub.f32 %v5102, %v5112
    %v5117 = vsub.f32 %v5107, %v5115
    %v5118 = vmul.f32 %v5116, 1.442695
    %v5119 = vpow.pop %v5118
    %v5120 = vmul.f32 %v5117, 1.442695
    %v5121 = vpow.pop %v5120
    %v5122 = vsel %vm422, %v5119, 0.0
    %5123 = vadd.xlane.f32.xlu0 %v5122
    %v5124 = vpop.xlane.xlu0 %5123
    %v5125 = vsel %vm422, %v5121, 0.0
    %5126 = vadd.xlane.f32.xlu0 %v5125
    %v5127 = vpop.xlane.xlu0 %5126
    %v5128 = vrcp.pop %v5124
    %v5129 = vrcp.pop %v5127
    %v5130 = vmul.f32 %v5119, %v5128
    %v5131 = vmul.f32 %v5121, %v5129
    %v5133 = vsel %vm422, %v5130, 0
    %v5136 = vsel %vm422, %v5131, 0
    %5138 = vmatprep.subr.mxu0 0.0
    %5139 = vmatpush1.msra.mxu0 0.0
    %5140 = vmatprep.subr.mxu0 0.0
    %5141 = vmatpush1.msra.mxu0 0.0
    %5142 = vmatprep.subr.mxu0 0.0
    %5143 = vmatpush1.msra.mxu0 0.0
    %5144 = vmatprep.subr.mxu0 0.0
    %5145 = vmatpush1.msra.mxu0 0.0
    %5146 = vmatprep.subr.mxu0 0.0
    %5147 = vmatpush1.msra.mxu0 0.0
    %5148 = vmatprep.subr.mxu0 0.0
    %5149 = vmatpush1.msra.mxu0 0.0
    %5150 = vmatprep.subr.mxu0 0.0
    %5151 = vmatpush1.msra.mxu0 0.0
    %5152 = vmatprep.subr.mxu0 0.0
    %5153 = vmatpush1.msra.mxu0 0.0
    %5154 = vmatprep.subr.mxu0 0.0
    %5155 = vmatpush1.msra.mxu0 0.0
    %5156 = vmatprep.subr.mxu0 0.0
    %5157 = vmatpush1.msra.mxu0 0.0
    %5158 = vmatprep.subr.mxu0 0.0
    %5159 = vmatpush1.msra.mxu0 0.0
    %5160 = vmatprep.subr.mxu0 0.0
    %5161 = vmatpush1.msra.mxu0 0.0
    %5162 = vmatprep.subr.mxu0 0.0
    %5163 = vmatpush1.msra.mxu0 0.0
    %5164 = vmatprep.subr.mxu0 0.0
    %5165 = vmatpush1.msra.mxu0 0.0
    %5166 = vmatprep.subr.mxu0 0.0
    %5167 = vmatpush1.msra.mxu0 %v5020
    %5168 = vmatprep.subr.mxu0 0.0
    %5169 = vmatpush1.msra.mxu0 %v5015
    %5170 = vmatprep.subr.mxu0 0.0
    %5171 = vmatpush2.msra.mxu0 0.0
    %5172 = vmatprep.subr.mxu0 0.0
    %5173 = vmatpush2.msra.mxu0 0.0
    %5174 = vmatprep.subr.mxu0 0.0
    %5175 = vmatpush2.msra.mxu0 0.0
    %5176 = vmatprep.subr.mxu0 0.0
    %5177 = vmatpush2.msra.mxu0 0.0
    %5178 = vmatprep.subr.mxu0 0.0
    %5179 = vmatpush2.msra.mxu0 0.0
    %5180 = vmatprep.subr.mxu0 0.0
    %5181 = vmatpush2.msra.mxu0 0.0
    %5182 = vmatprep.subr.mxu0 0.0
    %5183 = vmatpush2.msra.mxu0 0.0
    %5184 = vmatprep.subr.mxu0 0.0
    %5185 = vmatpush2.msra.mxu0 0.0
    %5186 = vmatprep.subr.mxu0 0.0
    %5187 = vmatpush2.msra.mxu0 0.0
    %5188 = vmatprep.subr.mxu0 0.0
    %5189 = vmatpush2.msra.mxu0 0.0
    %5190 = vmatprep.subr.mxu0 0.0
    %5191 = vmatpush2.msra.mxu0 0.0
    %5192 = vmatprep.subr.mxu0 0.0
    %5193 = vmatpush2.msra.mxu0 0.0
    %5194 = vmatprep.subr.mxu0 0.0
    %5195 = vmatpush2.msra.mxu0 0.0
    %5196 = vmatprep.subr.mxu0 0.0
    %5197 = vmatpush2.msra.mxu0 0.0
    %5198 = vmatprep.subr.mxu0 0.0
    %5199 = vmatpush2.msra.mxu0 0.0
    %5200 = vmatprep.subr.mxu0 0.0
    %5201 = vmatpush2.msra.mxu0 0.0
    %5202 = vmatprep.mubr.f32.mxu0 0.0
    %5203 = vmatmul.mubr.f32.gmra.mxu0 %v5133
    %v5204 = vpop.f32.mrf.mxu0
    %v5205 = vadd.f32 0.0, %v5204
    %v5206 = vpop.f32.mrf.mxu0
    %5207 = vmatprep.mubr.f32.mxu0 0.0
    %5208 = vmatmul.mubr.f32.gmra.mxu0 %v5136
    %v5209 = vpop.f32.mrf.mxu0
    %v5210 = vadd.f32 0.0, %v5209
    %v5211 = vpop.f32.mrf.mxu0
    %5212 = vdwg.mxu0
    %s5213 = scalar_lea.vmem %s3, 64
    %v5214 = vld [vmem:[%s5213] sm:$0xff]
    %v5216 = vsel %vm334, %v5205, 0
    %v5219 = vsel %vm334, %v5210, 0
    %5221 = vmatprep.subr.mxu0 0.0
    %5222 = vmatpush1.msra.mxu0 0.0
    %5223 = vmatprep.subr.mxu0 0.0
    %5224 = vmatpush1.msra.mxu0 0.0
    %5225 = vmatprep.subr.mxu0 0.0
    %5226 = vmatpush1.msra.mxu0 0.0
    %5227 = vmatprep.subr.mxu0 0.0
    %5228 = vmatpush1.msra.mxu0 0.0
    %5229 = vmatprep.subr.mxu0 0.0
    %5230 = vmatpush1.msra.mxu0 0.0
    %5231 = vmatprep.subr.mxu0 0.0
    %5232 = vmatpush1.msra.mxu0 0.0
    %5233 = vmatprep.subr.mxu0 0.0
    %5234 = vmatpush1.msra.mxu0 0.0
    %5235 = vmatprep.subr.mxu0 0.0
    %5236 = vmatpush1.msra.mxu0 0.0
    %5237 = vmatprep.subr.mxu0 0.0
    %5238 = vmatpush1.msra.mxu0 0.0
    %5239 = vmatprep.subr.mxu0 0.0
    %5240 = vmatpush1.msra.mxu0 0.0
    %5241 = vmatprep.subr.mxu0 0.0
    %5242 = vmatpush1.msra.mxu0 0.0
    %5243 = vmatprep.subr.mxu0 0.0
    %5244 = vmatpush1.msra.mxu0 0.0
    %5245 = vmatprep.subr.mxu0 0.0
    %5246 = vmatpush1.msra.mxu0 0.0
    %5247 = vmatprep.subr.mxu0 0.0
    %5248 = vmatpush1.msra.mxu0 0.0
    %5249 = vmatprep.subr.mxu0 0.0
    %5250 = vmatpush1.msra.mxu0 0.0
    %5251 = vmatprep.subr.mxu0 0.0
    %5252 = vmatpush1.msra.mxu0 %v5214
    %5253 = vmatprep.subr.mxu0 0.0
    %5254 = vmatpush2.msra.mxu0 0.0
    %5255 = vmatprep.subr.mxu0 0.0
    %5256 = vmatpush2.msra.mxu0 0.0
    %5257 = vmatprep.subr.mxu0 0.0
    %5258 = vmatpush2.msra.mxu0 0.0
    %5259 = vmatprep.subr.mxu0 0.0
    %5260 = vmatpush2.msra.mxu0 0.0
    %5261 = vmatprep.subr.mxu0 0.0
    %5262 = vmatpush2.msra.mxu0 0.0
    %5263 = vmatprep.subr.mxu0 0.0
    %5264 = vmatpush2.msra.mxu0 0.0
    %5265 = vmatprep.subr.mxu0 0.0
    %5266 = vmatpush2.msra.mxu0 0.0
    %5267 = vmatprep.subr.mxu0 0.0
    %5268 = vmatpush2.msra.mxu0 0.0
    %5269 = vmatprep.subr.mxu0 0.0
    %5270 = vmatpush2.msra.mxu0 0.0
    %5271 = vmatprep.subr.mxu0 0.0
    %5272 = vmatpush2.msra.mxu0 0.0
    %5273 = vmatprep.subr.mxu0 0.0
    %5274 = vmatpush2.msra.mxu0 0.0
    %5275 = vmatprep.subr.mxu0 0.0
    %5276 = vmatpush2.msra.mxu0 0.0
    %5277 = vmatprep.subr.mxu0 0.0
    %5278 = vmatpush2.msra.mxu0 0.0
    %5279 = vmatprep.subr.mxu0 0.0
    %5280 = vmatpush2.msra.mxu0 0.0
    %5281 = vmatprep.subr.mxu0 0.0
    %5282 = vmatpush2.msra.mxu0 0.0
    %5283 = vmatprep.subr.mxu0 0.0
    %5284 = vmatpush2.msra.mxu0 0.0
    %5285 = vmatprep.mubr.f32.mxu0 0.0
    %5286 = vmatmul.mubr.f32.gmra.mxu0 %v5216
    %v5287 = vpop.f32.mrf.mxu0
    %v5288 = vadd.f32 0.0, %v5287
    %v5289 = vpop.f32.mrf.mxu0
    %5290 = vmatprep.mubr.f32.mxu0 0.0
    %5291 = vmatmul.mubr.f32.gmra.mxu0 %v5219
    %v5292 = vpop.f32.mrf.mxu0
    %v5293 = vadd.f32 0.0, %v5292
    %v5294 = vpop.f32.mrf.mxu0
    %5295 = vdwg.mxu0
    %v5296 = vadd.f32 %v4735, %v5288
    %v5297 = vadd.f32 %v4736, %v5293
    %s5298 = scalar_lea.vmem %s2, 800
    %v5299 = vld [vmem:[%s5298] sm:$0xff]
    %v5300 = vld [vmem:[%s5298 + $0x8] sm:$0xff]
    %v5301 = vld [vmem:[%s5298 + $0x10] sm:$0xff]
    %v5302 = vld [vmem:[%s5298 + $0x18] sm:$0xff]
    %5303 = vmatprep.subr.mxu0 0.0
    %5304 = vmatpush1.msra.mxu0 0.0
    %5305 = vmatprep.subr.mxu0 0.0
    %5306 = vmatpush1.msra.mxu0 0.0
    %5307 = vmatprep.subr.mxu0 0.0
    %5308 = vmatpush1.msra.mxu0 0.0
    %5309 = vmatprep.subr.mxu0 0.0
    %5310 = vmatpush1.msra.mxu0 0.0
    %5311 = vmatprep.subr.mxu0 0.0
    %5312 = vmatpush1.msra.mxu0 0.0
    %5313 = vmatprep.subr.mxu0 0.0
    %5314 = vmatpush1.msra.mxu0 0.0
    %5315 = vmatprep.subr.mxu0 0.0
    %5316 = vmatpush1.msra.mxu0 0.0
    %5317 = vmatprep.subr.mxu0 0.0
    %5318 = vmatpush1.msra.mxu0 0.0
    %5319 = vmatprep.subr.mxu0 0.0
    %5320 = vmatpush1.msra.mxu0 0.0
    %5321 = vmatprep.subr.mxu0 0.0
    %5322 = vmatpush1.msra.mxu0 0.0
    %5323 = vmatprep.subr.mxu0 0.0
    %5324 = vmatpush1.msra.mxu0 0.0
    %5325 = vmatprep.subr.mxu0 0.0
    %5326 = vmatpush1.msra.mxu0 0.0
    %5327 = vmatprep.subr.mxu0 0.0
    %5328 = vmatpush1.msra.mxu0 %v5302
    %5329 = vmatprep.subr.mxu0 0.0
    %5330 = vmatpush1.msra.mxu0 %v5301
    %5331 = vmatprep.subr.mxu0 0.0
    %5332 = vmatpush1.msra.mxu0 %v5300
    %5333 = vmatprep.subr.mxu0 0.0
    %5334 = vmatpush1.msra.mxu0 %v5299
    %5335 = vmatprep.subr.mxu0 0.0
    %5336 = vmatpush2.msra.mxu0 0.0
    %5337 = vmatprep.subr.mxu0 0.0
    %5338 = vmatpush2.msra.mxu0 0.0
    %5339 = vmatprep.subr.mxu0 0.0
    %5340 = vmatpush2.msra.mxu0 0.0
    %5341 = vmatprep.subr.mxu0 0.0
    %5342 = vmatpush2.msra.mxu0 0.0
    %5343 = vmatprep.subr.mxu0 0.0
    %5344 = vmatpush2.msra.mxu0 0.0
    %5345 = vmatprep.subr.mxu0 0.0
    %5346 = vmatpush2.msra.mxu0 0.0
    %5347 = vmatprep.subr.mxu0 0.0
    %5348 = vmatpush2.msra.mxu0 0.0
    %5349 = vmatprep.subr.mxu0 0.0
    %5350 = vmatpush2.msra.mxu0 0.0
    %5351 = vmatprep.subr.mxu0 0.0
    %5352 = vmatpush2.msra.mxu0 0.0
    %5353 = vmatprep.subr.mxu0 0.0
    %5354 = vmatpush2.msra.mxu0 0.0
    %5355 = vmatprep.subr.mxu0 0.0
    %5356 = vmatpush2.msra.mxu0 0.0
    %5357 = vmatprep.subr.mxu0 0.0
    %5358 = vmatpush2.msra.mxu0 0.0
    %5359 = vmatprep.subr.mxu0 0.0
    %5360 = vmatpush2.msra.mxu0 0.0
    %5361 = vmatprep.subr.mxu0 0.0
    %5362 = vmatpush2.msra.mxu0 0.0
    %5363 = vmatprep.subr.mxu0 0.0
    %5364 = vmatpush2.msra.mxu0 0.0
    %5365 = vmatprep.subr.mxu0 0.0
    %5366 = vmatpush2.msra.mxu0 0.0
    %5367 = vmatprep.mubr.f32.mxu0 0.0
    %5368 = vmatmul.mubr.f32.gmra.mxu0 %v4783
    %v5369 = vpop.f32.mrf.mxu0
    %v5370 = vadd.f32 0.0, %v5369
    %v5371 = vpop.f32.mrf.mxu0
    %5372 = vmatprep.mubr.f32.mxu0 0.0
    %5373 = vmatmul.mubr.f32.gmra.mxu0 %v4786
    %v5374 = vpop.f32.mrf.mxu0
    %v5375 = vadd.f32 0.0, %v5374
    %v5376 = vpop.f32.mrf.mxu0
    %5377 = vdwg.mxu0
    %s5378 = scalar_lea.vmem %s2, 928
    %v5379 = vld [vmem:[%s5378] sm:$0xff]
    %v5380 = vld [vmem:[%s5378 + $0x8] sm:$0xff]
    %v5381 = vld [vmem:[%s5378 + $0x10] sm:$0xff]
    %v5382 = vld [vmem:[%s5378 + $0x18] sm:$0xff]
    %5383 = vmatprep.subr.mxu0 0.0
    %5384 = vmatpush1.msra.mxu0 0.0
    %5385 = vmatprep.subr.mxu0 0.0
    %5386 = vmatpush1.msra.mxu0 0.0
    %5387 = vmatprep.subr.mxu0 0.0
    %5388 = vmatpush1.msra.mxu0 0.0
    %5389 = vmatprep.subr.mxu0 0.0
    %5390 = vmatpush1.msra.mxu0 0.0
    %5391 = vmatprep.subr.mxu0 0.0
    %5392 = vmatpush1.msra.mxu0 0.0
    %5393 = vmatprep.subr.mxu0 0.0
    %5394 = vmatpush1.msra.mxu0 0.0
    %5395 = vmatprep.subr.mxu0 0.0
    %5396 = vmatpush1.msra.mxu0 0.0
    %5397 = vmatprep.subr.mxu0 0.0
    %5398 = vmatpush1.msra.mxu0 0.0
    %5399 = vmatprep.subr.mxu0 0.0
    %5400 = vmatpush1.msra.mxu0 0.0
    %5401 = vmatprep.subr.mxu0 0.0
    %5402 = vmatpush1.msra.mxu0 0.0
    %5403 = vmatprep.subr.mxu0 0.0
    %5404 = vmatpush1.msra.mxu0 0.0
    %5405 = vmatprep.subr.mxu0 0.0
    %5406 = vmatpush1.msra.mxu0 0.0
    %5407 = vmatprep.subr.mxu0 0.0
    %5408 = vmatpush1.msra.mxu0 %v5382
    %5409 = vmatprep.subr.mxu0 0.0
    %5410 = vmatpush1.msra.mxu0 %v5381
    %5411 = vmatprep.subr.mxu0 0.0
    %5412 = vmatpush1.msra.mxu0 %v5380
    %5413 = vmatprep.subr.mxu0 0.0
    %5414 = vmatpush1.msra.mxu0 %v5379
    %5415 = vmatprep.subr.mxu0 0.0
    %5416 = vmatpush2.msra.mxu0 0.0
    %5417 = vmatprep.subr.mxu0 0.0
    %5418 = vmatpush2.msra.mxu0 0.0
    %5419 = vmatprep.subr.mxu0 0.0
    %5420 = vmatpush2.msra.mxu0 0.0
    %5421 = vmatprep.subr.mxu0 0.0
    %5422 = vmatpush2.msra.mxu0 0.0
    %5423 = vmatprep.subr.mxu0 0.0
    %5424 = vmatpush2.msra.mxu0 0.0
    %5425 = vmatprep.subr.mxu0 0.0
    %5426 = vmatpush2.msra.mxu0 0.0
    %5427 = vmatprep.subr.mxu0 0.0
    %5428 = vmatpush2.msra.mxu0 0.0
    %5429 = vmatprep.subr.mxu0 0.0
    %5430 = vmatpush2.msra.mxu0 0.0
    %5431 = vmatprep.subr.mxu0 0.0
    %5432 = vmatpush2.msra.mxu0 0.0
    %5433 = vmatprep.subr.mxu0 0.0
    %5434 = vmatpush2.msra.mxu0 0.0
    %5435 = vmatprep.subr.mxu0 0.0
    %5436 = vmatpush2.msra.mxu0 0.0
    %5437 = vmatprep.subr.mxu0 0.0
    %5438 = vmatpush2.msra.mxu0 0.0
    %5439 = vmatprep.subr.mxu0 0.0
    %5440 = vmatpush2.msra.mxu0 0.0
    %5441 = vmatprep.subr.mxu0 0.0
    %5442 = vmatpush2.msra.mxu0 0.0
    %5443 = vmatprep.subr.mxu0 0.0
    %5444 = vmatpush2.msra.mxu0 0.0
    %5445 = vmatprep.subr.mxu0 0.0
    %5446 = vmatpush2.msra.mxu0 0.0
    %5447 = vmatprep.mubr.f32.mxu0 0.0
    %5448 = vmatmul.mubr.f32.gmra.mxu0 %v4783
    %v5449 = vpop.f32.mrf.mxu0
    %v5450 = vadd.f32 0.0, %v5449
    %v5451 = vpop.f32.mrf.mxu0
    %5452 = vmatprep.mubr.f32.mxu0 0.0
    %5453 = vmatmul.mubr.f32.gmra.mxu0 %v4786
    %v5454 = vpop.f32.mrf.mxu0
    %v5455 = vadd.f32 0.0, %v5454
    %v5456 = vpop.f32.mrf.mxu0
    %5457 = vdwg.mxu0
    %s5458 = scalar_lea.vmem %s2, 1056
    %v5459 = vld [vmem:[%s5458] sm:$0xff]
    %v5460 = vld [vmem:[%s5458 + $0x8] sm:$0xff]
    %v5461 = vld [vmem:[%s5458 + $0x10] sm:$0xff]
    %v5462 = vld [vmem:[%s5458 + $0x18] sm:$0xff]
    %5463 = vmatprep.subr.mxu0 0.0
    %5464 = vmatpush1.msra.mxu0 0.0
    %5465 = vmatprep.subr.mxu0 0.0
    %5466 = vmatpush1.msra.mxu0 0.0
    %5467 = vmatprep.subr.mxu0 0.0
    %5468 = vmatpush1.msra.mxu0 0.0
    %5469 = vmatprep.subr.mxu0 0.0
    %5470 = vmatpush1.msra.mxu0 0.0
    %5471 = vmatprep.subr.mxu0 0.0
    %5472 = vmatpush1.msra.mxu0 0.0
    %5473 = vmatprep.subr.mxu0 0.0
    %5474 = vmatpush1.msra.mxu0 0.0
    %5475 = vmatprep.subr.mxu0 0.0
    %5476 = vmatpush1.msra.mxu0 0.0
    %5477 = vmatprep.subr.mxu0 0.0
    %5478 = vmatpush1.msra.mxu0 0.0
    %5479 = vmatprep.subr.mxu0 0.0
    %5480 = vmatpush1.msra.mxu0 0.0
    %5481 = vmatprep.subr.mxu0 0.0
    %5482 = vmatpush1.msra.mxu0 0.0
    %5483 = vmatprep.subr.mxu0 0.0
    %5484 = vmatpush1.msra.mxu0 0.0
    %5485 = vmatprep.subr.mxu0 0.0
    %5486 = vmatpush1.msra.mxu0 0.0
    %5487 = vmatprep.subr.mxu0 0.0
    %5488 = vmatpush1.msra.mxu0 %v5462
    %5489 = vmatprep.subr.mxu0 0.0
    %5490 = vmatpush1.msra.mxu0 %v5461
    %5491 = vmatprep.subr.mxu0 0.0
    %5492 = vmatpush1.msra.mxu0 %v5460
    %5493 = vmatprep.subr.mxu0 0.0
    %5494 = vmatpush1.msra.mxu0 %v5459
    %5495 = vmatprep.subr.mxu0 0.0
    %5496 = vmatpush2.msra.mxu0 0.0
    %5497 = vmatprep.subr.mxu0 0.0
    %5498 = vmatpush2.msra.mxu0 0.0
    %5499 = vmatprep.subr.mxu0 0.0
    %5500 = vmatpush2.msra.mxu0 0.0
    %5501 = vmatprep.subr.mxu0 0.0
    %5502 = vmatpush2.msra.mxu0 0.0
    %5503 = vmatprep.subr.mxu0 0.0
    %5504 = vmatpush2.msra.mxu0 0.0
    %5505 = vmatprep.subr.mxu0 0.0
    %5506 = vmatpush2.msra.mxu0 0.0
    %5507 = vmatprep.subr.mxu0 0.0
    %5508 = vmatpush2.msra.mxu0 0.0
    %5509 = vmatprep.subr.mxu0 0.0
    %5510 = vmatpush2.msra.mxu0 0.0
    %5511 = vmatprep.subr.mxu0 0.0
    %5512 = vmatpush2.msra.mxu0 0.0
    %5513 = vmatprep.subr.mxu0 0.0
    %5514 = vmatpush2.msra.mxu0 0.0
    %5515 = vmatprep.subr.mxu0 0.0
    %5516 = vmatpush2.msra.mxu0 0.0
    %5517 = vmatprep.subr.mxu0 0.0
    %5518 = vmatpush2.msra.mxu0 0.0
    %5519 = vmatprep.subr.mxu0 0.0
    %5520 = vmatpush2.msra.mxu0 0.0
    %5521 = vmatprep.subr.mxu0 0.0
    %5522 = vmatpush2.msra.mxu0 0.0
    %5523 = vmatprep.subr.mxu0 0.0
    %5524 = vmatpush2.msra.mxu0 0.0
    %5525 = vmatprep.subr.mxu0 0.0
    %5526 = vmatpush2.msra.mxu0 0.0
    %5527 = vmatprep.mubr.f32.mxu0 0.0
    %5528 = vmatmul.mubr.f32.gmra.mxu0 %v4783
    %v5529 = vpop.f32.mrf.mxu0
    %v5530 = vadd.f32 0.0, %v5529
    %v5531 = vpop.f32.mrf.mxu0
    %5532 = vmatprep.mubr.f32.mxu0 0.0
    %5533 = vmatmul.mubr.f32.gmra.mxu0 %v4786
    %v5534 = vpop.f32.mrf.mxu0
    %v5535 = vadd.f32 0.0, %v5534
    %v5536 = vpop.f32.mrf.mxu0
    %5537 = vdwg.mxu0
    %v5539 = vsel %vm334, %v5370, 0
    %v5542 = vsel %vm334, %v5375, 0
    %v5545 = vsel %vm334, %v5450, 0
    %v5548 = vsel %vm334, %v5455, 0
    %5550 = vmatprep.subr.mxu0 0.0
    %5551 = vmatpush1.xpose.msra.mxu0 0.0
    %5552 = vmatprep.subr.mxu0 0.0
    %5553 = vmatpush1.xpose.msra.mxu0 0.0
    %5554 = vmatprep.subr.mxu0 0.0
    %5555 = vmatpush1.xpose.msra.mxu0 0.0
    %5556 = vmatprep.subr.mxu0 0.0
    %5557 = vmatpush1.xpose.msra.mxu0 0.0
    %5558 = vmatprep.subr.mxu0 0.0
    %5559 = vmatpush1.xpose.msra.mxu0 0.0
    %5560 = vmatprep.subr.mxu0 0.0
    %5561 = vmatpush1.xpose.msra.mxu0 0.0
    %5562 = vmatprep.subr.mxu0 0.0
    %5563 = vmatpush1.xpose.msra.mxu0 0.0
    %5564 = vmatprep.subr.mxu0 0.0
    %5565 = vmatpush1.xpose.msra.mxu0 0.0
    %5566 = vmatprep.subr.mxu0 0.0
    %5567 = vmatpush1.xpose.msra.mxu0 0.0
    %5568 = vmatprep.subr.mxu0 0.0
    %5569 = vmatpush1.xpose.msra.mxu0 0.0
    %5570 = vmatprep.subr.mxu0 0.0
    %5571 = vmatpush1.xpose.msra.mxu0 0.0
    %5572 = vmatprep.subr.mxu0 0.0
    %5573 = vmatpush1.xpose.msra.mxu0 0.0
    %5574 = vmatprep.subr.mxu0 0.0
    %5575 = vmatpush1.xpose.msra.mxu0 0.0
    %5576 = vmatprep.subr.mxu0 0.0
    %5577 = vmatpush1.xpose.msra.mxu0 0.0
    %5578 = vmatprep.subr.mxu0 0.0
    %5579 = vmatpush1.xpose.msra.mxu0 %v5548
    %5580 = vmatprep.subr.mxu0 0.0
    %5581 = vmatpush1.xpose.msra.mxu0 %v5545
    %5582 = vmatprep.subr.mxu0 0.0
    %5583 = vmatpush2.xpose.msra.mxu0 0.0
    %5584 = vmatprep.subr.mxu0 0.0
    %5585 = vmatpush2.xpose.msra.mxu0 0.0
    %5586 = vmatprep.subr.mxu0 0.0
    %5587 = vmatpush2.xpose.msra.mxu0 0.0
    %5588 = vmatprep.subr.mxu0 0.0
    %5589 = vmatpush2.xpose.msra.mxu0 0.0
    %5590 = vmatprep.subr.mxu0 0.0
    %5591 = vmatpush2.xpose.msra.mxu0 0.0
    %5592 = vmatprep.subr.mxu0 0.0
    %5593 = vmatpush2.xpose.msra.mxu0 0.0
    %5594 = vmatprep.subr.mxu0 0.0
    %5595 = vmatpush2.xpose.msra.mxu0 0.0
    %5596 = vmatprep.subr.mxu0 0.0
    %5597 = vmatpush2.xpose.msra.mxu0 0.0
    %5598 = vmatprep.subr.mxu0 0.0
    %5599 = vmatpush2.xpose.msra.mxu0 0.0
    %5600 = vmatprep.subr.mxu0 0.0
    %5601 = vmatpush2.xpose.msra.mxu0 0.0
    %5602 = vmatprep.subr.mxu0 0.0
    %5603 = vmatpush2.xpose.msra.mxu0 0.0
    %5604 = vmatprep.subr.mxu0 0.0
    %5605 = vmatpush2.xpose.msra.mxu0 0.0
    %5606 = vmatprep.subr.mxu0 0.0
    %5607 = vmatpush2.xpose.msra.mxu0 0.0
    %5608 = vmatprep.subr.mxu0 0.0
    %5609 = vmatpush2.xpose.msra.mxu0 0.0
    %5610 = vmatprep.subr.mxu0 0.0
    %5611 = vmatpush2.xpose.msra.mxu0 0.0
    %5612 = vmatprep.subr.mxu0 0.0
    %5613 = vmatpush2.xpose.msra.mxu0 0.0
    %5614 = vmatprep.mubr.f32.mxu0 0.0
    %5615 = vmatmul.mubr.f32.gmra.mxu0 %v5539
    %v5616 = vpop.f32.mrf.mxu0
    %v5617 = vadd.f32 %v46, %v5616
    %v5618 = vpop.f32.mrf.mxu0
    %5619 = vmatprep.mubr.f32.mxu0 0.0
    %5620 = vmatmul.mubr.f32.gmra.mxu0 %v5542
    %v5621 = vpop.f32.mrf.mxu0
    %v5622 = vadd.f32 %v47, %v5621
    %v5623 = vpop.f32.mrf.mxu0
    %5624 = vdwg.mxu0
    %v5625 = vsel %vm422, %v5617, -inf
    %5626 = vmax.xlane.f32.xlu0 %v5625
    %v5627 = vpop.xlane.xlu0 %5626
    %v5628 = vsel %vm422, %v5622, -inf
    %5629 = vmax.xlane.f32.xlu0 %v5628
    %v5630 = vpop.xlane.xlu0 %5629
    %v5631 = vsub.f32 %v5617, %v5627
    %v5632 = vsub.f32 %v5622, %v5630
    %v5633 = vmul.f32 %v5631, 1.442695
    %v5634 = vpow.pop %v5633
    %v5635 = vmul.f32 %v5632, 1.442695
    %v5636 = vpow.pop %v5635
    %v5637 = vsel %vm422, %v5634, 0.0
    %5638 = vadd.xlane.f32.xlu0 %v5637
    %v5639 = vpop.xlane.xlu0 %5638
    %v5640 = vsel %vm422, %v5636, 0.0
    %5641 = vadd.xlane.f32.xlu0 %v5640
    %v5642 = vpop.xlane.xlu0 %5641
    %v5643 = vrcp.pop %v5639
    %v5644 = vrcp.pop %v5642
    %v5645 = vmul.f32 %v5634, %v5643
    %v5646 = vmul.f32 %v5636, %v5644
    %v5648 = vsel %vm422, %v5645, 0
    %v5651 = vsel %vm422, %v5646, 0
    %5653 = vmatprep.subr.mxu0 0.0
    %5654 = vmatpush1.msra.mxu0 0.0
    %5655 = vmatprep.subr.mxu0 0.0
    %5656 = vmatpush1.msra.mxu0 0.0
    %5657 = vmatprep.subr.mxu0 0.0
    %5658 = vmatpush1.msra.mxu0 0.0
    %5659 = vmatprep.subr.mxu0 0.0
    %5660 = vmatpush1.msra.mxu0 0.0
    %5661 = vmatprep.subr.mxu0 0.0
    %5662 = vmatpush1.msra.mxu0 0.0
    %5663 = vmatprep.subr.mxu0 0.0
    %5664 = vmatpush1.msra.mxu0 0.0
    %5665 = vmatprep.subr.mxu0 0.0
    %5666 = vmatpush1.msra.mxu0 0.0
    %5667 = vmatprep.subr.mxu0 0.0
    %5668 = vmatpush1.msra.mxu0 0.0
    %5669 = vmatprep.subr.mxu0 0.0
    %5670 = vmatpush1.msra.mxu0 0.0
    %5671 = vmatprep.subr.mxu0 0.0
    %5672 = vmatpush1.msra.mxu0 0.0
    %5673 = vmatprep.subr.mxu0 0.0
    %5674 = vmatpush1.msra.mxu0 0.0
    %5675 = vmatprep.subr.mxu0 0.0
    %5676 = vmatpush1.msra.mxu0 0.0
    %5677 = vmatprep.subr.mxu0 0.0
    %5678 = vmatpush1.msra.mxu0 0.0
    %5679 = vmatprep.subr.mxu0 0.0
    %5680 = vmatpush1.msra.mxu0 0.0
    %5681 = vmatprep.subr.mxu0 0.0
    %5682 = vmatpush1.msra.mxu0 %v5535
    %5683 = vmatprep.subr.mxu0 0.0
    %5684 = vmatpush1.msra.mxu0 %v5530
    %5685 = vmatprep.subr.mxu0 0.0
    %5686 = vmatpush2.msra.mxu0 0.0
    %5687 = vmatprep.subr.mxu0 0.0
    %5688 = vmatpush2.msra.mxu0 0.0
    %5689 = vmatprep.subr.mxu0 0.0
    %5690 = vmatpush2.msra.mxu0 0.0
    %5691 = vmatprep.subr.mxu0 0.0
    %5692 = vmatpush2.msra.mxu0 0.0
    %5693 = vmatprep.subr.mxu0 0.0
    %5694 = vmatpush2.msra.mxu0 0.0
    %5695 = vmatprep.subr.mxu0 0.0
    %5696 = vmatpush2.msra.mxu0 0.0
    %5697 = vmatprep.subr.mxu0 0.0
    %5698 = vmatpush2.msra.mxu0 0.0
    %5699 = vmatprep.subr.mxu0 0.0
    %5700 = vmatpush2.msra.mxu0 0.0
    %5701 = vmatprep.subr.mxu0 0.0
    %5702 = vmatpush2.msra.mxu0 0.0
    %5703 = vmatprep.subr.mxu0 0.0
    %5704 = vmatpush2.msra.mxu0 0.0
    %5705 = vmatprep.subr.mxu0 0.0
    %5706 = vmatpush2.msra.mxu0 0.0
    %5707 = vmatprep.subr.mxu0 0.0
    %5708 = vmatpush2.msra.mxu0 0.0
    %5709 = vmatprep.subr.mxu0 0.0
    %5710 = vmatpush2.msra.mxu0 0.0
    %5711 = vmatprep.subr.mxu0 0.0
    %5712 = vmatpush2.msra.mxu0 0.0
    %5713 = vmatprep.subr.mxu0 0.0
    %5714 = vmatpush2.msra.mxu0 0.0
    %5715 = vmatprep.subr.mxu0 0.0
    %5716 = vmatpush2.msra.mxu0 0.0
    %5717 = vmatprep.mubr.f32.mxu0 0.0
    %5718 = vmatmul.mubr.f32.gmra.mxu0 %v5648
    %v5719 = vpop.f32.mrf.mxu0
    %v5720 = vadd.f32 0.0, %v5719
    %v5721 = vpop.f32.mrf.mxu0
    %5722 = vmatprep.mubr.f32.mxu0 0.0
    %5723 = vmatmul.mubr.f32.gmra.mxu0 %v5651
    %v5724 = vpop.f32.mrf.mxu0
    %v5725 = vadd.f32 0.0, %v5724
    %v5726 = vpop.f32.mrf.mxu0
    %5727 = vdwg.mxu0
    %s5728 = scalar_lea.vmem %s3, 72
    %v5729 = vld [vmem:[%s5728] sm:$0xff]
    %v5731 = vsel %vm334, %v5720, 0
    %v5734 = vsel %vm334, %v5725, 0
    %5736 = vmatprep.subr.mxu0 0.0
    %5737 = vmatpush1.msra.mxu0 0.0
    %5738 = vmatprep.subr.mxu0 0.0
    %5739 = vmatpush1.msra.mxu0 0.0
    %5740 = vmatprep.subr.mxu0 0.0
    %5741 = vmatpush1.msra.mxu0 0.0
    %5742 = vmatprep.subr.mxu0 0.0
    %5743 = vmatpush1.msra.mxu0 0.0
    %5744 = vmatprep.subr.mxu0 0.0
    %5745 = vmatpush1.msra.mxu0 0.0
    %5746 = vmatprep.subr.mxu0 0.0
    %5747 = vmatpush1.msra.mxu0 0.0
    %5748 = vmatprep.subr.mxu0 0.0
    %5749 = vmatpush1.msra.mxu0 0.0
    %5750 = vmatprep.subr.mxu0 0.0
    %5751 = vmatpush1.msra.mxu0 0.0
    %5752 = vmatprep.subr.mxu0 0.0
    %5753 = vmatpush1.msra.mxu0 0.0
    %5754 = vmatprep.subr.mxu0 0.0
    %5755 = vmatpush1.msra.mxu0 0.0
    %5756 = vmatprep.subr.mxu0 0.0
    %5757 = vmatpush1.msra.mxu0 0.0
    %5758 = vmatprep.subr.mxu0 0.0
    %5759 = vmatpush1.msra.mxu0 0.0
    %5760 = vmatprep.subr.mxu0 0.0
    %5761 = vmatpush1.msra.mxu0 0.0
    %5762 = vmatprep.subr.mxu0 0.0
    %5763 = vmatpush1.msra.mxu0 0.0
    %5764 = vmatprep.subr.mxu0 0.0
    %5765 = vmatpush1.msra.mxu0 0.0
    %5766 = vmatprep.subr.mxu0 0.0
    %5767 = vmatpush1.msra.mxu0 %v5729
    %5768 = vmatprep.subr.mxu0 0.0
    %5769 = vmatpush2.msra.mxu0 0.0
    %5770 = vmatprep.subr.mxu0 0.0
    %5771 = vmatpush2.msra.mxu0 0.0
    %5772 = vmatprep.subr.mxu0 0.0
    %5773 = vmatpush2.msra.mxu0 0.0
    %5774 = vmatprep.subr.mxu0 0.0
    %5775 = vmatpush2.msra.mxu0 0.0
    %5776 = vmatprep.subr.mxu0 0.0
    %5777 = vmatpush2.msra.mxu0 0.0
    %5778 = vmatprep.subr.mxu0 0.0
    %5779 = vmatpush2.msra.mxu0 0.0
    %5780 = vmatprep.subr.mxu0 0.0
    %5781 = vmatpush2.msra.mxu0 0.0
    %5782 = vmatprep.subr.mxu0 0.0
    %5783 = vmatpush2.msra.mxu0 0.0
    %5784 = vmatprep.subr.mxu0 0.0
    %5785 = vmatpush2.msra.mxu0 0.0
    %5786 = vmatprep.subr.mxu0 0.0
    %5787 = vmatpush2.msra.mxu0 0.0
    %5788 = vmatprep.subr.mxu0 0.0
    %5789 = vmatpush2.msra.mxu0 0.0
    %5790 = vmatprep.subr.mxu0 0.0
    %5791 = vmatpush2.msra.mxu0 0.0
    %5792 = vmatprep.subr.mxu0 0.0
    %5793 = vmatpush2.msra.mxu0 0.0
    %5794 = vmatprep.subr.mxu0 0.0
    %5795 = vmatpush2.msra.mxu0 0.0
    %5796 = vmatprep.subr.mxu0 0.0
    %5797 = vmatpush2.msra.mxu0 0.0
    %5798 = vmatprep.subr.mxu0 0.0
    %5799 = vmatpush2.msra.mxu0 0.0
    %5800 = vmatprep.mubr.f32.mxu0 0.0
    %5801 = vmatmul.mubr.f32.gmra.mxu0 %v5731
    %v5802 = vpop.f32.mrf.mxu0
    %v5803 = vadd.f32 0.0, %v5802
    %v5804 = vpop.f32.mrf.mxu0
    %5805 = vmatprep.mubr.f32.mxu0 0.0
    %5806 = vmatmul.mubr.f32.gmra.mxu0 %v5734
    %v5807 = vpop.f32.mrf.mxu0
    %v5808 = vadd.f32 0.0, %v5807
    %v5809 = vpop.f32.mrf.mxu0
    %5810 = vdwg.mxu0
    %v5811 = vadd.f32 %v5296, %v5803
    %v5812 = vadd.f32 %v5297, %v5808
    %s5813 = scalar_lea.vmem %s2, 832
    %v5814 = vld [vmem:[%s5813] sm:$0xff]
    %v5815 = vld [vmem:[%s5813 + $0x8] sm:$0xff]
    %v5816 = vld [vmem:[%s5813 + $0x10] sm:$0xff]
    %v5817 = vld [vmem:[%s5813 + $0x18] sm:$0xff]
    %5818 = vmatprep.subr.mxu0 0.0
    %5819 = vmatpush1.msra.mxu0 0.0
    %5820 = vmatprep.subr.mxu0 0.0
    %5821 = vmatpush1.msra.mxu0 0.0
    %5822 = vmatprep.subr.mxu0 0.0
    %5823 = vmatpush1.msra.mxu0 0.0
    %5824 = vmatprep.subr.mxu0 0.0
    %5825 = vmatpush1.msra.mxu0 0.0
    %5826 = vmatprep.subr.mxu0 0.0
    %5827 = vmatpush1.msra.mxu0 0.0
    %5828 = vmatprep.subr.mxu0 0.0
    %5829 = vmatpush1.msra.mxu0 0.0
    %5830 = vmatprep.subr.mxu0 0.0
    %5831 = vmatpush1.msra.mxu0 0.0
    %5832 = vmatprep.subr.mxu0 0.0
    %5833 = vmatpush1.msra.mxu0 0.0
    %5834 = vmatprep.subr.mxu0 0.0
    %5835 = vmatpush1.msra.mxu0 0.0
    %5836 = vmatprep.subr.mxu0 0.0
    %5837 = vmatpush1.msra.mxu0 0.0
    %5838 = vmatprep.subr.mxu0 0.0
    %5839 = vmatpush1.msra.mxu0 0.0
    %5840 = vmatprep.subr.mxu0 0.0
    %5841 = vmatpush1.msra.mxu0 0.0
    %5842 = vmatprep.subr.mxu0 0.0
    %5843 = vmatpush1.msra.mxu0 %v5817
    %5844 = vmatprep.subr.mxu0 0.0
    %5845 = vmatpush1.msra.mxu0 %v5816
    %5846 = vmatprep.subr.mxu0 0.0
    %5847 = vmatpush1.msra.mxu0 %v5815
    %5848 = vmatprep.subr.mxu0 0.0
    %5849 = vmatpush1.msra.mxu0 %v5814
    %5850 = vmatprep.subr.mxu0 0.0
    %5851 = vmatpush2.msra.mxu0 0.0
    %5852 = vmatprep.subr.mxu0 0.0
    %5853 = vmatpush2.msra.mxu0 0.0
    %5854 = vmatprep.subr.mxu0 0.0
    %5855 = vmatpush2.msra.mxu0 0.0
    %5856 = vmatprep.subr.mxu0 0.0
    %5857 = vmatpush2.msra.mxu0 0.0
    %5858 = vmatprep.subr.mxu0 0.0
    %5859 = vmatpush2.msra.mxu0 0.0
    %5860 = vmatprep.subr.mxu0 0.0
    %5861 = vmatpush2.msra.mxu0 0.0
    %5862 = vmatprep.subr.mxu0 0.0
    %5863 = vmatpush2.msra.mxu0 0.0
    %5864 = vmatprep.subr.mxu0 0.0
    %5865 = vmatpush2.msra.mxu0 0.0
    %5866 = vmatprep.subr.mxu0 0.0
    %5867 = vmatpush2.msra.mxu0 0.0
    %5868 = vmatprep.subr.mxu0 0.0
    %5869 = vmatpush2.msra.mxu0 0.0
    %5870 = vmatprep.subr.mxu0 0.0
    %5871 = vmatpush2.msra.mxu0 0.0
    %5872 = vmatprep.subr.mxu0 0.0
    %5873 = vmatpush2.msra.mxu0 0.0
    %5874 = vmatprep.subr.mxu0 0.0
    %5875 = vmatpush2.msra.mxu0 0.0
    %5876 = vmatprep.subr.mxu0 0.0
    %5877 = vmatpush2.msra.mxu0 0.0
    %5878 = vmatprep.subr.mxu0 0.0
    %5879 = vmatpush2.msra.mxu0 0.0
    %5880 = vmatprep.subr.mxu0 0.0
    %5881 = vmatpush2.msra.mxu0 0.0
    %5882 = vmatprep.mubr.f32.mxu0 0.0
    %5883 = vmatmul.mubr.f32.gmra.mxu0 %v4783
    %v5884 = vpop.f32.mrf.mxu0
    %v5885 = vadd.f32 0.0, %v5884
    %v5886 = vpop.f32.mrf.mxu0
    %5887 = vmatprep.mubr.f32.mxu0 0.0
    %5888 = vmatmul.mubr.f32.gmra.mxu0 %v4786
    %v5889 = vpop.f32.mrf.mxu0
    %v5890 = vadd.f32 0.0, %v5889
    %v5891 = vpop.f32.mrf.mxu0
    %5892 = vdwg.mxu0
    %s5893 = scalar_lea.vmem %s2, 960
    %v5894 = vld [vmem:[%s5893] sm:$0xff]
    %v5895 = vld [vmem:[%s5893 + $0x8] sm:$0xff]
    %v5896 = vld [vmem:[%s5893 + $0x10] sm:$0xff]
    %v5897 = vld [vmem:[%s5893 + $0x18] sm:$0xff]
    %5898 = vmatprep.subr.mxu0 0.0
    %5899 = vmatpush1.msra.mxu0 0.0
    %5900 = vmatprep.subr.mxu0 0.0
    %5901 = vmatpush1.msra.mxu0 0.0
    %5902 = vmatprep.subr.mxu0 0.0
    %5903 = vmatpush1.msra.mxu0 0.0
    %5904 = vmatprep.subr.mxu0 0.0
    %5905 = vmatpush1.msra.mxu0 0.0
    %5906 = vmatprep.subr.mxu0 0.0
    %5907 = vmatpush1.msra.mxu0 0.0
    %5908 = vmatprep.subr.mxu0 0.0
    %5909 = vmatpush1.msra.mxu0 0.0
    %5910 = vmatprep.subr.mxu0 0.0
    %5911 = vmatpush1.msra.mxu0 0.0
    %5912 = vmatprep.subr.mxu0 0.0
    %5913 = vmatpush1.msra.mxu0 0.0
    %5914 = vmatprep.subr.mxu0 0.0
    %5915 = vmatpush1.msra.mxu0 0.0
    %5916 = vmatprep.subr.mxu0 0.0
    %5917 = vmatpush1.msra.mxu0 0.0
    %5918 = vmatprep.subr.mxu0 0.0
    %5919 = vmatpush1.msra.mxu0 0.0
    %5920 = vmatprep.subr.mxu0 0.0
    %5921 = vmatpush1.msra.mxu0 0.0
    %5922 = vmatprep.subr.mxu0 0.0
    %5923 = vmatpush1.msra.mxu0 %v5897
    %5924 = vmatprep.subr.mxu0 0.0
    %5925 = vmatpush1.msra.mxu0 %v5896
    %5926 = vmatprep.subr.mxu0 0.0
    %5927 = vmatpush1.msra.mxu0 %v5895
    %5928 = vmatprep.subr.mxu0 0.0
    %5929 = vmatpush1.msra.mxu0 %v5894
    %5930 = vmatprep.subr.mxu0 0.0
    %5931 = vmatpush2.msra.mxu0 0.0
    %5932 = vmatprep.subr.mxu0 0.0
    %5933 = vmatpush2.msra.mxu0 0.0
    %5934 = vmatprep.subr.mxu0 0.0
    %5935 = vmatpush2.msra.mxu0 0.0
    %5936 = vmatprep.subr.mxu0 0.0
    %5937 = vmatpush2.msra.mxu0 0.0
    %5938 = vmatprep.subr.mxu0 0.0
    %5939 = vmatpush2.msra.mxu0 0.0
    %5940 = vmatprep.subr.mxu0 0.0
    %5941 = vmatpush2.msra.mxu0 0.0
    %5942 = vmatprep.subr.mxu0 0.0
    %5943 = vmatpush2.msra.mxu0 0.0
    %5944 = vmatprep.subr.mxu0 0.0
    %5945 = vmatpush2.msra.mxu0 0.0
    %5946 = vmatprep.subr.mxu0 0.0
    %5947 = vmatpush2.msra.mxu0 0.0
    %5948 = vmatprep.subr.mxu0 0.0
    %5949 = vmatpush2.msra.mxu0 0.0
    %5950 = vmatprep.subr.mxu0 0.0
    %5951 = vmatpush2.msra.mxu0 0.0
    %5952 = vmatprep.subr.mxu0 0.0
    %5953 = vmatpush2.msra.mxu0 0.0
    %5954 = vmatprep.subr.mxu0 0.0
    %5955 = vmatpush2.msra.mxu0 0.0
    %5956 = vmatprep.subr.mxu0 0.0
    %5957 = vmatpush2.msra.mxu0 0.0
    %5958 = vmatprep.subr.mxu0 0.0
    %5959 = vmatpush2.msra.mxu0 0.0
    %5960 = vmatprep.subr.mxu0 0.0
    %5961 = vmatpush2.msra.mxu0 0.0
    %5962 = vmatprep.mubr.f32.mxu0 0.0
    %5963 = vmatmul.mubr.f32.gmra.mxu0 %v4783
    %v5964 = vpop.f32.mrf.mxu0
    %v5965 = vadd.f32 0.0, %v5964
    %v5966 = vpop.f32.mrf.mxu0
    %5967 = vmatprep.mubr.f32.mxu0 0.0
    %5968 = vmatmul.mubr.f32.gmra.mxu0 %v4786
    %v5969 = vpop.f32.mrf.mxu0
    %v5970 = vadd.f32 0.0, %v5969
    %v5971 = vpop.f32.mrf.mxu0
    %5972 = vdwg.mxu0
    %s5973 = scalar_lea.vmem %s2, 1088
    %v5974 = vld [vmem:[%s5973] sm:$0xff]
    %v5975 = vld [vmem:[%s5973 + $0x8] sm:$0xff]
    %v5976 = vld [vmem:[%s5973 + $0x10] sm:$0xff]
    %v5977 = vld [vmem:[%s5973 + $0x18] sm:$0xff]
    %5978 = vmatprep.subr.mxu0 0.0
    %5979 = vmatpush1.msra.mxu0 0.0
    %5980 = vmatprep.subr.mxu0 0.0
    %5981 = vmatpush1.msra.mxu0 0.0
    %5982 = vmatprep.subr.mxu0 0.0
    %5983 = vmatpush1.msra.mxu0 0.0
    %5984 = vmatprep.subr.mxu0 0.0
    %5985 = vmatpush1.msra.mxu0 0.0
    %5986 = vmatprep.subr.mxu0 0.0
    %5987 = vmatpush1.msra.mxu0 0.0
    %5988 = vmatprep.subr.mxu0 0.0
    %5989 = vmatpush1.msra.mxu0 0.0
    %5990 = vmatprep.subr.mxu0 0.0
    %5991 = vmatpush1.msra.mxu0 0.0
    %5992 = vmatprep.subr.mxu0 0.0
    %5993 = vmatpush1.msra.mxu0 0.0
    %5994 = vmatprep.subr.mxu0 0.0
    %5995 = vmatpush1.msra.mxu0 0.0
    %5996 = vmatprep.subr.mxu0 0.0
    %5997 = vmatpush1.msra.mxu0 0.0
    %5998 = vmatprep.subr.mxu0 0.0
    %5999 = vmatpush1.msra.mxu0 0.0
    %6000 = vmatprep.subr.mxu0 0.0
    %6001 = vmatpush1.msra.mxu0 0.0
    %6002 = vmatprep.subr.mxu0 0.0
    %6003 = vmatpush1.msra.mxu0 %v5977
    %6004 = vmatprep.subr.mxu0 0.0
    %6005 = vmatpush1.msra.mxu0 %v5976
    %6006 = vmatprep.subr.mxu0 0.0
    %6007 = vmatpush1.msra.mxu0 %v5975
    %6008 = vmatprep.subr.mxu0 0.0
    %6009 = vmatpush1.msra.mxu0 %v5974
    %6010 = vmatprep.subr.mxu0 0.0
    %6011 = vmatpush2.msra.mxu0 0.0
    %6012 = vmatprep.subr.mxu0 0.0
    %6013 = vmatpush2.msra.mxu0 0.0
    %6014 = vmatprep.subr.mxu0 0.0
    %6015 = vmatpush2.msra.mxu0 0.0
    %6016 = vmatprep.subr.mxu0 0.0
    %6017 = vmatpush2.msra.mxu0 0.0
    %6018 = vmatprep.subr.mxu0 0.0
    %6019 = vmatpush2.msra.mxu0 0.0
    %6020 = vmatprep.subr.mxu0 0.0
    %6021 = vmatpush2.msra.mxu0 0.0
    %6022 = vmatprep.subr.mxu0 0.0
    %6023 = vmatpush2.msra.mxu0 0.0
    %6024 = vmatprep.subr.mxu0 0.0
    %6025 = vmatpush2.msra.mxu0 0.0
    %6026 = vmatprep.subr.mxu0 0.0
    %6027 = vmatpush2.msra.mxu0 0.0
    %6028 = vmatprep.subr.mxu0 0.0
    %6029 = vmatpush2.msra.mxu0 0.0
    %6030 = vmatprep.subr.mxu0 0.0
    %6031 = vmatpush2.msra.mxu0 0.0
    %6032 = vmatprep.subr.mxu0 0.0
    %6033 = vmatpush2.msra.mxu0 0.0
    %6034 = vmatprep.subr.mxu0 0.0
    %6035 = vmatpush2.msra.mxu0 0.0
    %6036 = vmatprep.subr.mxu0 0.0
    %6037 = vmatpush2.msra.mxu0 0.0
    %6038 = vmatprep.subr.mxu0 0.0
    %6039 = vmatpush2.msra.mxu0 0.0
    %6040 = vmatprep.subr.mxu0 0.0
    %6041 = vmatpush2.msra.mxu0 0.0
    %6042 = vmatprep.mubr.f32.mxu0 0.0
    %6043 = vmatmul.mubr.f32.gmra.mxu0 %v4783
    %v6044 = vpop.f32.mrf.mxu0
    %v6045 = vadd.f32 0.0, %v6044
    %v6046 = vpop.f32.mrf.mxu0
    %6047 = vmatprep.mubr.f32.mxu0 0.0
    %6048 = vmatmul.mubr.f32.gmra.mxu0 %v4786
    %v6049 = vpop.f32.mrf.mxu0
    %v6050 = vadd.f32 0.0, %v6049
    %v6051 = vpop.f32.mrf.mxu0
    %6052 = vdwg.mxu0
    %v6054 = vsel %vm334, %v5885, 0
    %v6057 = vsel %vm334, %v5890, 0
    %v6060 = vsel %vm334, %v5965, 0
    %v6063 = vsel %vm334, %v5970, 0
    %6065 = vmatprep.subr.mxu0 0.0
    %6066 = vmatpush1.xpose.msra.mxu0 0.0
    %6067 = vmatprep.subr.mxu0 0.0
    %6068 = vmatpush1.xpose.msra.mxu0 0.0
    %6069 = vmatprep.subr.mxu0 0.0
    %6070 = vmatpush1.xpose.msra.mxu0 0.0
    %6071 = vmatprep.subr.mxu0 0.0
    %6072 = vmatpush1.xpose.msra.mxu0 0.0
    %6073 = vmatprep.subr.mxu0 0.0
    %6074 = vmatpush1.xpose.msra.mxu0 0.0
    %6075 = vmatprep.subr.mxu0 0.0
    %6076 = vmatpush1.xpose.msra.mxu0 0.0
    %6077 = vmatprep.subr.mxu0 0.0
    %6078 = vmatpush1.xpose.msra.mxu0 0.0
    %6079 = vmatprep.subr.mxu0 0.0
    %6080 = vmatpush1.xpose.msra.mxu0 0.0
    %6081 = vmatprep.subr.mxu0 0.0
    %6082 = vmatpush1.xpose.msra.mxu0 0.0
    %6083 = vmatprep.subr.mxu0 0.0
    %6084 = vmatpush1.xpose.msra.mxu0 0.0
    %6085 = vmatprep.subr.mxu0 0.0
    %6086 = vmatpush1.xpose.msra.mxu0 0.0
    %6087 = vmatprep.subr.mxu0 0.0
    %6088 = vmatpush1.xpose.msra.mxu0 0.0
    %6089 = vmatprep.subr.mxu0 0.0
    %6090 = vmatpush1.xpose.msra.mxu0 0.0
    %6091 = vmatprep.subr.mxu0 0.0
    %6092 = vmatpush1.xpose.msra.mxu0 0.0
    %6093 = vmatprep.subr.mxu0 0.0
    %6094 = vmatpush1.xpose.msra.mxu0 %v6063
    %6095 = vmatprep.subr.mxu0 0.0
    %6096 = vmatpush1.xpose.msra.mxu0 %v6060
    %6097 = vmatprep.subr.mxu0 0.0
    %6098 = vmatpush2.xpose.msra.mxu0 0.0
    %6099 = vmatprep.subr.mxu0 0.0
    %6100 = vmatpush2.xpose.msra.mxu0 0.0
    %6101 = vmatprep.subr.mxu0 0.0
    %6102 = vmatpush2.xpose.msra.mxu0 0.0
    %6103 = vmatprep.subr.mxu0 0.0
    %6104 = vmatpush2.xpose.msra.mxu0 0.0
    %6105 = vmatprep.subr.mxu0 0.0
    %6106 = vmatpush2.xpose.msra.mxu0 0.0
    %6107 = vmatprep.subr.mxu0 0.0
    %6108 = vmatpush2.xpose.msra.mxu0 0.0
    %6109 = vmatprep.subr.mxu0 0.0
    %6110 = vmatpush2.xpose.msra.mxu0 0.0
    %6111 = vmatprep.subr.mxu0 0.0
    %6112 = vmatpush2.xpose.msra.mxu0 0.0
    %6113 = vmatprep.subr.mxu0 0.0
    %6114 = vmatpush2.xpose.msra.mxu0 0.0
    %6115 = vmatprep.subr.mxu0 0.0
    %6116 = vmatpush2.xpose.msra.mxu0 0.0
    %6117 = vmatprep.subr.mxu0 0.0
    %6118 = vmatpush2.xpose.msra.mxu0 0.0
    %6119 = vmatprep.subr.mxu0 0.0
    %6120 = vmatpush2.xpose.msra.mxu0 0.0
    %6121 = vmatprep.subr.mxu0 0.0
    %6122 = vmatpush2.xpose.msra.mxu0 0.0
    %6123 = vmatprep.subr.mxu0 0.0
    %6124 = vmatpush2.xpose.msra.mxu0 0.0
    %6125 = vmatprep.subr.mxu0 0.0
    %6126 = vmatpush2.xpose.msra.mxu0 0.0
    %6127 = vmatprep.subr.mxu0 0.0
    %6128 = vmatpush2.xpose.msra.mxu0 0.0
    %6129 = vmatprep.mubr.f32.mxu0 0.0
    %6130 = vmatmul.mubr.f32.gmra.mxu0 %v6054
    %v6131 = vpop.f32.mrf.mxu0
    %v6132 = vadd.f32 %v46, %v6131
    %v6133 = vpop.f32.mrf.mxu0
    %6134 = vmatprep.mubr.f32.mxu0 0.0
    %6135 = vmatmul.mubr.f32.gmra.mxu0 %v6057
    %v6136 = vpop.f32.mrf.mxu0
    %v6137 = vadd.f32 %v47, %v6136
    %v6138 = vpop.f32.mrf.mxu0
    %6139 = vdwg.mxu0
    %v6140 = vsel %vm422, %v6132, -inf
    %6141 = vmax.xlane.f32.xlu0 %v6140
    %v6142 = vpop.xlane.xlu0 %6141
    %v6143 = vsel %vm422, %v6137, -inf
    %6144 = vmax.xlane.f32.xlu0 %v6143
    %v6145 = vpop.xlane.xlu0 %6144
    %v6146 = vsub.f32 %v6132, %v6142
    %v6147 = vsub.f32 %v6137, %v6145
    %v6148 = vmul.f32 %v6146, 1.442695
    %v6149 = vpow.pop %v6148
    %v6150 = vmul.f32 %v6147, 1.442695
    %v6151 = vpow.pop %v6150
    %v6152 = vsel %vm422, %v6149, 0.0
    %6153 = vadd.xlane.f32.xlu0 %v6152
    %v6154 = vpop.xlane.xlu0 %6153
    %v6155 = vsel %vm422, %v6151, 0.0
    %6156 = vadd.xlane.f32.xlu0 %v6155
    %v6157 = vpop.xlane.xlu0 %6156
    %v6158 = vrcp.pop %v6154
    %v6159 = vrcp.pop %v6157
    %v6160 = vmul.f32 %v6149, %v6158
    %v6161 = vmul.f32 %v6151, %v6159
    %v6163 = vsel %vm422, %v6160, 0
    %v6166 = vsel %vm422, %v6161, 0
    %6168 = vmatprep.subr.mxu0 0.0
    %6169 = vmatpush1.msra.mxu0 0.0
    %6170 = vmatprep.subr.mxu0 0.0
    %6171 = vmatpush1.msra.mxu0 0.0
    %6172 = vmatprep.subr.mxu0 0.0
    %6173 = vmatpush1.msra.mxu0 0.0
    %6174 = vmatprep.subr.mxu0 0.0
    %6175 = vmatpush1.msra.mxu0 0.0
    %6176 = vmatprep.subr.mxu0 0.0
    %6177 = vmatpush1.msra.mxu0 0.0
    %6178 = vmatprep.subr.mxu0 0.0
    %6179 = vmatpush1.msra.mxu0 0.0
    %6180 = vmatprep.subr.mxu0 0.0
    %6181 = vmatpush1.msra.mxu0 0.0
    %6182 = vmatprep.subr.mxu0 0.0
    %6183 = vmatpush1.msra.mxu0 0.0
    %6184 = vmatprep.subr.mxu0 0.0
    %6185 = vmatpush1.msra.mxu0 0.0
    %6186 = vmatprep.subr.mxu0 0.0
    %6187 = vmatpush1.msra.mxu0 0.0
    %6188 = vmatprep.subr.mxu0 0.0
    %6189 = vmatpush1.msra.mxu0 0.0
    %6190 = vmatprep.subr.mxu0 0.0
    %6191 = vmatpush1.msra.mxu0 0.0
    %6192 = vmatprep.subr.mxu0 0.0
    %6193 = vmatpush1.msra.mxu0 0.0
    %6194 = vmatprep.subr.mxu0 0.0
    %6195 = vmatpush1.msra.mxu0 0.0
    %6196 = vmatprep.subr.mxu0 0.0
    %6197 = vmatpush1.msra.mxu0 %v6050
    %6198 = vmatprep.subr.mxu0 0.0
    %6199 = vmatpush1.msra.mxu0 %v6045
    %6200 = vmatprep.subr.mxu0 0.0
    %6201 = vmatpush2.msra.mxu0 0.0
    %6202 = vmatprep.subr.mxu0 0.0
    %6203 = vmatpush2.msra.mxu0 0.0
    %6204 = vmatprep.subr.mxu0 0.0
    %6205 = vmatpush2.msra.mxu0 0.0
    %6206 = vmatprep.subr.mxu0 0.0
    %6207 = vmatpush2.msra.mxu0 0.0
    %6208 = vmatprep.subr.mxu0 0.0
    %6209 = vmatpush2.msra.mxu0 0.0
    %6210 = vmatprep.subr.mxu0 0.0
    %6211 = vmatpush2.msra.mxu0 0.0
    %6212 = vmatprep.subr.mxu0 0.0
    %6213 = vmatpush2.msra.mxu0 0.0
    %6214 = vmatprep.subr.mxu0 0.0
    %6215 = vmatpush2.msra.mxu0 0.0
    %6216 = vmatprep.subr.mxu0 0.0
    %6217 = vmatpush2.msra.mxu0 0.0
    %6218 = vmatprep.subr.mxu0 0.0
    %6219 = vmatpush2.msra.mxu0 0.0
    %6220 = vmatprep.subr.mxu0 0.0
    %6221 = vmatpush2.msra.mxu0 0.0
    %6222 = vmatprep.subr.mxu0 0.0
    %6223 = vmatpush2.msra.mxu0 0.0
    %6224 = vmatprep.subr.mxu0 0.0
    %6225 = vmatpush2.msra.mxu0 0.0
    %6226 = vmatprep.subr.mxu0 0.0
    %6227 = vmatpush2.msra.mxu0 0.0
    %6228 = vmatprep.subr.mxu0 0.0
    %6229 = vmatpush2.msra.mxu0 0.0
    %6230 = vmatprep.subr.mxu0 0.0
    %6231 = vmatpush2.msra.mxu0 0.0
    %6232 = vmatprep.mubr.f32.mxu0 0.0
    %6233 = vmatmul.mubr.f32.gmra.mxu0 %v6163
    %v6234 = vpop.f32.mrf.mxu0
    %v6235 = vadd.f32 0.0, %v6234
    %v6236 = vpop.f32.mrf.mxu0
    %6237 = vmatprep.mubr.f32.mxu0 0.0
    %6238 = vmatmul.mubr.f32.gmra.mxu0 %v6166
    %v6239 = vpop.f32.mrf.mxu0
    %v6240 = vadd.f32 0.0, %v6239
    %v6241 = vpop.f32.mrf.mxu0
    %6242 = vdwg.mxu0
    %s6243 = scalar_lea.vmem %s3, 80
    %v6244 = vld [vmem:[%s6243] sm:$0xff]
    %v6246 = vsel %vm334, %v6235, 0
    %v6249 = vsel %vm334, %v6240, 0
    %6251 = vmatprep.subr.mxu0 0.0
    %6252 = vmatpush1.msra.mxu0 0.0
    %6253 = vmatprep.subr.mxu0 0.0
    %6254 = vmatpush1.msra.mxu0 0.0
    %6255 = vmatprep.subr.mxu0 0.0
    %6256 = vmatpush1.msra.mxu0 0.0
    %6257 = vmatprep.subr.mxu0 0.0
    %6258 = vmatpush1.msra.mxu0 0.0
    %6259 = vmatprep.subr.mxu0 0.0
    %6260 = vmatpush1.msra.mxu0 0.0
    %6261 = vmatprep.subr.mxu0 0.0
    %6262 = vmatpush1.msra.mxu0 0.0
    %6263 = vmatprep.subr.mxu0 0.0
    %6264 = vmatpush1.msra.mxu0 0.0
    %6265 = vmatprep.subr.mxu0 0.0
    %6266 = vmatpush1.msra.mxu0 0.0
    %6267 = vmatprep.subr.mxu0 0.0
    %6268 = vmatpush1.msra.mxu0 0.0
    %6269 = vmatprep.subr.mxu0 0.0
    %6270 = vmatpush1.msra.mxu0 0.0
    %6271 = vmatprep.subr.mxu0 0.0
    %6272 = vmatpush1.msra.mxu0 0.0
    %6273 = vmatprep.subr.mxu0 0.0
    %6274 = vmatpush1.msra.mxu0 0.0
    %6275 = vmatprep.subr.mxu0 0.0
    %6276 = vmatpush1.msra.mxu0 0.0
    %6277 = vmatprep.subr.mxu0 0.0
    %6278 = vmatpush1.msra.mxu0 0.0
    %6279 = vmatprep.subr.mxu0 0.0
    %6280 = vmatpush1.msra.mxu0 0.0
    %6281 = vmatprep.subr.mxu0 0.0
    %6282 = vmatpush1.msra.mxu0 %v6244
    %6283 = vmatprep.subr.mxu0 0.0
    %6284 = vmatpush2.msra.mxu0 0.0
    %6285 = vmatprep.subr.mxu0 0.0
    %6286 = vmatpush2.msra.mxu0 0.0
    %6287 = vmatprep.subr.mxu0 0.0
    %6288 = vmatpush2.msra.mxu0 0.0
    %6289 = vmatprep.subr.mxu0 0.0
    %6290 = vmatpush2.msra.mxu0 0.0
    %6291 = vmatprep.subr.mxu0 0.0
    %6292 = vmatpush2.msra.mxu0 0.0
    %6293 = vmatprep.subr.mxu0 0.0
    %6294 = vmatpush2.msra.mxu0 0.0
    %6295 = vmatprep.subr.mxu0 0.0
    %6296 = vmatpush2.msra.mxu0 0.0
    %6297 = vmatprep.subr.mxu0 0.0
    %6298 = vmatpush2.msra.mxu0 0.0
    %6299 = vmatprep.subr.mxu0 0.0
    %6300 = vmatpush2.msra.mxu0 0.0
    %6301 = vmatprep.subr.mxu0 0.0
    %6302 = vmatpush2.msra.mxu0 0.0
    %6303 = vmatprep.subr.mxu0 0.0
    %6304 = vmatpush2.msra.mxu0 0.0
    %6305 = vmatprep.subr.mxu0 0.0
    %6306 = vmatpush2.msra.mxu0 0.0
    %6307 = vmatprep.subr.mxu0 0.0
    %6308 = vmatpush2.msra.mxu0 0.0
    %6309 = vmatprep.subr.mxu0 0.0
    %6310 = vmatpush2.msra.mxu0 0.0
    %6311 = vmatprep.subr.mxu0 0.0
    %6312 = vmatpush2.msra.mxu0 0.0
    %6313 = vmatprep.subr.mxu0 0.0
    %6314 = vmatpush2.msra.mxu0 0.0
    %6315 = vmatprep.mubr.f32.mxu0 0.0
    %6316 = vmatmul.mubr.f32.gmra.mxu0 %v6246
    %v6317 = vpop.f32.mrf.mxu0
    %v6318 = vadd.f32 0.0, %v6317
    %v6319 = vpop.f32.mrf.mxu0
    %6320 = vmatprep.mubr.f32.mxu0 0.0
    %6321 = vmatmul.mubr.f32.gmra.mxu0 %v6249
    %v6322 = vpop.f32.mrf.mxu0
    %v6323 = vadd.f32 0.0, %v6322
    %v6324 = vpop.f32.mrf.mxu0
    %6325 = vdwg.mxu0
    %v6326 = vadd.f32 %v5811, %v6318
    %v6327 = vadd.f32 %v5812, %v6323
    %s6328 = scalar_lea.vmem %s2, 864
    %v6329 = vld [vmem:[%s6328] sm:$0xff]
    %v6330 = vld [vmem:[%s6328 + $0x8] sm:$0xff]
    %v6331 = vld [vmem:[%s6328 + $0x10] sm:$0xff]
    %v6332 = vld [vmem:[%s6328 + $0x18] sm:$0xff]
    %6333 = vmatprep.subr.mxu0 0.0
    %6334 = vmatpush1.msra.mxu0 0.0
    %6335 = vmatprep.subr.mxu0 0.0
    %6336 = vmatpush1.msra.mxu0 0.0
    %6337 = vmatprep.subr.mxu0 0.0
    %6338 = vmatpush1.msra.mxu0 0.0
    %6339 = vmatprep.subr.mxu0 0.0
    %6340 = vmatpush1.msra.mxu0 0.0
    %6341 = vmatprep.subr.mxu0 0.0
    %6342 = vmatpush1.msra.mxu0 0.0
    %6343 = vmatprep.subr.mxu0 0.0
    %6344 = vmatpush1.msra.mxu0 0.0
    %6345 = vmatprep.subr.mxu0 0.0
    %6346 = vmatpush1.msra.mxu0 0.0
    %6347 = vmatprep.subr.mxu0 0.0
    %6348 = vmatpush1.msra.mxu0 0.0
    %6349 = vmatprep.subr.mxu0 0.0
    %6350 = vmatpush1.msra.mxu0 0.0
    %6351 = vmatprep.subr.mxu0 0.0
    %6352 = vmatpush1.msra.mxu0 0.0
    %6353 = vmatprep.subr.mxu0 0.0
    %6354 = vmatpush1.msra.mxu0 0.0
    %6355 = vmatprep.subr.mxu0 0.0
    %6356 = vmatpush1.msra.mxu0 0.0
    %6357 = vmatprep.subr.mxu0 0.0
    %6358 = vmatpush1.msra.mxu0 %v6332
    %6359 = vmatprep.subr.mxu0 0.0
    %6360 = vmatpush1.msra.mxu0 %v6331
    %6361 = vmatprep.subr.mxu0 0.0
    %6362 = vmatpush1.msra.mxu0 %v6330
    %6363 = vmatprep.subr.mxu0 0.0
    %6364 = vmatpush1.msra.mxu0 %v6329
    %6365 = vmatprep.subr.mxu0 0.0
    %6366 = vmatpush2.msra.mxu0 0.0
    %6367 = vmatprep.subr.mxu0 0.0
    %6368 = vmatpush2.msra.mxu0 0.0
    %6369 = vmatprep.subr.mxu0 0.0
    %6370 = vmatpush2.msra.mxu0 0.0
    %6371 = vmatprep.subr.mxu0 0.0
    %6372 = vmatpush2.msra.mxu0 0.0
    %6373 = vmatprep.subr.mxu0 0.0
    %6374 = vmatpush2.msra.mxu0 0.0
    %6375 = vmatprep.subr.mxu0 0.0
    %6376 = vmatpush2.msra.mxu0 0.0
    %6377 = vmatprep.subr.mxu0 0.0
    %6378 = vmatpush2.msra.mxu0 0.0
    %6379 = vmatprep.subr.mxu0 0.0
    %6380 = vmatpush2.msra.mxu0 0.0
    %6381 = vmatprep.subr.mxu0 0.0
    %6382 = vmatpush2.msra.mxu0 0.0
    %6383 = vmatprep.subr.mxu0 0.0
    %6384 = vmatpush2.msra.mxu0 0.0
    %6385 = vmatprep.subr.mxu0 0.0
    %6386 = vmatpush2.msra.mxu0 0.0
    %6387 = vmatprep.subr.mxu0 0.0
    %6388 = vmatpush2.msra.mxu0 0.0
    %6389 = vmatprep.subr.mxu0 0.0
    %6390 = vmatpush2.msra.mxu0 0.0
    %6391 = vmatprep.subr.mxu0 0.0
    %6392 = vmatpush2.msra.mxu0 0.0
    %6393 = vmatprep.subr.mxu0 0.0
    %6394 = vmatpush2.msra.mxu0 0.0
    %6395 = vmatprep.subr.mxu0 0.0
    %6396 = vmatpush2.msra.mxu0 0.0
    %6397 = vmatprep.mubr.f32.mxu0 0.0
    %6398 = vmatmul.mubr.f32.gmra.mxu0 %v4783
    %v6399 = vpop.f32.mrf.mxu0
    %v6400 = vadd.f32 0.0, %v6399
    %v6401 = vpop.f32.mrf.mxu0
    %6402 = vmatprep.mubr.f32.mxu0 0.0
    %6403 = vmatmul.mubr.f32.gmra.mxu0 %v4786
    %v6404 = vpop.f32.mrf.mxu0
    %v6405 = vadd.f32 0.0, %v6404
    %v6406 = vpop.f32.mrf.mxu0
    %6407 = vdwg.mxu0
    %s6408 = scalar_lea.vmem %s2, 992
    %v6409 = vld [vmem:[%s6408] sm:$0xff]
    %v6410 = vld [vmem:[%s6408 + $0x8] sm:$0xff]
    %v6411 = vld [vmem:[%s6408 + $0x10] sm:$0xff]
    %v6412 = vld [vmem:[%s6408 + $0x18] sm:$0xff]
    %6413 = vmatprep.subr.mxu0 0.0
    %6414 = vmatpush1.msra.mxu0 0.0
    %6415 = vmatprep.subr.mxu0 0.0
    %6416 = vmatpush1.msra.mxu0 0.0
    %6417 = vmatprep.subr.mxu0 0.0
    %6418 = vmatpush1.msra.mxu0 0.0
    %6419 = vmatprep.subr.mxu0 0.0
    %6420 = vmatpush1.msra.mxu0 0.0
    %6421 = vmatprep.subr.mxu0 0.0
    %6422 = vmatpush1.msra.mxu0 0.0
    %6423 = vmatprep.subr.mxu0 0.0
    %6424 = vmatpush1.msra.mxu0 0.0
    %6425 = vmatprep.subr.mxu0 0.0
    %6426 = vmatpush1.msra.mxu0 0.0
    %6427 = vmatprep.subr.mxu0 0.0
    %6428 = vmatpush1.msra.mxu0 0.0
    %6429 = vmatprep.subr.mxu0 0.0
    %6430 = vmatpush1.msra.mxu0 0.0
    %6431 = vmatprep.subr.mxu0 0.0
    %6432 = vmatpush1.msra.mxu0 0.0
    %6433 = vmatprep.subr.mxu0 0.0
    %6434 = vmatpush1.msra.mxu0 0.0
    %6435 = vmatprep.subr.mxu0 0.0
    %6436 = vmatpush1.msra.mxu0 0.0
    %6437 = vmatprep.subr.mxu0 0.0
    %6438 = vmatpush1.msra.mxu0 %v6412
    %6439 = vmatprep.subr.mxu0 0.0
    %6440 = vmatpush1.msra.mxu0 %v6411
    %6441 = vmatprep.subr.mxu0 0.0
    %6442 = vmatpush1.msra.mxu0 %v6410
    %6443 = vmatprep.subr.mxu0 0.0
    %6444 = vmatpush1.msra.mxu0 %v6409
    %6445 = vmatprep.subr.mxu0 0.0
    %6446 = vmatpush2.msra.mxu0 0.0
    %6447 = vmatprep.subr.mxu0 0.0
    %6448 = vmatpush2.msra.mxu0 0.0
    %6449 = vmatprep.subr.mxu0 0.0
    %6450 = vmatpush2.msra.mxu0 0.0
    %6451 = vmatprep.subr.mxu0 0.0
    %6452 = vmatpush2.msra.mxu0 0.0
    %6453 = vmatprep.subr.mxu0 0.0
    %6454 = vmatpush2.msra.mxu0 0.0
    %6455 = vmatprep.subr.mxu0 0.0
    %6456 = vmatpush2.msra.mxu0 0.0
    %6457 = vmatprep.subr.mxu0 0.0
    %6458 = vmatpush2.msra.mxu0 0.0
    %6459 = vmatprep.subr.mxu0 0.0
    %6460 = vmatpush2.msra.mxu0 0.0
    %6461 = vmatprep.subr.mxu0 0.0
    %6462 = vmatpush2.msra.mxu0 0.0
    %6463 = vmatprep.subr.mxu0 0.0
    %6464 = vmatpush2.msra.mxu0 0.0
    %6465 = vmatprep.subr.mxu0 0.0
    %6466 = vmatpush2.msra.mxu0 0.0
    %6467 = vmatprep.subr.mxu0 0.0
    %6468 = vmatpush2.msra.mxu0 0.0
    %6469 = vmatprep.subr.mxu0 0.0
    %6470 = vmatpush2.msra.mxu0 0.0
    %6471 = vmatprep.subr.mxu0 0.0
    %6472 = vmatpush2.msra.mxu0 0.0
    %6473 = vmatprep.subr.mxu0 0.0
    %6474 = vmatpush2.msra.mxu0 0.0
    %6475 = vmatprep.subr.mxu0 0.0
    %6476 = vmatpush2.msra.mxu0 0.0
    %6477 = vmatprep.mubr.f32.mxu0 0.0
    %6478 = vmatmul.mubr.f32.gmra.mxu0 %v4783
    %v6479 = vpop.f32.mrf.mxu0
    %v6480 = vadd.f32 0.0, %v6479
    %v6481 = vpop.f32.mrf.mxu0
    %6482 = vmatprep.mubr.f32.mxu0 0.0
    %6483 = vmatmul.mubr.f32.gmra.mxu0 %v4786
    %v6484 = vpop.f32.mrf.mxu0
    %v6485 = vadd.f32 0.0, %v6484
    %v6486 = vpop.f32.mrf.mxu0
    %6487 = vdwg.mxu0
    %s6488 = scalar_lea.vmem %s2, 1120
    %v6489 = vld [vmem:[%s6488] sm:$0xff]
    %v6490 = vld [vmem:[%s6488 + $0x8] sm:$0xff]
    %v6491 = vld [vmem:[%s6488 + $0x10] sm:$0xff]
    %v6492 = vld [vmem:[%s6488 + $0x18] sm:$0xff]
    %6493 = vmatprep.subr.mxu0 0.0
    %6494 = vmatpush1.msra.mxu0 0.0
    %6495 = vmatprep.subr.mxu0 0.0
    %6496 = vmatpush1.msra.mxu0 0.0
    %6497 = vmatprep.subr.mxu0 0.0
    %6498 = vmatpush1.msra.mxu0 0.0
    %6499 = vmatprep.subr.mxu0 0.0
    %6500 = vmatpush1.msra.mxu0 0.0
    %6501 = vmatprep.subr.mxu0 0.0
    %6502 = vmatpush1.msra.mxu0 0.0
    %6503 = vmatprep.subr.mxu0 0.0
    %6504 = vmatpush1.msra.mxu0 0.0
    %6505 = vmatprep.subr.mxu0 0.0
    %6506 = vmatpush1.msra.mxu0 0.0
    %6507 = vmatprep.subr.mxu0 0.0
    %6508 = vmatpush1.msra.mxu0 0.0
    %6509 = vmatprep.subr.mxu0 0.0
    %6510 = vmatpush1.msra.mxu0 0.0
    %6511 = vmatprep.subr.mxu0 0.0
    %6512 = vmatpush1.msra.mxu0 0.0
    %6513 = vmatprep.subr.mxu0 0.0
    %6514 = vmatpush1.msra.mxu0 0.0
    %6515 = vmatprep.subr.mxu0 0.0
    %6516 = vmatpush1.msra.mxu0 0.0
    %6517 = vmatprep.subr.mxu0 0.0
    %6518 = vmatpush1.msra.mxu0 %v6492
    %6519 = vmatprep.subr.mxu0 0.0
    %6520 = vmatpush1.msra.mxu0 %v6491
    %6521 = vmatprep.subr.mxu0 0.0
    %6522 = vmatpush1.msra.mxu0 %v6490
    %6523 = vmatprep.subr.mxu0 0.0
    %6524 = vmatpush1.msra.mxu0 %v6489
    %6525 = vmatprep.subr.mxu0 0.0
    %6526 = vmatpush2.msra.mxu0 0.0
    %6527 = vmatprep.subr.mxu0 0.0
    %6528 = vmatpush2.msra.mxu0 0.0
    %6529 = vmatprep.subr.mxu0 0.0
    %6530 = vmatpush2.msra.mxu0 0.0
    %6531 = vmatprep.subr.mxu0 0.0
    %6532 = vmatpush2.msra.mxu0 0.0
    %6533 = vmatprep.subr.mxu0 0.0
    %6534 = vmatpush2.msra.mxu0 0.0
    %6535 = vmatprep.subr.mxu0 0.0
    %6536 = vmatpush2.msra.mxu0 0.0
    %6537 = vmatprep.subr.mxu0 0.0
    %6538 = vmatpush2.msra.mxu0 0.0
    %6539 = vmatprep.subr.mxu0 0.0
    %6540 = vmatpush2.msra.mxu0 0.0
    %6541 = vmatprep.subr.mxu0 0.0
    %6542 = vmatpush2.msra.mxu0 0.0
    %6543 = vmatprep.subr.mxu0 0.0
    %6544 = vmatpush2.msra.mxu0 0.0
    %6545 = vmatprep.subr.mxu0 0.0
    %6546 = vmatpush2.msra.mxu0 0.0
    %6547 = vmatprep.subr.mxu0 0.0
    %6548 = vmatpush2.msra.mxu0 0.0
    %6549 = vmatprep.subr.mxu0 0.0
    %6550 = vmatpush2.msra.mxu0 0.0
    %6551 = vmatprep.subr.mxu0 0.0
    %6552 = vmatpush2.msra.mxu0 0.0
    %6553 = vmatprep.subr.mxu0 0.0
    %6554 = vmatpush2.msra.mxu0 0.0
    %6555 = vmatprep.subr.mxu0 0.0
    %6556 = vmatpush2.msra.mxu0 0.0
    %6557 = vmatprep.mubr.f32.mxu0 0.0
    %6558 = vmatmul.mubr.f32.gmra.mxu0 %v4783
    %v6559 = vpop.f32.mrf.mxu0
    %v6560 = vadd.f32 0.0, %v6559
    %v6561 = vpop.f32.mrf.mxu0
    %6562 = vmatprep.mubr.f32.mxu0 0.0
    %6563 = vmatmul.mubr.f32.gmra.mxu0 %v4786
    %v6564 = vpop.f32.mrf.mxu0
    %v6565 = vadd.f32 0.0, %v6564
    %v6566 = vpop.f32.mrf.mxu0
    %6567 = vdwg.mxu0
    %v6569 = vsel %vm334, %v6400, 0
    %v6572 = vsel %vm334, %v6405, 0
    %v6575 = vsel %vm334, %v6480, 0
    %v6578 = vsel %vm334, %v6485, 0
    %6580 = vmatprep.subr.mxu0 0.0
    %6581 = vmatpush1.xpose.msra.mxu0 0.0
    %6582 = vmatprep.subr.mxu0 0.0
    %6583 = vmatpush1.xpose.msra.mxu0 0.0
    %6584 = vmatprep.subr.mxu0 0.0
    %6585 = vmatpush1.xpose.msra.mxu0 0.0
    %6586 = vmatprep.subr.mxu0 0.0
    %6587 = vmatpush1.xpose.msra.mxu0 0.0
    %6588 = vmatprep.subr.mxu0 0.0
    %6589 = vmatpush1.xpose.msra.mxu0 0.0
    %6590 = vmatprep.subr.mxu0 0.0
    %6591 = vmatpush1.xpose.msra.mxu0 0.0
    %6592 = vmatprep.subr.mxu0 0.0
    %6593 = vmatpush1.xpose.msra.mxu0 0.0
    %6594 = vmatprep.subr.mxu0 0.0
    %6595 = vmatpush1.xpose.msra.mxu0 0.0
    %6596 = vmatprep.subr.mxu0 0.0
    %6597 = vmatpush1.xpose.msra.mxu0 0.0
    %6598 = vmatprep.subr.mxu0 0.0
    %6599 = vmatpush1.xpose.msra.mxu0 0.0
    %6600 = vmatprep.subr.mxu0 0.0
    %6601 = vmatpush1.xpose.msra.mxu0 0.0
    %6602 = vmatprep.subr.mxu0 0.0
    %6603 = vmatpush1.xpose.msra.mxu0 0.0
    %6604 = vmatprep.subr.mxu0 0.0
    %6605 = vmatpush1.xpose.msra.mxu0 0.0
    %6606 = vmatprep.subr.mxu0 0.0
    %6607 = vmatpush1.xpose.msra.mxu0 0.0
    %6608 = vmatprep.subr.mxu0 0.0
    %6609 = vmatpush1.xpose.msra.mxu0 %v6578
    %6610 = vmatprep.subr.mxu0 0.0
    %6611 = vmatpush1.xpose.msra.mxu0 %v6575
    %6612 = vmatprep.subr.mxu0 0.0
    %6613 = vmatpush2.xpose.msra.mxu0 0.0
    %6614 = vmatprep.subr.mxu0 0.0
    %6615 = vmatpush2.xpose.msra.mxu0 0.0
    %6616 = vmatprep.subr.mxu0 0.0
    %6617 = vmatpush2.xpose.msra.mxu0 0.0
    %6618 = vmatprep.subr.mxu0 0.0
    %6619 = vmatpush2.xpose.msra.mxu0 0.0
    %6620 = vmatprep.subr.mxu0 0.0
    %6621 = vmatpush2.xpose.msra.mxu0 0.0
    %6622 = vmatprep.subr.mxu0 0.0
    %6623 = vmatpush2.xpose.msra.mxu0 0.0
    %6624 = vmatprep.subr.mxu0 0.0
    %6625 = vmatpush2.xpose.msra.mxu0 0.0
    %6626 = vmatprep.subr.mxu0 0.0
    %6627 = vmatpush2.xpose.msra.mxu0 0.0
    %6628 = vmatprep.subr.mxu0 0.0
    %6629 = vmatpush2.xpose.msra.mxu0 0.0
    %6630 = vmatprep.subr.mxu0 0.0
    %6631 = vmatpush2.xpose.msra.mxu0 0.0
    %6632 = vmatprep.subr.mxu0 0.0
    %6633 = vmatpush2.xpose.msra.mxu0 0.0
    %6634 = vmatprep.subr.mxu0 0.0
    %6635 = vmatpush2.xpose.msra.mxu0 0.0
    %6636 = vmatprep.subr.mxu0 0.0
    %6637 = vmatpush2.xpose.msra.mxu0 0.0
    %6638 = vmatprep.subr.mxu0 0.0
    %6639 = vmatpush2.xpose.msra.mxu0 0.0
    %6640 = vmatprep.subr.mxu0 0.0
    %6641 = vmatpush2.xpose.msra.mxu0 0.0
    %6642 = vmatprep.subr.mxu0 0.0
    %6643 = vmatpush2.xpose.msra.mxu0 0.0
    %6644 = vmatprep.mubr.f32.mxu0 0.0
    %6645 = vmatmul.mubr.f32.gmra.mxu0 %v6569
    %v6646 = vpop.f32.mrf.mxu0
    %v6647 = vadd.f32 %v46, %v6646
    %v6648 = vpop.f32.mrf.mxu0
    %6649 = vmatprep.mubr.f32.mxu0 0.0
    %6650 = vmatmul.mubr.f32.gmra.mxu0 %v6572
    %v6651 = vpop.f32.mrf.mxu0
    %v6652 = vadd.f32 %v47, %v6651
    %v6653 = vpop.f32.mrf.mxu0
    %6654 = vdwg.mxu0
    %v6655 = vsel %vm422, %v6647, -inf
    %6656 = vmax.xlane.f32.xlu0 %v6655
    %v6657 = vpop.xlane.xlu0 %6656
    %v6658 = vsel %vm422, %v6652, -inf
    %6659 = vmax.xlane.f32.xlu0 %v6658
    %v6660 = vpop.xlane.xlu0 %6659
    %v6661 = vsub.f32 %v6647, %v6657
    %v6662 = vsub.f32 %v6652, %v6660
    %v6663 = vmul.f32 %v6661, 1.442695
    %v6664 = vpow.pop %v6663
    %v6665 = vmul.f32 %v6662, 1.442695
    %v6666 = vpow.pop %v6665
    %v6667 = vsel %vm422, %v6664, 0.0
    %6668 = vadd.xlane.f32.xlu0 %v6667
    %v6669 = vpop.xlane.xlu0 %6668
    %v6670 = vsel %vm422, %v6666, 0.0
    %6671 = vadd.xlane.f32.xlu0 %v6670
    %v6672 = vpop.xlane.xlu0 %6671
    %v6673 = vrcp.pop %v6669
    %v6674 = vrcp.pop %v6672
    %v6675 = vmul.f32 %v6664, %v6673
    %v6676 = vmul.f32 %v6666, %v6674
    %v6678 = vsel %vm422, %v6675, 0
    %v6681 = vsel %vm422, %v6676, 0
    %6683 = vmatprep.subr.mxu0 0.0
    %6684 = vmatpush1.msra.mxu0 0.0
    %6685 = vmatprep.subr.mxu0 0.0
    %6686 = vmatpush1.msra.mxu0 0.0
    %6687 = vmatprep.subr.mxu0 0.0
    %6688 = vmatpush1.msra.mxu0 0.0
    %6689 = vmatprep.subr.mxu0 0.0
    %6690 = vmatpush1.msra.mxu0 0.0
    %6691 = vmatprep.subr.mxu0 0.0
    %6692 = vmatpush1.msra.mxu0 0.0
    %6693 = vmatprep.subr.mxu0 0.0
    %6694 = vmatpush1.msra.mxu0 0.0
    %6695 = vmatprep.subr.mxu0 0.0
    %6696 = vmatpush1.msra.mxu0 0.0
    %6697 = vmatprep.subr.mxu0 0.0
    %6698 = vmatpush1.msra.mxu0 0.0
    %6699 = vmatprep.subr.mxu0 0.0
    %6700 = vmatpush1.msra.mxu0 0.0
    %6701 = vmatprep.subr.mxu0 0.0
    %6702 = vmatpush1.msra.mxu0 0.0
    %6703 = vmatprep.subr.mxu0 0.0
    %6704 = vmatpush1.msra.mxu0 0.0
    %6705 = vmatprep.subr.mxu0 0.0
    %6706 = vmatpush1.msra.mxu0 0.0
    %6707 = vmatprep.subr.mxu0 0.0
    %6708 = vmatpush1.msra.mxu0 0.0
    %6709 = vmatprep.subr.mxu0 0.0
    %6710 = vmatpush1.msra.mxu0 0.0
    %6711 = vmatprep.subr.mxu0 0.0
    %6712 = vmatpush1.msra.mxu0 %v6565
    %6713 = vmatprep.subr.mxu0 0.0
    %6714 = vmatpush1.msra.mxu0 %v6560
    %6715 = vmatprep.subr.mxu0 0.0
    %6716 = vmatpush2.msra.mxu0 0.0
    %6717 = vmatprep.subr.mxu0 0.0
    %6718 = vmatpush2.msra.mxu0 0.0
    %6719 = vmatprep.subr.mxu0 0.0
    %6720 = vmatpush2.msra.mxu0 0.0
    %6721 = vmatprep.subr.mxu0 0.0
    %6722 = vmatpush2.msra.mxu0 0.0
    %6723 = vmatprep.subr.mxu0 0.0
    %6724 = vmatpush2.msra.mxu0 0.0
    %6725 = vmatprep.subr.mxu0 0.0
    %6726 = vmatpush2.msra.mxu0 0.0
    %6727 = vmatprep.subr.mxu0 0.0
    %6728 = vmatpush2.msra.mxu0 0.0
    %6729 = vmatprep.subr.mxu0 0.0
    %6730 = vmatpush2.msra.mxu0 0.0
    %6731 = vmatprep.subr.mxu0 0.0
    %6732 = vmatpush2.msra.mxu0 0.0
    %6733 = vmatprep.subr.mxu0 0.0
    %6734 = vmatpush2.msra.mxu0 0.0
    %6735 = vmatprep.subr.mxu0 0.0
    %6736 = vmatpush2.msra.mxu0 0.0
    %6737 = vmatprep.subr.mxu0 0.0
    %6738 = vmatpush2.msra.mxu0 0.0
    %6739 = vmatprep.subr.mxu0 0.0
    %6740 = vmatpush2.msra.mxu0 0.0
    %6741 = vmatprep.subr.mxu0 0.0
    %6742 = vmatpush2.msra.mxu0 0.0
    %6743 = vmatprep.subr.mxu0 0.0
    %6744 = vmatpush2.msra.mxu0 0.0
    %6745 = vmatprep.subr.mxu0 0.0
    %6746 = vmatpush2.msra.mxu0 0.0
    %6747 = vmatprep.mubr.f32.mxu0 0.0
    %6748 = vmatmul.mubr.f32.gmra.mxu0 %v6678
    %v6749 = vpop.f32.mrf.mxu0
    %v6750 = vadd.f32 0.0, %v6749
    %v6751 = vpop.f32.mrf.mxu0
    %6752 = vmatprep.mubr.f32.mxu0 0.0
    %6753 = vmatmul.mubr.f32.gmra.mxu0 %v6681
    %v6754 = vpop.f32.mrf.mxu0
    %v6755 = vadd.f32 0.0, %v6754
    %v6756 = vpop.f32.mrf.mxu0
    %6757 = vdwg.mxu0
    %s6758 = scalar_lea.vmem %s3, 88
    %v6759 = vld [vmem:[%s6758] sm:$0xff]
    %v6761 = vsel %vm334, %v6750, 0
    %v6764 = vsel %vm334, %v6755, 0
    %6766 = vmatprep.subr.mxu0 0.0
    %6767 = vmatpush1.msra.mxu0 0.0
    %6768 = vmatprep.subr.mxu0 0.0
    %6769 = vmatpush1.msra.mxu0 0.0
    %6770 = vmatprep.subr.mxu0 0.0
    %6771 = vmatpush1.msra.mxu0 0.0
    %6772 = vmatprep.subr.mxu0 0.0
    %6773 = vmatpush1.msra.mxu0 0.0
    %6774 = vmatprep.subr.mxu0 0.0
    %6775 = vmatpush1.msra.mxu0 0.0
    %6776 = vmatprep.subr.mxu0 0.0
    %6777 = vmatpush1.msra.mxu0 0.0
    %6778 = vmatprep.subr.mxu0 0.0
    %6779 = vmatpush1.msra.mxu0 0.0
    %6780 = vmatprep.subr.mxu0 0.0
    %6781 = vmatpush1.msra.mxu0 0.0
    %6782 = vmatprep.subr.mxu0 0.0
    %6783 = vmatpush1.msra.mxu0 0.0
    %6784 = vmatprep.subr.mxu0 0.0
    %6785 = vmatpush1.msra.mxu0 0.0
    %6786 = vmatprep.subr.mxu0 0.0
    %6787 = vmatpush1.msra.mxu0 0.0
    %6788 = vmatprep.subr.mxu0 0.0
    %6789 = vmatpush1.msra.mxu0 0.0
    %6790 = vmatprep.subr.mxu0 0.0
    %6791 = vmatpush1.msra.mxu0 0.0
    %6792 = vmatprep.subr.mxu0 0.0
    %6793 = vmatpush1.msra.mxu0 0.0
    %6794 = vmatprep.subr.mxu0 0.0
    %6795 = vmatpush1.msra.mxu0 0.0
    %6796 = vmatprep.subr.mxu0 0.0
    %6797 = vmatpush1.msra.mxu0 %v6759
    %6798 = vmatprep.subr.mxu0 0.0
    %6799 = vmatpush2.msra.mxu0 0.0
    %6800 = vmatprep.subr.mxu0 0.0
    %6801 = vmatpush2.msra.mxu0 0.0
    %6802 = vmatprep.subr.mxu0 0.0
    %6803 = vmatpush2.msra.mxu0 0.0
    %6804 = vmatprep.subr.mxu0 0.0
    %6805 = vmatpush2.msra.mxu0 0.0
    %6806 = vmatprep.subr.mxu0 0.0
    %6807 = vmatpush2.msra.mxu0 0.0
    %6808 = vmatprep.subr.mxu0 0.0
    %6809 = vmatpush2.msra.mxu0 0.0
    %6810 = vmatprep.subr.mxu0 0.0
    %6811 = vmatpush2.msra.mxu0 0.0
    %6812 = vmatprep.subr.mxu0 0.0
    %6813 = vmatpush2.msra.mxu0 0.0
    %6814 = vmatprep.subr.mxu0 0.0
    %6815 = vmatpush2.msra.mxu0 0.0
    %6816 = vmatprep.subr.mxu0 0.0
    %6817 = vmatpush2.msra.mxu0 0.0
    %6818 = vmatprep.subr.mxu0 0.0
    %6819 = vmatpush2.msra.mxu0 0.0
    %6820 = vmatprep.subr.mxu0 0.0
    %6821 = vmatpush2.msra.mxu0 0.0
    %6822 = vmatprep.subr.mxu0 0.0
    %6823 = vmatpush2.msra.mxu0 0.0
    %6824 = vmatprep.subr.mxu0 0.0
    %6825 = vmatpush2.msra.mxu0 0.0
    %6826 = vmatprep.subr.mxu0 0.0
    %6827 = vmatpush2.msra.mxu0 0.0
    %6828 = vmatprep.subr.mxu0 0.0
    %6829 = vmatpush2.msra.mxu0 0.0
    %6830 = vmatprep.mubr.f32.mxu0 0.0
    %6831 = vmatmul.mubr.f32.gmra.mxu0 %v6761
    %v6832 = vpop.f32.mrf.mxu0
    %v6833 = vadd.f32 0.0, %v6832
    %v6834 = vpop.f32.mrf.mxu0
    %6835 = vmatprep.mubr.f32.mxu0 0.0
    %6836 = vmatmul.mubr.f32.gmra.mxu0 %v6764
    %v6837 = vpop.f32.mrf.mxu0
    %v6838 = vadd.f32 0.0, %v6837
    %v6839 = vpop.f32.mrf.mxu0
    %6840 = vdwg.mxu0
    %v6841 = vadd.f32 %v6326, %v6833
    %v6842 = vadd.f32 %v6327, %v6838
    %v6843 = vsel %vm49, %v6841, 0.0
    %6844 = vadd.xlane.f32.xlu0 %v6843
    %v6845 = vpop.xlane.xlu0 %6844
    %v6846 = vsel %vm49, %v6842, 0.0
    %6847 = vadd.xlane.f32.xlu0 %v6846
    %v6848 = vpop.xlane.xlu0 %6847
    %v6849 = vmul.f32 %v6845, %v56
    %v6850 = vmul.f32 %v6848, %v56
    %v6851 = vsub.f32 %v6841, %v6849
    %v6852 = vsub.f32 %v6842, %v6850
    %v6853 = vmul.f32 %v6851, %v6851
    %v6854 = vmul.f32 %v6852, %v6852
    %v6855 = vsel %vm49, %v6853, 0.0
    %6856 = vadd.xlane.f32.xlu0 %v6855
    %v6857 = vpop.xlane.xlu0 %6856
    %v6858 = vsel %vm49, %v6854, 0.0
    %6859 = vadd.xlane.f32.xlu0 %v6858
    %v6860 = vpop.xlane.xlu0 %6859
    %v6861 = vmul.f32 %v6857, %v56
    %v6862 = vmul.f32 %v6860, %v56
    %v6863 = vadd.f32 %v6861, 1e-05
    %v6864 = vadd.f32 %v6862, 1e-05
    %v6865 = vrsqrt.pop %v6863
    %v6866 = vrsqrt.pop %v6864
    %v6867 = vmul.f32 %v6851, %v6865
    %v6868 = vmul.f32 %v6852, %v6866
    %v6869 = vlaneseq
    %v6870 = vshrl.u32 %v6869, 7
    %v6871 = vsub.s32 2, %v6870
    %v6872 = vrot.slane %v4738, %v6871
    %v6873 = vmul.f32 %v6867, %v6872
    %v6874 = vmul.f32 %v6868, %v6872
    %v6875 = vlaneseq
    %v6876 = vshrl.u32 %v6875, 7
    %v6877 = vsub.s32 3, %v6876
    %v6878 = vrot.slane %v4738, %v6877
    %v6879 = vadd.f32 %v6873, %v6878
    %v6880 = vadd.f32 %v6874, %v6878
    %s6881 = scalar_lea.vmem %s4, 64
    %v6882 = vld [vmem:[%s6881] sm:$0xff]
    %v6883 = vld [vmem:[%s6881 + $0x8] sm:$0xff]
    %v6884 = vld [vmem:[%s6881 + $0x10] sm:$0xff]
    %v6885 = vld [vmem:[%s6881 + $0x18] sm:$0xff]
    %v6886 = vld [vmem:[%s6 + $0x2] sm:$0x1]
    %v6887 = vlaneseq
    %v6888 = vshrl.u32 %v6887, 7
    %v6889 = vsub.s32 0, %v6888
    %v6890 = vrot.slane %v6886, %v6889
    %v6892 = vsel %vm49, %v6879, 0
    %v6895 = vsel %vm49, %v6880, 0
    %6897 = vmatprep.subr.mxu0 0.0
    %6898 = vmatpush1.msra.mxu0 0.0
    %6899 = vmatprep.subr.mxu0 0.0
    %6900 = vmatpush1.msra.mxu0 0.0
    %6901 = vmatprep.subr.mxu0 0.0
    %6902 = vmatpush1.msra.mxu0 0.0
    %6903 = vmatprep.subr.mxu0 0.0
    %6904 = vmatpush1.msra.mxu0 0.0
    %6905 = vmatprep.subr.mxu0 0.0
    %6906 = vmatpush1.msra.mxu0 0.0
    %6907 = vmatprep.subr.mxu0 0.0
    %6908 = vmatpush1.msra.mxu0 0.0
    %6909 = vmatprep.subr.mxu0 0.0
    %6910 = vmatpush1.msra.mxu0 0.0
    %6911 = vmatprep.subr.mxu0 0.0
    %6912 = vmatpush1.msra.mxu0 0.0
    %6913 = vmatprep.subr.mxu0 0.0
    %6914 = vmatpush1.msra.mxu0 0.0
    %6915 = vmatprep.subr.mxu0 0.0
    %6916 = vmatpush1.msra.mxu0 0.0
    %6917 = vmatprep.subr.mxu0 0.0
    %6918 = vmatpush1.msra.mxu0 0.0
    %6919 = vmatprep.subr.mxu0 0.0
    %6920 = vmatpush1.msra.mxu0 0.0
    %6921 = vmatprep.subr.mxu0 0.0
    %6922 = vmatpush1.msra.mxu0 %v6885
    %6923 = vmatprep.subr.mxu0 0.0
    %6924 = vmatpush1.msra.mxu0 %v6884
    %6925 = vmatprep.subr.mxu0 0.0
    %6926 = vmatpush1.msra.mxu0 %v6883
    %6927 = vmatprep.subr.mxu0 0.0
    %6928 = vmatpush1.msra.mxu0 %v6882
    %6929 = vmatprep.subr.mxu0 0.0
    %6930 = vmatpush2.msra.mxu0 0.0
    %6931 = vmatprep.subr.mxu0 0.0
    %6932 = vmatpush2.msra.mxu0 0.0
    %6933 = vmatprep.subr.mxu0 0.0
    %6934 = vmatpush2.msra.mxu0 0.0
    %6935 = vmatprep.subr.mxu0 0.0
    %6936 = vmatpush2.msra.mxu0 0.0
    %6937 = vmatprep.subr.mxu0 0.0
    %6938 = vmatpush2.msra.mxu0 0.0
    %6939 = vmatprep.subr.mxu0 0.0
    %6940 = vmatpush2.msra.mxu0 0.0
    %6941 = vmatprep.subr.mxu0 0.0
    %6942 = vmatpush2.msra.mxu0 0.0
    %6943 = vmatprep.subr.mxu0 0.0
    %6944 = vmatpush2.msra.mxu0 0.0
    %6945 = vmatprep.subr.mxu0 0.0
    %6946 = vmatpush2.msra.mxu0 0.0
    %6947 = vmatprep.subr.mxu0 0.0
    %6948 = vmatpush2.msra.mxu0 0.0
    %6949 = vmatprep.subr.mxu0 0.0
    %6950 = vmatpush2.msra.mxu0 0.0
    %6951 = vmatprep.subr.mxu0 0.0
    %6952 = vmatpush2.msra.mxu0 0.0
    %6953 = vmatprep.subr.mxu0 0.0
    %6954 = vmatpush2.msra.mxu0 0.0
    %6955 = vmatprep.subr.mxu0 0.0
    %6956 = vmatpush2.msra.mxu0 0.0
    %6957 = vmatprep.subr.mxu0 0.0
    %6958 = vmatpush2.msra.mxu0 0.0
    %6959 = vmatprep.subr.mxu0 0.0
    %6960 = vmatpush2.msra.mxu0 0.0
    %6961 = vmatprep.mubr.f32.mxu0 0.0
    %6962 = vmatmul.mubr.f32.gmra.mxu0 %v6892
    %v6963 = vpop.f32.mrf.mxu0
    %v6964 = vadd.f32 %v6890, %v6963
    %v6965 = vpop.f32.mrf.mxu0
    %6966 = vmatprep.mubr.f32.mxu0 0.0
    %6967 = vmatmul.mubr.f32.gmra.mxu0 %v6895
    %v6968 = vpop.f32.mrf.mxu0
    %v6969 = vadd.f32 %v6890, %v6968
    %v6970 = vpop.f32.mrf.mxu0
    %6971 = vdwg.mxu0
    %v6972 = vmul.f32 %v6964, 0.5
    %v6973 = vmul.f32 %v6969, 0.5
    %v6974 = vmul.f32 %v6964, 0.70710677
    %v6975 = vmul.f32 %v6969, 0.70710677
    %v6976 = verf.f32.pop %v6974
    %v6977 = verf.f32.pop %v6975
    %v6978 = vadd.f32 %v6976, 1.0
    %v6979 = vadd.f32 %v6977, 1.0
    %v6980 = vmul.f32 %v6972, %v6978
    %v6981 = vmul.f32 %v6973, %v6979
    %s6982 = scalar_lea.vmem %s5, 256
    %v6983 = vld [vmem:[%s6982] sm:$0xff]
    %v6984 = vld [vmem:[%s6982 + $0x8] sm:$0xff]
    %v6985 = vld [vmem:[%s6982 + $0x10] sm:$0xff]
    %v6986 = vld [vmem:[%s6982 + $0x18] sm:$0xff]
    %v6987 = vld [vmem:[%s6982 + $0x20] sm:$0xff]
    %v6988 = vld [vmem:[%s6982 + $0x28] sm:$0xff]
    %v6989 = vld [vmem:[%s6982 + $0x30] sm:$0xff]
    %v6990 = vld [vmem:[%s6982 + $0x38] sm:$0xff]
    %v6991 = vld [vmem:[%s6982 + $0x40] sm:$0xff]
    %v6992 = vld [vmem:[%s6982 + $0x48] sm:$0xff]
    %v6993 = vld [vmem:[%s6982 + $0x50] sm:$0xff]
    %v6994 = vld [vmem:[%s6982 + $0x58] sm:$0xff]
    %v6995 = vld [vmem:[%s6982 + $0x60] sm:$0xff]
    %v6996 = vld [vmem:[%s6982 + $0x68] sm:$0xff]
    %v6997 = vld [vmem:[%s6982 + $0x70] sm:$0xff]
    %v6998 = vld [vmem:[%s6982 + $0x78] sm:$0xff]
    %6999 = vmatprep.subr.mxu0 0.0
    %7000 = vmatpush1.msra.mxu0 %v6998
    %7001 = vmatprep.subr.mxu0 0.0
    %7002 = vmatpush1.msra.mxu0 %v6997
    %7003 = vmatprep.subr.mxu0 0.0
    %7004 = vmatpush1.msra.mxu0 %v6996
    %7005 = vmatprep.subr.mxu0 0.0
    %7006 = vmatpush1.msra.mxu0 %v6995
    %7007 = vmatprep.subr.mxu0 0.0
    %7008 = vmatpush1.msra.mxu0 %v6994
    %7009 = vmatprep.subr.mxu0 0.0
    %7010 = vmatpush1.msra.mxu0 %v6993
    %7011 = vmatprep.subr.mxu0 0.0
    %7012 = vmatpush1.msra.mxu0 %v6992
    %7013 = vmatprep.subr.mxu0 0.0
    %7014 = vmatpush1.msra.mxu0 %v6991
    %7015 = vmatprep.subr.mxu0 0.0
    %7016 = vmatpush1.msra.mxu0 %v6990
    %7017 = vmatprep.subr.mxu0 0.0
    %7018 = vmatpush1.msra.mxu0 %v6989
    %7019 = vmatprep.subr.mxu0 0.0
    %7020 = vmatpush1.msra.mxu0 %v6988
    %7021 = vmatprep.subr.mxu0 0.0
    %7022 = vmatpush1.msra.mxu0 %v6987
    %7023 = vmatprep.subr.mxu0 0.0
    %7024 = vmatpush1.msra.mxu0 %v6986
    %7025 = vmatprep.subr.mxu0 0.0
    %7026 = vmatpush1.msra.mxu0 %v6985
    %7027 = vmatprep.subr.mxu0 0.0
    %7028 = vmatpush1.msra.mxu0 %v6984
    %7029 = vmatprep.subr.mxu0 0.0
    %7030 = vmatpush1.msra.mxu0 %v6983
    %7031 = vmatprep.subr.mxu0 0.0
    %7032 = vmatpush2.msra.mxu0 0.0
    %7033 = vmatprep.subr.mxu0 0.0
    %7034 = vmatpush2.msra.mxu0 0.0
    %7035 = vmatprep.subr.mxu0 0.0
    %7036 = vmatpush2.msra.mxu0 0.0
    %7037 = vmatprep.subr.mxu0 0.0
    %7038 = vmatpush2.msra.mxu0 0.0
    %7039 = vmatprep.subr.mxu0 0.0
    %7040 = vmatpush2.msra.mxu0 0.0
    %7041 = vmatprep.subr.mxu0 0.0
    %7042 = vmatpush2.msra.mxu0 0.0
    %7043 = vmatprep.subr.mxu0 0.0
    %7044 = vmatpush2.msra.mxu0 0.0
    %7045 = vmatprep.subr.mxu0 0.0
    %7046 = vmatpush2.msra.mxu0 0.0
    %7047 = vmatprep.subr.mxu0 0.0
    %7048 = vmatpush2.msra.mxu0 0.0
    %7049 = vmatprep.subr.mxu0 0.0
    %7050 = vmatpush2.msra.mxu0 0.0
    %7051 = vmatprep.subr.mxu0 0.0
    %7052 = vmatpush2.msra.mxu0 0.0
    %7053 = vmatprep.subr.mxu0 0.0
    %7054 = vmatpush2.msra.mxu0 0.0
    %7055 = vmatprep.subr.mxu0 0.0
    %7056 = vmatpush2.msra.mxu0 0.0
    %7057 = vmatprep.subr.mxu0 0.0
    %7058 = vmatpush2.msra.mxu0 0.0
    %7059 = vmatprep.subr.mxu0 0.0
    %7060 = vmatpush2.msra.mxu0 0.0
    %7061 = vmatprep.subr.mxu0 0.0
    %7062 = vmatpush2.msra.mxu0 0.0
    %7063 = vmatprep.mubr.f32.mxu0 0.0
    %7064 = vmatmul.mubr.f32.gmra.mxu0 %v6980
    %v7065 = vpop.f32.mrf.mxu0
    %v7066 = vadd.f32 0.0, %v7065
    %v7067 = vpop.f32.mrf.mxu0
    %7068 = vmatprep.mubr.f32.mxu0 0.0
    %7069 = vmatmul.mubr.f32.gmra.mxu0 %v6981
    %v7070 = vpop.f32.mrf.mxu0
    %v7071 = vadd.f32 0.0, %v7070
    %v7072 = vpop.f32.mrf.mxu0
    %7073 = vdwg.mxu0
    %v7074 = vadd.f32 %v6841, %v7066
    %v7075 = vadd.f32 %v6842, %v7071
    %v7076 = vlaneseq
    %v7077 = vshrl.u32 %v7076, 7
    %v7078 = vsub.s32 4, %v7077
    %v7079 = vrot.slane %v4738, %v7078
    %v7080 = vadd.f32 %v7074, %v7079
    %v7081 = vadd.f32 %v7075, %v7079
    %s7082 = scalar_lea.vmem %s1, 24
    %v7083 = vld [vmem:[%s7082] sm:$0x1f]
    %v7084 = vsel %vm49, %v7080, 0.0
    %7085 = vadd.xlane.f32.xlu0 %v7084
    %v7086 = vpop.xlane.xlu0 %7085
    %v7087 = vsel %vm49, %v7081, 0.0
    %7088 = vadd.xlane.f32.xlu0 %v7087
    %v7089 = vpop.xlane.xlu0 %7088
    %v7090 = vmul.f32 %v7086, %v56
    %v7091 = vmul.f32 %v7089, %v56
    %v7092 = vsub.f32 %v7080, %v7090
    %v7093 = vsub.f32 %v7081, %v7091
    %v7094 = vmul.f32 %v7092, %v7092
    %v7095 = vmul.f32 %v7093, %v7093
    %v7096 = vsel %vm49, %v7094, 0.0
    %7097 = vadd.xlane.f32.xlu0 %v7096
    %v7098 = vpop.xlane.xlu0 %7097
    %v7099 = vsel %vm49, %v7095, 0.0
    %7100 = vadd.xlane.f32.xlu0 %v7099
    %v7101 = vpop.xlane.xlu0 %7100
    %v7102 = vmul.f32 %v7098, %v56
    %v7103 = vmul.f32 %v7101, %v56
    %v7104 = vadd.f32 %v7102, 1e-05
    %v7105 = vadd.f32 %v7103, 1e-05
    %v7106 = vrsqrt.pop %v7104
    %v7107 = vrsqrt.pop %v7105
    %v7108 = vmul.f32 %v7092, %v7106
    %v7109 = vmul.f32 %v7093, %v7107
    %v7110 = vlaneseq
    %v7111 = vshrl.u32 %v7110, 7
    %v7112 = vsub.s32 0, %v7111
    %v7113 = vrot.slane %v7083, %v7112
    %v7114 = vmul.f32 %v7108, %v7113
    %v7115 = vmul.f32 %v7109, %v7113
    %v7116 = vlaneseq
    %v7117 = vshrl.u32 %v7116, 7
    %v7118 = vsub.s32 1, %v7117
    %v7119 = vrot.slane %v7083, %v7118
    %v7120 = vadd.f32 %v7114, %v7119
    %v7121 = vadd.f32 %v7115, %v7119
    %s7122 = scalar_lea.vmem %s2, 1152
    %v7123 = vld [vmem:[%s7122] sm:$0xff]
    %v7124 = vld [vmem:[%s7122 + $0x8] sm:$0xff]
    %v7125 = vld [vmem:[%s7122 + $0x10] sm:$0xff]
    %v7126 = vld [vmem:[%s7122 + $0x18] sm:$0xff]
    %v7128 = vsel %vm49, %v7120, 0
    %v7131 = vsel %vm49, %v7121, 0
    %7133 = vmatprep.subr.mxu0 0.0
    %7134 = vmatpush1.msra.mxu0 0.0
    %7135 = vmatprep.subr.mxu0 0.0
    %7136 = vmatpush1.msra.mxu0 0.0
    %7137 = vmatprep.subr.mxu0 0.0
    %7138 = vmatpush1.msra.mxu0 0.0
    %7139 = vmatprep.subr.mxu0 0.0
    %7140 = vmatpush1.msra.mxu0 0.0
    %7141 = vmatprep.subr.mxu0 0.0
    %7142 = vmatpush1.msra.mxu0 0.0
    %7143 = vmatprep.subr.mxu0 0.0
    %7144 = vmatpush1.msra.mxu0 0.0
    %7145 = vmatprep.subr.mxu0 0.0
    %7146 = vmatpush1.msra.mxu0 0.0
    %7147 = vmatprep.subr.mxu0 0.0
    %7148 = vmatpush1.msra.mxu0 0.0
    %7149 = vmatprep.subr.mxu0 0.0
    %7150 = vmatpush1.msra.mxu0 0.0
    %7151 = vmatprep.subr.mxu0 0.0
    %7152 = vmatpush1.msra.mxu0 0.0
    %7153 = vmatprep.subr.mxu0 0.0
    %7154 = vmatpush1.msra.mxu0 0.0
    %7155 = vmatprep.subr.mxu0 0.0
    %7156 = vmatpush1.msra.mxu0 0.0
    %7157 = vmatprep.subr.mxu0 0.0
    %7158 = vmatpush1.msra.mxu0 %v7126
    %7159 = vmatprep.subr.mxu0 0.0
    %7160 = vmatpush1.msra.mxu0 %v7125
    %7161 = vmatprep.subr.mxu0 0.0
    %7162 = vmatpush1.msra.mxu0 %v7124
    %7163 = vmatprep.subr.mxu0 0.0
    %7164 = vmatpush1.msra.mxu0 %v7123
    %7165 = vmatprep.subr.mxu0 0.0
    %7166 = vmatpush2.msra.mxu0 0.0
    %7167 = vmatprep.subr.mxu0 0.0
    %7168 = vmatpush2.msra.mxu0 0.0
    %7169 = vmatprep.subr.mxu0 0.0
    %7170 = vmatpush2.msra.mxu0 0.0
    %7171 = vmatprep.subr.mxu0 0.0
    %7172 = vmatpush2.msra.mxu0 0.0
    %7173 = vmatprep.subr.mxu0 0.0
    %7174 = vmatpush2.msra.mxu0 0.0
    %7175 = vmatprep.subr.mxu0 0.0
    %7176 = vmatpush2.msra.mxu0 0.0
    %7177 = vmatprep.subr.mxu0 0.0
    %7178 = vmatpush2.msra.mxu0 0.0
    %7179 = vmatprep.subr.mxu0 0.0
    %7180 = vmatpush2.msra.mxu0 0.0
    %7181 = vmatprep.subr.mxu0 0.0
    %7182 = vmatpush2.msra.mxu0 0.0
    %7183 = vmatprep.subr.mxu0 0.0
    %7184 = vmatpush2.msra.mxu0 0.0
    %7185 = vmatprep.subr.mxu0 0.0
    %7186 = vmatpush2.msra.mxu0 0.0
    %7187 = vmatprep.subr.mxu0 0.0
    %7188 = vmatpush2.msra.mxu0 0.0
    %7189 = vmatprep.subr.mxu0 0.0
    %7190 = vmatpush2.msra.mxu0 0.0
    %7191 = vmatprep.subr.mxu0 0.0
    %7192 = vmatpush2.msra.mxu0 0.0
    %7193 = vmatprep.subr.mxu0 0.0
    %7194 = vmatpush2.msra.mxu0 0.0
    %7195 = vmatprep.subr.mxu0 0.0
    %7196 = vmatpush2.msra.mxu0 0.0
    %7197 = vmatprep.mubr.f32.mxu0 0.0
    %7198 = vmatmul.mubr.f32.gmra.mxu0 %v7128
    %v7199 = vpop.f32.mrf.mxu0
    %v7200 = vadd.f32 0.0, %v7199
    %v7201 = vpop.f32.mrf.mxu0
    %7202 = vmatprep.mubr.f32.mxu0 0.0
    %7203 = vmatmul.mubr.f32.gmra.mxu0 %v7131
    %v7204 = vpop.f32.mrf.mxu0
    %v7205 = vadd.f32 0.0, %v7204
    %v7206 = vpop.f32.mrf.mxu0
    %7207 = vdwg.mxu0
    %s7208 = scalar_lea.vmem %s2, 1280
    %v7209 = vld [vmem:[%s7208] sm:$0xff]
    %v7210 = vld [vmem:[%s7208 + $0x8] sm:$0xff]
    %v7211 = vld [vmem:[%s7208 + $0x10] sm:$0xff]
    %v7212 = vld [vmem:[%s7208 + $0x18] sm:$0xff]
    %7213 = vmatprep.subr.mxu0 0.0
    %7214 = vmatpush1.msra.mxu0 0.0
    %7215 = vmatprep.subr.mxu0 0.0
    %7216 = vmatpush1.msra.mxu0 0.0
    %7217 = vmatprep.subr.mxu0 0.0
    %7218 = vmatpush1.msra.mxu0 0.0
    %7219 = vmatprep.subr.mxu0 0.0
    %7220 = vmatpush1.msra.mxu0 0.0
    %7221 = vmatprep.subr.mxu0 0.0
    %7222 = vmatpush1.msra.mxu0 0.0
    %7223 = vmatprep.subr.mxu0 0.0
    %7224 = vmatpush1.msra.mxu0 0.0
    %7225 = vmatprep.subr.mxu0 0.0
    %7226 = vmatpush1.msra.mxu0 0.0
    %7227 = vmatprep.subr.mxu0 0.0
    %7228 = vmatpush1.msra.mxu0 0.0
    %7229 = vmatprep.subr.mxu0 0.0
    %7230 = vmatpush1.msra.mxu0 0.0
    %7231 = vmatprep.subr.mxu0 0.0
    %7232 = vmatpush1.msra.mxu0 0.0
    %7233 = vmatprep.subr.mxu0 0.0
    %7234 = vmatpush1.msra.mxu0 0.0
    %7235 = vmatprep.subr.mxu0 0.0
    %7236 = vmatpush1.msra.mxu0 0.0
    %7237 = vmatprep.subr.mxu0 0.0
    %7238 = vmatpush1.msra.mxu0 %v7212
    %7239 = vmatprep.subr.mxu0 0.0
    %7240 = vmatpush1.msra.mxu0 %v7211
    %7241 = vmatprep.subr.mxu0 0.0
    %7242 = vmatpush1.msra.mxu0 %v7210
    %7243 = vmatprep.subr.mxu0 0.0
    %7244 = vmatpush1.msra.mxu0 %v7209
    %7245 = vmatprep.subr.mxu0 0.0
    %7246 = vmatpush2.msra.mxu0 0.0
    %7247 = vmatprep.subr.mxu0 0.0
    %7248 = vmatpush2.msra.mxu0 0.0
    %7249 = vmatprep.subr.mxu0 0.0
    %7250 = vmatpush2.msra.mxu0 0.0
    %7251 = vmatprep.subr.mxu0 0.0
    %7252 = vmatpush2.msra.mxu0 0.0
    %7253 = vmatprep.subr.mxu0 0.0
    %7254 = vmatpush2.msra.mxu0 0.0
    %7255 = vmatprep.subr.mxu0 0.0
    %7256 = vmatpush2.msra.mxu0 0.0
    %7257 = vmatprep.subr.mxu0 0.0
    %7258 = vmatpush2.msra.mxu0 0.0
    %7259 = vmatprep.subr.mxu0 0.0
    %7260 = vmatpush2.msra.mxu0 0.0
    %7261 = vmatprep.subr.mxu0 0.0
    %7262 = vmatpush2.msra.mxu0 0.0
    %7263 = vmatprep.subr.mxu0 0.0
    %7264 = vmatpush2.msra.mxu0 0.0
    %7265 = vmatprep.subr.mxu0 0.0
    %7266 = vmatpush2.msra.mxu0 0.0
    %7267 = vmatprep.subr.mxu0 0.0
    %7268 = vmatpush2.msra.mxu0 0.0
    %7269 = vmatprep.subr.mxu0 0.0
    %7270 = vmatpush2.msra.mxu0 0.0
    %7271 = vmatprep.subr.mxu0 0.0
    %7272 = vmatpush2.msra.mxu0 0.0
    %7273 = vmatprep.subr.mxu0 0.0
    %7274 = vmatpush2.msra.mxu0 0.0
    %7275 = vmatprep.subr.mxu0 0.0
    %7276 = vmatpush2.msra.mxu0 0.0
    %7277 = vmatprep.mubr.f32.mxu0 0.0
    %7278 = vmatmul.mubr.f32.gmra.mxu0 %v7128
    %v7279 = vpop.f32.mrf.mxu0
    %v7280 = vadd.f32 0.0, %v7279
    %v7281 = vpop.f32.mrf.mxu0
    %7282 = vmatprep.mubr.f32.mxu0 0.0
    %7283 = vmatmul.mubr.f32.gmra.mxu0 %v7131
    %v7284 = vpop.f32.mrf.mxu0
    %v7285 = vadd.f32 0.0, %v7284
    %v7286 = vpop.f32.mrf.mxu0
    %7287 = vdwg.mxu0
    %s7288 = scalar_lea.vmem %s2, 1408
    %v7289 = vld [vmem:[%s7288] sm:$0xff]
    %v7290 = vld [vmem:[%s7288 + $0x8] sm:$0xff]
    %v7291 = vld [vmem:[%s7288 + $0x10] sm:$0xff]
    %v7292 = vld [vmem:[%s7288 + $0x18] sm:$0xff]
    %7293 = vmatprep.subr.mxu0 0.0
    %7294 = vmatpush1.msra.mxu0 0.0
    %7295 = vmatprep.subr.mxu0 0.0
    %7296 = vmatpush1.msra.mxu0 0.0
    %7297 = vmatprep.subr.mxu0 0.0
    %7298 = vmatpush1.msra.mxu0 0.0
    %7299 = vmatprep.subr.mxu0 0.0
    %7300 = vmatpush1.msra.mxu0 0.0
    %7301 = vmatprep.subr.mxu0 0.0
    %7302 = vmatpush1.msra.mxu0 0.0
    %7303 = vmatprep.subr.mxu0 0.0
    %7304 = vmatpush1.msra.mxu0 0.0
    %7305 = vmatprep.subr.mxu0 0.0
    %7306 = vmatpush1.msra.mxu0 0.0
    %7307 = vmatprep.subr.mxu0 0.0
    %7308 = vmatpush1.msra.mxu0 0.0
    %7309 = vmatprep.subr.mxu0 0.0
    %7310 = vmatpush1.msra.mxu0 0.0
    %7311 = vmatprep.subr.mxu0 0.0
    %7312 = vmatpush1.msra.mxu0 0.0
    %7313 = vmatprep.subr.mxu0 0.0
    %7314 = vmatpush1.msra.mxu0 0.0
    %7315 = vmatprep.subr.mxu0 0.0
    %7316 = vmatpush1.msra.mxu0 0.0
    %7317 = vmatprep.subr.mxu0 0.0
    %7318 = vmatpush1.msra.mxu0 %v7292
    %7319 = vmatprep.subr.mxu0 0.0
    %7320 = vmatpush1.msra.mxu0 %v7291
    %7321 = vmatprep.subr.mxu0 0.0
    %7322 = vmatpush1.msra.mxu0 %v7290
    %7323 = vmatprep.subr.mxu0 0.0
    %7324 = vmatpush1.msra.mxu0 %v7289
    %7325 = vmatprep.subr.mxu0 0.0
    %7326 = vmatpush2.msra.mxu0 0.0
    %7327 = vmatprep.subr.mxu0 0.0
    %7328 = vmatpush2.msra.mxu0 0.0
    %7329 = vmatprep.subr.mxu0 0.0
    %7330 = vmatpush2.msra.mxu0 0.0
    %7331 = vmatprep.subr.mxu0 0.0
    %7332 = vmatpush2.msra.mxu0 0.0
    %7333 = vmatprep.subr.mxu0 0.0
    %7334 = vmatpush2.msra.mxu0 0.0
    %7335 = vmatprep.subr.mxu0 0.0
    %7336 = vmatpush2.msra.mxu0 0.0
    %7337 = vmatprep.subr.mxu0 0.0
    %7338 = vmatpush2.msra.mxu0 0.0
    %7339 = vmatprep.subr.mxu0 0.0
    %7340 = vmatpush2.msra.mxu0 0.0
    %7341 = vmatprep.subr.mxu0 0.0
    %7342 = vmatpush2.msra.mxu0 0.0
    %7343 = vmatprep.subr.mxu0 0.0
    %7344 = vmatpush2.msra.mxu0 0.0
    %7345 = vmatprep.subr.mxu0 0.0
    %7346 = vmatpush2.msra.mxu0 0.0
    %7347 = vmatprep.subr.mxu0 0.0
    %7348 = vmatpush2.msra.mxu0 0.0
    %7349 = vmatprep.subr.mxu0 0.0
    %7350 = vmatpush2.msra.mxu0 0.0
    %7351 = vmatprep.subr.mxu0 0.0
    %7352 = vmatpush2.msra.mxu0 0.0
    %7353 = vmatprep.subr.mxu0 0.0
    %7354 = vmatpush2.msra.mxu0 0.0
    %7355 = vmatprep.subr.mxu0 0.0
    %7356 = vmatpush2.msra.mxu0 0.0
    %7357 = vmatprep.mubr.f32.mxu0 0.0
    %7358 = vmatmul.mubr.f32.gmra.mxu0 %v7128
    %v7359 = vpop.f32.mrf.mxu0
    %v7360 = vadd.f32 0.0, %v7359
    %v7361 = vpop.f32.mrf.mxu0
    %7362 = vmatprep.mubr.f32.mxu0 0.0
    %7363 = vmatmul.mubr.f32.gmra.mxu0 %v7131
    %v7364 = vpop.f32.mrf.mxu0
    %v7365 = vadd.f32 0.0, %v7364
    %v7366 = vpop.f32.mrf.mxu0
    %7367 = vdwg.mxu0
    %v7369 = vsel %vm334, %v7200, 0
    %v7372 = vsel %vm334, %v7205, 0
    %v7375 = vsel %vm334, %v7280, 0
    %v7378 = vsel %vm334, %v7285, 0
    %7380 = vmatprep.subr.mxu0 0.0
    %7381 = vmatpush1.xpose.msra.mxu0 0.0
    %7382 = vmatprep.subr.mxu0 0.0
    %7383 = vmatpush1.xpose.msra.mxu0 0.0
    %7384 = vmatprep.subr.mxu0 0.0
    %7385 = vmatpush1.xpose.msra.mxu0 0.0
    %7386 = vmatprep.subr.mxu0 0.0
    %7387 = vmatpush1.xpose.msra.mxu0 0.0
    %7388 = vmatprep.subr.mxu0 0.0
    %7389 = vmatpush1.xpose.msra.mxu0 0.0
    %7390 = vmatprep.subr.mxu0 0.0
    %7391 = vmatpush1.xpose.msra.mxu0 0.0
    %7392 = vmatprep.subr.mxu0 0.0
    %7393 = vmatpush1.xpose.msra.mxu0 0.0
    %7394 = vmatprep.subr.mxu0 0.0
    %7395 = vmatpush1.xpose.msra.mxu0 0.0
    %7396 = vmatprep.subr.mxu0 0.0
    %7397 = vmatpush1.xpose.msra.mxu0 0.0
    %7398 = vmatprep.subr.mxu0 0.0
    %7399 = vmatpush1.xpose.msra.mxu0 0.0
    %7400 = vmatprep.subr.mxu0 0.0
    %7401 = vmatpush1.xpose.msra.mxu0 0.0
    %7402 = vmatprep.subr.mxu0 0.0
    %7403 = vmatpush1.xpose.msra.mxu0 0.0
    %7404 = vmatprep.subr.mxu0 0.0
    %7405 = vmatpush1.xpose.msra.mxu0 0.0
    %7406 = vmatprep.subr.mxu0 0.0
    %7407 = vmatpush1.xpose.msra.mxu0 0.0
    %7408 = vmatprep.subr.mxu0 0.0
    %7409 = vmatpush1.xpose.msra.mxu0 %v7378
    %7410 = vmatprep.subr.mxu0 0.0
    %7411 = vmatpush1.xpose.msra.mxu0 %v7375
    %7412 = vmatprep.subr.mxu0 0.0
    %7413 = vmatpush2.xpose.msra.mxu0 0.0
    %7414 = vmatprep.subr.mxu0 0.0
    %7415 = vmatpush2.xpose.msra.mxu0 0.0
    %7416 = vmatprep.subr.mxu0 0.0
    %7417 = vmatpush2.xpose.msra.mxu0 0.0
    %7418 = vmatprep.subr.mxu0 0.0
    %7419 = vmatpush2.xpose.msra.mxu0 0.0
    %7420 = vmatprep.subr.mxu0 0.0
    %7421 = vmatpush2.xpose.msra.mxu0 0.0
    %7422 = vmatprep.subr.mxu0 0.0
    %7423 = vmatpush2.xpose.msra.mxu0 0.0
    %7424 = vmatprep.subr.mxu0 0.0
    %7425 = vmatpush2.xpose.msra.mxu0 0.0
    %7426 = vmatprep.subr.mxu0 0.0
    %7427 = vmatpush2.xpose.msra.mxu0 0.0
    %7428 = vmatprep.subr.mxu0 0.0
    %7429 = vmatpush2.xpose.msra.mxu0 0.0
    %7430 = vmatprep.subr.mxu0 0.0
    %7431 = vmatpush2.xpose.msra.mxu0 0.0
    %7432 = vmatprep.subr.mxu0 0.0
    %7433 = vmatpush2.xpose.msra.mxu0 0.0
    %7434 = vmatprep.subr.mxu0 0.0
    %7435 = vmatpush2.xpose.msra.mxu0 0.0
    %7436 = vmatprep.subr.mxu0 0.0
    %7437 = vmatpush2.xpose.msra.mxu0 0.0
    %7438 = vmatprep.subr.mxu0 0.0
    %7439 = vmatpush2.xpose.msra.mxu0 0.0
    %7440 = vmatprep.subr.mxu0 0.0
    %7441 = vmatpush2.xpose.msra.mxu0 0.0
    %7442 = vmatprep.subr.mxu0 0.0
    %7443 = vmatpush2.xpose.msra.mxu0 0.0
    %7444 = vmatprep.mubr.f32.mxu0 0.0
    %7445 = vmatmul.mubr.f32.gmra.mxu0 %v7369
    %v7446 = vpop.f32.mrf.mxu0
    %v7447 = vadd.f32 %v46, %v7446
    %v7448 = vpop.f32.mrf.mxu0
    %7449 = vmatprep.mubr.f32.mxu0 0.0
    %7450 = vmatmul.mubr.f32.gmra.mxu0 %v7372
    %v7451 = vpop.f32.mrf.mxu0
    %v7452 = vadd.f32 %v47, %v7451
    %v7453 = vpop.f32.mrf.mxu0
    %7454 = vdwg.mxu0
    %v7455 = vsel %vm422, %v7447, -inf
    %7456 = vmax.xlane.f32.xlu0 %v7455
    %v7457 = vpop.xlane.xlu0 %7456
    %v7458 = vsel %vm422, %v7452, -inf
    %7459 = vmax.xlane.f32.xlu0 %v7458
    %v7460 = vpop.xlane.xlu0 %7459
    %v7461 = vsub.f32 %v7447, %v7457
    %v7462 = vsub.f32 %v7452, %v7460
    %v7463 = vmul.f32 %v7461, 1.442695
    %v7464 = vpow.pop %v7463
    %v7465 = vmul.f32 %v7462, 1.442695
    %v7466 = vpow.pop %v7465
    %v7467 = vsel %vm422, %v7464, 0.0
    %7468 = vadd.xlane.f32.xlu0 %v7467
    %v7469 = vpop.xlane.xlu0 %7468
    %v7470 = vsel %vm422, %v7466, 0.0
    %7471 = vadd.xlane.f32.xlu0 %v7470
    %v7472 = vpop.xlane.xlu0 %7471
    %v7473 = vrcp.pop %v7469
    %v7474 = vrcp.pop %v7472
    %v7475 = vmul.f32 %v7464, %v7473
    %v7476 = vmul.f32 %v7466, %v7474
    %v7478 = vsel %vm422, %v7475, 0
    %v7481 = vsel %vm422, %v7476, 0
    %7483 = vmatprep.subr.mxu0 0.0
    %7484 = vmatpush1.msra.mxu0 0.0
    %7485 = vmatprep.subr.mxu0 0.0
    %7486 = vmatpush1.msra.mxu0 0.0
    %7487 = vmatprep.subr.mxu0 0.0
    %7488 = vmatpush1.msra.mxu0 0.0
    %7489 = vmatprep.subr.mxu0 0.0
    %7490 = vmatpush1.msra.mxu0 0.0
    %7491 = vmatprep.subr.mxu0 0.0
    %7492 = vmatpush1.msra.mxu0 0.0
    %7493 = vmatprep.subr.mxu0 0.0
    %7494 = vmatpush1.msra.mxu0 0.0
    %7495 = vmatprep.subr.mxu0 0.0
    %7496 = vmatpush1.msra.mxu0 0.0
    %7497 = vmatprep.subr.mxu0 0.0
    %7498 = vmatpush1.msra.mxu0 0.0
    %7499 = vmatprep.subr.mxu0 0.0
    %7500 = vmatpush1.msra.mxu0 0.0
    %7501 = vmatprep.subr.mxu0 0.0
    %7502 = vmatpush1.msra.mxu0 0.0
    %7503 = vmatprep.subr.mxu0 0.0
    %7504 = vmatpush1.msra.mxu0 0.0
    %7505 = vmatprep.subr.mxu0 0.0
    %7506 = vmatpush1.msra.mxu0 0.0
    %7507 = vmatprep.subr.mxu0 0.0
    %7508 = vmatpush1.msra.mxu0 0.0
    %7509 = vmatprep.subr.mxu0 0.0
    %7510 = vmatpush1.msra.mxu0 0.0
    %7511 = vmatprep.subr.mxu0 0.0
    %7512 = vmatpush1.msra.mxu0 %v7365
    %7513 = vmatprep.subr.mxu0 0.0
    %7514 = vmatpush1.msra.mxu0 %v7360
    %7515 = vmatprep.subr.mxu0 0.0
    %7516 = vmatpush2.msra.mxu0 0.0
    %7517 = vmatprep.subr.mxu0 0.0
    %7518 = vmatpush2.msra.mxu0 0.0
    %7519 = vmatprep.subr.mxu0 0.0
    %7520 = vmatpush2.msra.mxu0 0.0
    %7521 = vmatprep.subr.mxu0 0.0
    %7522 = vmatpush2.msra.mxu0 0.0
    %7523 = vmatprep.subr.mxu0 0.0
    %7524 = vmatpush2.msra.mxu0 0.0
    %7525 = vmatprep.subr.mxu0 0.0
    %7526 = vmatpush2.msra.mxu0 0.0
    %7527 = vmatprep.subr.mxu0 0.0
    %7528 = vmatpush2.msra.mxu0 0.0
    %7529 = vmatprep.subr.mxu0 0.0
    %7530 = vmatpush2.msra.mxu0 0.0
    %7531 = vmatprep.subr.mxu0 0.0
    %7532 = vmatpush2.msra.mxu0 0.0
    %7533 = vmatprep.subr.mxu0 0.0
    %7534 = vmatpush2.msra.mxu0 0.0
    %7535 = vmatprep.subr.mxu0 0.0
    %7536 = vmatpush2.msra.mxu0 0.0
    %7537 = vmatprep.subr.mxu0 0.0
    %7538 = vmatpush2.msra.mxu0 0.0
    %7539 = vmatprep.subr.mxu0 0.0
    %7540 = vmatpush2.msra.mxu0 0.0
    %7541 = vmatprep.subr.mxu0 0.0
    %7542 = vmatpush2.msra.mxu0 0.0
    %7543 = vmatprep.subr.mxu0 0.0
    %7544 = vmatpush2.msra.mxu0 0.0
    %7545 = vmatprep.subr.mxu0 0.0
    %7546 = vmatpush2.msra.mxu0 0.0
    %7547 = vmatprep.mubr.f32.mxu0 0.0
    %7548 = vmatmul.mubr.f32.gmra.mxu0 %v7478
    %v7549 = vpop.f32.mrf.mxu0
    %v7550 = vadd.f32 0.0, %v7549
    %v7551 = vpop.f32.mrf.mxu0
    %7552 = vmatprep.mubr.f32.mxu0 0.0
    %7553 = vmatmul.mubr.f32.gmra.mxu0 %v7481
    %v7554 = vpop.f32.mrf.mxu0
    %v7555 = vadd.f32 0.0, %v7554
    %v7556 = vpop.f32.mrf.mxu0
    %7557 = vdwg.mxu0
    %s7558 = scalar_lea.vmem %s3, 96
    %v7559 = vld [vmem:[%s7558] sm:$0xff]
    %v7561 = vsel %vm334, %v7550, 0
    %v7564 = vsel %vm334, %v7555, 0
    %7566 = vmatprep.subr.mxu0 0.0
    %7567 = vmatpush1.msra.mxu0 0.0
    %7568 = vmatprep.subr.mxu0 0.0
    %7569 = vmatpush1.msra.mxu0 0.0
    %7570 = vmatprep.subr.mxu0 0.0
    %7571 = vmatpush1.msra.mxu0 0.0
    %7572 = vmatprep.subr.mxu0 0.0
    %7573 = vmatpush1.msra.mxu0 0.0
    %7574 = vmatprep.subr.mxu0 0.0
    %7575 = vmatpush1.msra.mxu0 0.0
    %7576 = vmatprep.subr.mxu0 0.0
    %7577 = vmatpush1.msra.mxu0 0.0
    %7578 = vmatprep.subr.mxu0 0.0
    %7579 = vmatpush1.msra.mxu0 0.0
    %7580 = vmatprep.subr.mxu0 0.0
    %7581 = vmatpush1.msra.mxu0 0.0
    %7582 = vmatprep.subr.mxu0 0.0
    %7583 = vmatpush1.msra.mxu0 0.0
    %7584 = vmatprep.subr.mxu0 0.0
    %7585 = vmatpush1.msra.mxu0 0.0
    %7586 = vmatprep.subr.mxu0 0.0
    %7587 = vmatpush1.msra.mxu0 0.0
    %7588 = vmatprep.subr.mxu0 0.0
    %7589 = vmatpush1.msra.mxu0 0.0
    %7590 = vmatprep.subr.mxu0 0.0
    %7591 = vmatpush1.msra.mxu0 0.0
    %7592 = vmatprep.subr.mxu0 0.0
    %7593 = vmatpush1.msra.mxu0 0.0
    %7594 = vmatprep.subr.mxu0 0.0
    %7595 = vmatpush1.msra.mxu0 0.0
    %7596 = vmatprep.subr.mxu0 0.0
    %7597 = vmatpush1.msra.mxu0 %v7559
    %7598 = vmatprep.subr.mxu0 0.0
    %7599 = vmatpush2.msra.mxu0 0.0
    %7600 = vmatprep.subr.mxu0 0.0
    %7601 = vmatpush2.msra.mxu0 0.0
    %7602 = vmatprep.subr.mxu0 0.0
    %7603 = vmatpush2.msra.mxu0 0.0
    %7604 = vmatprep.subr.mxu0 0.0
    %7605 = vmatpush2.msra.mxu0 0.0
    %7606 = vmatprep.subr.mxu0 0.0
    %7607 = vmatpush2.msra.mxu0 0.0
    %7608 = vmatprep.subr.mxu0 0.0
    %7609 = vmatpush2.msra.mxu0 0.0
    %7610 = vmatprep.subr.mxu0 0.0
    %7611 = vmatpush2.msra.mxu0 0.0
    %7612 = vmatprep.subr.mxu0 0.0
    %7613 = vmatpush2.msra.mxu0 0.0
    %7614 = vmatprep.subr.mxu0 0.0
    %7615 = vmatpush2.msra.mxu0 0.0
    %7616 = vmatprep.subr.mxu0 0.0
    %7617 = vmatpush2.msra.mxu0 0.0
    %7618 = vmatprep.subr.mxu0 0.0
    %7619 = vmatpush2.msra.mxu0 0.0
    %7620 = vmatprep.subr.mxu0 0.0
    %7621 = vmatpush2.msra.mxu0 0.0
    %7622 = vmatprep.subr.mxu0 0.0
    %7623 = vmatpush2.msra.mxu0 0.0
    %7624 = vmatprep.subr.mxu0 0.0
    %7625 = vmatpush2.msra.mxu0 0.0
    %7626 = vmatprep.subr.mxu0 0.0
    %7627 = vmatpush2.msra.mxu0 0.0
    %7628 = vmatprep.subr.mxu0 0.0
    %7629 = vmatpush2.msra.mxu0 0.0
    %7630 = vmatprep.mubr.f32.mxu0 0.0
    %7631 = vmatmul.mubr.f32.gmra.mxu0 %v7561
    %v7632 = vpop.f32.mrf.mxu0
    %v7633 = vadd.f32 0.0, %v7632
    %v7634 = vpop.f32.mrf.mxu0
    %7635 = vmatprep.mubr.f32.mxu0 0.0
    %7636 = vmatmul.mubr.f32.gmra.mxu0 %v7564
    %v7637 = vpop.f32.mrf.mxu0
    %v7638 = vadd.f32 0.0, %v7637
    %v7639 = vpop.f32.mrf.mxu0
    %7640 = vdwg.mxu0
    %v7641 = vadd.f32 %v7080, %v7633
    %v7642 = vadd.f32 %v7081, %v7638
    %s7643 = scalar_lea.vmem %s2, 1184
    %v7644 = vld [vmem:[%s7643] sm:$0xff]
    %v7645 = vld [vmem:[%s7643 + $0x8] sm:$0xff]
    %v7646 = vld [vmem:[%s7643 + $0x10] sm:$0xff]
    %v7647 = vld [vmem:[%s7643 + $0x18] sm:$0xff]
    %7648 = vmatprep.subr.mxu0 0.0
    %7649 = vmatpush1.msra.mxu0 0.0
    %7650 = vmatprep.subr.mxu0 0.0
    %7651 = vmatpush1.msra.mxu0 0.0
    %7652 = vmatprep.subr.mxu0 0.0
    %7653 = vmatpush1.msra.mxu0 0.0
    %7654 = vmatprep.subr.mxu0 0.0
    %7655 = vmatpush1.msra.mxu0 0.0
    %7656 = vmatprep.subr.mxu0 0.0
    %7657 = vmatpush1.msra.mxu0 0.0
    %7658 = vmatprep.subr.mxu0 0.0
    %7659 = vmatpush1.msra.mxu0 0.0
    %7660 = vmatprep.subr.mxu0 0.0
    %7661 = vmatpush1.msra.mxu0 0.0
    %7662 = vmatprep.subr.mxu0 0.0
    %7663 = vmatpush1.msra.mxu0 0.0
    %7664 = vmatprep.subr.mxu0 0.0
    %7665 = vmatpush1.msra.mxu0 0.0
    %7666 = vmatprep.subr.mxu0 0.0
    %7667 = vmatpush1.msra.mxu0 0.0
    %7668 = vmatprep.subr.mxu0 0.0
    %7669 = vmatpush1.msra.mxu0 0.0
    %7670 = vmatprep.subr.mxu0 0.0
    %7671 = vmatpush1.msra.mxu0 0.0
    %7672 = vmatprep.subr.mxu0 0.0
    %7673 = vmatpush1.msra.mxu0 %v7647
    %7674 = vmatprep.subr.mxu0 0.0
    %7675 = vmatpush1.msra.mxu0 %v7646
    %7676 = vmatprep.subr.mxu0 0.0
    %7677 = vmatpush1.msra.mxu0 %v7645
    %7678 = vmatprep.subr.mxu0 0.0
    %7679 = vmatpush1.msra.mxu0 %v7644
    %7680 = vmatprep.subr.mxu0 0.0
    %7681 = vmatpush2.msra.mxu0 0.0
    %7682 = vmatprep.subr.mxu0 0.0
    %7683 = vmatpush2.msra.mxu0 0.0
    %7684 = vmatprep.subr.mxu0 0.0
    %7685 = vmatpush2.msra.mxu0 0.0
    %7686 = vmatprep.subr.mxu0 0.0
    %7687 = vmatpush2.msra.mxu0 0.0
    %7688 = vmatprep.subr.mxu0 0.0
    %7689 = vmatpush2.msra.mxu0 0.0
    %7690 = vmatprep.subr.mxu0 0.0
    %7691 = vmatpush2.msra.mxu0 0.0
    %7692 = vmatprep.subr.mxu0 0.0
    %7693 = vmatpush2.msra.mxu0 0.0
    %7694 = vmatprep.subr.mxu0 0.0
    %7695 = vmatpush2.msra.mxu0 0.0
    %7696 = vmatprep.subr.mxu0 0.0
    %7697 = vmatpush2.msra.mxu0 0.0
    %7698 = vmatprep.subr.mxu0 0.0
    %7699 = vmatpush2.msra.mxu0 0.0
    %7700 = vmatprep.subr.mxu0 0.0
    %7701 = vmatpush2.msra.mxu0 0.0
    %7702 = vmatprep.subr.mxu0 0.0
    %7703 = vmatpush2.msra.mxu0 0.0
    %7704 = vmatprep.subr.mxu0 0.0
    %7705 = vmatpush2.msra.mxu0 0.0
    %7706 = vmatprep.subr.mxu0 0.0
    %7707 = vmatpush2.msra.mxu0 0.0
    %7708 = vmatprep.subr.mxu0 0.0
    %7709 = vmatpush2.msra.mxu0 0.0
    %7710 = vmatprep.subr.mxu0 0.0
    %7711 = vmatpush2.msra.mxu0 0.0
    %7712 = vmatprep.mubr.f32.mxu0 0.0
    %7713 = vmatmul.mubr.f32.gmra.mxu0 %v7128
    %v7714 = vpop.f32.mrf.mxu0
    %v7715 = vadd.f32 0.0, %v7714
    %v7716 = vpop.f32.mrf.mxu0
    %7717 = vmatprep.mubr.f32.mxu0 0.0
    %7718 = vmatmul.mubr.f32.gmra.mxu0 %v7131
    %v7719 = vpop.f32.mrf.mxu0
    %v7720 = vadd.f32 0.0, %v7719
    %v7721 = vpop.f32.mrf.mxu0
    %7722 = vdwg.mxu0
    %s7723 = scalar_lea.vmem %s2, 1312
    %v7724 = vld [vmem:[%s7723] sm:$0xff]
    %v7725 = vld [vmem:[%s7723 + $0x8] sm:$0xff]
    %v7726 = vld [vmem:[%s7723 + $0x10] sm:$0xff]
    %v7727 = vld [vmem:[%s7723 + $0x18] sm:$0xff]
    %7728 = vmatprep.subr.mxu0 0.0
    %7729 = vmatpush1.msra.mxu0 0.0
    %7730 = vmatprep.subr.mxu0 0.0
    %7731 = vmatpush1.msra.mxu0 0.0
    %7732 = vmatprep.subr.mxu0 0.0
    %7733 = vmatpush1.msra.mxu0 0.0
    %7734 = vmatprep.subr.mxu0 0.0
    %7735 = vmatpush1.msra.mxu0 0.0
    %7736 = vmatprep.subr.mxu0 0.0
    %7737 = vmatpush1.msra.mxu0 0.0
    %7738 = vmatprep.subr.mxu0 0.0
    %7739 = vmatpush1.msra.mxu0 0.0
    %7740 = vmatprep.subr.mxu0 0.0
    %7741 = vmatpush1.msra.mxu0 0.0
    %7742 = vmatprep.subr.mxu0 0.0
    %7743 = vmatpush1.msra.mxu0 0.0
    %7744 = vmatprep.subr.mxu0 0.0
    %7745 = vmatpush1.msra.mxu0 0.0
    %7746 = vmatprep.subr.mxu0 0.0
    %7747 = vmatpush1.msra.mxu0 0.0
    %7748 = vmatprep.subr.mxu0 0.0
    %7749 = vmatpush1.msra.mxu0 0.0
    %7750 = vmatprep.subr.mxu0 0.0
    %7751 = vmatpush1.msra.mxu0 0.0
    %7752 = vmatprep.subr.mxu0 0.0
    %7753 = vmatpush1.msra.mxu0 %v7727
    %7754 = vmatprep.subr.mxu0 0.0
    %7755 = vmatpush1.msra.mxu0 %v7726
    %7756 = vmatprep.subr.mxu0 0.0
    %7757 = vmatpush1.msra.mxu0 %v7725
    %7758 = vmatprep.subr.mxu0 0.0
    %7759 = vmatpush1.msra.mxu0 %v7724
    %7760 = vmatprep.subr.mxu0 0.0
    %7761 = vmatpush2.msra.mxu0 0.0
    %7762 = vmatprep.subr.mxu0 0.0
    %7763 = vmatpush2.msra.mxu0 0.0
    %7764 = vmatprep.subr.mxu0 0.0
    %7765 = vmatpush2.msra.mxu0 0.0
    %7766 = vmatprep.subr.mxu0 0.0
    %7767 = vmatpush2.msra.mxu0 0.0
    %7768 = vmatprep.subr.mxu0 0.0
    %7769 = vmatpush2.msra.mxu0 0.0
    %7770 = vmatprep.subr.mxu0 0.0
    %7771 = vmatpush2.msra.mxu0 0.0
    %7772 = vmatprep.subr.mxu0 0.0
    %7773 = vmatpush2.msra.mxu0 0.0
    %7774 = vmatprep.subr.mxu0 0.0
    %7775 = vmatpush2.msra.mxu0 0.0
    %7776 = vmatprep.subr.mxu0 0.0
    %7777 = vmatpush2.msra.mxu0 0.0
    %7778 = vmatprep.subr.mxu0 0.0
    %7779 = vmatpush2.msra.mxu0 0.0
    %7780 = vmatprep.subr.mxu0 0.0
    %7781 = vmatpush2.msra.mxu0 0.0
    %7782 = vmatprep.subr.mxu0 0.0
    %7783 = vmatpush2.msra.mxu0 0.0
    %7784 = vmatprep.subr.mxu0 0.0
    %7785 = vmatpush2.msra.mxu0 0.0
    %7786 = vmatprep.subr.mxu0 0.0
    %7787 = vmatpush2.msra.mxu0 0.0
    %7788 = vmatprep.subr.mxu0 0.0
    %7789 = vmatpush2.msra.mxu0 0.0
    %7790 = vmatprep.subr.mxu0 0.0
    %7791 = vmatpush2.msra.mxu0 0.0
    %7792 = vmatprep.mubr.f32.mxu0 0.0
    %7793 = vmatmul.mubr.f32.gmra.mxu0 %v7128
    %v7794 = vpop.f32.mrf.mxu0
    %v7795 = vadd.f32 0.0, %v7794
    %v7796 = vpop.f32.mrf.mxu0
    %7797 = vmatprep.mubr.f32.mxu0 0.0
    %7798 = vmatmul.mubr.f32.gmra.mxu0 %v7131
    %v7799 = vpop.f32.mrf.mxu0
    %v7800 = vadd.f32 0.0, %v7799
    %v7801 = vpop.f32.mrf.mxu0
    %7802 = vdwg.mxu0
    %s7803 = scalar_lea.vmem %s2, 1440
    %v7804 = vld [vmem:[%s7803] sm:$0xff]
    %v7805 = vld [vmem:[%s7803 + $0x8] sm:$0xff]
    %v7806 = vld [vmem:[%s7803 + $0x10] sm:$0xff]
    %v7807 = vld [vmem:[%s7803 + $0x18] sm:$0xff]
    %7808 = vmatprep.subr.mxu0 0.0
    %7809 = vmatpush1.msra.mxu0 0.0
    %7810 = vmatprep.subr.mxu0 0.0
    %7811 = vmatpush1.msra.mxu0 0.0
    %7812 = vmatprep.subr.mxu0 0.0
    %7813 = vmatpush1.msra.mxu0 0.0
    %7814 = vmatprep.subr.mxu0 0.0
    %7815 = vmatpush1.msra.mxu0 0.0
    %7816 = vmatprep.subr.mxu0 0.0
    %7817 = vmatpush1.msra.mxu0 0.0
    %7818 = vmatprep.subr.mxu0 0.0
    %7819 = vmatpush1.msra.mxu0 0.0
    %7820 = vmatprep.subr.mxu0 0.0
    %7821 = vmatpush1.msra.mxu0 0.0
    %7822 = vmatprep.subr.mxu0 0.0
    %7823 = vmatpush1.msra.mxu0 0.0
    %7824 = vmatprep.subr.mxu0 0.0
    %7825 = vmatpush1.msra.mxu0 0.0
    %7826 = vmatprep.subr.mxu0 0.0
    %7827 = vmatpush1.msra.mxu0 0.0
    %7828 = vmatprep.subr.mxu0 0.0
    %7829 = vmatpush1.msra.mxu0 0.0
    %7830 = vmatprep.subr.mxu0 0.0
    %7831 = vmatpush1.msra.mxu0 0.0
    %7832 = vmatprep.subr.mxu0 0.0
    %7833 = vmatpush1.msra.mxu0 %v7807
    %7834 = vmatprep.subr.mxu0 0.0
    %7835 = vmatpush1.msra.mxu0 %v7806
    %7836 = vmatprep.subr.mxu0 0.0
    %7837 = vmatpush1.msra.mxu0 %v7805
    %7838 = vmatprep.subr.mxu0 0.0
    %7839 = vmatpush1.msra.mxu0 %v7804
    %7840 = vmatprep.subr.mxu0 0.0
    %7841 = vmatpush2.msra.mxu0 0.0
    %7842 = vmatprep.subr.mxu0 0.0
    %7843 = vmatpush2.msra.mxu0 0.0
    %7844 = vmatprep.subr.mxu0 0.0
    %7845 = vmatpush2.msra.mxu0 0.0
    %7846 = vmatprep.subr.mxu0 0.0
    %7847 = vmatpush2.msra.mxu0 0.0
    %7848 = vmatprep.subr.mxu0 0.0
    %7849 = vmatpush2.msra.mxu0 0.0
    %7850 = vmatprep.subr.mxu0 0.0
    %7851 = vmatpush2.msra.mxu0 0.0
    %7852 = vmatprep.subr.mxu0 0.0
    %7853 = vmatpush2.msra.mxu0 0.0
    %7854 = vmatprep.subr.mxu0 0.0
    %7855 = vmatpush2.msra.mxu0 0.0
    %7856 = vmatprep.subr.mxu0 0.0
    %7857 = vmatpush2.msra.mxu0 0.0
    %7858 = vmatprep.subr.mxu0 0.0
    %7859 = vmatpush2.msra.mxu0 0.0
    %7860 = vmatprep.subr.mxu0 0.0
    %7861 = vmatpush2.msra.mxu0 0.0
    %7862 = vmatprep.subr.mxu0 0.0
    %7863 = vmatpush2.msra.mxu0 0.0
    %7864 = vmatprep.subr.mxu0 0.0
    %7865 = vmatpush2.msra.mxu0 0.0
    %7866 = vmatprep.subr.mxu0 0.0
    %7867 = vmatpush2.msra.mxu0 0.0
    %7868 = vmatprep.subr.mxu0 0.0
    %7869 = vmatpush2.msra.mxu0 0.0
    %7870 = vmatprep.subr.mxu0 0.0
    %7871 = vmatpush2.msra.mxu0 0.0
    %7872 = vmatprep.mubr.f32.mxu0 0.0
    %7873 = vmatmul.mubr.f32.gmra.mxu0 %v7128
    %v7874 = vpop.f32.mrf.mxu0
    %v7875 = vadd.f32 0.0, %v7874
    %v7876 = vpop.f32.mrf.mxu0
    %7877 = vmatprep.mubr.f32.mxu0 0.0
    %7878 = vmatmul.mubr.f32.gmra.mxu0 %v7131
    %v7879 = vpop.f32.mrf.mxu0
    %v7880 = vadd.f32 0.0, %v7879
    %v7881 = vpop.f32.mrf.mxu0
    %7882 = vdwg.mxu0
    %v7884 = vsel %vm334, %v7715, 0
    %v7887 = vsel %vm334, %v7720, 0
    %v7890 = vsel %vm334, %v7795, 0
    %v7893 = vsel %vm334, %v7800, 0
    %7895 = vmatprep.subr.mxu0 0.0
    %7896 = vmatpush1.xpose.msra.mxu0 0.0
    %7897 = vmatprep.subr.mxu0 0.0
    %7898 = vmatpush1.xpose.msra.mxu0 0.0
    %7899 = vmatprep.subr.mxu0 0.0
    %7900 = vmatpush1.xpose.msra.mxu0 0.0
    %7901 = vmatprep.subr.mxu0 0.0
    %7902 = vmatpush1.xpose.msra.mxu0 0.0
    %7903 = vmatprep.subr.mxu0 0.0
    %7904 = vmatpush1.xpose.msra.mxu0 0.0
    %7905 = vmatprep.subr.mxu0 0.0
    %7906 = vmatpush1.xpose.msra.mxu0 0.0
    %7907 = vmatprep.subr.mxu0 0.0
    %7908 = vmatpush1.xpose.msra.mxu0 0.0
    %7909 = vmatprep.subr.mxu0 0.0
    %7910 = vmatpush1.xpose.msra.mxu0 0.0
    %7911 = vmatprep.subr.mxu0 0.0
    %7912 = vmatpush1.xpose.msra.mxu0 0.0
    %7913 = vmatprep.subr.mxu0 0.0
    %7914 = vmatpush1.xpose.msra.mxu0 0.0
    %7915 = vmatprep.subr.mxu0 0.0
    %7916 = vmatpush1.xpose.msra.mxu0 0.0
    %7917 = vmatprep.subr.mxu0 0.0
    %7918 = vmatpush1.xpose.msra.mxu0 0.0
    %7919 = vmatprep.subr.mxu0 0.0
    %7920 = vmatpush1.xpose.msra.mxu0 0.0
    %7921 = vmatprep.subr.mxu0 0.0
    %7922 = vmatpush1.xpose.msra.mxu0 0.0
    %7923 = vmatprep.subr.mxu0 0.0
    %7924 = vmatpush1.xpose.msra.mxu0 %v7893
    %7925 = vmatprep.subr.mxu0 0.0
    %7926 = vmatpush1.xpose.msra.mxu0 %v7890
    %7927 = vmatprep.subr.mxu0 0.0
    %7928 = vmatpush2.xpose.msra.mxu0 0.0
    %7929 = vmatprep.subr.mxu0 0.0
    %7930 = vmatpush2.xpose.msra.mxu0 0.0
    %7931 = vmatprep.subr.mxu0 0.0
    %7932 = vmatpush2.xpose.msra.mxu0 0.0
    %7933 = vmatprep.subr.mxu0 0.0
    %7934 = vmatpush2.xpose.msra.mxu0 0.0
    %7935 = vmatprep.subr.mxu0 0.0
    %7936 = vmatpush2.xpose.msra.mxu0 0.0
    %7937 = vmatprep.subr.mxu0 0.0
    %7938 = vmatpush2.xpose.msra.mxu0 0.0
    %7939 = vmatprep.subr.mxu0 0.0
    %7940 = vmatpush2.xpose.msra.mxu0 0.0
    %7941 = vmatprep.subr.mxu0 0.0
    %7942 = vmatpush2.xpose.msra.mxu0 0.0
    %7943 = vmatprep.subr.mxu0 0.0
    %7944 = vmatpush2.xpose.msra.mxu0 0.0
    %7945 = vmatprep.subr.mxu0 0.0
    %7946 = vmatpush2.xpose.msra.mxu0 0.0
    %7947 = vmatprep.subr.mxu0 0.0
    %7948 = vmatpush2.xpose.msra.mxu0 0.0
    %7949 = vmatprep.subr.mxu0 0.0
    %7950 = vmatpush2.xpose.msra.mxu0 0.0
    %7951 = vmatprep.subr.mxu0 0.0
    %7952 = vmatpush2.xpose.msra.mxu0 0.0
    %7953 = vmatprep.subr.mxu0 0.0
    %7954 = vmatpush2.xpose.msra.mxu0 0.0
    %7955 = vmatprep.subr.mxu0 0.0
    %7956 = vmatpush2.xpose.msra.mxu0 0.0
    %7957 = vmatprep.subr.mxu0 0.0
    %7958 = vmatpush2.xpose.msra.mxu0 0.0
    %7959 = vmatprep.mubr.f32.mxu0 0.0
    %7960 = vmatmul.mubr.f32.gmra.mxu0 %v7884
    %v7961 = vpop.f32.mrf.mxu0
    %v7962 = vadd.f32 %v46, %v7961
    %v7963 = vpop.f32.mrf.mxu0
    %7964 = vmatprep.mubr.f32.mxu0 0.0
    %7965 = vmatmul.mubr.f32.gmra.mxu0 %v7887
    %v7966 = vpop.f32.mrf.mxu0
    %v7967 = vadd.f32 %v47, %v7966
    %v7968 = vpop.f32.mrf.mxu0
    %7969 = vdwg.mxu0
    %v7970 = vsel %vm422, %v7962, -inf
    %7971 = vmax.xlane.f32.xlu0 %v7970
    %v7972 = vpop.xlane.xlu0 %7971
    %v7973 = vsel %vm422, %v7967, -inf
    %7974 = vmax.xlane.f32.xlu0 %v7973
    %v7975 = vpop.xlane.xlu0 %7974
    %v7976 = vsub.f32 %v7962, %v7972
    %v7977 = vsub.f32 %v7967, %v7975
    %v7978 = vmul.f32 %v7976, 1.442695
    %v7979 = vpow.pop %v7978
    %v7980 = vmul.f32 %v7977, 1.442695
    %v7981 = vpow.pop %v7980
    %v7982 = vsel %vm422, %v7979, 0.0
    %7983 = vadd.xlane.f32.xlu0 %v7982
    %v7984 = vpop.xlane.xlu0 %7983
    %v7985 = vsel %vm422, %v7981, 0.0
    %7986 = vadd.xlane.f32.xlu0 %v7985
    %v7987 = vpop.xlane.xlu0 %7986
    %v7988 = vrcp.pop %v7984
    %v7989 = vrcp.pop %v7987
    %v7990 = vmul.f32 %v7979, %v7988
    %v7991 = vmul.f32 %v7981, %v7989
    %v7993 = vsel %vm422, %v7990, 0
    %v7996 = vsel %vm422, %v7991, 0
    %7998 = vmatprep.subr.mxu0 0.0
    %7999 = vmatpush1.msra.mxu0 0.0
    %8000 = vmatprep.subr.mxu0 0.0
    %8001 = vmatpush1.msra.mxu0 0.0
    %8002 = vmatprep.subr.mxu0 0.0
    %8003 = vmatpush1.msra.mxu0 0.0
    %8004 = vmatprep.subr.mxu0 0.0
    %8005 = vmatpush1.msra.mxu0 0.0
    %8006 = vmatprep.subr.mxu0 0.0
    %8007 = vmatpush1.msra.mxu0 0.0
    %8008 = vmatprep.subr.mxu0 0.0
    %8009 = vmatpush1.msra.mxu0 0.0
    %8010 = vmatprep.subr.mxu0 0.0
    %8011 = vmatpush1.msra.mxu0 0.0
    %8012 = vmatprep.subr.mxu0 0.0
    %8013 = vmatpush1.msra.mxu0 0.0
    %8014 = vmatprep.subr.mxu0 0.0
    %8015 = vmatpush1.msra.mxu0 0.0
    %8016 = vmatprep.subr.mxu0 0.0
    %8017 = vmatpush1.msra.mxu0 0.0
    %8018 = vmatprep.subr.mxu0 0.0
    %8019 = vmatpush1.msra.mxu0 0.0
    %8020 = vmatprep.subr.mxu0 0.0
    %8021 = vmatpush1.msra.mxu0 0.0
    %8022 = vmatprep.subr.mxu0 0.0
    %8023 = vmatpush1.msra.mxu0 0.0
    %8024 = vmatprep.subr.mxu0 0.0
    %8025 = vmatpush1.msra.mxu0 0.0
    %8026 = vmatprep.subr.mxu0 0.0
    %8027 = vmatpush1.msra.mxu0 %v7880
    %8028 = vmatprep.subr.mxu0 0.0
    %8029 = vmatpush1.msra.mxu0 %v7875
    %8030 = vmatprep.subr.mxu0 0.0
    %8031 = vmatpush2.msra.mxu0 0.0
    %8032 = vmatprep.subr.mxu0 0.0
    %8033 = vmatpush2.msra.mxu0 0.0
    %8034 = vmatprep.subr.mxu0 0.0
    %8035 = vmatpush2.msra.mxu0 0.0
    %8036 = vmatprep.subr.mxu0 0.0
    %8037 = vmatpush2.msra.mxu0 0.0
    %8038 = vmatprep.subr.mxu0 0.0
    %8039 = vmatpush2.msra.mxu0 0.0
    %8040 = vmatprep.subr.mxu0 0.0
    %8041 = vmatpush2.msra.mxu0 0.0
    %8042 = vmatprep.subr.mxu0 0.0
    %8043 = vmatpush2.msra.mxu0 0.0
    %8044 = vmatprep.subr.mxu0 0.0
    %8045 = vmatpush2.msra.mxu0 0.0
    %8046 = vmatprep.subr.mxu0 0.0
    %8047 = vmatpush2.msra.mxu0 0.0
    %8048 = vmatprep.subr.mxu0 0.0
    %8049 = vmatpush2.msra.mxu0 0.0
    %8050 = vmatprep.subr.mxu0 0.0
    %8051 = vmatpush2.msra.mxu0 0.0
    %8052 = vmatprep.subr.mxu0 0.0
    %8053 = vmatpush2.msra.mxu0 0.0
    %8054 = vmatprep.subr.mxu0 0.0
    %8055 = vmatpush2.msra.mxu0 0.0
    %8056 = vmatprep.subr.mxu0 0.0
    %8057 = vmatpush2.msra.mxu0 0.0
    %8058 = vmatprep.subr.mxu0 0.0
    %8059 = vmatpush2.msra.mxu0 0.0
    %8060 = vmatprep.subr.mxu0 0.0
    %8061 = vmatpush2.msra.mxu0 0.0
    %8062 = vmatprep.mubr.f32.mxu0 0.0
    %8063 = vmatmul.mubr.f32.gmra.mxu0 %v7993
    %v8064 = vpop.f32.mrf.mxu0
    %v8065 = vadd.f32 0.0, %v8064
    %v8066 = vpop.f32.mrf.mxu0
    %8067 = vmatprep.mubr.f32.mxu0 0.0
    %8068 = vmatmul.mubr.f32.gmra.mxu0 %v7996
    %v8069 = vpop.f32.mrf.mxu0
    %v8070 = vadd.f32 0.0, %v8069
    %v8071 = vpop.f32.mrf.mxu0
    %8072 = vdwg.mxu0
    %s8073 = scalar_lea.vmem %s3, 104
    %v8074 = vld [vmem:[%s8073] sm:$0xff]
    %v8076 = vsel %vm334, %v8065, 0
    %v8079 = vsel %vm334, %v8070, 0
    %8081 = vmatprep.subr.mxu0 0.0
    %8082 = vmatpush1.msra.mxu0 0.0
    %8083 = vmatprep.subr.mxu0 0.0
    %8084 = vmatpush1.msra.mxu0 0.0
    %8085 = vmatprep.subr.mxu0 0.0
    %8086 = vmatpush1.msra.mxu0 0.0
    %8087 = vmatprep.subr.mxu0 0.0
    %8088 = vmatpush1.msra.mxu0 0.0
    %8089 = vmatprep.subr.mxu0 0.0
    %8090 = vmatpush1.msra.mxu0 0.0
    %8091 = vmatprep.subr.mxu0 0.0
    %8092 = vmatpush1.msra.mxu0 0.0
    %8093 = vmatprep.subr.mxu0 0.0
    %8094 = vmatpush1.msra.mxu0 0.0
    %8095 = vmatprep.subr.mxu0 0.0
    %8096 = vmatpush1.msra.mxu0 0.0
    %8097 = vmatprep.subr.mxu0 0.0
    %8098 = vmatpush1.msra.mxu0 0.0
    %8099 = vmatprep.subr.mxu0 0.0
    %8100 = vmatpush1.msra.mxu0 0.0
    %8101 = vmatprep.subr.mxu0 0.0
    %8102 = vmatpush1.msra.mxu0 0.0
    %8103 = vmatprep.subr.mxu0 0.0
    %8104 = vmatpush1.msra.mxu0 0.0
    %8105 = vmatprep.subr.mxu0 0.0
    %8106 = vmatpush1.msra.mxu0 0.0
    %8107 = vmatprep.subr.mxu0 0.0
    %8108 = vmatpush1.msra.mxu0 0.0
    %8109 = vmatprep.subr.mxu0 0.0
    %8110 = vmatpush1.msra.mxu0 0.0
    %8111 = vmatprep.subr.mxu0 0.0
    %8112 = vmatpush1.msra.mxu0 %v8074
    %8113 = vmatprep.subr.mxu0 0.0
    %8114 = vmatpush2.msra.mxu0 0.0
    %8115 = vmatprep.subr.mxu0 0.0
    %8116 = vmatpush2.msra.mxu0 0.0
    %8117 = vmatprep.subr.mxu0 0.0
    %8118 = vmatpush2.msra.mxu0 0.0
    %8119 = vmatprep.subr.mxu0 0.0
    %8120 = vmatpush2.msra.mxu0 0.0
    %8121 = vmatprep.subr.mxu0 0.0
    %8122 = vmatpush2.msra.mxu0 0.0
    %8123 = vmatprep.subr.mxu0 0.0
    %8124 = vmatpush2.msra.mxu0 0.0
    %8125 = vmatprep.subr.mxu0 0.0
    %8126 = vmatpush2.msra.mxu0 0.0
    %8127 = vmatprep.subr.mxu0 0.0
    %8128 = vmatpush2.msra.mxu0 0.0
    %8129 = vmatprep.subr.mxu0 0.0
    %8130 = vmatpush2.msra.mxu0 0.0
    %8131 = vmatprep.subr.mxu0 0.0
    %8132 = vmatpush2.msra.mxu0 0.0
    %8133 = vmatprep.subr.mxu0 0.0
    %8134 = vmatpush2.msra.mxu0 0.0
    %8135 = vmatprep.subr.mxu0 0.0
    %8136 = vmatpush2.msra.mxu0 0.0
    %8137 = vmatprep.subr.mxu0 0.0
    %8138 = vmatpush2.msra.mxu0 0.0
    %8139 = vmatprep.subr.mxu0 0.0
    %8140 = vmatpush2.msra.mxu0 0.0
    %8141 = vmatprep.subr.mxu0 0.0
    %8142 = vmatpush2.msra.mxu0 0.0
    %8143 = vmatprep.subr.mxu0 0.0
    %8144 = vmatpush2.msra.mxu0 0.0
    %8145 = vmatprep.mubr.f32.mxu0 0.0
    %8146 = vmatmul.mubr.f32.gmra.mxu0 %v8076
    %v8147 = vpop.f32.mrf.mxu0
    %v8148 = vadd.f32 0.0, %v8147
    %v8149 = vpop.f32.mrf.mxu0
    %8150 = vmatprep.mubr.f32.mxu0 0.0
    %8151 = vmatmul.mubr.f32.gmra.mxu0 %v8079
    %v8152 = vpop.f32.mrf.mxu0
    %v8153 = vadd.f32 0.0, %v8152
    %v8154 = vpop.f32.mrf.mxu0
    %8155 = vdwg.mxu0
    %v8156 = vadd.f32 %v7641, %v8148
    %v8157 = vadd.f32 %v7642, %v8153
    %s8158 = scalar_lea.vmem %s2, 1216
    %v8159 = vld [vmem:[%s8158] sm:$0xff]
    %v8160 = vld [vmem:[%s8158 + $0x8] sm:$0xff]
    %v8161 = vld [vmem:[%s8158 + $0x10] sm:$0xff]
    %v8162 = vld [vmem:[%s8158 + $0x18] sm:$0xff]
    %8163 = vmatprep.subr.mxu0 0.0
    %8164 = vmatpush1.msra.mxu0 0.0
    %8165 = vmatprep.subr.mxu0 0.0
    %8166 = vmatpush1.msra.mxu0 0.0
    %8167 = vmatprep.subr.mxu0 0.0
    %8168 = vmatpush1.msra.mxu0 0.0
    %8169 = vmatprep.subr.mxu0 0.0
    %8170 = vmatpush1.msra.mxu0 0.0
    %8171 = vmatprep.subr.mxu0 0.0
    %8172 = vmatpush1.msra.mxu0 0.0
    %8173 = vmatprep.subr.mxu0 0.0
    %8174 = vmatpush1.msra.mxu0 0.0
    %8175 = vmatprep.subr.mxu0 0.0
    %8176 = vmatpush1.msra.mxu0 0.0
    %8177 = vmatprep.subr.mxu0 0.0
    %8178 = vmatpush1.msra.mxu0 0.0
    %8179 = vmatprep.subr.mxu0 0.0
    %8180 = vmatpush1.msra.mxu0 0.0
    %8181 = vmatprep.subr.mxu0 0.0
    %8182 = vmatpush1.msra.mxu0 0.0
    %8183 = vmatprep.subr.mxu0 0.0
    %8184 = vmatpush1.msra.mxu0 0.0
    %8185 = vmatprep.subr.mxu0 0.0
    %8186 = vmatpush1.msra.mxu0 0.0
    %8187 = vmatprep.subr.mxu0 0.0
    %8188 = vmatpush1.msra.mxu0 %v8162
    %8189 = vmatprep.subr.mxu0 0.0
    %8190 = vmatpush1.msra.mxu0 %v8161
    %8191 = vmatprep.subr.mxu0 0.0
    %8192 = vmatpush1.msra.mxu0 %v8160
    %8193 = vmatprep.subr.mxu0 0.0
    %8194 = vmatpush1.msra.mxu0 %v8159
    %8195 = vmatprep.subr.mxu0 0.0
    %8196 = vmatpush2.msra.mxu0 0.0
    %8197 = vmatprep.subr.mxu0 0.0
    %8198 = vmatpush2.msra.mxu0 0.0
    %8199 = vmatprep.subr.mxu0 0.0
    %8200 = vmatpush2.msra.mxu0 0.0
    %8201 = vmatprep.subr.mxu0 0.0
    %8202 = vmatpush2.msra.mxu0 0.0
    %8203 = vmatprep.subr.mxu0 0.0
    %8204 = vmatpush2.msra.mxu0 0.0
    %8205 = vmatprep.subr.mxu0 0.0
    %8206 = vmatpush2.msra.mxu0 0.0
    %8207 = vmatprep.subr.mxu0 0.0
    %8208 = vmatpush2.msra.mxu0 0.0
    %8209 = vmatprep.subr.mxu0 0.0
    %8210 = vmatpush2.msra.mxu0 0.0
    %8211 = vmatprep.subr.mxu0 0.0
    %8212 = vmatpush2.msra.mxu0 0.0
    %8213 = vmatprep.subr.mxu0 0.0
    %8214 = vmatpush2.msra.mxu0 0.0
    %8215 = vmatprep.subr.mxu0 0.0
    %8216 = vmatpush2.msra.mxu0 0.0
    %8217 = vmatprep.subr.mxu0 0.0
    %8218 = vmatpush2.msra.mxu0 0.0
    %8219 = vmatprep.subr.mxu0 0.0
    %8220 = vmatpush2.msra.mxu0 0.0
    %8221 = vmatprep.subr.mxu0 0.0
    %8222 = vmatpush2.msra.mxu0 0.0
    %8223 = vmatprep.subr.mxu0 0.0
    %8224 = vmatpush2.msra.mxu0 0.0
    %8225 = vmatprep.subr.mxu0 0.0
    %8226 = vmatpush2.msra.mxu0 0.0
    %8227 = vmatprep.mubr.f32.mxu0 0.0
    %8228 = vmatmul.mubr.f32.gmra.mxu0 %v7128
    %v8229 = vpop.f32.mrf.mxu0
    %v8230 = vadd.f32 0.0, %v8229
    %v8231 = vpop.f32.mrf.mxu0
    %8232 = vmatprep.mubr.f32.mxu0 0.0
    %8233 = vmatmul.mubr.f32.gmra.mxu0 %v7131
    %v8234 = vpop.f32.mrf.mxu0
    %v8235 = vadd.f32 0.0, %v8234
    %v8236 = vpop.f32.mrf.mxu0
    %8237 = vdwg.mxu0
    %s8238 = scalar_lea.vmem %s2, 1344
    %v8239 = vld [vmem:[%s8238] sm:$0xff]
    %v8240 = vld [vmem:[%s8238 + $0x8] sm:$0xff]
    %v8241 = vld [vmem:[%s8238 + $0x10] sm:$0xff]
    %v8242 = vld [vmem:[%s8238 + $0x18] sm:$0xff]
    %8243 = vmatprep.subr.mxu0 0.0
    %8244 = vmatpush1.msra.mxu0 0.0
    %8245 = vmatprep.subr.mxu0 0.0
    %8246 = vmatpush1.msra.mxu0 0.0
    %8247 = vmatprep.subr.mxu0 0.0
    %8248 = vmatpush1.msra.mxu0 0.0
    %8249 = vmatprep.subr.mxu0 0.0
    %8250 = vmatpush1.msra.mxu0 0.0
    %8251 = vmatprep.subr.mxu0 0.0
    %8252 = vmatpush1.msra.mxu0 0.0
    %8253 = vmatprep.subr.mxu0 0.0
    %8254 = vmatpush1.msra.mxu0 0.0
    %8255 = vmatprep.subr.mxu0 0.0
    %8256 = vmatpush1.msra.mxu0 0.0
    %8257 = vmatprep.subr.mxu0 0.0
    %8258 = vmatpush1.msra.mxu0 0.0
    %8259 = vmatprep.subr.mxu0 0.0
    %8260 = vmatpush1.msra.mxu0 0.0
    %8261 = vmatprep.subr.mxu0 0.0
    %8262 = vmatpush1.msra.mxu0 0.0
    %8263 = vmatprep.subr.mxu0 0.0
    %8264 = vmatpush1.msra.mxu0 0.0
    %8265 = vmatprep.subr.mxu0 0.0
    %8266 = vmatpush1.msra.mxu0 0.0
    %8267 = vmatprep.subr.mxu0 0.0
    %8268 = vmatpush1.msra.mxu0 %v8242
    %8269 = vmatprep.subr.mxu0 0.0
    %8270 = vmatpush1.msra.mxu0 %v8241
    %8271 = vmatprep.subr.mxu0 0.0
    %8272 = vmatpush1.msra.mxu0 %v8240
    %8273 = vmatprep.subr.mxu0 0.0
    %8274 = vmatpush1.msra.mxu0 %v8239
    %8275 = vmatprep.subr.mxu0 0.0
    %8276 = vmatpush2.msra.mxu0 0.0
    %8277 = vmatprep.subr.mxu0 0.0
    %8278 = vmatpush2.msra.mxu0 0.0
    %8279 = vmatprep.subr.mxu0 0.0
    %8280 = vmatpush2.msra.mxu0 0.0
    %8281 = vmatprep.subr.mxu0 0.0
    %8282 = vmatpush2.msra.mxu0 0.0
    %8283 = vmatprep.subr.mxu0 0.0
    %8284 = vmatpush2.msra.mxu0 0.0
    %8285 = vmatprep.subr.mxu0 0.0
    %8286 = vmatpush2.msra.mxu0 0.0
    %8287 = vmatprep.subr.mxu0 0.0
    %8288 = vmatpush2.msra.mxu0 0.0
    %8289 = vmatprep.subr.mxu0 0.0
    %8290 = vmatpush2.msra.mxu0 0.0
    %8291 = vmatprep.subr.mxu0 0.0
    %8292 = vmatpush2.msra.mxu0 0.0
    %8293 = vmatprep.subr.mxu0 0.0
    %8294 = vmatpush2.msra.mxu0 0.0
    %8295 = vmatprep.subr.mxu0 0.0
    %8296 = vmatpush2.msra.mxu0 0.0
    %8297 = vmatprep.subr.mxu0 0.0
    %8298 = vmatpush2.msra.mxu0 0.0
    %8299 = vmatprep.subr.mxu0 0.0
    %8300 = vmatpush2.msra.mxu0 0.0
    %8301 = vmatprep.subr.mxu0 0.0
    %8302 = vmatpush2.msra.mxu0 0.0
    %8303 = vmatprep.subr.mxu0 0.0
    %8304 = vmatpush2.msra.mxu0 0.0
    %8305 = vmatprep.subr.mxu0 0.0
    %8306 = vmatpush2.msra.mxu0 0.0
    %8307 = vmatprep.mubr.f32.mxu0 0.0
    %8308 = vmatmul.mubr.f32.gmra.mxu0 %v7128
    %v8309 = vpop.f32.mrf.mxu0
    %v8310 = vadd.f32 0.0, %v8309
    %v8311 = vpop.f32.mrf.mxu0
    %8312 = vmatprep.mubr.f32.mxu0 0.0
    %8313 = vmatmul.mubr.f32.gmra.mxu0 %v7131
    %v8314 = vpop.f32.mrf.mxu0
    %v8315 = vadd.f32 0.0, %v8314
    %v8316 = vpop.f32.mrf.mxu0
    %8317 = vdwg.mxu0
    %s8318 = scalar_lea.vmem %s2, 1472
    %v8319 = vld [vmem:[%s8318] sm:$0xff]
    %v8320 = vld [vmem:[%s8318 + $0x8] sm:$0xff]
    %v8321 = vld [vmem:[%s8318 + $0x10] sm:$0xff]
    %v8322 = vld [vmem:[%s8318 + $0x18] sm:$0xff]
    %8323 = vmatprep.subr.mxu0 0.0
    %8324 = vmatpush1.msra.mxu0 0.0
    %8325 = vmatprep.subr.mxu0 0.0
    %8326 = vmatpush1.msra.mxu0 0.0
    %8327 = vmatprep.subr.mxu0 0.0
    %8328 = vmatpush1.msra.mxu0 0.0
    %8329 = vmatprep.subr.mxu0 0.0
    %8330 = vmatpush1.msra.mxu0 0.0
    %8331 = vmatprep.subr.mxu0 0.0
    %8332 = vmatpush1.msra.mxu0 0.0
    %8333 = vmatprep.subr.mxu0 0.0
    %8334 = vmatpush1.msra.mxu0 0.0
    %8335 = vmatprep.subr.mxu0 0.0
    %8336 = vmatpush1.msra.mxu0 0.0
    %8337 = vmatprep.subr.mxu0 0.0
    %8338 = vmatpush1.msra.mxu0 0.0
    %8339 = vmatprep.subr.mxu0 0.0
    %8340 = vmatpush1.msra.mxu0 0.0
    %8341 = vmatprep.subr.mxu0 0.0
    %8342 = vmatpush1.msra.mxu0 0.0
    %8343 = vmatprep.subr.mxu0 0.0
    %8344 = vmatpush1.msra.mxu0 0.0
    %8345 = vmatprep.subr.mxu0 0.0
    %8346 = vmatpush1.msra.mxu0 0.0
    %8347 = vmatprep.subr.mxu0 0.0
    %8348 = vmatpush1.msra.mxu0 %v8322
    %8349 = vmatprep.subr.mxu0 0.0
    %8350 = vmatpush1.msra.mxu0 %v8321
    %8351 = vmatprep.subr.mxu0 0.0
    %8352 = vmatpush1.msra.mxu0 %v8320
    %8353 = vmatprep.subr.mxu0 0.0
    %8354 = vmatpush1.msra.mxu0 %v8319
    %8355 = vmatprep.subr.mxu0 0.0
    %8356 = vmatpush2.msra.mxu0 0.0
    %8357 = vmatprep.subr.mxu0 0.0
    %8358 = vmatpush2.msra.mxu0 0.0
    %8359 = vmatprep.subr.mxu0 0.0
    %8360 = vmatpush2.msra.mxu0 0.0
    %8361 = vmatprep.subr.mxu0 0.0
    %8362 = vmatpush2.msra.mxu0 0.0
    %8363 = vmatprep.subr.mxu0 0.0
    %8364 = vmatpush2.msra.mxu0 0.0
    %8365 = vmatprep.subr.mxu0 0.0
    %8366 = vmatpush2.msra.mxu0 0.0
    %8367 = vmatprep.subr.mxu0 0.0
    %8368 = vmatpush2.msra.mxu0 0.0
    %8369 = vmatprep.subr.mxu0 0.0
    %8370 = vmatpush2.msra.mxu0 0.0
    %8371 = vmatprep.subr.mxu0 0.0
    %8372 = vmatpush2.msra.mxu0 0.0
    %8373 = vmatprep.subr.mxu0 0.0
    %8374 = vmatpush2.msra.mxu0 0.0
    %8375 = vmatprep.subr.mxu0 0.0
    %8376 = vmatpush2.msra.mxu0 0.0
    %8377 = vmatprep.subr.mxu0 0.0
    %8378 = vmatpush2.msra.mxu0 0.0
    %8379 = vmatprep.subr.mxu0 0.0
    %8380 = vmatpush2.msra.mxu0 0.0
    %8381 = vmatprep.subr.mxu0 0.0
    %8382 = vmatpush2.msra.mxu0 0.0
    %8383 = vmatprep.subr.mxu0 0.0
    %8384 = vmatpush2.msra.mxu0 0.0
    %8385 = vmatprep.subr.mxu0 0.0
    %8386 = vmatpush2.msra.mxu0 0.0
    %8387 = vmatprep.mubr.f32.mxu0 0.0
    %8388 = vmatmul.mubr.f32.gmra.mxu0 %v7128
    %v8389 = vpop.f32.mrf.mxu0
    %v8390 = vadd.f32 0.0, %v8389
    %v8391 = vpop.f32.mrf.mxu0
    %8392 = vmatprep.mubr.f32.mxu0 0.0
    %8393 = vmatmul.mubr.f32.gmra.mxu0 %v7131
    %v8394 = vpop.f32.mrf.mxu0
    %v8395 = vadd.f32 0.0, %v8394
    %v8396 = vpop.f32.mrf.mxu0
    %8397 = vdwg.mxu0
    %v8399 = vsel %vm334, %v8230, 0
    %v8402 = vsel %vm334, %v8235, 0
    %v8405 = vsel %vm334, %v8310, 0
    %v8408 = vsel %vm334, %v8315, 0
    %8410 = vmatprep.subr.mxu0 0.0
    %8411 = vmatpush1.xpose.msra.mxu0 0.0
    %8412 = vmatprep.subr.mxu0 0.0
    %8413 = vmatpush1.xpose.msra.mxu0 0.0
    %8414 = vmatprep.subr.mxu0 0.0
    %8415 = vmatpush1.xpose.msra.mxu0 0.0
    %8416 = vmatprep.subr.mxu0 0.0
    %8417 = vmatpush1.xpose.msra.mxu0 0.0
    %8418 = vmatprep.subr.mxu0 0.0
    %8419 = vmatpush1.xpose.msra.mxu0 0.0
    %8420 = vmatprep.subr.mxu0 0.0
    %8421 = vmatpush1.xpose.msra.mxu0 0.0
    %8422 = vmatprep.subr.mxu0 0.0
    %8423 = vmatpush1.xpose.msra.mxu0 0.0
    %8424 = vmatprep.subr.mxu0 0.0
    %8425 = vmatpush1.xpose.msra.mxu0 0.0
    %8426 = vmatprep.subr.mxu0 0.0
    %8427 = vmatpush1.xpose.msra.mxu0 0.0
    %8428 = vmatprep.subr.mxu0 0.0
    %8429 = vmatpush1.xpose.msra.mxu0 0.0
    %8430 = vmatprep.subr.mxu0 0.0
    %8431 = vmatpush1.xpose.msra.mxu0 0.0
    %8432 = vmatprep.subr.mxu0 0.0
    %8433 = vmatpush1.xpose.msra.mxu0 0.0
    %8434 = vmatprep.subr.mxu0 0.0
    %8435 = vmatpush1.xpose.msra.mxu0 0.0
    %8436 = vmatprep.subr.mxu0 0.0
    %8437 = vmatpush1.xpose.msra.mxu0 0.0
    %8438 = vmatprep.subr.mxu0 0.0
    %8439 = vmatpush1.xpose.msra.mxu0 %v8408
    %8440 = vmatprep.subr.mxu0 0.0
    %8441 = vmatpush1.xpose.msra.mxu0 %v8405
    %8442 = vmatprep.subr.mxu0 0.0
    %8443 = vmatpush2.xpose.msra.mxu0 0.0
    %8444 = vmatprep.subr.mxu0 0.0
    %8445 = vmatpush2.xpose.msra.mxu0 0.0
    %8446 = vmatprep.subr.mxu0 0.0
    %8447 = vmatpush2.xpose.msra.mxu0 0.0
    %8448 = vmatprep.subr.mxu0 0.0
    %8449 = vmatpush2.xpose.msra.mxu0 0.0
    %8450 = vmatprep.subr.mxu0 0.0
    %8451 = vmatpush2.xpose.msra.mxu0 0.0
    %8452 = vmatprep.subr.mxu0 0.0
    %8453 = vmatpush2.xpose.msra.mxu0 0.0
    %8454 = vmatprep.subr.mxu0 0.0
    %8455 = vmatpush2.xpose.msra.mxu0 0.0
    %8456 = vmatprep.subr.mxu0 0.0
    %8457 = vmatpush2.xpose.msra.mxu0 0.0
    %8458 = vmatprep.subr.mxu0 0.0
    %8459 = vmatpush2.xpose.msra.mxu0 0.0
    %8460 = vmatprep.subr.mxu0 0.0
    %8461 = vmatpush2.xpose.msra.mxu0 0.0
    %8462 = vmatprep.subr.mxu0 0.0
    %8463 = vmatpush2.xpose.msra.mxu0 0.0
    %8464 = vmatprep.subr.mxu0 0.0
    %8465 = vmatpush2.xpose.msra.mxu0 0.0
    %8466 = vmatprep.subr.mxu0 0.0
    %8467 = vmatpush2.xpose.msra.mxu0 0.0
    %8468 = vmatprep.subr.mxu0 0.0
    %8469 = vmatpush2.xpose.msra.mxu0 0.0
    %8470 = vmatprep.subr.mxu0 0.0
    %8471 = vmatpush2.xpose.msra.mxu0 0.0
    %8472 = vmatprep.subr.mxu0 0.0
    %8473 = vmatpush2.xpose.msra.mxu0 0.0
    %8474 = vmatprep.mubr.f32.mxu0 0.0
    %8475 = vmatmul.mubr.f32.gmra.mxu0 %v8399
    %v8476 = vpop.f32.mrf.mxu0
    %v8477 = vadd.f32 %v46, %v8476
    %v8478 = vpop.f32.mrf.mxu0
    %8479 = vmatprep.mubr.f32.mxu0 0.0
    %8480 = vmatmul.mubr.f32.gmra.mxu0 %v8402
    %v8481 = vpop.f32.mrf.mxu0
    %v8482 = vadd.f32 %v47, %v8481
    %v8483 = vpop.f32.mrf.mxu0
    %8484 = vdwg.mxu0
    %v8485 = vsel %vm422, %v8477, -inf
    %8486 = vmax.xlane.f32.xlu0 %v8485
    %v8487 = vpop.xlane.xlu0 %8486
    %v8488 = vsel %vm422, %v8482, -inf
    %8489 = vmax.xlane.f32.xlu0 %v8488
    %v8490 = vpop.xlane.xlu0 %8489
    %v8491 = vsub.f32 %v8477, %v8487
    %v8492 = vsub.f32 %v8482, %v8490
    %v8493 = vmul.f32 %v8491, 1.442695
    %v8494 = vpow.pop %v8493
    %v8495 = vmul.f32 %v8492, 1.442695
    %v8496 = vpow.pop %v8495
    %v8497 = vsel %vm422, %v8494, 0.0
    %8498 = vadd.xlane.f32.xlu0 %v8497
    %v8499 = vpop.xlane.xlu0 %8498
    %v8500 = vsel %vm422, %v8496, 0.0
    %8501 = vadd.xlane.f32.xlu0 %v8500
    %v8502 = vpop.xlane.xlu0 %8501
    %v8503 = vrcp.pop %v8499
    %v8504 = vrcp.pop %v8502
    %v8505 = vmul.f32 %v8494, %v8503
    %v8506 = vmul.f32 %v8496, %v8504
    %v8508 = vsel %vm422, %v8505, 0
    %v8511 = vsel %vm422, %v8506, 0
    %8513 = vmatprep.subr.mxu0 0.0
    %8514 = vmatpush1.msra.mxu0 0.0
    %8515 = vmatprep.subr.mxu0 0.0
    %8516 = vmatpush1.msra.mxu0 0.0
    %8517 = vmatprep.subr.mxu0 0.0
    %8518 = vmatpush1.msra.mxu0 0.0
    %8519 = vmatprep.subr.mxu0 0.0
    %8520 = vmatpush1.msra.mxu0 0.0
    %8521 = vmatprep.subr.mxu0 0.0
    %8522 = vmatpush1.msra.mxu0 0.0
    %8523 = vmatprep.subr.mxu0 0.0
    %8524 = vmatpush1.msra.mxu0 0.0
    %8525 = vmatprep.subr.mxu0 0.0
    %8526 = vmatpush1.msra.mxu0 0.0
    %8527 = vmatprep.subr.mxu0 0.0
    %8528 = vmatpush1.msra.mxu0 0.0
    %8529 = vmatprep.subr.mxu0 0.0
    %8530 = vmatpush1.msra.mxu0 0.0
    %8531 = vmatprep.subr.mxu0 0.0
    %8532 = vmatpush1.msra.mxu0 0.0
    %8533 = vmatprep.subr.mxu0 0.0
    %8534 = vmatpush1.msra.mxu0 0.0
    %8535 = vmatprep.subr.mxu0 0.0
    %8536 = vmatpush1.msra.mxu0 0.0
    %8537 = vmatprep.subr.mxu0 0.0
    %8538 = vmatpush1.msra.mxu0 0.0
    %8539 = vmatprep.subr.mxu0 0.0
    %8540 = vmatpush1.msra.mxu0 0.0
    %8541 = vmatprep.subr.mxu0 0.0
    %8542 = vmatpush1.msra.mxu0 %v8395
    %8543 = vmatprep.subr.mxu0 0.0
    %8544 = vmatpush1.msra.mxu0 %v8390
    %8545 = vmatprep.subr.mxu0 0.0
    %8546 = vmatpush2.msra.mxu0 0.0
    %8547 = vmatprep.subr.mxu0 0.0
    %8548 = vmatpush2.msra.mxu0 0.0
    %8549 = vmatprep.subr.mxu0 0.0
    %8550 = vmatpush2.msra.mxu0 0.0
    %8551 = vmatprep.subr.mxu0 0.0
    %8552 = vmatpush2.msra.mxu0 0.0
    %8553 = vmatprep.subr.mxu0 0.0
    %8554 = vmatpush2.msra.mxu0 0.0
    %8555 = vmatprep.subr.mxu0 0.0
    %8556 = vmatpush2.msra.mxu0 0.0
    %8557 = vmatprep.subr.mxu0 0.0
    %8558 = vmatpush2.msra.mxu0 0.0
    %8559 = vmatprep.subr.mxu0 0.0
    %8560 = vmatpush2.msra.mxu0 0.0
    %8561 = vmatprep.subr.mxu0 0.0
    %8562 = vmatpush2.msra.mxu0 0.0
    %8563 = vmatprep.subr.mxu0 0.0
    %8564 = vmatpush2.msra.mxu0 0.0
    %8565 = vmatprep.subr.mxu0 0.0
    %8566 = vmatpush2.msra.mxu0 0.0
    %8567 = vmatprep.subr.mxu0 0.0
    %8568 = vmatpush2.msra.mxu0 0.0
    %8569 = vmatprep.subr.mxu0 0.0
    %8570 = vmatpush2.msra.mxu0 0.0
    %8571 = vmatprep.subr.mxu0 0.0
    %8572 = vmatpush2.msra.mxu0 0.0
    %8573 = vmatprep.subr.mxu0 0.0
    %8574 = vmatpush2.msra.mxu0 0.0
    %8575 = vmatprep.subr.mxu0 0.0
    %8576 = vmatpush2.msra.mxu0 0.0
    %8577 = vmatprep.mubr.f32.mxu0 0.0
    %8578 = vmatmul.mubr.f32.gmra.mxu0 %v8508
    %v8579 = vpop.f32.mrf.mxu0
    %v8580 = vadd.f32 0.0, %v8579
    %v8581 = vpop.f32.mrf.mxu0
    %8582 = vmatprep.mubr.f32.mxu0 0.0
    %8583 = vmatmul.mubr.f32.gmra.mxu0 %v8511
    %v8584 = vpop.f32.mrf.mxu0
    %v8585 = vadd.f32 0.0, %v8584
    %v8586 = vpop.f32.mrf.mxu0
    %8587 = vdwg.mxu0
    %s8588 = scalar_lea.vmem %s3, 112
    %v8589 = vld [vmem:[%s8588] sm:$0xff]
    %v8591 = vsel %vm334, %v8580, 0
    %v8594 = vsel %vm334, %v8585, 0
    %8596 = vmatprep.subr.mxu0 0.0
    %8597 = vmatpush1.msra.mxu0 0.0
    %8598 = vmatprep.subr.mxu0 0.0
    %8599 = vmatpush1.msra.mxu0 0.0
    %8600 = vmatprep.subr.mxu0 0.0
    %8601 = vmatpush1.msra.mxu0 0.0
    %8602 = vmatprep.subr.mxu0 0.0
    %8603 = vmatpush1.msra.mxu0 0.0
    %8604 = vmatprep.subr.mxu0 0.0
    %8605 = vmatpush1.msra.mxu0 0.0
    %8606 = vmatprep.subr.mxu0 0.0
    %8607 = vmatpush1.msra.mxu0 0.0
    %8608 = vmatprep.subr.mxu0 0.0
    %8609 = vmatpush1.msra.mxu0 0.0
    %8610 = vmatprep.subr.mxu0 0.0
    %8611 = vmatpush1.msra.mxu0 0.0
    %8612 = vmatprep.subr.mxu0 0.0
    %8613 = vmatpush1.msra.mxu0 0.0
    %8614 = vmatprep.subr.mxu0 0.0
    %8615 = vmatpush1.msra.mxu0 0.0
    %8616 = vmatprep.subr.mxu0 0.0
    %8617 = vmatpush1.msra.mxu0 0.0
    %8618 = vmatprep.subr.mxu0 0.0
    %8619 = vmatpush1.msra.mxu0 0.0
    %8620 = vmatprep.subr.mxu0 0.0
    %8621 = vmatpush1.msra.mxu0 0.0
    %8622 = vmatprep.subr.mxu0 0.0
    %8623 = vmatpush1.msra.mxu0 0.0
    %8624 = vmatprep.subr.mxu0 0.0
    %8625 = vmatpush1.msra.mxu0 0.0
    %8626 = vmatprep.subr.mxu0 0.0
    %8627 = vmatpush1.msra.mxu0 %v8589
    %8628 = vmatprep.subr.mxu0 0.0
    %8629 = vmatpush2.msra.mxu0 0.0
    %8630 = vmatprep.subr.mxu0 0.0
    %8631 = vmatpush2.msra.mxu0 0.0
    %8632 = vmatprep.subr.mxu0 0.0
    %8633 = vmatpush2.msra.mxu0 0.0
    %8634 = vmatprep.subr.mxu0 0.0
    %8635 = vmatpush2.msra.mxu0 0.0
    %8636 = vmatprep.subr.mxu0 0.0
    %8637 = vmatpush2.msra.mxu0 0.0
    %8638 = vmatprep.subr.mxu0 0.0
    %8639 = vmatpush2.msra.mxu0 0.0
    %8640 = vmatprep.subr.mxu0 0.0
    %8641 = vmatpush2.msra.mxu0 0.0
    %8642 = vmatprep.subr.mxu0 0.0
    %8643 = vmatpush2.msra.mxu0 0.0
    %8644 = vmatprep.subr.mxu0 0.0
    %8645 = vmatpush2.msra.mxu0 0.0
    %8646 = vmatprep.subr.mxu0 0.0
    %8647 = vmatpush2.msra.mxu0 0.0
    %8648 = vmatprep.subr.mxu0 0.0
    %8649 = vmatpush2.msra.mxu0 0.0
    %8650 = vmatprep.subr.mxu0 0.0
    %8651 = vmatpush2.msra.mxu0 0.0
    %8652 = vmatprep.subr.mxu0 0.0
    %8653 = vmatpush2.msra.mxu0 0.0
    %8654 = vmatprep.subr.mxu0 0.0
    %8655 = vmatpush2.msra.mxu0 0.0
    %8656 = vmatprep.subr.mxu0 0.0
    %8657 = vmatpush2.msra.mxu0 0.0
    %8658 = vmatprep.subr.mxu0 0.0
    %8659 = vmatpush2.msra.mxu0 0.0
    %8660 = vmatprep.mubr.f32.mxu0 0.0
    %8661 = vmatmul.mubr.f32.gmra.mxu0 %v8591
    %v8662 = vpop.f32.mrf.mxu0
    %v8663 = vadd.f32 0.0, %v8662
    %v8664 = vpop.f32.mrf.mxu0
    %8665 = vmatprep.mubr.f32.mxu0 0.0
    %8666 = vmatmul.mubr.f32.gmra.mxu0 %v8594
    %v8667 = vpop.f32.mrf.mxu0
    %v8668 = vadd.f32 0.0, %v8667
    %v8669 = vpop.f32.mrf.mxu0
    %8670 = vdwg.mxu0
    %v8671 = vadd.f32 %v8156, %v8663
    %v8672 = vadd.f32 %v8157, %v8668
    %s8673 = scalar_lea.vmem %s2, 1248
    %v8674 = vld [vmem:[%s8673] sm:$0xff]
    %v8675 = vld [vmem:[%s8673 + $0x8] sm:$0xff]
    %v8676 = vld [vmem:[%s8673 + $0x10] sm:$0xff]
    %v8677 = vld [vmem:[%s8673 + $0x18] sm:$0xff]
    %8678 = vmatprep.subr.mxu0 0.0
    %8679 = vmatpush1.msra.mxu0 0.0
    %8680 = vmatprep.subr.mxu0 0.0
    %8681 = vmatpush1.msra.mxu0 0.0
    %8682 = vmatprep.subr.mxu0 0.0
    %8683 = vmatpush1.msra.mxu0 0.0
    %8684 = vmatprep.subr.mxu0 0.0
    %8685 = vmatpush1.msra.mxu0 0.0
    %8686 = vmatprep.subr.mxu0 0.0
    %8687 = vmatpush1.msra.mxu0 0.0
    %8688 = vmatprep.subr.mxu0 0.0
    %8689 = vmatpush1.msra.mxu0 0.0
    %8690 = vmatprep.subr.mxu0 0.0
    %8691 = vmatpush1.msra.mxu0 0.0
    %8692 = vmatprep.subr.mxu0 0.0
    %8693 = vmatpush1.msra.mxu0 0.0
    %8694 = vmatprep.subr.mxu0 0.0
    %8695 = vmatpush1.msra.mxu0 0.0
    %8696 = vmatprep.subr.mxu0 0.0
    %8697 = vmatpush1.msra.mxu0 0.0
    %8698 = vmatprep.subr.mxu0 0.0
    %8699 = vmatpush1.msra.mxu0 0.0
    %8700 = vmatprep.subr.mxu0 0.0
    %8701 = vmatpush1.msra.mxu0 0.0
    %8702 = vmatprep.subr.mxu0 0.0
    %8703 = vmatpush1.msra.mxu0 %v8677
    %8704 = vmatprep.subr.mxu0 0.0
    %8705 = vmatpush1.msra.mxu0 %v8676
    %8706 = vmatprep.subr.mxu0 0.0
    %8707 = vmatpush1.msra.mxu0 %v8675
    %8708 = vmatprep.subr.mxu0 0.0
    %8709 = vmatpush1.msra.mxu0 %v8674
    %8710 = vmatprep.subr.mxu0 0.0
    %8711 = vmatpush2.msra.mxu0 0.0
    %8712 = vmatprep.subr.mxu0 0.0
    %8713 = vmatpush2.msra.mxu0 0.0
    %8714 = vmatprep.subr.mxu0 0.0
    %8715 = vmatpush2.msra.mxu0 0.0
    %8716 = vmatprep.subr.mxu0 0.0
    %8717 = vmatpush2.msra.mxu0 0.0
    %8718 = vmatprep.subr.mxu0 0.0
    %8719 = vmatpush2.msra.mxu0 0.0
    %8720 = vmatprep.subr.mxu0 0.0
    %8721 = vmatpush2.msra.mxu0 0.0
    %8722 = vmatprep.subr.mxu0 0.0
    %8723 = vmatpush2.msra.mxu0 0.0
    %8724 = vmatprep.subr.mxu0 0.0
    %8725 = vmatpush2.msra.mxu0 0.0
    %8726 = vmatprep.subr.mxu0 0.0
    %8727 = vmatpush2.msra.mxu0 0.0
    %8728 = vmatprep.subr.mxu0 0.0
    %8729 = vmatpush2.msra.mxu0 0.0
    %8730 = vmatprep.subr.mxu0 0.0
    %8731 = vmatpush2.msra.mxu0 0.0
    %8732 = vmatprep.subr.mxu0 0.0
    %8733 = vmatpush2.msra.mxu0 0.0
    %8734 = vmatprep.subr.mxu0 0.0
    %8735 = vmatpush2.msra.mxu0 0.0
    %8736 = vmatprep.subr.mxu0 0.0
    %8737 = vmatpush2.msra.mxu0 0.0
    %8738 = vmatprep.subr.mxu0 0.0
    %8739 = vmatpush2.msra.mxu0 0.0
    %8740 = vmatprep.subr.mxu0 0.0
    %8741 = vmatpush2.msra.mxu0 0.0
    %8742 = vmatprep.mubr.f32.mxu0 0.0
    %8743 = vmatmul.mubr.f32.gmra.mxu0 %v7128
    %v8744 = vpop.f32.mrf.mxu0
    %v8745 = vadd.f32 0.0, %v8744
    %v8746 = vpop.f32.mrf.mxu0
    %8747 = vmatprep.mubr.f32.mxu0 0.0
    %8748 = vmatmul.mubr.f32.gmra.mxu0 %v7131
    %v8749 = vpop.f32.mrf.mxu0
    %v8750 = vadd.f32 0.0, %v8749
    %v8751 = vpop.f32.mrf.mxu0
    %8752 = vdwg.mxu0
    %s8753 = scalar_lea.vmem %s2, 1376
    %v8754 = vld [vmem:[%s8753] sm:$0xff]
    %v8755 = vld [vmem:[%s8753 + $0x8] sm:$0xff]
    %v8756 = vld [vmem:[%s8753 + $0x10] sm:$0xff]
    %v8757 = vld [vmem:[%s8753 + $0x18] sm:$0xff]
    %8758 = vmatprep.subr.mxu0 0.0
    %8759 = vmatpush1.msra.mxu0 0.0
    %8760 = vmatprep.subr.mxu0 0.0
    %8761 = vmatpush1.msra.mxu0 0.0
    %8762 = vmatprep.subr.mxu0 0.0
    %8763 = vmatpush1.msra.mxu0 0.0
    %8764 = vmatprep.subr.mxu0 0.0
    %8765 = vmatpush1.msra.mxu0 0.0
    %8766 = vmatprep.subr.mxu0 0.0
    %8767 = vmatpush1.msra.mxu0 0.0
    %8768 = vmatprep.subr.mxu0 0.0
    %8769 = vmatpush1.msra.mxu0 0.0
    %8770 = vmatprep.subr.mxu0 0.0
    %8771 = vmatpush1.msra.mxu0 0.0
    %8772 = vmatprep.subr.mxu0 0.0
    %8773 = vmatpush1.msra.mxu0 0.0
    %8774 = vmatprep.subr.mxu0 0.0
    %8775 = vmatpush1.msra.mxu0 0.0
    %8776 = vmatprep.subr.mxu0 0.0
    %8777 = vmatpush1.msra.mxu0 0.0
    %8778 = vmatprep.subr.mxu0 0.0
    %8779 = vmatpush1.msra.mxu0 0.0
    %8780 = vmatprep.subr.mxu0 0.0
    %8781 = vmatpush1.msra.mxu0 0.0
    %8782 = vmatprep.subr.mxu0 0.0
    %8783 = vmatpush1.msra.mxu0 %v8757
    %8784 = vmatprep.subr.mxu0 0.0
    %8785 = vmatpush1.msra.mxu0 %v8756
    %8786 = vmatprep.subr.mxu0 0.0
    %8787 = vmatpush1.msra.mxu0 %v8755
    %8788 = vmatprep.subr.mxu0 0.0
    %8789 = vmatpush1.msra.mxu0 %v8754
    %8790 = vmatprep.subr.mxu0 0.0
    %8791 = vmatpush2.msra.mxu0 0.0
    %8792 = vmatprep.subr.mxu0 0.0
    %8793 = vmatpush2.msra.mxu0 0.0
    %8794 = vmatprep.subr.mxu0 0.0
    %8795 = vmatpush2.msra.mxu0 0.0
    %8796 = vmatprep.subr.mxu0 0.0
    %8797 = vmatpush2.msra.mxu0 0.0
    %8798 = vmatprep.subr.mxu0 0.0
    %8799 = vmatpush2.msra.mxu0 0.0
    %8800 = vmatprep.subr.mxu0 0.0
    %8801 = vmatpush2.msra.mxu0 0.0
    %8802 = vmatprep.subr.mxu0 0.0
    %8803 = vmatpush2.msra.mxu0 0.0
    %8804 = vmatprep.subr.mxu0 0.0
    %8805 = vmatpush2.msra.mxu0 0.0
    %8806 = vmatprep.subr.mxu0 0.0
    %8807 = vmatpush2.msra.mxu0 0.0
    %8808 = vmatprep.subr.mxu0 0.0
    %8809 = vmatpush2.msra.mxu0 0.0
    %8810 = vmatprep.subr.mxu0 0.0
    %8811 = vmatpush2.msra.mxu0 0.0
    %8812 = vmatprep.subr.mxu0 0.0
    %8813 = vmatpush2.msra.mxu0 0.0
    %8814 = vmatprep.subr.mxu0 0.0
    %8815 = vmatpush2.msra.mxu0 0.0
    %8816 = vmatprep.subr.mxu0 0.0
    %8817 = vmatpush2.msra.mxu0 0.0
    %8818 = vmatprep.subr.mxu0 0.0
    %8819 = vmatpush2.msra.mxu0 0.0
    %8820 = vmatprep.subr.mxu0 0.0
    %8821 = vmatpush2.msra.mxu0 0.0
    %8822 = vmatprep.mubr.f32.mxu0 0.0
    %8823 = vmatmul.mubr.f32.gmra.mxu0 %v7128
    %v8824 = vpop.f32.mrf.mxu0
    %v8825 = vadd.f32 0.0, %v8824
    %v8826 = vpop.f32.mrf.mxu0
    %8827 = vmatprep.mubr.f32.mxu0 0.0
    %8828 = vmatmul.mubr.f32.gmra.mxu0 %v7131
    %v8829 = vpop.f32.mrf.mxu0
    %v8830 = vadd.f32 0.0, %v8829
    %v8831 = vpop.f32.mrf.mxu0
    %8832 = vdwg.mxu0
    %s8833 = scalar_lea.vmem %s2, 1504
    %v8834 = vld [vmem:[%s8833] sm:$0xff]
    %v8835 = vld [vmem:[%s8833 + $0x8] sm:$0xff]
    %v8836 = vld [vmem:[%s8833 + $0x10] sm:$0xff]
    %v8837 = vld [vmem:[%s8833 + $0x18] sm:$0xff]
    %8838 = vmatprep.subr.mxu0 0.0
    %8839 = vmatpush1.msra.mxu0 0.0
    %8840 = vmatprep.subr.mxu0 0.0
    %8841 = vmatpush1.msra.mxu0 0.0
    %8842 = vmatprep.subr.mxu0 0.0
    %8843 = vmatpush1.msra.mxu0 0.0
    %8844 = vmatprep.subr.mxu0 0.0
    %8845 = vmatpush1.msra.mxu0 0.0
    %8846 = vmatprep.subr.mxu0 0.0
    %8847 = vmatpush1.msra.mxu0 0.0
    %8848 = vmatprep.subr.mxu0 0.0
    %8849 = vmatpush1.msra.mxu0 0.0
    %8850 = vmatprep.subr.mxu0 0.0
    %8851 = vmatpush1.msra.mxu0 0.0
    %8852 = vmatprep.subr.mxu0 0.0
    %8853 = vmatpush1.msra.mxu0 0.0
    %8854 = vmatprep.subr.mxu0 0.0
    %8855 = vmatpush1.msra.mxu0 0.0
    %8856 = vmatprep.subr.mxu0 0.0
    %8857 = vmatpush1.msra.mxu0 0.0
    %8858 = vmatprep.subr.mxu0 0.0
    %8859 = vmatpush1.msra.mxu0 0.0
    %8860 = vmatprep.subr.mxu0 0.0
    %8861 = vmatpush1.msra.mxu0 0.0
    %8862 = vmatprep.subr.mxu0 0.0
    %8863 = vmatpush1.msra.mxu0 %v8837
    %8864 = vmatprep.subr.mxu0 0.0
    %8865 = vmatpush1.msra.mxu0 %v8836
    %8866 = vmatprep.subr.mxu0 0.0
    %8867 = vmatpush1.msra.mxu0 %v8835
    %8868 = vmatprep.subr.mxu0 0.0
    %8869 = vmatpush1.msra.mxu0 %v8834
    %8870 = vmatprep.subr.mxu0 0.0
    %8871 = vmatpush2.msra.mxu0 0.0
    %8872 = vmatprep.subr.mxu0 0.0
    %8873 = vmatpush2.msra.mxu0 0.0
    %8874 = vmatprep.subr.mxu0 0.0
    %8875 = vmatpush2.msra.mxu0 0.0
    %8876 = vmatprep.subr.mxu0 0.0
    %8877 = vmatpush2.msra.mxu0 0.0
    %8878 = vmatprep.subr.mxu0 0.0
    %8879 = vmatpush2.msra.mxu0 0.0
    %8880 = vmatprep.subr.mxu0 0.0
    %8881 = vmatpush2.msra.mxu0 0.0
    %8882 = vmatprep.subr.mxu0 0.0
    %8883 = vmatpush2.msra.mxu0 0.0
    %8884 = vmatprep.subr.mxu0 0.0
    %8885 = vmatpush2.msra.mxu0 0.0
    %8886 = vmatprep.subr.mxu0 0.0
    %8887 = vmatpush2.msra.mxu0 0.0
    %8888 = vmatprep.subr.mxu0 0.0
    %8889 = vmatpush2.msra.mxu0 0.0
    %8890 = vmatprep.subr.mxu0 0.0
    %8891 = vmatpush2.msra.mxu0 0.0
    %8892 = vmatprep.subr.mxu0 0.0
    %8893 = vmatpush2.msra.mxu0 0.0
    %8894 = vmatprep.subr.mxu0 0.0
    %8895 = vmatpush2.msra.mxu0 0.0
    %8896 = vmatprep.subr.mxu0 0.0
    %8897 = vmatpush2.msra.mxu0 0.0
    %8898 = vmatprep.subr.mxu0 0.0
    %8899 = vmatpush2.msra.mxu0 0.0
    %8900 = vmatprep.subr.mxu0 0.0
    %8901 = vmatpush2.msra.mxu0 0.0
    %8902 = vmatprep.mubr.f32.mxu0 0.0
    %8903 = vmatmul.mubr.f32.gmra.mxu0 %v7128
    %v8904 = vpop.f32.mrf.mxu0
    %v8905 = vadd.f32 0.0, %v8904
    %v8906 = vpop.f32.mrf.mxu0
    %8907 = vmatprep.mubr.f32.mxu0 0.0
    %8908 = vmatmul.mubr.f32.gmra.mxu0 %v7131
    %v8909 = vpop.f32.mrf.mxu0
    %v8910 = vadd.f32 0.0, %v8909
    %v8911 = vpop.f32.mrf.mxu0
    %8912 = vdwg.mxu0
    %v8914 = vsel %vm334, %v8745, 0
    %v8917 = vsel %vm334, %v8750, 0
    %v8920 = vsel %vm334, %v8825, 0
    %v8923 = vsel %vm334, %v8830, 0
    %8925 = vmatprep.subr.mxu0 0.0
    %8926 = vmatpush1.xpose.msra.mxu0 0.0
    %8927 = vmatprep.subr.mxu0 0.0
    %8928 = vmatpush1.xpose.msra.mxu0 0.0
    %8929 = vmatprep.subr.mxu0 0.0
    %8930 = vmatpush1.xpose.msra.mxu0 0.0
    %8931 = vmatprep.subr.mxu0 0.0
    %8932 = vmatpush1.xpose.msra.mxu0 0.0
    %8933 = vmatprep.subr.mxu0 0.0
    %8934 = vmatpush1.xpose.msra.mxu0 0.0
    %8935 = vmatprep.subr.mxu0 0.0
    %8936 = vmatpush1.xpose.msra.mxu0 0.0
    %8937 = vmatprep.subr.mxu0 0.0
    %8938 = vmatpush1.xpose.msra.mxu0 0.0
    %8939 = vmatprep.subr.mxu0 0.0
    %8940 = vmatpush1.xpose.msra.mxu0 0.0
    %8941 = vmatprep.subr.mxu0 0.0
    %8942 = vmatpush1.xpose.msra.mxu0 0.0
    %8943 = vmatprep.subr.mxu0 0.0
    %8944 = vmatpush1.xpose.msra.mxu0 0.0
    %8945 = vmatprep.subr.mxu0 0.0
    %8946 = vmatpush1.xpose.msra.mxu0 0.0
    %8947 = vmatprep.subr.mxu0 0.0
    %8948 = vmatpush1.xpose.msra.mxu0 0.0
    %8949 = vmatprep.subr.mxu0 0.0
    %8950 = vmatpush1.xpose.msra.mxu0 0.0
    %8951 = vmatprep.subr.mxu0 0.0
    %8952 = vmatpush1.xpose.msra.mxu0 0.0
    %8953 = vmatprep.subr.mxu0 0.0
    %8954 = vmatpush1.xpose.msra.mxu0 %v8923
    %8955 = vmatprep.subr.mxu0 0.0
    %8956 = vmatpush1.xpose.msra.mxu0 %v8920
    %8957 = vmatprep.subr.mxu0 0.0
    %8958 = vmatpush2.xpose.msra.mxu0 0.0
    %8959 = vmatprep.subr.mxu0 0.0
    %8960 = vmatpush2.xpose.msra.mxu0 0.0
    %8961 = vmatprep.subr.mxu0 0.0
    %8962 = vmatpush2.xpose.msra.mxu0 0.0
    %8963 = vmatprep.subr.mxu0 0.0
    %8964 = vmatpush2.xpose.msra.mxu0 0.0
    %8965 = vmatprep.subr.mxu0 0.0
    %8966 = vmatpush2.xpose.msra.mxu0 0.0
    %8967 = vmatprep.subr.mxu0 0.0
    %8968 = vmatpush2.xpose.msra.mxu0 0.0
    %8969 = vmatprep.subr.mxu0 0.0
    %8970 = vmatpush2.xpose.msra.mxu0 0.0
    %8971 = vmatprep.subr.mxu0 0.0
    %8972 = vmatpush2.xpose.msra.mxu0 0.0
    %8973 = vmatprep.subr.mxu0 0.0
    %8974 = vmatpush2.xpose.msra.mxu0 0.0
    %8975 = vmatprep.subr.mxu0 0.0
    %8976 = vmatpush2.xpose.msra.mxu0 0.0
    %8977 = vmatprep.subr.mxu0 0.0
    %8978 = vmatpush2.xpose.msra.mxu0 0.0
    %8979 = vmatprep.subr.mxu0 0.0
    %8980 = vmatpush2.xpose.msra.mxu0 0.0
    %8981 = vmatprep.subr.mxu0 0.0
    %8982 = vmatpush2.xpose.msra.mxu0 0.0
    %8983 = vmatprep.subr.mxu0 0.0
    %8984 = vmatpush2.xpose.msra.mxu0 0.0
    %8985 = vmatprep.subr.mxu0 0.0
    %8986 = vmatpush2.xpose.msra.mxu0 0.0
    %8987 = vmatprep.subr.mxu0 0.0
    %8988 = vmatpush2.xpose.msra.mxu0 0.0
    %8989 = vmatprep.mubr.f32.mxu0 0.0
    %8990 = vmatmul.mubr.f32.gmra.mxu0 %v8914
    %v8991 = vpop.f32.mrf.mxu0
    %v8992 = vadd.f32 %v46, %v8991
    %v8993 = vpop.f32.mrf.mxu0
    %8994 = vmatprep.mubr.f32.mxu0 0.0
    %8995 = vmatmul.mubr.f32.gmra.mxu0 %v8917
    %v8996 = vpop.f32.mrf.mxu0
    %v8997 = vadd.f32 %v47, %v8996
    %v8998 = vpop.f32.mrf.mxu0
    %8999 = vdwg.mxu0
    %v9000 = vsel %vm422, %v8992, -inf
    %9001 = vmax.xlane.f32.xlu0 %v9000
    %v9002 = vpop.xlane.xlu0 %9001
    %v9003 = vsel %vm422, %v8997, -inf
    %9004 = vmax.xlane.f32.xlu0 %v9003
    %v9005 = vpop.xlane.xlu0 %9004
    %v9006 = vsub.f32 %v8992, %v9002
    %v9007 = vsub.f32 %v8997, %v9005
    %v9008 = vmul.f32 %v9006, 1.442695
    %v9009 = vpow.pop %v9008
    %v9010 = vmul.f32 %v9007, 1.442695
    %v9011 = vpow.pop %v9010
    %v9012 = vsel %vm422, %v9009, 0.0
    %9013 = vadd.xlane.f32.xlu0 %v9012
    %v9014 = vpop.xlane.xlu0 %9013
    %v9015 = vsel %vm422, %v9011, 0.0
    %9016 = vadd.xlane.f32.xlu0 %v9015
    %v9017 = vpop.xlane.xlu0 %9016
    %v9018 = vrcp.pop %v9014
    %v9019 = vrcp.pop %v9017
    %v9020 = vmul.f32 %v9009, %v9018
    %v9021 = vmul.f32 %v9011, %v9019
    %v9023 = vsel %vm422, %v9020, 0
    %v9026 = vsel %vm422, %v9021, 0
    %9028 = vmatprep.subr.mxu0 0.0
    %9029 = vmatpush1.msra.mxu0 0.0
    %9030 = vmatprep.subr.mxu0 0.0
    %9031 = vmatpush1.msra.mxu0 0.0
    %9032 = vmatprep.subr.mxu0 0.0
    %9033 = vmatpush1.msra.mxu0 0.0
    %9034 = vmatprep.subr.mxu0 0.0
    %9035 = vmatpush1.msra.mxu0 0.0
    %9036 = vmatprep.subr.mxu0 0.0
    %9037 = vmatpush1.msra.mxu0 0.0
    %9038 = vmatprep.subr.mxu0 0.0
    %9039 = vmatpush1.msra.mxu0 0.0
    %9040 = vmatprep.subr.mxu0 0.0
    %9041 = vmatpush1.msra.mxu0 0.0
    %9042 = vmatprep.subr.mxu0 0.0
    %9043 = vmatpush1.msra.mxu0 0.0
    %9044 = vmatprep.subr.mxu0 0.0
    %9045 = vmatpush1.msra.mxu0 0.0
    %9046 = vmatprep.subr.mxu0 0.0
    %9047 = vmatpush1.msra.mxu0 0.0
    %9048 = vmatprep.subr.mxu0 0.0
    %9049 = vmatpush1.msra.mxu0 0.0
    %9050 = vmatprep.subr.mxu0 0.0
    %9051 = vmatpush1.msra.mxu0 0.0
    %9052 = vmatprep.subr.mxu0 0.0
    %9053 = vmatpush1.msra.mxu0 0.0
    %9054 = vmatprep.subr.mxu0 0.0
    %9055 = vmatpush1.msra.mxu0 0.0
    %9056 = vmatprep.subr.mxu0 0.0
    %9057 = vmatpush1.msra.mxu0 %v8910
    %9058 = vmatprep.subr.mxu0 0.0
    %9059 = vmatpush1.msra.mxu0 %v8905
    %9060 = vmatprep.subr.mxu0 0.0
    %9061 = vmatpush2.msra.mxu0 0.0
    %9062 = vmatprep.subr.mxu0 0.0
    %9063 = vmatpush2.msra.mxu0 0.0
    %9064 = vmatprep.subr.mxu0 0.0
    %9065 = vmatpush2.msra.mxu0 0.0
    %9066 = vmatprep.subr.mxu0 0.0
    %9067 = vmatpush2.msra.mxu0 0.0
    %9068 = vmatprep.subr.mxu0 0.0
    %9069 = vmatpush2.msra.mxu0 0.0
    %9070 = vmatprep.subr.mxu0 0.0
    %9071 = vmatpush2.msra.mxu0 0.0
    %9072 = vmatprep.subr.mxu0 0.0
    %9073 = vmatpush2.msra.mxu0 0.0
    %9074 = vmatprep.subr.mxu0 0.0
    %9075 = vmatpush2.msra.mxu0 0.0
    %9076 = vmatprep.subr.mxu0 0.0
    %9077 = vmatpush2.msra.mxu0 0.0
    %9078 = vmatprep.subr.mxu0 0.0
    %9079 = vmatpush2.msra.mxu0 0.0
    %9080 = vmatprep.subr.mxu0 0.0
    %9081 = vmatpush2.msra.mxu0 0.0
    %9082 = vmatprep.subr.mxu0 0.0
    %9083 = vmatpush2.msra.mxu0 0.0
    %9084 = vmatprep.subr.mxu0 0.0
    %9085 = vmatpush2.msra.mxu0 0.0
    %9086 = vmatprep.subr.mxu0 0.0
    %9087 = vmatpush2.msra.mxu0 0.0
    %9088 = vmatprep.subr.mxu0 0.0
    %9089 = vmatpush2.msra.mxu0 0.0
    %9090 = vmatprep.subr.mxu0 0.0
    %9091 = vmatpush2.msra.mxu0 0.0
    %9092 = vmatprep.mubr.f32.mxu0 0.0
    %9093 = vmatmul.mubr.f32.gmra.mxu0 %v9023
    %v9094 = vpop.f32.mrf.mxu0
    %v9095 = vadd.f32 0.0, %v9094
    %v9096 = vpop.f32.mrf.mxu0
    %9097 = vmatprep.mubr.f32.mxu0 0.0
    %9098 = vmatmul.mubr.f32.gmra.mxu0 %v9026
    %v9099 = vpop.f32.mrf.mxu0
    %v9100 = vadd.f32 0.0, %v9099
    %v9101 = vpop.f32.mrf.mxu0
    %9102 = vdwg.mxu0
    %s9103 = scalar_lea.vmem %s3, 120
    %v9104 = vld [vmem:[%s9103] sm:$0xff]
    %v9106 = vsel %vm334, %v9095, 0
    %v9109 = vsel %vm334, %v9100, 0
    %9111 = vmatprep.subr.mxu0 0.0
    %9112 = vmatpush1.msra.mxu0 0.0
    %9113 = vmatprep.subr.mxu0 0.0
    %9114 = vmatpush1.msra.mxu0 0.0
    %9115 = vmatprep.subr.mxu0 0.0
    %9116 = vmatpush1.msra.mxu0 0.0
    %9117 = vmatprep.subr.mxu0 0.0
    %9118 = vmatpush1.msra.mxu0 0.0
    %9119 = vmatprep.subr.mxu0 0.0
    %9120 = vmatpush1.msra.mxu0 0.0
    %9121 = vmatprep.subr.mxu0 0.0
    %9122 = vmatpush1.msra.mxu0 0.0
    %9123 = vmatprep.subr.mxu0 0.0
    %9124 = vmatpush1.msra.mxu0 0.0
    %9125 = vmatprep.subr.mxu0 0.0
    %9126 = vmatpush1.msra.mxu0 0.0
    %9127 = vmatprep.subr.mxu0 0.0
    %9128 = vmatpush1.msra.mxu0 0.0
    %9129 = vmatprep.subr.mxu0 0.0
    %9130 = vmatpush1.msra.mxu0 0.0
    %9131 = vmatprep.subr.mxu0 0.0
    %9132 = vmatpush1.msra.mxu0 0.0
    %9133 = vmatprep.subr.mxu0 0.0
    %9134 = vmatpush1.msra.mxu0 0.0
    %9135 = vmatprep.subr.mxu0 0.0
    %9136 = vmatpush1.msra.mxu0 0.0
    %9137 = vmatprep.subr.mxu0 0.0
    %9138 = vmatpush1.msra.mxu0 0.0
    %9139 = vmatprep.subr.mxu0 0.0
    %9140 = vmatpush1.msra.mxu0 0.0
    %9141 = vmatprep.subr.mxu0 0.0
    %9142 = vmatpush1.msra.mxu0 %v9104
    %9143 = vmatprep.subr.mxu0 0.0
    %9144 = vmatpush2.msra.mxu0 0.0
    %9145 = vmatprep.subr.mxu0 0.0
    %9146 = vmatpush2.msra.mxu0 0.0
    %9147 = vmatprep.subr.mxu0 0.0
    %9148 = vmatpush2.msra.mxu0 0.0
    %9149 = vmatprep.subr.mxu0 0.0
    %9150 = vmatpush2.msra.mxu0 0.0
    %9151 = vmatprep.subr.mxu0 0.0
    %9152 = vmatpush2.msra.mxu0 0.0
    %9153 = vmatprep.subr.mxu0 0.0
    %9154 = vmatpush2.msra.mxu0 0.0
    %9155 = vmatprep.subr.mxu0 0.0
    %9156 = vmatpush2.msra.mxu0 0.0
    %9157 = vmatprep.subr.mxu0 0.0
    %9158 = vmatpush2.msra.mxu0 0.0
    %9159 = vmatprep.subr.mxu0 0.0
    %9160 = vmatpush2.msra.mxu0 0.0
    %9161 = vmatprep.subr.mxu0 0.0
    %9162 = vmatpush2.msra.mxu0 0.0
    %9163 = vmatprep.subr.mxu0 0.0
    %9164 = vmatpush2.msra.mxu0 0.0
    %9165 = vmatprep.subr.mxu0 0.0
    %9166 = vmatpush2.msra.mxu0 0.0
    %9167 = vmatprep.subr.mxu0 0.0
    %9168 = vmatpush2.msra.mxu0 0.0
    %9169 = vmatprep.subr.mxu0 0.0
    %9170 = vmatpush2.msra.mxu0 0.0
    %9171 = vmatprep.subr.mxu0 0.0
    %9172 = vmatpush2.msra.mxu0 0.0
    %9173 = vmatprep.subr.mxu0 0.0
    %9174 = vmatpush2.msra.mxu0 0.0
    %9175 = vmatprep.mubr.f32.mxu0 0.0
    %9176 = vmatmul.mubr.f32.gmra.mxu0 %v9106
    %v9177 = vpop.f32.mrf.mxu0
    %v9178 = vadd.f32 0.0, %v9177
    %v9179 = vpop.f32.mrf.mxu0
    %9180 = vmatprep.mubr.f32.mxu0 0.0
    %9181 = vmatmul.mubr.f32.gmra.mxu0 %v9109
    %v9182 = vpop.f32.mrf.mxu0
    %v9183 = vadd.f32 0.0, %v9182
    %v9184 = vpop.f32.mrf.mxu0
    %9185 = vdwg.mxu0
    %v9186 = vadd.f32 %v8671, %v9178
    %v9187 = vadd.f32 %v8672, %v9183
    %v9188 = vsel %vm49, %v9186, 0.0
    %9189 = vadd.xlane.f32.xlu0 %v9188
    %v9190 = vpop.xlane.xlu0 %9189
    %v9191 = vsel %vm49, %v9187, 0.0
    %9192 = vadd.xlane.f32.xlu0 %v9191
    %v9193 = vpop.xlane.xlu0 %9192
    %v9194 = vmul.f32 %v9190, %v56
    %v9195 = vmul.f32 %v9193, %v56
    %v9196 = vsub.f32 %v9186, %v9194
    %v9197 = vsub.f32 %v9187, %v9195
    %v9198 = vmul.f32 %v9196, %v9196
    %v9199 = vmul.f32 %v9197, %v9197
    %v9200 = vsel %vm49, %v9198, 0.0
    %9201 = vadd.xlane.f32.xlu0 %v9200
    %v9202 = vpop.xlane.xlu0 %9201
    %v9203 = vsel %vm49, %v9199, 0.0
    %9204 = vadd.xlane.f32.xlu0 %v9203
    %v9205 = vpop.xlane.xlu0 %9204
    %v9206 = vmul.f32 %v9202, %v56
    %v9207 = vmul.f32 %v9205, %v56
    %v9208 = vadd.f32 %v9206, 1e-05
    %v9209 = vadd.f32 %v9207, 1e-05
    %v9210 = vrsqrt.pop %v9208
    %v9211 = vrsqrt.pop %v9209
    %v9212 = vmul.f32 %v9196, %v9210
    %v9213 = vmul.f32 %v9197, %v9211
    %v9214 = vlaneseq
    %v9215 = vshrl.u32 %v9214, 7
    %v9216 = vsub.s32 2, %v9215
    %v9217 = vrot.slane %v7083, %v9216
    %v9218 = vmul.f32 %v9212, %v9217
    %v9219 = vmul.f32 %v9213, %v9217
    %v9220 = vlaneseq
    %v9221 = vshrl.u32 %v9220, 7
    %v9222 = vsub.s32 3, %v9221
    %v9223 = vrot.slane %v7083, %v9222
    %v9224 = vadd.f32 %v9218, %v9223
    %v9225 = vadd.f32 %v9219, %v9223
    %s9226 = scalar_lea.vmem %s4, 96
    %v9227 = vld [vmem:[%s9226] sm:$0xff]
    %v9228 = vld [vmem:[%s9226 + $0x8] sm:$0xff]
    %v9229 = vld [vmem:[%s9226 + $0x10] sm:$0xff]
    %v9230 = vld [vmem:[%s9226 + $0x18] sm:$0xff]
    %v9231 = vld [vmem:[%s6 + $0x3] sm:$0x1]
    %v9232 = vlaneseq
    %v9233 = vshrl.u32 %v9232, 7
    %v9234 = vsub.s32 0, %v9233
    %v9235 = vrot.slane %v9231, %v9234
    %v9237 = vsel %vm49, %v9224, 0
    %v9240 = vsel %vm49, %v9225, 0
    %9242 = vmatprep.subr.mxu0 0.0
    %9243 = vmatpush1.msra.mxu0 0.0
    %9244 = vmatprep.subr.mxu0 0.0
    %9245 = vmatpush1.msra.mxu0 0.0
    %9246 = vmatprep.subr.mxu0 0.0
    %9247 = vmatpush1.msra.mxu0 0.0
    %9248 = vmatprep.subr.mxu0 0.0
    %9249 = vmatpush1.msra.mxu0 0.0
    %9250 = vmatprep.subr.mxu0 0.0
    %9251 = vmatpush1.msra.mxu0 0.0
    %9252 = vmatprep.subr.mxu0 0.0
    %9253 = vmatpush1.msra.mxu0 0.0
    %9254 = vmatprep.subr.mxu0 0.0
    %9255 = vmatpush1.msra.mxu0 0.0
    %9256 = vmatprep.subr.mxu0 0.0
    %9257 = vmatpush1.msra.mxu0 0.0
    %9258 = vmatprep.subr.mxu0 0.0
    %9259 = vmatpush1.msra.mxu0 0.0
    %9260 = vmatprep.subr.mxu0 0.0
    %9261 = vmatpush1.msra.mxu0 0.0
    %9262 = vmatprep.subr.mxu0 0.0
    %9263 = vmatpush1.msra.mxu0 0.0
    %9264 = vmatprep.subr.mxu0 0.0
    %9265 = vmatpush1.msra.mxu0 0.0
    %9266 = vmatprep.subr.mxu0 0.0
    %9267 = vmatpush1.msra.mxu0 %v9230
    %9268 = vmatprep.subr.mxu0 0.0
    %9269 = vmatpush1.msra.mxu0 %v9229
    %9270 = vmatprep.subr.mxu0 0.0
    %9271 = vmatpush1.msra.mxu0 %v9228
    %9272 = vmatprep.subr.mxu0 0.0
    %9273 = vmatpush1.msra.mxu0 %v9227
    %9274 = vmatprep.subr.mxu0 0.0
    %9275 = vmatpush2.msra.mxu0 0.0
    %9276 = vmatprep.subr.mxu0 0.0
    %9277 = vmatpush2.msra.mxu0 0.0
    %9278 = vmatprep.subr.mxu0 0.0
    %9279 = vmatpush2.msra.mxu0 0.0
    %9280 = vmatprep.subr.mxu0 0.0
    %9281 = vmatpush2.msra.mxu0 0.0
    %9282 = vmatprep.subr.mxu0 0.0
    %9283 = vmatpush2.msra.mxu0 0.0
    %9284 = vmatprep.subr.mxu0 0.0
    %9285 = vmatpush2.msra.mxu0 0.0
    %9286 = vmatprep.subr.mxu0 0.0
    %9287 = vmatpush2.msra.mxu0 0.0
    %9288 = vmatprep.subr.mxu0 0.0
    %9289 = vmatpush2.msra.mxu0 0.0
    %9290 = vmatprep.subr.mxu0 0.0
    %9291 = vmatpush2.msra.mxu0 0.0
    %9292 = vmatprep.subr.mxu0 0.0
    %9293 = vmatpush2.msra.mxu0 0.0
    %9294 = vmatprep.subr.mxu0 0.0
    %9295 = vmatpush2.msra.mxu0 0.0
    %9296 = vmatprep.subr.mxu0 0.0
    %9297 = vmatpush2.msra.mxu0 0.0
    %9298 = vmatprep.subr.mxu0 0.0
    %9299 = vmatpush2.msra.mxu0 0.0
    %9300 = vmatprep.subr.mxu0 0.0
    %9301 = vmatpush2.msra.mxu0 0.0
    %9302 = vmatprep.subr.mxu0 0.0
    %9303 = vmatpush2.msra.mxu0 0.0
    %9304 = vmatprep.subr.mxu0 0.0
    %9305 = vmatpush2.msra.mxu0 0.0
    %9306 = vmatprep.mubr.f32.mxu0 0.0
    %9307 = vmatmul.mubr.f32.gmra.mxu0 %v9237
    %v9308 = vpop.f32.mrf.mxu0
    %v9309 = vadd.f32 %v9235, %v9308
    %v9310 = vpop.f32.mrf.mxu0
    %9311 = vmatprep.mubr.f32.mxu0 0.0
    %9312 = vmatmul.mubr.f32.gmra.mxu0 %v9240
    %v9313 = vpop.f32.mrf.mxu0
    %v9314 = vadd.f32 %v9235, %v9313
    %v9315 = vpop.f32.mrf.mxu0
    %9316 = vdwg.mxu0
    %v9317 = vmul.f32 %v9309, 0.5
    %v9318 = vmul.f32 %v9314, 0.5
    %v9319 = vmul.f32 %v9309, 0.70710677
    %v9320 = vmul.f32 %v9314, 0.70710677
    %v9321 = verf.f32.pop %v9319
    %v9322 = verf.f32.pop %v9320
    %v9323 = vadd.f32 %v9321, 1.0
    %v9324 = vadd.f32 %v9322, 1.0
    %v9325 = vmul.f32 %v9317, %v9323
    %v9326 = vmul.f32 %v9318, %v9324
    %s9327 = scalar_lea.vmem %s5, 384
    %v9328 = vld [vmem:[%s9327] sm:$0xff]
    %v9329 = vld [vmem:[%s9327 + $0x8] sm:$0xff]
    %v9330 = vld [vmem:[%s9327 + $0x10] sm:$0xff]
    %v9331 = vld [vmem:[%s9327 + $0x18] sm:$0xff]
    %v9332 = vld [vmem:[%s9327 + $0x20] sm:$0xff]
    %v9333 = vld [vmem:[%s9327 + $0x28] sm:$0xff]
    %v9334 = vld [vmem:[%s9327 + $0x30] sm:$0xff]
    %v9335 = vld [vmem:[%s9327 + $0x38] sm:$0xff]
    %v9336 = vld [vmem:[%s9327 + $0x40] sm:$0xff]
    %v9337 = vld [vmem:[%s9327 + $0x48] sm:$0xff]
    %v9338 = vld [vmem:[%s9327 + $0x50] sm:$0xff]
    %v9339 = vld [vmem:[%s9327 + $0x58] sm:$0xff]
    %v9340 = vld [vmem:[%s9327 + $0x60] sm:$0xff]
    %v9341 = vld [vmem:[%s9327 + $0x68] sm:$0xff]
    %v9342 = vld [vmem:[%s9327 + $0x70] sm:$0xff]
    %v9343 = vld [vmem:[%s9327 + $0x78] sm:$0xff]
    %9344 = vmatprep.subr.mxu0 0.0
    %9345 = vmatpush1.msra.mxu0 %v9343
    %9346 = vmatprep.subr.mxu0 0.0
    %9347 = vmatpush1.msra.mxu0 %v9342
    %9348 = vmatprep.subr.mxu0 0.0
    %9349 = vmatpush1.msra.mxu0 %v9341
    %9350 = vmatprep.subr.mxu0 0.0
    %9351 = vmatpush1.msra.mxu0 %v9340
    %9352 = vmatprep.subr.mxu0 0.0
    %9353 = vmatpush1.msra.mxu0 %v9339
    %9354 = vmatprep.subr.mxu0 0.0
    %9355 = vmatpush1.msra.mxu0 %v9338
    %9356 = vmatprep.subr.mxu0 0.0
    %9357 = vmatpush1.msra.mxu0 %v9337
    %9358 = vmatprep.subr.mxu0 0.0
    %9359 = vmatpush1.msra.mxu0 %v9336
    %9360 = vmatprep.subr.mxu0 0.0
    %9361 = vmatpush1.msra.mxu0 %v9335
    %9362 = vmatprep.subr.mxu0 0.0
    %9363 = vmatpush1.msra.mxu0 %v9334
    %9364 = vmatprep.subr.mxu0 0.0
    %9365 = vmatpush1.msra.mxu0 %v9333
    %9366 = vmatprep.subr.mxu0 0.0
    %9367 = vmatpush1.msra.mxu0 %v9332
    %9368 = vmatprep.subr.mxu0 0.0
    %9369 = vmatpush1.msra.mxu0 %v9331
    %9370 = vmatprep.subr.mxu0 0.0
    %9371 = vmatpush1.msra.mxu0 %v9330
    %9372 = vmatprep.subr.mxu0 0.0
    %9373 = vmatpush1.msra.mxu0 %v9329
    %9374 = vmatprep.subr.mxu0 0.0
    %9375 = vmatpush1.msra.mxu0 %v9328
    %9376 = vmatprep.subr.mxu0 0.0
    %9377 = vmatpush2.msra.mxu0 0.0
    %9378 = vmatprep.subr.mxu0 0.0
    %9379 = vmatpush2.msra.mxu0 0.0
    %9380 = vmatprep.subr.mxu0 0.0
    %9381 = vmatpush2.msra.mxu0 0.0
    %9382 = vmatprep.subr.mxu0 0.0
    %9383 = vmatpush2.msra.mxu0 0.0
    %9384 = vmatprep.subr.mxu0 0.0
    %9385 = vmatpush2.msra.mxu0 0.0
    %9386 = vmatprep.subr.mxu0 0.0
    %9387 = vmatpush2.msra.mxu0 0.0
    %9388 = vmatprep.subr.mxu0 0.0
    %9389 = vmatpush2.msra.mxu0 0.0
    %9390 = vmatprep.subr.mxu0 0.0
    %9391 = vmatpush2.msra.mxu0 0.0
    %9392 = vmatprep.subr.mxu0 0.0
    %9393 = vmatpush2.msra.mxu0 0.0
    %9394 = vmatprep.subr.mxu0 0.0
    %9395 = vmatpush2.msra.mxu0 0.0
    %9396 = vmatprep.subr.mxu0 0.0
    %9397 = vmatpush2.msra.mxu0 0.0
    %9398 = vmatprep.subr.mxu0 0.0
    %9399 = vmatpush2.msra.mxu0 0.0
    %9400 = vmatprep.subr.mxu0 0.0
    %9401 = vmatpush2.msra.mxu0 0.0
    %9402 = vmatprep.subr.mxu0 0.0
    %9403 = vmatpush2.msra.mxu0 0.0
    %9404 = vmatprep.subr.mxu0 0.0
    %9405 = vmatpush2.msra.mxu0 0.0
    %9406 = vmatprep.subr.mxu0 0.0
    %9407 = vmatpush2.msra.mxu0 0.0
    %9408 = vmatprep.mubr.f32.mxu0 0.0
    %9409 = vmatmul.mubr.f32.gmra.mxu0 %v9325
    %v9410 = vpop.f32.mrf.mxu0
    %v9411 = vadd.f32 0.0, %v9410
    %v9412 = vpop.f32.mrf.mxu0
    %9413 = vmatprep.mubr.f32.mxu0 0.0
    %9414 = vmatmul.mubr.f32.gmra.mxu0 %v9326
    %v9415 = vpop.f32.mrf.mxu0
    %v9416 = vadd.f32 0.0, %v9415
    %v9417 = vpop.f32.mrf.mxu0
    %9418 = vdwg.mxu0
    %v9419 = vadd.f32 %v9186, %v9411
    %v9420 = vadd.f32 %v9187, %v9416
    %v9421 = vlaneseq
    %v9422 = vshrl.u32 %v9421, 7
    %v9423 = vsub.s32 4, %v9422
    %v9424 = vrot.slane %v7083, %v9423
    %v9425 = vadd.f32 %v9419, %v9424
    %v9426 = vadd.f32 %v9420, %v9424
    %v9427 = vld [vmem:[%s7] sm:$0xff]
    %v9428 = vld [vmem:[%s7 + $0x8] sm:$0xff]
    %v9429 = vld [vmem:[%s7 + $0x10] sm:$0xff]
    %v9430 = vld [vmem:[%s7 + $0x18] sm:$0xff]
    %v9431 = vld [vmem:[%s6 + $0x4] sm:$0x1]
    %v9432 = vlaneseq
    %v9433 = vshrl.u32 %v9432, 7
    %v9434 = vsub.s32 0, %v9433
    %v9435 = vrot.slane %v9431, %v9434
    %v9437 = vsel %vm49, %v9425, 0
    %v9440 = vsel %vm49, %v9426, 0
    %9442 = vmatprep.subr.mxu0 0.0
    %9443 = vmatpush1.msra.mxu0 0.0
    %9444 = vmatprep.subr.mxu0 0.0
    %9445 = vmatpush1.msra.mxu0 0.0
    %9446 = vmatprep.subr.mxu0 0.0
    %9447 = vmatpush1.msra.mxu0 0.0
    %9448 = vmatprep.subr.mxu0 0.0
    %9449 = vmatpush1.msra.mxu0 0.0
    %9450 = vmatprep.subr.mxu0 0.0
    %9451 = vmatpush1.msra.mxu0 0.0
    %9452 = vmatprep.subr.mxu0 0.0
    %9453 = vmatpush1.msra.mxu0 0.0
    %9454 = vmatprep.subr.mxu0 0.0
    %9455 = vmatpush1.msra.mxu0 0.0
    %9456 = vmatprep.subr.mxu0 0.0
    %9457 = vmatpush1.msra.mxu0 0.0
    %9458 = vmatprep.subr.mxu0 0.0
    %9459 = vmatpush1.msra.mxu0 0.0
    %9460 = vmatprep.subr.mxu0 0.0
    %9461 = vmatpush1.msra.mxu0 0.0
    %9462 = vmatprep.subr.mxu0 0.0
    %9463 = vmatpush1.msra.mxu0 0.0
    %9464 = vmatprep.subr.mxu0 0.0
    %9465 = vmatpush1.msra.mxu0 0.0
    %9466 = vmatprep.subr.mxu0 0.0
    %9467 = vmatpush1.msra.mxu0 %v9430
    %9468 = vmatprep.subr.mxu0 0.0
    %9469 = vmatpush1.msra.mxu0 %v9429
    %9470 = vmatprep.subr.mxu0 0.0
    %9471 = vmatpush1.msra.mxu0 %v9428
    %9472 = vmatprep.subr.mxu0 0.0
    %9473 = vmatpush1.msra.mxu0 %v9427
    %9474 = vmatprep.subr.mxu0 0.0
    %9475 = vmatpush2.msra.mxu0 0.0
    %9476 = vmatprep.subr.mxu0 0.0
    %9477 = vmatpush2.msra.mxu0 0.0
    %9478 = vmatprep.subr.mxu0 0.0
    %9479 = vmatpush2.msra.mxu0 0.0
    %9480 = vmatprep.subr.mxu0 0.0
    %9481 = vmatpush2.msra.mxu0 0.0
    %9482 = vmatprep.subr.mxu0 0.0
    %9483 = vmatpush2.msra.mxu0 0.0
    %9484 = vmatprep.subr.mxu0 0.0
    %9485 = vmatpush2.msra.mxu0 0.0
    %9486 = vmatprep.subr.mxu0 0.0
    %9487 = vmatpush2.msra.mxu0 0.0
    %9488 = vmatprep.subr.mxu0 0.0
    %9489 = vmatpush2.msra.mxu0 0.0
    %9490 = vmatprep.subr.mxu0 0.0
    %9491 = vmatpush2.msra.mxu0 0.0
    %9492 = vmatprep.subr.mxu0 0.0
    %9493 = vmatpush2.msra.mxu0 0.0
    %9494 = vmatprep.subr.mxu0 0.0
    %9495 = vmatpush2.msra.mxu0 0.0
    %9496 = vmatprep.subr.mxu0 0.0
    %9497 = vmatpush2.msra.mxu0 0.0
    %9498 = vmatprep.subr.mxu0 0.0
    %9499 = vmatpush2.msra.mxu0 0.0
    %9500 = vmatprep.subr.mxu0 0.0
    %9501 = vmatpush2.msra.mxu0 0.0
    %9502 = vmatprep.subr.mxu0 0.0
    %9503 = vmatpush2.msra.mxu0 0.0
    %9504 = vmatprep.subr.mxu0 0.0
    %9505 = vmatpush2.msra.mxu0 0.0
    %9506 = vmatprep.mubr.f32.mxu0 0.0
    %9507 = vmatmul.mubr.f32.gmra.mxu0 %v9437
    %v9508 = vpop.f32.mrf.mxu0
    %v9509 = vadd.f32 %v9435, %v9508
    %v9510 = vpop.f32.mrf.mxu0
    %9511 = vmatprep.mubr.f32.mxu0 0.0
    %9512 = vmatmul.mubr.f32.gmra.mxu0 %v9440
    %v9513 = vpop.f32.mrf.mxu0
    %v9514 = vadd.f32 %v9435, %v9513
    %v9515 = vpop.f32.mrf.mxu0
    %9516 = vdwg.mxu0
    %9517 = vst [vmem:[#allocation2] sm:$0xff] %v9509
    %9518 = vst [vmem:[#allocation2 + $0x8] sm:$0xff] %v9514
    // Predicated region
    $region34: #{tpu_custom_call.1} parent=1 // pred_check
      _
    $region35: #{tpu_custom_call.1} parent=1 // pred_check_branch
      %9520 = sbr.rel (0) target = $region37
    $region36: #{tpu_custom_call.1} parent=1 // pred_region
      %s9522 = ssub.s32 256, 256
      %9523 = vsyncadd [#allocation3], %s9522
      %s9524 = sshll.u32 [#allocation2], 4
      %s9525 = int_to_ptr.vmem [resolvable:$true] %s9524
      %9530 = dma.vmem_to_hbm [thread:$0]  %s9525, 256, %s8, [#allocation3], 128, 128, 8
    $region37: #{tpu_custom_call.1} parent=1 // pred_fallthru
      _
    // Predicated region
    $region38: #{tpu_custom_call.1} parent=1 // pred_check
      _
    $region39: #{tpu_custom_call.1} parent=1 // pred_check_branch
      %9532 = sbr.rel (0) target = $region41
    $region40: #{tpu_custom_call.1} parent=1 // pred_region
      %9533 = dma.done [#allocation3], 256
    $region41: #{tpu_custom_call.1} parent=1 // pred_fallthru
      _
    %9534 = vsyncpa [#allocation3], 1

</llo_original>
